<compile_context>
chip_gen: v5e
topology: v5e:2x2
jax: 0.10.0
libtpu: 0.0.40
codegen_flags: <defaults>
</compile_context>

<pallas_src>
from functools import partial

import numpy as np
import jax
import jax.numpy as jnp
from jax import lax
from jax.experimental import pallas as pl
from jax.experimental.pallas import tpu as pltpu

LN_EPS = 1e-5
_COMPUTE_DTYPE = jnp.bfloat16   # MXU input dtype; accumulation is always f32

_PARAM_ORDER = [
    "ln1_g", "ln1_b", "wqkv1", "wo1", "bo1",
    "ln2_g", "ln2_b", "wq2", "wkv2", "wo2", "bo2",
    "wqe", "wkve", "woe", "boe",
    "ln3_g", "ln3_b", "wff1", "bff1", "wff2", "bff2",
]


def _gelu_tanh(x):
    # TODO(synk): diffusers GEGLU uses exact (erf) GELU; tanh approximation is used
    # here because erf lowering inside Mosaic is not guaranteed on all jax versions.
    c = np.float32(np.sqrt(2.0 / np.pi))
    return 0.5 * x * (1.0 + jnp.tanh(c * (x + 0.044715 * x * x * x)))


def _round_up(x, m):
    return ((x + m - 1) // m) * m


def _pick_vmem_limit_bytes():
    # v5e/v6e: 128 MiB physical VMEM -> cap ~96 MiB; v7x: 64 MiB -> cap ~48 MiB.
    try:
        cap = int(pltpu.get_tpu_info().vmem_capacity_bytes)
    except Exception:
        cap = 0
    if cap <= 0:
        return 64 * 1024 * 1024          # conservative default, safe on all gens
    return int(min(96 * 1024 * 1024, cap * 3 // 4))


def make_block_kernel(num_heads, head_dim, s_enc_valid, s_expr_valid, d_ff):
    H, hd = num_heads, head_dim
    inner = H * hd
    cdt = _COMPUTE_DTYPE

    def kernel(hs_ref, enc_ref, expr_ref,
               ln1_g, ln1_b, wqkv1, wo1, bo1,
               ln2_g, ln2_b, wq2, wkv2, wo2, bo2,
               wqe, wkve, woe, boe,
               ln3_g, ln3_b, wff1, bff1, wff2, bff2,
               out_ref):

        def layernorm(x, g_ref, b_ref):
            mu = jnp.mean(x, axis=-1, keepdims=True)
            xc = x - mu
            var = jnp.mean(xc * xc, axis=-1, keepdims=True)
            return xc * lax.rsqrt(var + LN_EPS) * g_ref[...] + b_ref[...]

        def attend(q, k, v, wo_ref, bo_ref, kv_valid):
            # q: (Sq, inner), k/v: (Skv, inner); softmax scale folded into Q weights.
            # Heads processed via a static loop over lane slices (no (H,Sq,hd) stack,
            # no (H,Sq,D) f32 intermediate); only one (Sq,Skv) f32 score tile live at
            # a time; merged heads feed one K=inner output-projection matmul.
            kv_len = k.shape[0]
            if kv_valid < kv_len:
                # Additive bias depends only on the key index: one (1, Skv) row,
                # broadcast over query rows inside every head.
                key_idx = lax.broadcasted_iota(jnp.int32, (1, kv_len), 1)
                bias = jnp.where(key_idx < kv_valid,
                                 jnp.float32(0.0), jnp.float32(-1e30))
            else:
                bias = None
            qc, kc, vc = q.astype(cdt), k.astype(cdt), v.astype(cdt)
            head_outs = []
            # TODO(synk): K = head_dim (=32) contractions underfill the MXU; raising
            # the effective contraction depth needs model-level head grouping.
            for h in range(H):
                sl = slice(h * hd, (h + 1) * hd)
                s = jnp.einsum('qd,kd->qk', qc[:, sl], kc[:, sl],
                               preferred_element_type=jnp.float32)
                if bias is not None:
                    s = s + bias
                s = s - jnp.max(s, axis=-1, keepdims=True)
                p = jnp.exp(s)
                p = p * pl.reciprocal(jnp.sum(p, axis=-1, keepdims=True), approx=True)
                head_outs.append(jnp.dot(p.astype(cdt), vc[:, sl],
                                         preferred_element_type=jnp.float32))
            merged = jnp.concatenate(head_outs, axis=-1).astype(cdt)      # (Sq, inner)
            return (jnp.dot(merged, wo_ref[...], preferred_element_type=jnp.float32)
                    + bo_ref[...])

        x = hs_ref[0].astype(jnp.float32)     # (S, D) residual stream, kept in f32
        enc = enc_ref[0]                      # (S_enc_pad, C)
        expr = expr_ref[0]                    # (S_expr_pad, C)
        S = x.shape[0]

        # 1) self-attention, fused QKV projection (K = D, N = 3*inner on the MXU)
        y = layernorm(x, ln1_g, ln1_b)
        qkv = jnp.dot(y.astype(cdt), wqkv1[...], preferred_element_type=jnp.float32)
        x = attend(qkv[:, :inner], qkv[:, inner:2 * inner], qkv[:, 2 * inner:],
                   wo1, bo1, kv_valid=S) + x

        # 2) cross-attention over encoder_hidden_states (fused KV projection)
        y = layernorm(x, ln2_g, ln2_b)
        q = jnp.dot(y.astype(cdt), wq2[...], preferred_element_type=jnp.float32)
        kv = jnp.dot(enc.astype(cdt), wkv2[...], preferred_element_type=jnp.float32)
        x = attend(q, kv[:, :inner], kv[:, inner:], wo2, bo2,
                   kv_valid=s_enc_valid) + x

        # 3) expression cross-attention; query is the UN-normalized hidden state
        #    (matches the PyTorch module: _expression_attention(hidden_states, ...)).
        q = jnp.dot(x.astype(cdt), wqe[...], preferred_element_type=jnp.float32)
        kv = jnp.dot(expr.astype(cdt), wkve[...], preferred_element_type=jnp.float32)
        x = attend(q, kv[:, :inner], kv[:, inner:], woe, boe,
                   kv_valid=s_expr_valid) + x

        # 4) feed-forward (GEGLU): one wide (D, 2*d_ff) matmul, then a 128-aligned
        #    lane slice at the d_ff boundary (value | gate).
        y = layernorm(x, ln3_g, ln3_b).astype(cdt)
        hgl = jnp.dot(y, wff1[...], preferred_element_type=jnp.float32) + bff1[...]
        act = (hgl[:, :d_ff] * _gelu_tanh(hgl[:, d_ff:])).astype(cdt)
        x = jnp.dot(act, wff2[...], preferred_element_type=jnp.float32) + bff2[...] + x

        out_ref[0] = x.astype(out_ref.dtype)

    return kernel


def prepare_params(raw, num_heads, head_dim):
    """One-time weight preparation — call at parameter-load time, NOT per forward.

    Fuses QKV / KV projection weights, folds the 1/sqrt(head_dim) softmax scale into
    the Q weights and downcasts all matmul weights to bf16 (LN / bias stay f32).
    """
    del num_heads
    scale = np.float32(1.0 / np.sqrt(head_dim))
    f32, bf16 = jnp.float32, _COMPUTE_DTYPE
    return {
        "ln1_g": raw["ln1_g"].astype(f32), "ln1_b": raw["ln1_b"].astype(f32),
        "wqkv1": jnp.concatenate([raw["wq1"] * scale, raw["wk1"], raw["wv1"]],
                                 axis=1).astype(bf16),
        "wo1": raw["wo1"].astype(bf16), "bo1": raw["bo1"].astype(f32),
        "ln2_g": raw["ln2_g"].astype(f32), "ln2_b": raw["ln2_b"].astype(f32),
        "wq2": (raw["wq2"] * scale).astype(bf16),
        "wkv2": jnp.concatenate([raw["wk2"], raw["wv2"]], axis=1).astype(bf16),
        "wo2": raw["wo2"].astype(bf16), "bo2": raw["bo2"].astype(f32),
        "wqe": (raw["wqe"] * scale).astype(bf16),
        "wkve": jnp.concatenate([raw["wke"], raw["wve"]], axis=1).astype(bf16),
        "woe": raw["woe"].astype(bf16), "boe": raw["boe"].astype(f32),
        "ln3_g": raw["ln3_g"].astype(f32), "ln3_b": raw["ln3_b"].astype(f32),
        "wff1": raw["wff1"].astype(bf16), "bff1": raw["bff1"].astype(f32),
        "wff2": raw["wff2"].astype(bf16), "bff2": raw["bff2"].astype(f32),
    }


@partial(jax.jit, static_argnames=("num_heads", "head_dim"))
def expression_attention_transformer_block(hidden_states, encoder_hidden_states,
                                           expression_codes, params, *,
                                           num_heads, head_dim):
    """Fused forward pass.  `params` must come from prepare_params() (one-time)."""
    B, S, D = hidden_states.shape
    C = encoder_hidden_states.shape[-1]
    H, hd = num_heads, head_dim
    inner = H * hd
    d_ff = params["wff2"].shape[0]
    s_enc, s_expr = encoder_hidden_states.shape[1], expression_codes.shape[1]

    # Lane-dense KV: pad cross/expression key-value sequences to a multiple of 128.
    # Padded keys get an additive -1e30 bias inside the kernel (softmax weight 0).
    kv_e = _round_up(max(s_enc, 1), 128)
    kv_x = _round_up(max(s_expr, 1), 128)
    enc_p = jnp.pad(encoder_hidden_states, ((0, 0), (0, kv_e - s_enc), (0, 0)))
    expr_p = jnp.pad(expression_codes, ((0, 0), (0, kv_x - s_expr), (0, 0)))

    weights = [params[name] for name in _PARAM_ORDER]

    def full_spec(a):
        # Grid-invariant weight block (whole array, constant index map).
        # TODO(synk): on v7x (64 MiB VMEM) add pipeline_mode=pl.Buffered(1) here to
        # single-buffer grid-invariant weights once that option is available in the
        # deployment JAX version (halves the resident weight footprint).
        return pl.BlockSpec(a.shape, lambda b, _n=a.ndim: (0,) * _n)

    in_specs = [
        pl.BlockSpec((1, S, D), lambda b: (b, 0, 0)),
        pl.BlockSpec((1, kv_e, C), lambda b: (b, 0, 0)),
        pl.BlockSpec((1, kv_x, C), lambda b: (b, 0, 0)),
    ] + [full_spec(w) for w in weights]
    out_spec = pl.BlockSpec((1, S, D), lambda b: (b, 0, 0))

    kernel = make_block_kernel(num_heads, head_dim, s_enc, s_expr, d_ff)

    # Advisory cost estimate so XLA schedules around this long fused custom call.
    macs = (S * D * 3 * inner + 2 * H * S * S * hd + S * inner * D                   # self
            + S * D * inner + kv_e * C * 2 * inner + 2 * H * S * kv_e * hd + S * inner * D
            + S * D * inner + kv_x * C * 2 * inner + 2 * H * S * kv_x * hd + S * inner * D
            + S * D * 2 * d_ff + S * d_ff * D)                                       # ff
    flops = 2 * macs * B
    trans = B * (H * S * (S + kv_e + kv_x) + S * d_ff)
    ins = [hidden_states, enc_p, expr_p] + weights
    bytes_accessed = (sum(int(np.prod(a.shape)) * a.dtype.itemsize for a in ins)
                      + B * S * D * hidden_states.dtype.itemsize)

    # TODO(synk): for very long token sequences on v7x, add a query-tile grid axis
    # over S with an online-softmax (flash) self-attention inner loop so the score
    # and GEGLU intermediates stay within the 64 MiB VMEM budget.
    return pl.pallas_call(
        kernel,
        out_shape=jax.ShapeDtypeStruct((B, S, D), hidden_states.dtype),
        grid_spec=pltpu.PrefetchScalarGridSpec(
            num_scalar_prefetch=0,
            grid=(B,),
            in_specs=in_specs,
            out_specs=out_spec,
        ),
        compiler_params=pltpu.CompilerParams(
            dimension_semantics=("parallel",),
            vmem_limit_bytes=_pick_vmem_limit_bytes()),
        cost_estimate=pl.CostEstimate(flops=int(flops), transcendentals=int(trans),
                                      bytes_accessed=int(bytes_accessed)),
    )(hidden_states, enc_p, expr_p, *weights)


# ----------------------- pure-JAX reference (for verification) -----------------------
def reference(hs, enc, expr, p, num_heads, head_dim):
    def ln(x, g, b):
        mu = x.mean(-1, keepdims=True)
        var = ((x - mu) ** 2).mean(-1, keepdims=True)
        return (x - mu) / jnp.sqrt(var + LN_EPS) * g + b

    def mha(q_in, kv_in, wq, wk, wv, wo, bo):
        q = q_in @ wq
        k = kv_in @ wk
        v = kv_in @ wv

        def split(t):
            return t.reshape(t.shape[0], t.shape[1], num_heads, head_dim).transpose(0, 2, 1, 3)

        qh, kh, vh = split(q), split(k), split(v)
        s = jnp.einsum("bhqd,bhkd->bhqk", qh, kh) / np.sqrt(head_dim)
        a = jax.nn.softmax(s, axis=-1)
        o = jnp.einsum("bhqk,bhkd->bhqd", a, vh)
        o = o.transpose(0, 2, 1, 3).reshape(q.shape)
        return o @ wo + bo

    x = hs
    y = ln(x, p["ln1_g"], p["ln1_b"])
    x = mha(y, y, p["wq1"], p["wk1"], p["wv1"], p["wo1"], p["bo1"]) + x
    y = ln(x, p["ln2_g"], p["ln2_b"])
    x = mha(y, enc, p["wq2"], p["wk2"], p["wv2"], p["wo2"], p["bo2"]) + x
    x = mha(x, expr, p["wqe"], p["wke"], p["wve"], p["woe"], p["boe"]) + x
    y = ln(x, p["ln3_g"], p["ln3_b"])
    h = y @ p["wff1"] + p["bff1"]
    d_ff = p["wff2"].shape[0]
    hval, gate = h[..., :d_ff], h[..., d_ff:]
    x = (hval * _gelu_tanh(gate)) @ p["wff2"] + p["bff2"] + x
    return x


if __name__ == "__main__":
    # Small shapes consistent with the module's forward semantics, chosen lane-friendly.
    B, S, D = 2, 128, 128             # batch, tokens, dim
    num_heads, head_dim = 4, 32       # inner_dim = 128 == dim
    inner = num_heads * head_dim
    cross_dim = 64                    # cross_attention_dim
    S_enc, S_expr = 8, 8              # short KV sequences (padded to 128 in the wrapper)
    d_ff = 4 * D

    key = jax.random.PRNGKey(0)
    keys = jax.random.split(key, 24)

    def w(k, shape, scl=0.05):
        return (scl * jax.random.normal(k, shape)).astype(jnp.float32)

    raw_params = {
        "ln1_g": jnp.ones((1, D), jnp.float32), "ln1_b": jnp.zeros((1, D), jnp.float32),
        "wq1": w(keys[0], (D, inner)), "wk1": w(keys[1], (D, inner)),
        "wv1": w(keys[2], (D, inner)), "wo1": w(keys[3], (inner, D)),
        "bo1": w(keys[4], (1, D)),
        "ln2_g": jnp.ones((1, D), jnp.float32), "ln2_b": jnp.zeros((1, D), jnp.float32),
        "wq2": w(keys[5], (D, inner)), "wk2": w(keys[6], (cross_dim, inner)),
        "wv2": w(keys[7], (cross_dim, inner)), "wo2": w(keys[8], (inner, D)),
        "bo2": w(keys[9], (1, D)),
        # _expression_attention: q/k/v get default Linear init; to_out is zero-initialized
        # in __init__ (initialize_expression_attention() not called here).
        "wqe": w(keys[10], (D, inner)), "wke": w(keys[11], (cross_dim, inner)),
        "wve": w(keys[12], (cross_dim, inner)),
        "woe": jnp.zeros((inner, D), jnp.float32),
        "boe": jnp.zeros((1, D), jnp.float32),
        "ln3_g": jnp.ones((1, D), jnp.float32), "ln3_b": jnp.zeros((1, D), jnp.float32),
        "wff1": w(keys[13], (D, 2 * d_ff)), "bff1": w(keys[14], (1, 2 * d_ff)),
        "wff2": w(keys[15], (d_ff, D)), "bff2": w(keys[16], (1, D)),
    }

    hidden = jax.random.normal(keys[17], (B, S, D), jnp.float32)
    enc = jax.random.normal(keys[18], (B, S_enc, cross_dim), jnp.float32)
    expr = jax.random.normal(keys[19], (B, S_expr, cross_dim), jnp.float32)

    # One-time parameter preparation (hoisted out of the per-call forward path).
    prepared = prepare_params(raw_params, num_heads, head_dim)
    prepared = jax.tree_util.tree_map(jnp.asarray, prepared)

    out = expression_attention_transformer_block(
        hidden, enc, expr, prepared, num_heads=num_heads, head_dim=head_dim)
    out = jax.block_until_ready(out)

    ref = reference(hidden, enc, expr, raw_params, num_heads, head_dim)
    # Kernel runs MXU inputs in bf16 (f32 accumulation) and uses the EUP approximate
    # reciprocal for softmax; reference is pure f32 -> compare with a loose tolerance.
    np.testing.assert_allclose(np.asarray(out), np.asarray(ref), rtol=2e-2, atol=2e-2)

    print("KERNEL_OK")
</pallas_src>

<mosaic_0001>
module attributes {stable_mosaic.version = 11 : i64} {
  func.func @kernel(%arg0: i32, %arg1: memref<1x128x128xf32, #tpu.memory_space<vmem>>, %arg2: memref<1x128x64xf32, #tpu.memory_space<vmem>>, %arg3: memref<1x128x64xf32, #tpu.memory_space<vmem>>, %arg4: memref<1x128xf32, #tpu.memory_space<vmem>>, %arg5: memref<1x128xf32, #tpu.memory_space<vmem>>, %arg6: memref<128x384xbf16, #tpu.memory_space<vmem>>, %arg7: memref<128x128xbf16, #tpu.memory_space<vmem>>, %arg8: memref<1x128xf32, #tpu.memory_space<vmem>>, %arg9: memref<1x128xf32, #tpu.memory_space<vmem>>, %arg10: memref<1x128xf32, #tpu.memory_space<vmem>>, %arg11: memref<128x128xbf16, #tpu.memory_space<vmem>>, %arg12: memref<64x256xbf16, #tpu.memory_space<vmem>>, %arg13: memref<128x128xbf16, #tpu.memory_space<vmem>>, %arg14: memref<1x128xf32, #tpu.memory_space<vmem>>, %arg15: memref<128x128xbf16, #tpu.memory_space<vmem>>, %arg16: memref<64x256xbf16, #tpu.memory_space<vmem>>, %arg17: memref<128x128xbf16, #tpu.memory_space<vmem>>, %arg18: memref<1x128xf32, #tpu.memory_space<vmem>>, %arg19: memref<1x128xf32, #tpu.memory_space<vmem>>, %arg20: memref<1x128xf32, #tpu.memory_space<vmem>>, %arg21: memref<128x1024xbf16, #tpu.memory_space<vmem>>, %arg22: memref<1x1024xf32, #tpu.memory_space<vmem>>, %arg23: memref<512x128xbf16, #tpu.memory_space<vmem>>, %arg24: memref<1x128xf32, #tpu.memory_space<vmem>>, %arg25: memref<1x128x128xf32, #tpu.memory_space<vmem>>) attributes {dimension_semantics = [#tpu.dimension_semantics<parallel>], iteration_bounds = array<i64: 2>, scalar_prefetch = 0 : i64, scratch_operands = 0 : i64, tpu.core_type = #tpu.core_type<tc>, window_params = [{transform_indices = @transform_0, window_bounds = array<i64: 1, 128, 128>}, {transform_indices = @transform_1, window_bounds = array<i64: 1, 128, 64>}, {transform_indices = @transform_2, window_bounds = array<i64: 1, 128, 64>}, {pipeline_mode = #tpu.pipeline_mode<synchronous>, transform_indices = @transform_3, window_bounds = array<i64: 1, 128>}, {pipeline_mode = #tpu.pipeline_mode<synchronous>, transform_indices = @transform_4, window_bounds = array<i64: 1, 128>}, {pipeline_mode = #tpu.pipeline_mode<synchronous>, transform_indices = @transform_5, window_bounds = array<i64: 128, 384>}, {pipeline_mode = #tpu.pipeline_mode<synchronous>, transform_indices = @transform_6, window_bounds = array<i64: 128, 128>}, {pipeline_mode = #tpu.pipeline_mode<synchronous>, transform_indices = @transform_7, window_bounds = array<i64: 1, 128>}, {pipeline_mode = #tpu.pipeline_mode<synchronous>, transform_indices = @transform_8, window_bounds = array<i64: 1, 128>}, {pipeline_mode = #tpu.pipeline_mode<synchronous>, transform_indices = @transform_9, window_bounds = array<i64: 1, 128>}, {pipeline_mode = #tpu.pipeline_mode<synchronous>, transform_indices = @transform_10, window_bounds = array<i64: 128, 128>}, {pipeline_mode = #tpu.pipeline_mode<synchronous>, transform_indices = @transform_11, window_bounds = array<i64: 64, 256>}, {pipeline_mode = #tpu.pipeline_mode<synchronous>, transform_indices = @transform_12, window_bounds = array<i64: 128, 128>}, {pipeline_mode = #tpu.pipeline_mode<synchronous>, transform_indices = @transform_13, window_bounds = array<i64: 1, 128>}, {pipeline_mode = #tpu.pipeline_mode<synchronous>, transform_indices = @transform_14, window_bounds = array<i64: 128, 128>}, {pipeline_mode = #tpu.pipeline_mode<synchronous>, transform_indices = @transform_15, window_bounds = array<i64: 64, 256>}, {pipeline_mode = #tpu.pipeline_mode<synchronous>, transform_indices = @transform_16, window_bounds = array<i64: 128, 128>}, {pipeline_mode = #tpu.pipeline_mode<synchronous>, transform_indices = @transform_17, window_bounds = array<i64: 1, 128>}, {pipeline_mode = #tpu.pipeline_mode<synchronous>, transform_indices = @transform_18, window_bounds = array<i64: 1, 128>}, {pipeline_mode = #tpu.pipeline_mode<synchronous>, transform_indices = @transform_19, window_bounds = array<i64: 1, 128>}, {pipeline_mode = #tpu.pipeline_mode<synchronous>, transform_indices = @transform_20, window_bounds = array<i64: 128, 1024>}, {pipeline_mode = #tpu.pipeline_mode<synchronous>, transform_indices = @transform_21, window_bounds = array<i64: 1, 1024>}, {pipeline_mode = #tpu.pipeline_mode<synchronous>, transform_indices = @transform_22, window_bounds = array<i64: 512, 128>}, {pipeline_mode = #tpu.pipeline_mode<synchronous>, transform_indices = @transform_23, window_bounds = array<i64: 1, 128>}, {transform_indices = @transform_24, window_bounds = array<i64: 1, 128, 128>}]} {
    %c0 = arith.constant 0 : index
    %c0_0 = arith.constant 0 : index
    %c0_1 = arith.constant 0 : index
    %0 = vector.load %arg1[%c0, %c0_0, %c0_1] : memref<1x128x128xf32, #tpu.memory_space<vmem>>, vector<1x128x128xf32>
    %1 = vector.shape_cast %0 : vector<1x128x128xf32> to vector<128x128xf32>
    %c0_2 = arith.constant 0 : index
    %c0_3 = arith.constant 0 : index
    %c0_4 = arith.constant 0 : index
    %2 = vector.load %arg2[%c0_2, %c0_3, %c0_4] : memref<1x128x64xf32, #tpu.memory_space<vmem>>, vector<1x128x64xf32>
    %3 = vector.shape_cast %2 : vector<1x128x64xf32> to vector<128x64xf32>
    %c0_5 = arith.constant 0 : index
    %c0_6 = arith.constant 0 : index
    %c0_7 = arith.constant 0 : index
    %4 = vector.load %arg3[%c0_5, %c0_6, %c0_7] : memref<1x128x64xf32, #tpu.memory_space<vmem>>, vector<1x128x64xf32>
    %5 = vector.shape_cast %4 : vector<1x128x64xf32> to vector<128x64xf32>
    %cst = arith.constant dense<0.000000e+00> : vector<128xf32>
    %6 = vector.multi_reduction <add>, %1, %cst [1] : vector<128x128xf32> to vector<128xf32>
    %7 = vector.shape_cast %6 : vector<128xf32> to vector<128x1xf32>
    %cst_8 = arith.constant 1.280000e+02 : f32
    %8 = vector.broadcast %cst_8 : f32 to vector<128x1xf32>
    %9 = arith.divf %7, %8 : vector<128x1xf32>
    %10 = vector.broadcast %9 : vector<128x1xf32> to vector<128x128xf32>
    %11 = arith.subf %1, %10 : vector<128x128xf32>
    %12 = arith.mulf %11, %11 : vector<128x128xf32>
    %cst_9 = arith.constant dense<0.000000e+00> : vector<128xf32>
    %13 = vector.multi_reduction <add>, %12, %cst_9 [1] : vector<128x128xf32> to vector<128xf32>
    %14 = vector.shape_cast %13 : vector<128xf32> to vector<128x1xf32>
    %cst_10 = arith.constant 1.280000e+02 : f32
    %15 = vector.broadcast %cst_10 : f32 to vector<128x1xf32>
    %16 = arith.divf %14, %15 : vector<128x1xf32>
    %cst_11 = arith.constant 9.99999974E-6 : f32
    %17 = vector.broadcast %cst_11 : f32 to vector<128x1xf32>
    %18 = arith.addf %16, %17 : vector<128x1xf32>
    %19 = math.rsqrt %18 : vector<128x1xf32>
    %20 = vector.broadcast %19 : vector<128x1xf32> to vector<128x128xf32>
    %21 = arith.mulf %11, %20 : vector<128x128xf32>
    %c0_12 = arith.constant 0 : index
    %c0_13 = arith.constant 0 : index
    %22 = vector.load %arg4[%c0_12, %c0_13] : memref<1x128xf32, #tpu.memory_space<vmem>>, vector<1x128xf32>
    %23 = vector.broadcast %22 : vector<1x128xf32> to vector<128x128xf32>
    %24 = arith.mulf %21, %23 : vector<128x128xf32>
    %c0_14 = arith.constant 0 : index
    %c0_15 = arith.constant 0 : index
    %25 = vector.load %arg5[%c0_14, %c0_15] : memref<1x128xf32, #tpu.memory_space<vmem>>, vector<1x128xf32>
    %26 = vector.broadcast %25 : vector<1x128xf32> to vector<128x128xf32>
    %27 = arith.addf %24, %26 : vector<128x128xf32>
    %28 = arith.truncf %27 : vector<128x128xf32> to vector<128x128xbf16>
    %c0_16 = arith.constant 0 : index
    %c0_17 = arith.constant 0 : index
    %29 = vector.load %arg6[%c0_16, %c0_17] : memref<128x384xbf16, #tpu.memory_space<vmem>>, vector<128x384xbf16>
    %cst_18 = arith.constant dense<0.000000e+00> : vector<128x384xf32>
    %30 = tpu.matmul %28, %29, %cst_18 {dimension_numbers = #tpu.dot_dimension_numbers<[1], [0], [0], [1], [0, 0, 1, 1], [], []>} : vector<128x128xbf16>, vector<128x384xbf16>, vector<128x384xf32> -> vector<128x384xf32>
    %31 = vector.extract_strided_slice %30 {offsets = [0, 0], sizes = [128, 128], strides = [1, 1]} : vector<128x384xf32> to vector<128x128xf32>
    %32 = vector.extract_strided_slice %30 {offsets = [0, 128], sizes = [128, 128], strides = [1, 1]} : vector<128x384xf32> to vector<128x128xf32>
    %33 = vector.extract_strided_slice %30 {offsets = [0, 256], sizes = [128, 128], strides = [1, 1]} : vector<128x384xf32> to vector<128x128xf32>
    %34 = arith.truncf %31 : vector<128x128xf32> to vector<128x128xbf16>
    %35 = arith.truncf %32 : vector<128x128xf32> to vector<128x128xbf16>
    %36 = arith.truncf %33 : vector<128x128xf32> to vector<128x128xbf16>
    %37 = vector.extract_strided_slice %34 {offsets = [0, 0], sizes = [128, 32], strides = [1, 1]} : vector<128x128xbf16> to vector<128x32xbf16>
    %38 = vector.extract_strided_slice %35 {offsets = [0, 0], sizes = [128, 32], strides = [1, 1]} : vector<128x128xbf16> to vector<128x32xbf16>
    "tpu.trace_start"() <{level = 10 : i32, message = "qd,kd->qk"}> : () -> ()
    %cst_19 = arith.constant dense<0.000000e+00> : vector<128x128xf32>
    %39 = tpu.matmul %37, %38, %cst_19 {dimension_numbers = #tpu.dot_dimension_numbers<[1], [1], [0], [0], [0, 0, 1, 0], [], []>} : vector<128x32xbf16>, vector<128x32xbf16>, vector<128x128xf32> -> vector<128x128xf32>
    "tpu.trace_stop"() : () -> ()
    %cst_20 = arith.constant dense<0xFF800000> : vector<128xf32>
    %40 = vector.multi_reduction <maximumf>, %39, %cst_20 [1] : vector<128x128xf32> to vector<128xf32>
    %41 = vector.shape_cast %40 : vector<128xf32> to vector<128x1xf32>
    %42 = vector.broadcast %41 : vector<128x1xf32> to vector<128x128xf32>
    %43 = arith.subf %39, %42 : vector<128x128xf32>
    %44 = math.exp %43 : vector<128x128xf32>
    %cst_21 = arith.constant dense<0.000000e+00> : vector<128xf32>
    %45 = vector.multi_reduction <add>, %44, %cst_21 [1] : vector<128x128xf32> to vector<128xf32>
    %46 = vector.shape_cast %45 : vector<128xf32> to vector<128x1xf32>
    %47 = tpu.reciprocal %46 {approx = true} : vector<128x1xf32> -> vector<128x1xf32>
    %48 = vector.broadcast %47 : vector<128x1xf32> to vector<128x128xf32>
    %49 = arith.mulf %44, %48 : vector<128x128xf32>
    %50 = arith.truncf %49 : vector<128x128xf32> to vector<128x128xbf16>
    %51 = vector.extract_strided_slice %36 {offsets = [0, 0], sizes = [128, 32], strides = [1, 1]} : vector<128x128xbf16> to vector<128x32xbf16>
    %cst_22 = arith.constant dense<0.000000e+00> : vector<128x32xf32>
    %52 = tpu.matmul %50, %51, %cst_22 {dimension_numbers = #tpu.dot_dimension_numbers<[1], [0], [0], [1], [0, 0, 1, 1], [], []>} : vector<128x128xbf16>, vector<128x32xbf16>, vector<128x32xf32> -> vector<128x32xf32>
    %53 = vector.extract_strided_slice %34 {offsets = [0, 32], sizes = [128, 32], strides = [1, 1]} : vector<128x128xbf16> to vector<128x32xbf16>
    %54 = vector.extract_strided_slice %35 {offsets = [0, 32], sizes = [128, 32], strides = [1, 1]} : vector<128x128xbf16> to vector<128x32xbf16>
    "tpu.trace_start"() <{level = 10 : i32, message = "qd,kd->qk"}> : () -> ()
    %cst_23 = arith.constant dense<0.000000e+00> : vector<128x128xf32>
    %55 = tpu.matmul %53, %54, %cst_23 {dimension_numbers = #tpu.dot_dimension_numbers<[1], [1], [0], [0], [0, 0, 1, 0], [], []>} : vector<128x32xbf16>, vector<128x32xbf16>, vector<128x128xf32> -> vector<128x128xf32>
    "tpu.trace_stop"() : () -> ()
    %cst_24 = arith.constant dense<0xFF800000> : vector<128xf32>
    %56 = vector.multi_reduction <maximumf>, %55, %cst_24 [1] : vector<128x128xf32> to vector<128xf32>
    %57 = vector.shape_cast %56 : vector<128xf32> to vector<128x1xf32>
    %58 = vector.broadcast %57 : vector<128x1xf32> to vector<128x128xf32>
    %59 = arith.subf %55, %58 : vector<128x128xf32>
    %60 = math.exp %59 : vector<128x128xf32>
    %cst_25 = arith.constant dense<0.000000e+00> : vector<128xf32>
    %61 = vector.multi_reduction <add>, %60, %cst_25 [1] : vector<128x128xf32> to vector<128xf32>
    %62 = vector.shape_cast %61 : vector<128xf32> to vector<128x1xf32>
    %63 = tpu.reciprocal %62 {approx = true} : vector<128x1xf32> -> vector<128x1xf32>
    %64 = vector.broadcast %63 : vector<128x1xf32> to vector<128x128xf32>
    %65 = arith.mulf %60, %64 : vector<128x128xf32>
    %66 = arith.truncf %65 : vector<128x128xf32> to vector<128x128xbf16>
    %67 = vector.extract_strided_slice %36 {offsets = [0, 32], sizes = [128, 32], strides = [1, 1]} : vector<128x128xbf16> to vector<128x32xbf16>
    %cst_26 = arith.constant dense<0.000000e+00> : vector<128x32xf32>
    %68 = tpu.matmul %66, %67, %cst_26 {dimension_numbers = #tpu.dot_dimension_numbers<[1], [0], [0], [1], [0, 0, 1, 1], [], []>} : vector<128x128xbf16>, vector<128x32xbf16>, vector<128x32xf32> -> vector<128x32xf32>
    %69 = vector.extract_strided_slice %34 {offsets = [0, 64], sizes = [128, 32], strides = [1, 1]} : vector<128x128xbf16> to vector<128x32xbf16>
    %70 = vector.extract_strided_slice %35 {offsets = [0, 64], sizes = [128, 32], strides = [1, 1]} : vector<128x128xbf16> to vector<128x32xbf16>
    "tpu.trace_start"() <{level = 10 : i32, message = "qd,kd->qk"}> : () -> ()
    %cst_27 = arith.constant dense<0.000000e+00> : vector<128x128xf32>
    %71 = tpu.matmul %69, %70, %cst_27 {dimension_numbers = #tpu.dot_dimension_numbers<[1], [1], [0], [0], [0, 0, 1, 0], [], []>} : vector<128x32xbf16>, vector<128x32xbf16>, vector<128x128xf32> -> vector<128x128xf32>
    "tpu.trace_stop"() : () -> ()
    %cst_28 = arith.constant dense<0xFF800000> : vector<128xf32>
    %72 = vector.multi_reduction <maximumf>, %71, %cst_28 [1] : vector<128x128xf32> to vector<128xf32>
    %73 = vector.shape_cast %72 : vector<128xf32> to vector<128x1xf32>
    %74 = vector.broadcast %73 : vector<128x1xf32> to vector<128x128xf32>
    %75 = arith.subf %71, %74 : vector<128x128xf32>
    %76 = math.exp %75 : vector<128x128xf32>
    %cst_29 = arith.constant dense<0.000000e+00> : vector<128xf32>
    %77 = vector.multi_reduction <add>, %76, %cst_29 [1] : vector<128x128xf32> to vector<128xf32>
    %78 = vector.shape_cast %77 : vector<128xf32> to vector<128x1xf32>
    %79 = tpu.reciprocal %78 {approx = true} : vector<128x1xf32> -> vector<128x1xf32>
    %80 = vector.broadcast %79 : vector<128x1xf32> to vector<128x128xf32>
    %81 = arith.mulf %76, %80 : vector<128x128xf32>
    %82 = arith.truncf %81 : vector<128x128xf32> to vector<128x128xbf16>
    %83 = vector.extract_strided_slice %36 {offsets = [0, 64], sizes = [128, 32], strides = [1, 1]} : vector<128x128xbf16> to vector<128x32xbf16>
    %cst_30 = arith.constant dense<0.000000e+00> : vector<128x32xf32>
    %84 = tpu.matmul %82, %83, %cst_30 {dimension_numbers = #tpu.dot_dimension_numbers<[1], [0], [0], [1], [0, 0, 1, 1], [], []>} : vector<128x128xbf16>, vector<128x32xbf16>, vector<128x32xf32> -> vector<128x32xf32>
    %85 = vector.extract_strided_slice %34 {offsets = [0, 96], sizes = [128, 32], strides = [1, 1]} : vector<128x128xbf16> to vector<128x32xbf16>
    %86 = vector.extract_strided_slice %35 {offsets = [0, 96], sizes = [128, 32], strides = [1, 1]} : vector<128x128xbf16> to vector<128x32xbf16>
    "tpu.trace_start"() <{level = 10 : i32, message = "qd,kd->qk"}> : () -> ()
    %cst_31 = arith.constant dense<0.000000e+00> : vector<128x128xf32>
    %87 = tpu.matmul %85, %86, %cst_31 {dimension_numbers = #tpu.dot_dimension_numbers<[1], [1], [0], [0], [0, 0, 1, 0], [], []>} : vector<128x32xbf16>, vector<128x32xbf16>, vector<128x128xf32> -> vector<128x128xf32>
    "tpu.trace_stop"() : () -> ()
    %cst_32 = arith.constant dense<0xFF800000> : vector<128xf32>
    %88 = vector.multi_reduction <maximumf>, %87, %cst_32 [1] : vector<128x128xf32> to vector<128xf32>
    %89 = vector.shape_cast %88 : vector<128xf32> to vector<128x1xf32>
    %90 = vector.broadcast %89 : vector<128x1xf32> to vector<128x128xf32>
    %91 = arith.subf %87, %90 : vector<128x128xf32>
    %92 = math.exp %91 : vector<128x128xf32>
    %cst_33 = arith.constant dense<0.000000e+00> : vector<128xf32>
    %93 = vector.multi_reduction <add>, %92, %cst_33 [1] : vector<128x128xf32> to vector<128xf32>
    %94 = vector.shape_cast %93 : vector<128xf32> to vector<128x1xf32>
    %95 = tpu.reciprocal %94 {approx = true} : vector<128x1xf32> -> vector<128x1xf32>
    %96 = vector.broadcast %95 : vector<128x1xf32> to vector<128x128xf32>
    %97 = arith.mulf %92, %96 : vector<128x128xf32>
    %98 = arith.truncf %97 : vector<128x128xf32> to vector<128x128xbf16>
    %99 = vector.extract_strided_slice %36 {offsets = [0, 96], sizes = [128, 32], strides = [1, 1]} : vector<128x128xbf16> to vector<128x32xbf16>
    %cst_34 = arith.constant dense<0.000000e+00> : vector<128x32xf32>
    %100 = tpu.matmul %98, %99, %cst_34 {dimension_numbers = #tpu.dot_dimension_numbers<[1], [0], [0], [1], [0, 0, 1, 1], [], []>} : vector<128x128xbf16>, vector<128x32xbf16>, vector<128x32xf32> -> vector<128x32xf32>
    %101 = tpu.concatenate %52, %68, %84, %100 in 1 : vector<128x32xf32>, vector<128x32xf32>, vector<128x32xf32>, vector<128x32xf32> -> vector<128x128xf32>
    %102 = arith.truncf %101 : vector<128x128xf32> to vector<128x128xbf16>
    %c0_35 = arith.constant 0 : index
    %c0_36 = arith.constant 0 : index
    %103 = vector.load %arg7[%c0_35, %c0_36] : memref<128x128xbf16, #tpu.memory_space<vmem>>, vector<128x128xbf16>
    %cst_37 = arith.constant dense<0.000000e+00> : vector<128x128xf32>
    %104 = tpu.matmul %102, %103, %cst_37 {dimension_numbers = #tpu.dot_dimension_numbers<[1], [0], [0], [1], [0, 0, 1, 1], [], []>} : vector<128x128xbf16>, vector<128x128xbf16>, vector<128x128xf32> -> vector<128x128xf32>
    %c0_38 = arith.constant 0 : index
    %c0_39 = arith.constant 0 : index
    %105 = vector.load %arg8[%c0_38, %c0_39] : memref<1x128xf32, #tpu.memory_space<vmem>>, vector<1x128xf32>
    %106 = vector.broadcast %105 : vector<1x128xf32> to vector<128x128xf32>
    %107 = arith.addf %104, %106 : vector<128x128xf32>
    %108 = arith.addf %107, %1 : vector<128x128xf32>
    %cst_40 = arith.constant dense<0.000000e+00> : vector<128xf32>
    %109 = vector.multi_reduction <add>, %108, %cst_40 [1] : vector<128x128xf32> to vector<128xf32>
    %110 = vector.shape_cast %109 : vector<128xf32> to vector<128x1xf32>
    %cst_41 = arith.constant 1.280000e+02 : f32
    %111 = vector.broadcast %cst_41 : f32 to vector<128x1xf32>
    %112 = arith.divf %110, %111 : vector<128x1xf32>
    %113 = vector.broadcast %112 : vector<128x1xf32> to vector<128x128xf32>
    %114 = arith.subf %108, %113 : vector<128x128xf32>
    %115 = arith.mulf %114, %114 : vector<128x128xf32>
    %cst_42 = arith.constant dense<0.000000e+00> : vector<128xf32>
    %116 = vector.multi_reduction <add>, %115, %cst_42 [1] : vector<128x128xf32> to vector<128xf32>
    %117 = vector.shape_cast %116 : vector<128xf32> to vector<128x1xf32>
    %cst_43 = arith.constant 1.280000e+02 : f32
    %118 = vector.broadcast %cst_43 : f32 to vector<128x1xf32>
    %119 = arith.divf %117, %118 : vector<128x1xf32>
    %cst_44 = arith.constant 9.99999974E-6 : f32
    %120 = vector.broadcast %cst_44 : f32 to vector<128x1xf32>
    %121 = arith.addf %119, %120 : vector<128x1xf32>
    %122 = math.rsqrt %121 : vector<128x1xf32>
    %123 = vector.broadcast %122 : vector<128x1xf32> to vector<128x128xf32>
    %124 = arith.mulf %114, %123 : vector<128x128xf32>
    %c0_45 = arith.constant 0 : index
    %c0_46 = arith.constant 0 : index
    %125 = vector.load %arg9[%c0_45, %c0_46] : memref<1x128xf32, #tpu.memory_space<vmem>>, vector<1x128xf32>
    %126 = vector.broadcast %125 : vector<1x128xf32> to vector<128x128xf32>
    %127 = arith.mulf %124, %126 : vector<128x128xf32>
    %c0_47 = arith.constant 0 : index
    %c0_48 = arith.constant 0 : index
    %128 = vector.load %arg10[%c0_47, %c0_48] : memref<1x128xf32, #tpu.memory_space<vmem>>, vector<1x128xf32>
    %129 = vector.broadcast %128 : vector<1x128xf32> to vector<128x128xf32>
    %130 = arith.addf %127, %129 : vector<128x128xf32>
    %131 = arith.truncf %130 : vector<128x128xf32> to vector<128x128xbf16>
    %c0_49 = arith.constant 0 : index
    %c0_50 = arith.constant 0 : index
    %132 = vector.load %arg11[%c0_49, %c0_50] : memref<128x128xbf16, #tpu.memory_space<vmem>>, vector<128x128xbf16>
    %cst_51 = arith.constant dense<0.000000e+00> : vector<128x128xf32>
    %133 = tpu.matmul %131, %132, %cst_51 {dimension_numbers = #tpu.dot_dimension_numbers<[1], [0], [0], [1], [0, 0, 1, 1], [], []>} : vector<128x128xbf16>, vector<128x128xbf16>, vector<128x128xf32> -> vector<128x128xf32>
    %134 = arith.truncf %3 : vector<128x64xf32> to vector<128x64xbf16>
    %c0_52 = arith.constant 0 : index
    %c0_53 = arith.constant 0 : index
    %135 = vector.load %arg12[%c0_52, %c0_53] : memref<64x256xbf16, #tpu.memory_space<vmem>>, vector<64x256xbf16>
    %cst_54 = arith.constant dense<0.000000e+00> : vector<128x256xf32>
    %136 = tpu.matmul %134, %135, %cst_54 {dimension_numbers = #tpu.dot_dimension_numbers<[1], [0], [0], [1], [0, 0, 1, 1], [], []>} : vector<128x64xbf16>, vector<64x256xbf16>, vector<128x256xf32> -> vector<128x256xf32>
    %137 = vector.extract_strided_slice %136 {offsets = [0, 0], sizes = [128, 128], strides = [1, 1]} : vector<128x256xf32> to vector<128x128xf32>
    %138 = vector.extract_strided_slice %136 {offsets = [0, 128], sizes = [128, 128], strides = [1, 1]} : vector<128x256xf32> to vector<128x128xf32>
    %139 = tpu.iota {dimensions = array<i32: 1>} : vector<1x128xi32>
    %c8_i32 = arith.constant 8 : i32
    %140 = vector.broadcast %c8_i32 : i32 to vector<1x128xi32>
    %141 = arith.cmpi slt, %139, %140 : vector<1x128xi32>
    %cst_55 = arith.constant 0.000000e+00 : f32
    %cst_56 = arith.constant -1.000000e+30 : f32
    %142 = vector.broadcast %cst_55 : f32 to vector<1x128xf32>
    %143 = vector.broadcast %cst_56 : f32 to vector<1x128xf32>
    %144 = arith.select %141, %142, %143 : vector<1x128xi1>, vector<1x128xf32>
    %145 = arith.truncf %133 : vector<128x128xf32> to vector<128x128xbf16>
    %146 = arith.truncf %137 : vector<128x128xf32> to vector<128x128xbf16>
    %147 = arith.truncf %138 : vector<128x128xf32> to vector<128x128xbf16>
    %148 = vector.extract_strided_slice %145 {offsets = [0, 0], sizes = [128, 32], strides = [1, 1]} : vector<128x128xbf16> to vector<128x32xbf16>
    %149 = vector.extract_strided_slice %146 {offsets = [0, 0], sizes = [128, 32], strides = [1, 1]} : vector<128x128xbf16> to vector<128x32xbf16>
    "tpu.trace_start"() <{level = 10 : i32, message = "qd,kd->qk"}> : () -> ()
    %cst_57 = arith.constant dense<0.000000e+00> : vector<128x128xf32>
    %150 = tpu.matmul %148, %149, %cst_57 {dimension_numbers = #tpu.dot_dimension_numbers<[1], [1], [0], [0], [0, 0, 1, 0], [], []>} : vector<128x32xbf16>, vector<128x32xbf16>, vector<128x128xf32> -> vector<128x128xf32>
    "tpu.trace_stop"() : () -> ()
    %151 = vector.broadcast %144 : vector<1x128xf32> to vector<128x128xf32>
    %152 = arith.addf %150, %151 : vector<128x128xf32>
    %cst_58 = arith.constant dense<0xFF800000> : vector<128xf32>
    %153 = vector.multi_reduction <maximumf>, %152, %cst_58 [1] : vector<128x128xf32> to vector<128xf32>
    %154 = vector.shape_cast %153 : vector<128xf32> to vector<128x1xf32>
    %155 = vector.broadcast %154 : vector<128x1xf32> to vector<128x128xf32>
    %156 = arith.subf %152, %155 : vector<128x128xf32>
    %157 = math.exp %156 : vector<128x128xf32>
    %cst_59 = arith.constant dense<0.000000e+00> : vector<128xf32>
    %158 = vector.multi_reduction <add>, %157, %cst_59 [1] : vector<128x128xf32> to vector<128xf32>
    %159 = vector.shape_cast %158 : vector<128xf32> to vector<128x1xf32>
    %160 = tpu.reciprocal %159 {approx = true} : vector<128x1xf32> -> vector<128x1xf32>
    %161 = vector.broadcast %160 : vector<128x1xf32> to vector<128x128xf32>
    %162 = arith.mulf %157, %161 : vector<128x128xf32>
    %163 = arith.truncf %162 : vector<128x128xf32> to vector<128x128xbf16>
    %164 = vector.extract_strided_slice %147 {offsets = [0, 0], sizes = [128, 32], strides = [1, 1]} : vector<128x128xbf16> to vector<128x32xbf16>
    %cst_60 = arith.constant dense<0.000000e+00> : vector<128x32xf32>
    %165 = tpu.matmul %163, %164, %cst_60 {dimension_numbers = #tpu.dot_dimension_numbers<[1], [0], [0], [1], [0, 0, 1, 1], [], []>} : vector<128x128xbf16>, vector<128x32xbf16>, vector<128x32xf32> -> vector<128x32xf32>
    %166 = vector.extract_strided_slice %145 {offsets = [0, 32], sizes = [128, 32], strides = [1, 1]} : vector<128x128xbf16> to vector<128x32xbf16>
    %167 = vector.extract_strided_slice %146 {offsets = [0, 32], sizes = [128, 32], strides = [1, 1]} : vector<128x128xbf16> to vector<128x32xbf16>
    "tpu.trace_start"() <{level = 10 : i32, message = "qd,kd->qk"}> : () -> ()
    %cst_61 = arith.constant dense<0.000000e+00> : vector<128x128xf32>
    %168 = tpu.matmul %166, %167, %cst_61 {dimension_numbers = #tpu.dot_dimension_numbers<[1], [1], [0], [0], [0, 0, 1, 0], [], []>} : vector<128x32xbf16>, vector<128x32xbf16>, vector<128x128xf32> -> vector<128x128xf32>
    "tpu.trace_stop"() : () -> ()
    %169 = vector.broadcast %144 : vector<1x128xf32> to vector<128x128xf32>
    %170 = arith.addf %168, %169 : vector<128x128xf32>
    %cst_62 = arith.constant dense<0xFF800000> : vector<128xf32>
    %171 = vector.multi_reduction <maximumf>, %170, %cst_62 [1] : vector<128x128xf32> to vector<128xf32>
    %172 = vector.shape_cast %171 : vector<128xf32> to vector<128x1xf32>
    %173 = vector.broadcast %172 : vector<128x1xf32> to vector<128x128xf32>
    %174 = arith.subf %170, %173 : vector<128x128xf32>
    %175 = math.exp %174 : vector<128x128xf32>
    %cst_63 = arith.constant dense<0.000000e+00> : vector<128xf32>
    %176 = vector.multi_reduction <add>, %175, %cst_63 [1] : vector<128x128xf32> to vector<128xf32>
    %177 = vector.shape_cast %176 : vector<128xf32> to vector<128x1xf32>
    %178 = tpu.reciprocal %177 {approx = true} : vector<128x1xf32> -> vector<128x1xf32>
    %179 = vector.broadcast %178 : vector<128x1xf32> to vector<128x128xf32>
    %180 = arith.mulf %175, %179 : vector<128x128xf32>
    %181 = arith.truncf %180 : vector<128x128xf32> to vector<128x128xbf16>
    %182 = vector.extract_strided_slice %147 {offsets = [0, 32], sizes = [128, 32], strides = [1, 1]} : vector<128x128xbf16> to vector<128x32xbf16>
    %cst_64 = arith.constant dense<0.000000e+00> : vector<128x32xf32>
    %183 = tpu.matmul %181, %182, %cst_64 {dimension_numbers = #tpu.dot_dimension_numbers<[1], [0], [0], [1], [0, 0, 1, 1], [], []>} : vector<128x128xbf16>, vector<128x32xbf16>, vector<128x32xf32> -> vector<128x32xf32>
    %184 = vector.extract_strided_slice %145 {offsets = [0, 64], sizes = [128, 32], strides = [1, 1]} : vector<128x128xbf16> to vector<128x32xbf16>
    %185 = vector.extract_strided_slice %146 {offsets = [0, 64], sizes = [128, 32], strides = [1, 1]} : vector<128x128xbf16> to vector<128x32xbf16>
    "tpu.trace_start"() <{level = 10 : i32, message = "qd,kd->qk"}> : () -> ()
    %cst_65 = arith.constant dense<0.000000e+00> : vector<128x128xf32>
    %186 = tpu.matmul %184, %185, %cst_65 {dimension_numbers = #tpu.dot_dimension_numbers<[1], [1], [0], [0], [0, 0, 1, 0], [], []>} : vector<128x32xbf16>, vector<128x32xbf16>, vector<128x128xf32> -> vector<128x128xf32>
    "tpu.trace_stop"() : () -> ()
    %187 = vector.broadcast %144 : vector<1x128xf32> to vector<128x128xf32>
    %188 = arith.addf %186, %187 : vector<128x128xf32>
    %cst_66 = arith.constant dense<0xFF800000> : vector<128xf32>
    %189 = vector.multi_reduction <maximumf>, %188, %cst_66 [1] : vector<128x128xf32> to vector<128xf32>
    %190 = vector.shape_cast %189 : vector<128xf32> to vector<128x1xf32>
    %191 = vector.broadcast %190 : vector<128x1xf32> to vector<128x128xf32>
    %192 = arith.subf %188, %191 : vector<128x128xf32>
    %193 = math.exp %192 : vector<128x128xf32>
    %cst_67 = arith.constant dense<0.000000e+00> : vector<128xf32>
    %194 = vector.multi_reduction <add>, %193, %cst_67 [1] : vector<128x128xf32> to vector<128xf32>
    %195 = vector.shape_cast %194 : vector<128xf32> to vector<128x1xf32>
    %196 = tpu.reciprocal %195 {approx = true} : vector<128x1xf32> -> vector<128x1xf32>
    %197 = vector.broadcast %196 : vector<128x1xf32> to vector<128x128xf32>
    %198 = arith.mulf %193, %197 : vector<128x128xf32>
    %199 = arith.truncf %198 : vector<128x128xf32> to vector<128x128xbf16>
    %200 = vector.extract_strided_slice %147 {offsets = [0, 64], sizes = [128, 32], strides = [1, 1]} : vector<128x128xbf16> to vector<128x32xbf16>
    %cst_68 = arith.constant dense<0.000000e+00> : vector<128x32xf32>
    %201 = tpu.matmul %199, %200, %cst_68 {dimension_numbers = #tpu.dot_dimension_numbers<[1], [0], [0], [1], [0, 0, 1, 1], [], []>} : vector<128x128xbf16>, vector<128x32xbf16>, vector<128x32xf32> -> vector<128x32xf32>
    %202 = vector.extract_strided_slice %145 {offsets = [0, 96], sizes = [128, 32], strides = [1, 1]} : vector<128x128xbf16> to vector<128x32xbf16>
    %203 = vector.extract_strided_slice %146 {offsets = [0, 96], sizes = [128, 32], strides = [1, 1]} : vector<128x128xbf16> to vector<128x32xbf16>
    "tpu.trace_start"() <{level = 10 : i32, message = "qd,kd->qk"}> : () -> ()
    %cst_69 = arith.constant dense<0.000000e+00> : vector<128x128xf32>
    %204 = tpu.matmul %202, %203, %cst_69 {dimension_numbers = #tpu.dot_dimension_numbers<[1], [1], [0], [0], [0, 0, 1, 0], [], []>} : vector<128x32xbf16>, vector<128x32xbf16>, vector<128x128xf32> -> vector<128x128xf32>
    "tpu.trace_stop"() : () -> ()
    %205 = vector.broadcast %144 : vector<1x128xf32> to vector<128x128xf32>
    %206 = arith.addf %204, %205 : vector<128x128xf32>
    %cst_70 = arith.constant dense<0xFF800000> : vector<128xf32>
    %207 = vector.multi_reduction <maximumf>, %206, %cst_70 [1] : vector<128x128xf32> to vector<128xf32>
    %208 = vector.shape_cast %207 : vector<128xf32> to vector<128x1xf32>
    %209 = vector.broadcast %208 : vector<128x1xf32> to vector<128x128xf32>
    %210 = arith.subf %206, %209 : vector<128x128xf32>
    %211 = math.exp %210 : vector<128x128xf32>
    %cst_71 = arith.constant dense<0.000000e+00> : vector<128xf32>
    %212 = vector.multi_reduction <add>, %211, %cst_71 [1] : vector<128x128xf32> to vector<128xf32>
    %213 = vector.shape_cast %212 : vector<128xf32> to vector<128x1xf32>
    %214 = tpu.reciprocal %213 {approx = true} : vector<128x1xf32> -> vector<128x1xf32>
    %215 = vector.broadcast %214 : vector<128x1xf32> to vector<128x128xf32>
    %216 = arith.mulf %211, %215 : vector<128x128xf32>
    %217 = arith.truncf %216 : vector<128x128xf32> to vector<128x128xbf16>
    %218 = vector.extract_strided_slice %147 {offsets = [0, 96], sizes = [128, 32], strides = [1, 1]} : vector<128x128xbf16> to vector<128x32xbf16>
    %cst_72 = arith.constant dense<0.000000e+00> : vector<128x32xf32>
    %219 = tpu.matmul %217, %218, %cst_72 {dimension_numbers = #tpu.dot_dimension_numbers<[1], [0], [0], [1], [0, 0, 1, 1], [], []>} : vector<128x128xbf16>, vector<128x32xbf16>, vector<128x32xf32> -> vector<128x32xf32>
    %220 = tpu.concatenate %165, %183, %201, %219 in 1 : vector<128x32xf32>, vector<128x32xf32>, vector<128x32xf32>, vector<128x32xf32> -> vector<128x128xf32>
    %221 = arith.truncf %220 : vector<128x128xf32> to vector<128x128xbf16>
    %c0_73 = arith.constant 0 : index
    %c0_74 = arith.constant 0 : index
    %222 = vector.load %arg13[%c0_73, %c0_74] : memref<128x128xbf16, #tpu.memory_space<vmem>>, vector<128x128xbf16>
    %cst_75 = arith.constant dense<0.000000e+00> : vector<128x128xf32>
    %223 = tpu.matmul %221, %222, %cst_75 {dimension_numbers = #tpu.dot_dimension_numbers<[1], [0], [0], [1], [0, 0, 1, 1], [], []>} : vector<128x128xbf16>, vector<128x128xbf16>, vector<128x128xf32> -> vector<128x128xf32>
    %c0_76 = arith.constant 0 : index
    %c0_77 = arith.constant 0 : index
    %224 = vector.load %arg14[%c0_76, %c0_77] : memref<1x128xf32, #tpu.memory_space<vmem>>, vector<1x128xf32>
    %225 = vector.broadcast %224 : vector<1x128xf32> to vector<128x128xf32>
    %226 = arith.addf %223, %225 : vector<128x128xf32>
    %227 = arith.addf %226, %108 : vector<128x128xf32>
    %228 = arith.truncf %227 : vector<128x128xf32> to vector<128x128xbf16>
    %c0_78 = arith.constant 0 : index
    %c0_79 = arith.constant 0 : index
    %229 = vector.load %arg15[%c0_78, %c0_79] : memref<128x128xbf16, #tpu.memory_space<vmem>>, vector<128x128xbf16>
    %cst_80 = arith.constant dense<0.000000e+00> : vector<128x128xf32>
    %230 = tpu.matmul %228, %229, %cst_80 {dimension_numbers = #tpu.dot_dimension_numbers<[1], [0], [0], [1], [0, 0, 1, 1], [], []>} : vector<128x128xbf16>, vector<128x128xbf16>, vector<128x128xf32> -> vector<128x128xf32>
    %231 = arith.truncf %5 : vector<128x64xf32> to vector<128x64xbf16>
    %c0_81 = arith.constant 0 : index
    %c0_82 = arith.constant 0 : index
    %232 = vector.load %arg16[%c0_81, %c0_82] : memref<64x256xbf16, #tpu.memory_space<vmem>>, vector<64x256xbf16>
    %cst_83 = arith.constant dense<0.000000e+00> : vector<128x256xf32>
    %233 = tpu.matmul %231, %232, %cst_83 {dimension_numbers = #tpu.dot_dimension_numbers<[1], [0], [0], [1], [0, 0, 1, 1], [], []>} : vector<128x64xbf16>, vector<64x256xbf16>, vector<128x256xf32> -> vector<128x256xf32>
    %234 = vector.extract_strided_slice %233 {offsets = [0, 0], sizes = [128, 128], strides = [1, 1]} : vector<128x256xf32> to vector<128x128xf32>
    %235 = vector.extract_strided_slice %233 {offsets = [0, 128], sizes = [128, 128], strides = [1, 1]} : vector<128x256xf32> to vector<128x128xf32>
    %236 = tpu.iota {dimensions = array<i32: 1>} : vector<1x128xi32>
    %c8_i32_84 = arith.constant 8 : i32
    %237 = vector.broadcast %c8_i32_84 : i32 to vector<1x128xi32>
    %238 = arith.cmpi slt, %236, %237 : vector<1x128xi32>
    %cst_85 = arith.constant 0.000000e+00 : f32
    %cst_86 = arith.constant -1.000000e+30 : f32
    %239 = vector.broadcast %cst_85 : f32 to vector<1x128xf32>
    %240 = vector.broadcast %cst_86 : f32 to vector<1x128xf32>
    %241 = arith.select %238, %239, %240 : vector<1x128xi1>, vector<1x128xf32>
    %242 = arith.truncf %230 : vector<128x128xf32> to vector<128x128xbf16>
    %243 = arith.truncf %234 : vector<128x128xf32> to vector<128x128xbf16>
    %244 = arith.truncf %235 : vector<128x128xf32> to vector<128x128xbf16>
    %245 = vector.extract_strided_slice %242 {offsets = [0, 0], sizes = [128, 32], strides = [1, 1]} : vector<128x128xbf16> to vector<128x32xbf16>
    %246 = vector.extract_strided_slice %243 {offsets = [0, 0], sizes = [128, 32], strides = [1, 1]} : vector<128x128xbf16> to vector<128x32xbf16>
    "tpu.trace_start"() <{level = 10 : i32, message = "qd,kd->qk"}> : () -> ()
    %cst_87 = arith.constant dense<0.000000e+00> : vector<128x128xf32>
    %247 = tpu.matmul %245, %246, %cst_87 {dimension_numbers = #tpu.dot_dimension_numbers<[1], [1], [0], [0], [0, 0, 1, 0], [], []>} : vector<128x32xbf16>, vector<128x32xbf16>, vector<128x128xf32> -> vector<128x128xf32>
    "tpu.trace_stop"() : () -> ()
    %248 = vector.broadcast %241 : vector<1x128xf32> to vector<128x128xf32>
    %249 = arith.addf %247, %248 : vector<128x128xf32>
    %cst_88 = arith.constant dense<0xFF800000> : vector<128xf32>
    %250 = vector.multi_reduction <maximumf>, %249, %cst_88 [1] : vector<128x128xf32> to vector<128xf32>
    %251 = vector.shape_cast %250 : vector<128xf32> to vector<128x1xf32>
    %252 = vector.broadcast %251 : vector<128x1xf32> to vector<128x128xf32>
    %253 = arith.subf %249, %252 : vector<128x128xf32>
    %254 = math.exp %253 : vector<128x128xf32>
    %cst_89 = arith.constant dense<0.000000e+00> : vector<128xf32>
    %255 = vector.multi_reduction <add>, %254, %cst_89 [1] : vector<128x128xf32> to vector<128xf32>
    %256 = vector.shape_cast %255 : vector<128xf32> to vector<128x1xf32>
    %257 = tpu.reciprocal %256 {approx = true} : vector<128x1xf32> -> vector<128x1xf32>
    %258 = vector.broadcast %257 : vector<128x1xf32> to vector<128x128xf32>
    %259 = arith.mulf %254, %258 : vector<128x128xf32>
    %260 = arith.truncf %259 : vector<128x128xf32> to vector<128x128xbf16>
    %261 = vector.extract_strided_slice %244 {offsets = [0, 0], sizes = [128, 32], strides = [1, 1]} : vector<128x128xbf16> to vector<128x32xbf16>
    %cst_90 = arith.constant dense<0.000000e+00> : vector<128x32xf32>
    %262 = tpu.matmul %260, %261, %cst_90 {dimension_numbers = #tpu.dot_dimension_numbers<[1], [0], [0], [1], [0, 0, 1, 1], [], []>} : vector<128x128xbf16>, vector<128x32xbf16>, vector<128x32xf32> -> vector<128x32xf32>
    %263 = vector.extract_strided_slice %242 {offsets = [0, 32], sizes = [128, 32], strides = [1, 1]} : vector<128x128xbf16> to vector<128x32xbf16>
    %264 = vector.extract_strided_slice %243 {offsets = [0, 32], sizes = [128, 32], strides = [1, 1]} : vector<128x128xbf16> to vector<128x32xbf16>
    "tpu.trace_start"() <{level = 10 : i32, message = "qd,kd->qk"}> : () -> ()
    %cst_91 = arith.constant dense<0.000000e+00> : vector<128x128xf32>
    %265 = tpu.matmul %263, %264, %cst_91 {dimension_numbers = #tpu.dot_dimension_numbers<[1], [1], [0], [0], [0, 0, 1, 0], [], []>} : vector<128x32xbf16>, vector<128x32xbf16>, vector<128x128xf32> -> vector<128x128xf32>
    "tpu.trace_stop"() : () -> ()
    %266 = vector.broadcast %241 : vector<1x128xf32> to vector<128x128xf32>
    %267 = arith.addf %265, %266 : vector<128x128xf32>
    %cst_92 = arith.constant dense<0xFF800000> : vector<128xf32>
    %268 = vector.multi_reduction <maximumf>, %267, %cst_92 [1] : vector<128x128xf32> to vector<128xf32>
    %269 = vector.shape_cast %268 : vector<128xf32> to vector<128x1xf32>
    %270 = vector.broadcast %269 : vector<128x1xf32> to vector<128x128xf32>
    %271 = arith.subf %267, %270 : vector<128x128xf32>
    %272 = math.exp %271 : vector<128x128xf32>
    %cst_93 = arith.constant dense<0.000000e+00> : vector<128xf32>
    %273 = vector.multi_reduction <add>, %272, %cst_93 [1] : vector<128x128xf32> to vector<128xf32>
    %274 = vector.shape_cast %273 : vector<128xf32> to vector<128x1xf32>
    %275 = tpu.reciprocal %274 {approx = true} : vector<128x1xf32> -> vector<128x1xf32>
    %276 = vector.broadcast %275 : vector<128x1xf32> to vector<128x128xf32>
    %277 = arith.mulf %272, %276 : vector<128x128xf32>
    %278 = arith.truncf %277 : vector<128x128xf32> to vector<128x128xbf16>
    %279 = vector.extract_strided_slice %244 {offsets = [0, 32], sizes = [128, 32], strides = [1, 1]} : vector<128x128xbf16> to vector<128x32xbf16>
    %cst_94 = arith.constant dense<0.000000e+00> : vector<128x32xf32>
    %280 = tpu.matmul %278, %279, %cst_94 {dimension_numbers = #tpu.dot_dimension_numbers<[1], [0], [0], [1], [0, 0, 1, 1], [], []>} : vector<128x128xbf16>, vector<128x32xbf16>, vector<128x32xf32> -> vector<128x32xf32>
    %281 = vector.extract_strided_slice %242 {offsets = [0, 64], sizes = [128, 32], strides = [1, 1]} : vector<128x128xbf16> to vector<128x32xbf16>
    %282 = vector.extract_strided_slice %243 {offsets = [0, 64], sizes = [128, 32], strides = [1, 1]} : vector<128x128xbf16> to vector<128x32xbf16>
    "tpu.trace_start"() <{level = 10 : i32, message = "qd,kd->qk"}> : () -> ()
    %cst_95 = arith.constant dense<0.000000e+00> : vector<128x128xf32>
    %283 = tpu.matmul %281, %282, %cst_95 {dimension_numbers = #tpu.dot_dimension_numbers<[1], [1], [0], [0], [0, 0, 1, 0], [], []>} : vector<128x32xbf16>, vector<128x32xbf16>, vector<128x128xf32> -> vector<128x128xf32>
    "tpu.trace_stop"() : () -> ()
    %284 = vector.broadcast %241 : vector<1x128xf32> to vector<128x128xf32>
    %285 = arith.addf %283, %284 : vector<128x128xf32>
    %cst_96 = arith.constant dense<0xFF800000> : vector<128xf32>
    %286 = vector.multi_reduction <maximumf>, %285, %cst_96 [1] : vector<128x128xf32> to vector<128xf32>
    %287 = vector.shape_cast %286 : vector<128xf32> to vector<128x1xf32>
    %288 = vector.broadcast %287 : vector<128x1xf32> to vector<128x128xf32>
    %289 = arith.subf %285, %288 : vector<128x128xf32>
    %290 = math.exp %289 : vector<128x128xf32>
    %cst_97 = arith.constant dense<0.000000e+00> : vector<128xf32>
    %291 = vector.multi_reduction <add>, %290, %cst_97 [1] : vector<128x128xf32> to vector<128xf32>
    %292 = vector.shape_cast %291 : vector<128xf32> to vector<128x1xf32>
    %293 = tpu.reciprocal %292 {approx = true} : vector<128x1xf32> -> vector<128x1xf32>
    %294 = vector.broadcast %293 : vector<128x1xf32> to vector<128x128xf32>
    %295 = arith.mulf %290, %294 : vector<128x128xf32>
    %296 = arith.truncf %295 : vector<128x128xf32> to vector<128x128xbf16>
    %297 = vector.extract_strided_slice %244 {offsets = [0, 64], sizes = [128, 32], strides = [1, 1]} : vector<128x128xbf16> to vector<128x32xbf16>
    %cst_98 = arith.constant dense<0.000000e+00> : vector<128x32xf32>
    %298 = tpu.matmul %296, %297, %cst_98 {dimension_numbers = #tpu.dot_dimension_numbers<[1], [0], [0], [1], [0, 0, 1, 1], [], []>} : vector<128x128xbf16>, vector<128x32xbf16>, vector<128x32xf32> -> vector<128x32xf32>
    %299 = vector.extract_strided_slice %242 {offsets = [0, 96], sizes = [128, 32], strides = [1, 1]} : vector<128x128xbf16> to vector<128x32xbf16>
    %300 = vector.extract_strided_slice %243 {offsets = [0, 96], sizes = [128, 32], strides = [1, 1]} : vector<128x128xbf16> to vector<128x32xbf16>
    "tpu.trace_start"() <{level = 10 : i32, message = "qd,kd->qk"}> : () -> ()
    %cst_99 = arith.constant dense<0.000000e+00> : vector<128x128xf32>
    %301 = tpu.matmul %299, %300, %cst_99 {dimension_numbers = #tpu.dot_dimension_numbers<[1], [1], [0], [0], [0, 0, 1, 0], [], []>} : vector<128x32xbf16>, vector<128x32xbf16>, vector<128x128xf32> -> vector<128x128xf32>
    "tpu.trace_stop"() : () -> ()
    %302 = vector.broadcast %241 : vector<1x128xf32> to vector<128x128xf32>
    %303 = arith.addf %301, %302 : vector<128x128xf32>
    %cst_100 = arith.constant dense<0xFF800000> : vector<128xf32>
    %304 = vector.multi_reduction <maximumf>, %303, %cst_100 [1] : vector<128x128xf32> to vector<128xf32>
    %305 = vector.shape_cast %304 : vector<128xf32> to vector<128x1xf32>
    %306 = vector.broadcast %305 : vector<128x1xf32> to vector<128x128xf32>
    %307 = arith.subf %303, %306 : vector<128x128xf32>
    %308 = math.exp %307 : vector<128x128xf32>
    %cst_101 = arith.constant dense<0.000000e+00> : vector<128xf32>
    %309 = vector.multi_reduction <add>, %308, %cst_101 [1] : vector<128x128xf32> to vector<128xf32>
    %310 = vector.shape_cast %309 : vector<128xf32> to vector<128x1xf32>
    %311 = tpu.reciprocal %310 {approx = true} : vector<128x1xf32> -> vector<128x1xf32>
    %312 = vector.broadcast %311 : vector<128x1xf32> to vector<128x128xf32>
    %313 = arith.mulf %308, %312 : vector<128x128xf32>
    %314 = arith.truncf %313 : vector<128x128xf32> to vector<128x128xbf16>
    %315 = vector.extract_strided_slice %244 {offsets = [0, 96], sizes = [128, 32], strides = [1, 1]} : vector<128x128xbf16> to vector<128x32xbf16>
    %cst_102 = arith.constant dense<0.000000e+00> : vector<128x32xf32>
    %316 = tpu.matmul %314, %315, %cst_102 {dimension_numbers = #tpu.dot_dimension_numbers<[1], [0], [0], [1], [0, 0, 1, 1], [], []>} : vector<128x128xbf16>, vector<128x32xbf16>, vector<128x32xf32> -> vector<128x32xf32>
    %317 = tpu.concatenate %262, %280, %298, %316 in 1 : vector<128x32xf32>, vector<128x32xf32>, vector<128x32xf32>, vector<128x32xf32> -> vector<128x128xf32>
    %318 = arith.truncf %317 : vector<128x128xf32> to vector<128x128xbf16>
    %c0_103 = arith.constant 0 : index
    %c0_104 = arith.constant 0 : index
    %319 = vector.load %arg17[%c0_103, %c0_104] : memref<128x128xbf16, #tpu.memory_space<vmem>>, vector<128x128xbf16>
    %cst_105 = arith.constant dense<0.000000e+00> : vector<128x128xf32>
    %320 = tpu.matmul %318, %319, %cst_105 {dimension_numbers = #tpu.dot_dimension_numbers<[1], [0], [0], [1], [0, 0, 1, 1], [], []>} : vector<128x128xbf16>, vector<128x128xbf16>, vector<128x128xf32> -> vector<128x128xf32>
    %c0_106 = arith.constant 0 : index
    %c0_107 = arith.constant 0 : index
    %321 = vector.load %arg18[%c0_106, %c0_107] : memref<1x128xf32, #tpu.memory_space<vmem>>, vector<1x128xf32>
    %322 = vector.broadcast %321 : vector<1x128xf32> to vector<128x128xf32>
    %323 = arith.addf %320, %322 : vector<128x128xf32>
    %324 = arith.addf %323, %227 : vector<128x128xf32>
    %cst_108 = arith.constant dense<0.000000e+00> : vector<128xf32>
    %325 = vector.multi_reduction <add>, %324, %cst_108 [1] : vector<128x128xf32> to vector<128xf32>
    %326 = vector.shape_cast %325 : vector<128xf32> to vector<128x1xf32>
    %cst_109 = arith.constant 1.280000e+02 : f32
    %327 = vector.broadcast %cst_109 : f32 to vector<128x1xf32>
    %328 = arith.divf %326, %327 : vector<128x1xf32>
    %329 = vector.broadcast %328 : vector<128x1xf32> to vector<128x128xf32>
    %330 = arith.subf %324, %329 : vector<128x128xf32>
    %331 = arith.mulf %330, %330 : vector<128x128xf32>
    %cst_110 = arith.constant dense<0.000000e+00> : vector<128xf32>
    %332 = vector.multi_reduction <add>, %331, %cst_110 [1] : vector<128x128xf32> to vector<128xf32>
    %333 = vector.shape_cast %332 : vector<128xf32> to vector<128x1xf32>
    %cst_111 = arith.constant 1.280000e+02 : f32
    %334 = vector.broadcast %cst_111 : f32 to vector<128x1xf32>
    %335 = arith.divf %333, %334 : vector<128x1xf32>
    %cst_112 = arith.constant 9.99999974E-6 : f32
    %336 = vector.broadcast %cst_112 : f32 to vector<128x1xf32>
    %337 = arith.addf %335, %336 : vector<128x1xf32>
    %338 = math.rsqrt %337 : vector<128x1xf32>
    %339 = vector.broadcast %338 : vector<128x1xf32> to vector<128x128xf32>
    %340 = arith.mulf %330, %339 : vector<128x128xf32>
    %c0_113 = arith.constant 0 : index
    %c0_114 = arith.constant 0 : index
    %341 = vector.load %arg19[%c0_113, %c0_114] : memref<1x128xf32, #tpu.memory_space<vmem>>, vector<1x128xf32>
    %342 = vector.broadcast %341 : vector<1x128xf32> to vector<128x128xf32>
    %343 = arith.mulf %340, %342 : vector<128x128xf32>
    %c0_115 = arith.constant 0 : index
    %c0_116 = arith.constant 0 : index
    %344 = vector.load %arg20[%c0_115, %c0_116] : memref<1x128xf32, #tpu.memory_space<vmem>>, vector<1x128xf32>
    %345 = vector.broadcast %344 : vector<1x128xf32> to vector<128x128xf32>
    %346 = arith.addf %343, %345 : vector<128x128xf32>
    %347 = arith.truncf %346 : vector<128x128xf32> to vector<128x128xbf16>
    %c0_117 = arith.constant 0 : index
    %c0_118 = arith.constant 0 : index
    %348 = vector.load %arg21[%c0_117, %c0_118] : memref<128x1024xbf16, #tpu.memory_space<vmem>>, vector<128x1024xbf16>
    %cst_119 = arith.constant dense<0.000000e+00> : vector<128x1024xf32>
    %349 = tpu.matmul %347, %348, %cst_119 {dimension_numbers = #tpu.dot_dimension_numbers<[1], [0], [0], [1], [0, 0, 1, 1], [], []>} : vector<128x128xbf16>, vector<128x1024xbf16>, vector<128x1024xf32> -> vector<128x1024xf32>
    %c0_120 = arith.constant 0 : index
    %c0_121 = arith.constant 0 : index
    %350 = vector.load %arg22[%c0_120, %c0_121] : memref<1x1024xf32, #tpu.memory_space<vmem>>, vector<1x1024xf32>
    %351 = vector.broadcast %350 : vector<1x1024xf32> to vector<128x1024xf32>
    %352 = arith.addf %349, %351 : vector<128x1024xf32>
    %353 = vector.extract_strided_slice %352 {offsets = [0, 0], sizes = [128, 512], strides = [1, 1]} : vector<128x1024xf32> to vector<128x512xf32>
    %354 = vector.extract_strided_slice %352 {offsets = [0, 512], sizes = [128, 512], strides = [1, 1]} : vector<128x1024xf32> to vector<128x512xf32>
    %cst_122 = arith.constant 5.000000e-01 : f32
    %355 = vector.broadcast %cst_122 : f32 to vector<128x512xf32>
    %356 = arith.mulf %355, %354 : vector<128x512xf32>
    %cst_123 = arith.constant 4.471500e-02 : f32
    %357 = vector.broadcast %cst_123 : f32 to vector<128x512xf32>
    %358 = arith.mulf %357, %354 : vector<128x512xf32>
    %359 = arith.mulf %358, %354 : vector<128x512xf32>
    %360 = arith.mulf %359, %354 : vector<128x512xf32>
    %361 = arith.addf %354, %360 : vector<128x512xf32>
    %cst_124 = arith.constant 0.797884583 : f32
    %362 = vector.broadcast %cst_124 : f32 to vector<128x512xf32>
    %363 = arith.mulf %362, %361 : vector<128x512xf32>
    %364 = math.tanh %363 : vector<128x512xf32>
    %cst_125 = arith.constant 1.000000e+00 : f32
    %365 = vector.broadcast %cst_125 : f32 to vector<128x512xf32>
    %366 = arith.addf %365, %364 : vector<128x512xf32>
    %367 = arith.mulf %356, %366 : vector<128x512xf32>
    %368 = arith.mulf %353, %367 : vector<128x512xf32>
    %369 = arith.truncf %368 : vector<128x512xf32> to vector<128x512xbf16>
    %c0_126 = arith.constant 0 : index
    %c0_127 = arith.constant 0 : index
    %370 = vector.load %arg23[%c0_126, %c0_127] : memref<512x128xbf16, #tpu.memory_space<vmem>>, vector<512x128xbf16>
    %cst_128 = arith.constant dense<0.000000e+00> : vector<128x128xf32>
    %371 = tpu.matmul %369, %370, %cst_128 {dimension_numbers = #tpu.dot_dimension_numbers<[1], [0], [0], [1], [0, 0, 1, 1], [], []>} : vector<128x512xbf16>, vector<512x128xbf16>, vector<128x128xf32> -> vector<128x128xf32>
    %c0_129 = arith.constant 0 : index
    %c0_130 = arith.constant 0 : index
    %372 = vector.load %arg24[%c0_129, %c0_130] : memref<1x128xf32, #tpu.memory_space<vmem>>, vector<1x128xf32>
    %373 = vector.broadcast %372 : vector<1x128xf32> to vector<128x128xf32>
    %374 = arith.addf %371, %373 : vector<128x128xf32>
    %375 = arith.addf %374, %324 : vector<128x128xf32>
    %c0_131 = arith.constant 0 : index
    %c0_132 = arith.constant 0 : index
    %c0_133 = arith.constant 0 : index
    %376 = vector.load %arg25[%c0_131, %c0_132, %c0_133] : memref<1x128x128xf32, #tpu.memory_space<vmem>>, vector<1x128x128xf32>
    %377 = vector.shape_cast %376 : vector<1x128x128xf32> to vector<128x128xf32>
    %378 = vector.shape_cast %375 : vector<128x128xf32> to vector<1x128x128xf32>
    tpu.vector_store %arg25[%c0_131, %c0_132, %c0_133], %378 {strides = array<i32>} : memref<1x128x128xf32, #tpu.memory_space<vmem>>, vector<1x128x128xf32>,
    return
  }
  func.func @transform_0(%arg0: i32) -> (i32, i32, i32) {
    %c0_i32 = arith.constant 0 : i32
    %c0_i32_0 = arith.constant 0 : i32
    %c0_i32_1 = arith.constant 0 : i32
    return %arg0, %c0_i32, %c0_i32_0 : i32, i32, i32
  }
  func.func @transform_1(%arg0: i32) -> (i32, i32, i32) {
    %c0_i32 = arith.constant 0 : i32
    %c0_i32_0 = arith.constant 0 : i32
    %c0_i32_1 = arith.constant 0 : i32
    return %arg0, %c0_i32, %c0_i32_0 : i32, i32, i32
  }
  func.func @transform_2(%arg0: i32) -> (i32, i32, i32) {
    %c0_i32 = arith.constant 0 : i32
    %c0_i32_0 = arith.constant 0 : i32
    %c0_i32_1 = arith.constant 0 : i32
    return %arg0, %c0_i32, %c0_i32_0 : i32, i32, i32
  }
  func.func @transform_3(%arg0: i32) -> (i32, i32) {
    %c0_i32 = arith.constant 0 : i32
    %c0_i32_0 = arith.constant 0 : i32
    %c0_i32_1 = arith.constant 0 : i32
    return %c0_i32, %c0_i32_0 : i32, i32
  }
  func.func @transform_4(%arg0: i32) -> (i32, i32) {
    %c0_i32 = arith.constant 0 : i32
    %c0_i32_0 = arith.constant 0 : i32
    %c0_i32_1 = arith.constant 0 : i32
    return %c0_i32, %c0_i32_0 : i32, i32
  }
  func.func @transform_5(%arg0: i32) -> (i32, i32) {
    %c0_i32 = arith.constant 0 : i32
    %c0_i32_0 = arith.constant 0 : i32
    %c0_i32_1 = arith.constant 0 : i32
    return %c0_i32, %c0_i32_0 : i32, i32
  }
  func.func @transform_6(%arg0: i32) -> (i32, i32) {
    %c0_i32 = arith.constant 0 : i32
    %c0_i32_0 = arith.constant 0 : i32
    %c0_i32_1 = arith.constant 0 : i32
    return %c0_i32, %c0_i32_0 : i32, i32
  }
  func.func @transform_7(%arg0: i32) -> (i32, i32) {
    %c0_i32 = arith.constant 0 : i32
    %c0_i32_0 = arith.constant 0 : i32
    %c0_i32_1 = arith.constant 0 : i32
    return %c0_i32, %c0_i32_0 : i32, i32
  }
  func.func @transform_8(%arg0: i32) -> (i32, i32) {
    %c0_i32 = arith.constant 0 : i32
    %c0_i32_0 = arith.constant 0 : i32
    %c0_i32_1 = arith.constant 0 : i32
    return %c0_i32, %c0_i32_0 : i32, i32
  }
  func.func @transform_9(%arg0: i32) -> (i32, i32) {
    %c0_i32 = arith.constant 0 : i32
    %c0_i32_0 = arith.constant 0 : i32
    %c0_i32_1 = arith.constant 0 : i32
    return %c0_i32, %c0_i32_0 : i32, i32
  }
  func.func @transform_10(%arg0: i32) -> (i32, i32) {
    %c0_i32 = arith.constant 0 : i32
    %c0_i32_0 = arith.constant 0 : i32
    %c0_i32_1 = arith.constant 0 : i32
    return %c0_i32, %c0_i32_0 : i32, i32
  }
  func.func @transform_11(%arg0: i32) -> (i32, i32) {
    %c0_i32 = arith.constant 0 : i32
    %c0_i32_0 = arith.constant 0 : i32
    %c0_i32_1 = arith.constant 0 : i32
    return %c0_i32, %c0_i32_0 : i32, i32
  }
  func.func @transform_12(%arg0: i32) -> (i32, i32) {
    %c0_i32 = arith.constant 0 : i32
    %c0_i32_0 = arith.constant 0 : i32
    %c0_i32_1 = arith.constant 0 : i32
    return %c0_i32, %c0_i32_0 : i32, i32
  }
  func.func @transform_13(%arg0: i32) -> (i32, i32) {
    %c0_i32 = arith.constant 0 : i32
    %c0_i32_0 = arith.constant 0 : i32
    %c0_i32_1 = arith.constant 0 : i32
    return %c0_i32, %c0_i32_0 : i32, i32
  }
  func.func @transform_14(%arg0: i32) -> (i32, i32) {
    %c0_i32 = arith.constant 0 : i32
    %c0_i32_0 = arith.constant 0 : i32
    %c0_i32_1 = arith.constant 0 : i32
    return %c0_i32, %c0_i32_0 : i32, i32
  }
  func.func @transform_15(%arg0: i32) -> (i32, i32) {
    %c0_i32 = arith.constant 0 : i32
    %c0_i32_0 = arith.constant 0 : i32
    %c0_i32_1 = arith.constant 0 : i32
    return %c0_i32, %c0_i32_0 : i32, i32
  }
  func.func @transform_16(%arg0: i32) -> (i32, i32) {
    %c0_i32 = arith.constant 0 : i32
    %c0_i32_0 = arith.constant 0 : i32
    %c0_i32_1 = arith.constant 0 : i32
    return %c0_i32, %c0_i32_0 : i32, i32
  }
  func.func @transform_17(%arg0: i32) -> (i32, i32) {
    %c0_i32 = arith.constant 0 : i32
    %c0_i32_0 = arith.constant 0 : i32
    %c0_i32_1 = arith.constant 0 : i32
    return %c0_i32, %c0_i32_0 : i32, i32
  }
  func.func @transform_18(%arg0: i32) -> (i32, i32) {
    %c0_i32 = arith.constant 0 : i32
    %c0_i32_0 = arith.constant 0 : i32
    %c0_i32_1 = arith.constant 0 : i32
    return %c0_i32, %c0_i32_0 : i32, i32
  }
  func.func @transform_19(%arg0: i32) -> (i32, i32) {
    %c0_i32 = arith.constant 0 : i32
    %c0_i32_0 = arith.constant 0 : i32
    %c0_i32_1 = arith.constant 0 : i32
    return %c0_i32, %c0_i32_0 : i32, i32
  }
  func.func @transform_20(%arg0: i32) -> (i32, i32) {
    %c0_i32 = arith.constant 0 : i32
    %c0_i32_0 = arith.constant 0 : i32
    %c0_i32_1 = arith.constant 0 : i32
    return %c0_i32, %c0_i32_0 : i32, i32
  }
  func.func @transform_21(%arg0: i32) -> (i32, i32) {
    %c0_i32 = arith.constant 0 : i32
    %c0_i32_0 = arith.constant 0 : i32
    %c0_i32_1 = arith.constant 0 : i32
    return %c0_i32, %c0_i32_0 : i32, i32
  }
  func.func @transform_22(%arg0: i32) -> (i32, i32) {
    %c0_i32 = arith.constant 0 : i32
    %c0_i32_0 = arith.constant 0 : i32
    %c0_i32_1 = arith.constant 0 : i32
    return %c0_i32, %c0_i32_0 : i32, i32
  }
  func.func @transform_23(%arg0: i32) -> (i32, i32) {
    %c0_i32 = arith.constant 0 : i32
    %c0_i32_0 = arith.constant 0 : i32
    %c0_i32_1 = arith.constant 0 : i32
    return %c0_i32, %c0_i32_0 : i32, i32
  }
  func.func @transform_24(%arg0: i32) -> (i32, i32, i32) {
    %c0_i32 = arith.constant 0 : i32
    %c0_i32_0 = arith.constant 0 : i32
    %c0_i32_1 = arith.constant 0 : i32
    return %arg0, %c0_i32, %c0_i32_0 : i32, i32, i32
  }
}

</mosaic_0001>

<llo_original>
// kernel: expression_attention_transformer_block.1
$region0: #{expression_attention_transformer_block.1}
  #allocation0 [shape = 'u32[]', space=smem, size = 0x4, offset = 0x4, fixed_abs, tag = 'smem constant byte address 0x4 - core index']
  #allocation1 [shape = 'u32[72,128]{1,0:T(1,128)}', space=vmem, size = 0x9000, scoped, tag = 'internal scratch']
  %s0 = inlined_call_operand.hbm [shape: f32[2,128,128], index: 0, kind: input, shape index: {}]
  %s1 = inlined_call_operand.vmem [shape: f32[2,128,64], index: 1, kind: input, shape index: {}]
  %s2 = inlined_call_operand.vmem [shape: f32[2,128,64], index: 2, kind: input, shape index: {}]
  %s3 = inlined_call_operand.vmem [shape: f32[1,128], index: 3, kind: input, shape index: {}]
  %s4 = inlined_call_operand.vmem [shape: f32[1,128], index: 4, kind: input, shape index: {}]
  %s5 = inlined_call_operand.hbm [shape: bf16[128,384], index: 5, kind: input, shape index: {}]
  %s6 = inlined_call_operand.hbm [shape: bf16[128,128], index: 6, kind: input, shape index: {}]
  %s7 = inlined_call_operand.vmem [shape: f32[1,128], index: 7, kind: input, shape index: {}]
  %s8 = inlined_call_operand.vmem [shape: f32[1,128], index: 8, kind: input, shape index: {}]
  %s9 = inlined_call_operand.vmem [shape: f32[1,128], index: 9, kind: input, shape index: {}]
  %s10 = inlined_call_operand.hbm [shape: bf16[128,128], index: 10, kind: input, shape index: {}]
  %s11 = inlined_call_operand.hbm [shape: bf16[64,256], index: 11, kind: input, shape index: {}]
  %s12 = inlined_call_operand.hbm [shape: bf16[128,128], index: 12, kind: input, shape index: {}]
  %s13 = inlined_call_operand.vmem [shape: f32[1,128], index: 13, kind: input, shape index: {}]
  %s14 = inlined_call_operand.hbm [shape: bf16[128,128], index: 14, kind: input, shape index: {}]
  %s15 = inlined_call_operand.hbm [shape: bf16[64,256], index: 15, kind: input, shape index: {}]
  %s16 = inlined_call_operand.hbm [shape: bf16[128,128], index: 16, kind: input, shape index: {}]
  %s17 = inlined_call_operand.vmem [shape: f32[1,128], index: 17, kind: input, shape index: {}]
  %s18 = inlined_call_operand.vmem [shape: f32[1,128], index: 18, kind: input, shape index: {}]
  %s19 = inlined_call_operand.vmem [shape: f32[1,128], index: 19, kind: input, shape index: {}]
  %s20 = inlined_call_operand.vmem [shape: bf16[128,1024], index: 20, kind: input, shape index: {}]
  %s21 = inlined_call_operand.vmem [shape: f32[1,1024], index: 21, kind: input, shape index: {}]
  %s22 = inlined_call_operand.hbm [shape: bf16[512,128], index: 22, kind: input, shape index: {}]
  %s23 = inlined_call_operand.vmem [shape: f32[1,128], index: 23, kind: input, shape index: {}]
  %s24 = inlined_call_operand.hbm [shape: f32[2,128,128], index: 24, kind: output, shape index: {}]
  %s25 = sld [smem:[#allocation0]]
  $region169: #{expression_attention_transformer_block.1} parent=0
    _
  %s27 = ssub.s32 1, %s25
  %s28 = scalar_select 0, %s27, %s25
  $region1: #{expression_attention_transformer_block.1} parent=0
    #allocation2 [shape = 'u8[131072]{0}', space=vmem, size = 0x20000, scoped, tag = 'input window, operand 0']
    #allocation3 [shape = 's32[2]{0}', space=sflag, size = 0x8, scoped, tag = 'scoped memory for expression_attention_transformer_block.1']
    #allocation4 [shape = 's32[2]{0}', space=sflag, size = 0x8, scoped, tag = 'scoped memory for expression_attention_transformer_block.1']
    #allocation5 [shape = 'u8[98304]{0}', space=vmem, size = 0x18000, scoped, tag = 'input window, operand 5, single buffered']
    #allocation6 [shape = 's32[1]{0}', space=sflag, size = 0x4, scoped, tag = 'scoped memory for expression_attention_transformer_block.1']
    #allocation7 [shape = 'u8[32768]{0}', space=vmem, size = 0x8000, scoped, tag = 'input window, operand 6, single buffered']
    #allocation8 [shape = 'u8[32768]{0}', space=vmem, size = 0x8000, scoped, tag = 'input window, operand 10, single buffered']
    #allocation9 [shape = 's32[1]{0}', space=sflag, size = 0x4, scoped, tag = 'scoped memory for expression_attention_transformer_block.1']
    #allocation10 [shape = 'u8[32768]{0}', space=vmem, size = 0x8000, scoped, tag = 'input window, operand 11, single buffered']
    #allocation11 [shape = 'u8[32768]{0}', space=vmem, size = 0x8000, scoped, tag = 'input window, operand 12, single buffered']
    #allocation12 [shape = 's32[1]{0}', space=sflag, size = 0x4, scoped, tag = 'scoped memory for expression_attention_transformer_block.1']
    #allocation13 [shape = 'u8[32768]{0}', space=vmem, size = 0x8000, scoped, tag = 'input window, operand 14, single buffered']
    #allocation14 [shape = 'u8[32768]{0}', space=vmem, size = 0x8000, scoped, tag = 'input window, operand 15, single buffered']
    #allocation15 [shape = 's32[1]{0}', space=sflag, size = 0x4, scoped, tag = 'scoped memory for expression_attention_transformer_block.1']
    #allocation16 [shape = 'u8[32768]{0}', space=vmem, size = 0x8000, scoped, tag = 'input window, operand 16, single buffered']
    #allocation17 [shape = 'u8[131072]{0}', space=vmem, size = 0x20000, scoped, tag = 'input window, operand 22, single buffered']
    #allocation18 [shape = 's32[1]{0}', space=sflag, size = 0x4, scoped, tag = 'scoped memory for expression_attention_transformer_block.1']
    #allocation19 [shape = 'u8[131072]{0}', space=vmem, size = 0x20000, scoped, tag = 'output window, operand 0']
    %29 = vsyncpa [#allocation3], 0
    %s30 = scalar_lea.sflag [#allocation3], 1
    %31 = vsyncpa %s30, 0
    %32 = vsyncpa [#allocation6], 0
    %33 = vsyncpa [#allocation9], 0
    %34 = vsyncpa [#allocation12], 0
    %35 = vsyncpa [#allocation15], 0
    %36 = vsyncpa [#allocation18], 0
    %37 = vsyncpa [#allocation4], 0
    %s38 = scalar_lea.sflag [#allocation4], 1
    %39 = vsyncpa %s38, 0
    loop: start=0, step=1, limit=4
    $region2: #{expression_attention_transformer_block.1} parent=1 // loop_pre_header
      _
    $region3: #{expression_attention_transformer_block.1} parent=1 // loop_header
      %s41 = sphi 0, %s45
      %p42 = scmp.ge.s32.totalorder %s41, 4
      %s51 = sphi 0, %s53
      %s54 = sphi 0, %s51
      %s55 = sphi 0, %s54
      %s71 = sphi 0, %s55
      %s77 = sphi 0, %s79
      %s80 = sphi 0, %s77
      %s81 = sphi 0, %s80
      %s97 = sphi 0, %s81
      %s103 = sphi 0, %s105
      %s106 = sphi 0, %s103
      %s107 = sphi 0, %s106
      %s123 = sphi 0, %s107
      %s127 = sphi 0, %s127
      %s129 = sphi 0, %s127
      %s130 = sphi 0, %s129
      %s144 = sphi 0, %s130
      %s148 = sphi 0, %s148
      %s150 = sphi 0, %s148
      %s151 = sphi 0, %s150
      %s165 = sphi 0, %s151
      %s169 = sphi 0, %s169
      %s171 = sphi 0, %s169
      %s172 = sphi 0, %s171
      %s186 = sphi 0, %s172
      %s190 = sphi 0, %s190
      %s192 = sphi 0, %s190
      %s193 = sphi 0, %s192
      %s207 = sphi 0, %s193
      %s211 = sphi 0, %s211
      %s213 = sphi 0, %s211
      %s214 = sphi 0, %s213
      %s228 = sphi 0, %s214
      %s232 = sphi 0, %s232
      %s234 = sphi 0, %s232
      %s235 = sphi 0, %s234
      %s249 = sphi 0, %s235
      %s253 = sphi 0, %s253
      %s255 = sphi 0, %s253
      %s256 = sphi 0, %s255
      %s270 = sphi 0, %s256
      %s274 = sphi 0, %s274
      %s276 = sphi 0, %s274
      %s277 = sphi 0, %s276
      %s291 = sphi 0, %s277
      %s295 = sphi 0, %s295
      %s297 = sphi 0, %s295
      %s298 = sphi 0, %s297
      %s312 = sphi 0, %s298
      %s316 = sphi 0, %s316
      %s318 = sphi 0, %s316
      %s319 = sphi 0, %s318
      %s333 = sphi 0, %s319
      %s337 = sphi 0, %s337
      %s339 = sphi 0, %s337
      %s340 = sphi 0, %s339
      %s354 = sphi 0, %s340
      %s358 = sphi 0, %s358
      %s360 = sphi 0, %s358
      %s361 = sphi 0, %s360
      %s375 = sphi 0, %s361
      %s379 = sphi 0, %s379
      %s381 = sphi 0, %s379
      %s382 = sphi 0, %s381
      %s396 = sphi 0, %s382
      %s400 = sphi 0, %s400
      %s402 = sphi 0, %s400
      %s403 = sphi 0, %s402
      %s417 = sphi 0, %s403
      %s421 = sphi 0, %s421
      %s423 = sphi 0, %s421
      %s424 = sphi 0, %s423
      %s438 = sphi 0, %s424
      %s442 = sphi 0, %s442
      %s444 = sphi 0, %s442
      %s445 = sphi 0, %s444
      %s459 = sphi 0, %s445
      %s463 = sphi 0, %s463
      %s465 = sphi 0, %s463
      %s466 = sphi 0, %s465
      %s480 = sphi 0, %s466
      %s484 = sphi 0, %s484
      %s486 = sphi 0, %s484
      %s487 = sphi 0, %s486
      %s501 = sphi 0, %s487
      %s505 = sphi 0, %s505
      %s507 = sphi 0, %s505
      %s508 = sphi 0, %s507
      %s522 = sphi 0, %s508
      %s526 = sphi 0, %s526
      %s528 = sphi 0, %s526
      %s529 = sphi 0, %s528
      %s543 = sphi 0, %s529
      %s547 = sphi 0, %s547
      %s549 = sphi 0, %s547
      %s550 = sphi 0, %s549
      %s564 = sphi 0, %s550
      %s570 = sphi 0, %s572
      %s573 = sphi 0, %s570
      %s574 = sphi 0, %s573
      %s590 = sphi 0, %s574
    $region4: #{expression_attention_transformer_block.1} parent=1 // loop_header_branch
      %44 = sbr.rel (%p42) target = $region8
    $region5: #{expression_attention_transformer_block.1} parent=1 // loop_body
      %s46 = ssub.s32 %s41, 1
      %s47 = ssub.s32 %s41, 2
      %s48 = sadd.s32 %s41, 1
      %s49 = ssub.s32 %s41, %s48
      %p50 = scmp.eq.s32.totalorder %s49, 0
      %s52 = sadd.s32 %s51, 1
      %s53 = scalar_select %p50, %s51, %s52
      %p56 = pneg %p50
      %p57 = scmp.eq.s32.totalorder %s41, 1
      %p58 = por %p56, %p57
      %p59 = scmp.ne.s32.totalorder %s51, %s54
      %p60 = scmp.eq.s32.totalorder %s41, 0
      %p61 = por %p59, %p60
      %p62 = scmp.ne.s32.totalorder %s51, %s54
      %p63 = scmp.eq.s32.totalorder %s46, 1
      %p64 = por %p62, %p63
      %p65 = scmp.ne.s32.totalorder %s54, %s55
      %p66 = scmp.eq.s32.totalorder %s46, 0
      %p67 = por %p65, %p66
      %p68 = scmp.ne.s32.totalorder %s54, %s55
      %p69 = scmp.eq.s32.totalorder %s47, 1
      %p70 = por %p68, %p69
      %p72 = scmp.ne.s32.totalorder %s55, %s71
      %p73 = scmp.eq.s32.totalorder %s47, 0
      %p74 = por %p72, %p73
      %s75 = ssub.s32 %s41, %s48
      %p76 = scmp.eq.s32.totalorder %s75, 0
      %s78 = sadd.s32 %s77, 1
      %s79 = scalar_select %p76, %s77, %s78
      %p82 = pneg %p76
      %p83 = scmp.eq.s32.totalorder %s41, 1
      %p84 = por %p82, %p83
      %p85 = scmp.ne.s32.totalorder %s77, %s80
      %p86 = scmp.eq.s32.totalorder %s41, 0
      %p87 = por %p85, %p86
      %p88 = scmp.ne.s32.totalorder %s77, %s80
      %p89 = scmp.eq.s32.totalorder %s46, 1
      %p90 = por %p88, %p89
      %p91 = scmp.ne.s32.totalorder %s80, %s81
      %p92 = scmp.eq.s32.totalorder %s46, 0
      %p93 = por %p91, %p92
      %p94 = scmp.ne.s32.totalorder %s80, %s81
      %p95 = scmp.eq.s32.totalorder %s47, 1
      %p96 = por %p94, %p95
      %p98 = scmp.ne.s32.totalorder %s81, %s97
      %p99 = scmp.eq.s32.totalorder %s47, 0
      %p100 = por %p98, %p99
      %s101 = ssub.s32 %s41, %s48
      %p102 = scmp.eq.s32.totalorder %s101, 0
      %s104 = sadd.s32 %s103, 1
      %s105 = scalar_select %p102, %s103, %s104
      %p108 = pneg %p102
      %p109 = scmp.eq.s32.totalorder %s41, 1
      %p110 = por %p108, %p109
      %p111 = scmp.ne.s32.totalorder %s103, %s106
      %p112 = scmp.eq.s32.totalorder %s41, 0
      %p113 = por %p111, %p112
      %p114 = scmp.ne.s32.totalorder %s103, %s106
      %p115 = scmp.eq.s32.totalorder %s46, 1
      %p116 = por %p114, %p115
      %p117 = scmp.ne.s32.totalorder %s106, %s107
      %p118 = scmp.eq.s32.totalorder %s46, 0
      %p119 = por %p117, %p118
      %p120 = scmp.ne.s32.totalorder %s106, %s107
      %p121 = scmp.eq.s32.totalorder %s47, 1
      %p122 = por %p120, %p121
      %p124 = scmp.ne.s32.totalorder %s107, %s123
      %p125 = scmp.eq.s32.totalorder %s47, 0
      %p126 = por %p124, %p125
      %s128 = sadd.s32 %s127, 1
      %p131 = scmp.eq.s32.totalorder %s41, 1
      %p132 = scmp.ne.s32.totalorder %s127, %s129
      %p133 = scmp.eq.s32.totalorder %s41, 0
      %p134 = por %p132, %p133
      %p135 = scmp.ne.s32.totalorder %s127, %s129
      %p136 = scmp.eq.s32.totalorder %s46, 1
      %p137 = por %p135, %p136
      %p138 = scmp.ne.s32.totalorder %s129, %s130
      %p139 = scmp.eq.s32.totalorder %s46, 0
      %p140 = por %p138, %p139
      %p141 = scmp.ne.s32.totalorder %s129, %s130
      %p142 = scmp.eq.s32.totalorder %s47, 1
      %p143 = por %p141, %p142
      %p145 = scmp.ne.s32.totalorder %s130, %s144
      %p146 = scmp.eq.s32.totalorder %s47, 0
      %p147 = por %p145, %p146
      %s149 = sadd.s32 %s148, 1
      %p152 = scmp.eq.s32.totalorder %s41, 1
      %p153 = scmp.ne.s32.totalorder %s148, %s150
      %p154 = scmp.eq.s32.totalorder %s41, 0
      %p155 = por %p153, %p154
      %p156 = scmp.ne.s32.totalorder %s148, %s150
      %p157 = scmp.eq.s32.totalorder %s46, 1
      %p158 = por %p156, %p157
      %p159 = scmp.ne.s32.totalorder %s150, %s151
      %p160 = scmp.eq.s32.totalorder %s46, 0
      %p161 = por %p159, %p160
      %p162 = scmp.ne.s32.totalorder %s150, %s151
      %p163 = scmp.eq.s32.totalorder %s47, 1
      %p164 = por %p162, %p163
      %p166 = scmp.ne.s32.totalorder %s151, %s165
      %p167 = scmp.eq.s32.totalorder %s47, 0
      %p168 = por %p166, %p167
      %s170 = sadd.s32 %s169, 1
      %p173 = scmp.eq.s32.totalorder %s41, 1
      %p174 = scmp.ne.s32.totalorder %s169, %s171
      %p175 = scmp.eq.s32.totalorder %s41, 0
      %p176 = por %p174, %p175
      %p177 = scmp.ne.s32.totalorder %s169, %s171
      %p178 = scmp.eq.s32.totalorder %s46, 1
      %p179 = por %p177, %p178
      %p180 = scmp.ne.s32.totalorder %s171, %s172
      %p181 = scmp.eq.s32.totalorder %s46, 0
      %p182 = por %p180, %p181
      %p183 = scmp.ne.s32.totalorder %s171, %s172
      %p184 = scmp.eq.s32.totalorder %s47, 1
      %p185 = por %p183, %p184
      %p187 = scmp.ne.s32.totalorder %s172, %s186
      %p188 = scmp.eq.s32.totalorder %s47, 0
      %p189 = por %p187, %p188
      %s191 = sadd.s32 %s190, 1
      %p194 = scmp.eq.s32.totalorder %s41, 1
      %p195 = scmp.ne.s32.totalorder %s190, %s192
      %p196 = scmp.eq.s32.totalorder %s41, 0
      %p197 = por %p195, %p196
      %p198 = scmp.ne.s32.totalorder %s190, %s192
      %p199 = scmp.eq.s32.totalorder %s46, 1
      %p200 = por %p198, %p199
      %p201 = scmp.ne.s32.totalorder %s192, %s193
      %p202 = scmp.eq.s32.totalorder %s46, 0
      %p203 = por %p201, %p202
      %p204 = scmp.ne.s32.totalorder %s192, %s193
      %p205 = scmp.eq.s32.totalorder %s47, 1
      %p206 = por %p204, %p205
      %p208 = scmp.ne.s32.totalorder %s193, %s207
      %p209 = scmp.eq.s32.totalorder %s47, 0
      %p210 = por %p208, %p209
      %s212 = sadd.s32 %s211, 1
      %p215 = scmp.eq.s32.totalorder %s41, 1
      %p216 = scmp.ne.s32.totalorder %s211, %s213
      %p217 = scmp.eq.s32.totalorder %s41, 0
      %p218 = por %p216, %p217
      %p219 = scmp.ne.s32.totalorder %s211, %s213
      %p220 = scmp.eq.s32.totalorder %s46, 1
      %p221 = por %p219, %p220
      %p222 = scmp.ne.s32.totalorder %s213, %s214
      %p223 = scmp.eq.s32.totalorder %s46, 0
      %p224 = por %p222, %p223
      %p225 = scmp.ne.s32.totalorder %s213, %s214
      %p226 = scmp.eq.s32.totalorder %s47, 1
      %p227 = por %p225, %p226
      %p229 = scmp.ne.s32.totalorder %s214, %s228
      %p230 = scmp.eq.s32.totalorder %s47, 0
      %p231 = por %p229, %p230
      %s233 = sadd.s32 %s232, 1
      %p236 = scmp.eq.s32.totalorder %s41, 1
      %p237 = scmp.ne.s32.totalorder %s232, %s234
      %p238 = scmp.eq.s32.totalorder %s41, 0
      %p239 = por %p237, %p238
      %p240 = scmp.ne.s32.totalorder %s232, %s234
      %p241 = scmp.eq.s32.totalorder %s46, 1
      %p242 = por %p240, %p241
      %p243 = scmp.ne.s32.totalorder %s234, %s235
      %p244 = scmp.eq.s32.totalorder %s46, 0
      %p245 = por %p243, %p244
      %p246 = scmp.ne.s32.totalorder %s234, %s235
      %p247 = scmp.eq.s32.totalorder %s47, 1
      %p248 = por %p246, %p247
      %p250 = scmp.ne.s32.totalorder %s235, %s249
      %p251 = scmp.eq.s32.totalorder %s47, 0
      %p252 = por %p250, %p251
      %s254 = sadd.s32 %s253, 1
      %p257 = scmp.eq.s32.totalorder %s41, 1
      %p258 = scmp.ne.s32.totalorder %s253, %s255
      %p259 = scmp.eq.s32.totalorder %s41, 0
      %p260 = por %p258, %p259
      %p261 = scmp.ne.s32.totalorder %s253, %s255
      %p262 = scmp.eq.s32.totalorder %s46, 1
      %p263 = por %p261, %p262
      %p264 = scmp.ne.s32.totalorder %s255, %s256
      %p265 = scmp.eq.s32.totalorder %s46, 0
      %p266 = por %p264, %p265
      %p267 = scmp.ne.s32.totalorder %s255, %s256
      %p268 = scmp.eq.s32.totalorder %s47, 1
      %p269 = por %p267, %p268
      %p271 = scmp.ne.s32.totalorder %s256, %s270
      %p272 = scmp.eq.s32.totalorder %s47, 0
      %p273 = por %p271, %p272
      %s275 = sadd.s32 %s274, 1
      %p278 = scmp.eq.s32.totalorder %s41, 1
      %p279 = scmp.ne.s32.totalorder %s274, %s276
      %p280 = scmp.eq.s32.totalorder %s41, 0
      %p281 = por %p279, %p280
      %p282 = scmp.ne.s32.totalorder %s274, %s276
      %p283 = scmp.eq.s32.totalorder %s46, 1
      %p284 = por %p282, %p283
      %p285 = scmp.ne.s32.totalorder %s276, %s277
      %p286 = scmp.eq.s32.totalorder %s46, 0
      %p287 = por %p285, %p286
      %p288 = scmp.ne.s32.totalorder %s276, %s277
      %p289 = scmp.eq.s32.totalorder %s47, 1
      %p290 = por %p288, %p289
      %p292 = scmp.ne.s32.totalorder %s277, %s291
      %p293 = scmp.eq.s32.totalorder %s47, 0
      %p294 = por %p292, %p293
      %s296 = sadd.s32 %s295, 1
      %p299 = scmp.eq.s32.totalorder %s41, 1
      %p300 = scmp.ne.s32.totalorder %s295, %s297
      %p301 = scmp.eq.s32.totalorder %s41, 0
      %p302 = por %p300, %p301
      %p303 = scmp.ne.s32.totalorder %s295, %s297
      %p304 = scmp.eq.s32.totalorder %s46, 1
      %p305 = por %p303, %p304
      %p306 = scmp.ne.s32.totalorder %s297, %s298
      %p307 = scmp.eq.s32.totalorder %s46, 0
      %p308 = por %p306, %p307
      %p309 = scmp.ne.s32.totalorder %s297, %s298
      %p310 = scmp.eq.s32.totalorder %s47, 1
      %p311 = por %p309, %p310
      %p313 = scmp.ne.s32.totalorder %s298, %s312
      %p314 = scmp.eq.s32.totalorder %s47, 0
      %p315 = por %p313, %p314
      %s317 = sadd.s32 %s316, 1
      %p320 = scmp.eq.s32.totalorder %s41, 1
      %p321 = scmp.ne.s32.totalorder %s316, %s318
      %p322 = scmp.eq.s32.totalorder %s41, 0
      %p323 = por %p321, %p322
      %p324 = scmp.ne.s32.totalorder %s316, %s318
      %p325 = scmp.eq.s32.totalorder %s46, 1
      %p326 = por %p324, %p325
      %p327 = scmp.ne.s32.totalorder %s318, %s319
      %p328 = scmp.eq.s32.totalorder %s46, 0
      %p329 = por %p327, %p328
      %p330 = scmp.ne.s32.totalorder %s318, %s319
      %p331 = scmp.eq.s32.totalorder %s47, 1
      %p332 = por %p330, %p331
      %p334 = scmp.ne.s32.totalorder %s319, %s333
      %p335 = scmp.eq.s32.totalorder %s47, 0
      %p336 = por %p334, %p335
      %s338 = sadd.s32 %s337, 1
      %p341 = scmp.eq.s32.totalorder %s41, 1
      %p342 = scmp.ne.s32.totalorder %s337, %s339
      %p343 = scmp.eq.s32.totalorder %s41, 0
      %p344 = por %p342, %p343
      %p345 = scmp.ne.s32.totalorder %s337, %s339
      %p346 = scmp.eq.s32.totalorder %s46, 1
      %p347 = por %p345, %p346
      %p348 = scmp.ne.s32.totalorder %s339, %s340
      %p349 = scmp.eq.s32.totalorder %s46, 0
      %p350 = por %p348, %p349
      %p351 = scmp.ne.s32.totalorder %s339, %s340
      %p352 = scmp.eq.s32.totalorder %s47, 1
      %p353 = por %p351, %p352
      %p355 = scmp.ne.s32.totalorder %s340, %s354
      %p356 = scmp.eq.s32.totalorder %s47, 0
      %p357 = por %p355, %p356
      %s359 = sadd.s32 %s358, 1
      %p362 = scmp.eq.s32.totalorder %s41, 1
      %p363 = scmp.ne.s32.totalorder %s358, %s360
      %p364 = scmp.eq.s32.totalorder %s41, 0
      %p365 = por %p363, %p364
      %p366 = scmp.ne.s32.totalorder %s358, %s360
      %p367 = scmp.eq.s32.totalorder %s46, 1
      %p368 = por %p366, %p367
      %p369 = scmp.ne.s32.totalorder %s360, %s361
      %p370 = scmp.eq.s32.totalorder %s46, 0
      %p371 = por %p369, %p370
      %p372 = scmp.ne.s32.totalorder %s360, %s361
      %p373 = scmp.eq.s32.totalorder %s47, 1
      %p374 = por %p372, %p373
      %p376 = scmp.ne.s32.totalorder %s361, %s375
      %p377 = scmp.eq.s32.totalorder %s47, 0
      %p378 = por %p376, %p377
      %s380 = sadd.s32 %s379, 1
      %p383 = scmp.eq.s32.totalorder %s41, 1
      %p384 = scmp.ne.s32.totalorder %s379, %s381
      %p385 = scmp.eq.s32.totalorder %s41, 0
      %p386 = por %p384, %p385
      %p387 = scmp.ne.s32.totalorder %s379, %s381
      %p388 = scmp.eq.s32.totalorder %s46, 1
      %p389 = por %p387, %p388
      %p390 = scmp.ne.s32.totalorder %s381, %s382
      %p391 = scmp.eq.s32.totalorder %s46, 0
      %p392 = por %p390, %p391
      %p393 = scmp.ne.s32.totalorder %s381, %s382
      %p394 = scmp.eq.s32.totalorder %s47, 1
      %p395 = por %p393, %p394
      %p397 = scmp.ne.s32.totalorder %s382, %s396
      %p398 = scmp.eq.s32.totalorder %s47, 0
      %p399 = por %p397, %p398
      %s401 = sadd.s32 %s400, 1
      %p404 = scmp.eq.s32.totalorder %s41, 1
      %p405 = scmp.ne.s32.totalorder %s400, %s402
      %p406 = scmp.eq.s32.totalorder %s41, 0
      %p407 = por %p405, %p406
      %p408 = scmp.ne.s32.totalorder %s400, %s402
      %p409 = scmp.eq.s32.totalorder %s46, 1
      %p410 = por %p408, %p409
      %p411 = scmp.ne.s32.totalorder %s402, %s403
      %p412 = scmp.eq.s32.totalorder %s46, 0
      %p413 = por %p411, %p412
      %p414 = scmp.ne.s32.totalorder %s402, %s403
      %p415 = scmp.eq.s32.totalorder %s47, 1
      %p416 = por %p414, %p415
      %p418 = scmp.ne.s32.totalorder %s403, %s417
      %p419 = scmp.eq.s32.totalorder %s47, 0
      %p420 = por %p418, %p419
      %s422 = sadd.s32 %s421, 1
      %p425 = scmp.eq.s32.totalorder %s41, 1
      %p426 = scmp.ne.s32.totalorder %s421, %s423
      %p427 = scmp.eq.s32.totalorder %s41, 0
      %p428 = por %p426, %p427
      %p429 = scmp.ne.s32.totalorder %s421, %s423
      %p430 = scmp.eq.s32.totalorder %s46, 1
      %p431 = por %p429, %p430
      %p432 = scmp.ne.s32.totalorder %s423, %s424
      %p433 = scmp.eq.s32.totalorder %s46, 0
      %p434 = por %p432, %p433
      %p435 = scmp.ne.s32.totalorder %s423, %s424
      %p436 = scmp.eq.s32.totalorder %s47, 1
      %p437 = por %p435, %p436
      %p439 = scmp.ne.s32.totalorder %s424, %s438
      %p440 = scmp.eq.s32.totalorder %s47, 0
      %p441 = por %p439, %p440
      %s443 = sadd.s32 %s442, 1
      %p446 = scmp.eq.s32.totalorder %s41, 1
      %p447 = scmp.ne.s32.totalorder %s442, %s444
      %p448 = scmp.eq.s32.totalorder %s41, 0
      %p449 = por %p447, %p448
      %p450 = scmp.ne.s32.totalorder %s442, %s444
      %p451 = scmp.eq.s32.totalorder %s46, 1
      %p452 = por %p450, %p451
      %p453 = scmp.ne.s32.totalorder %s444, %s445
      %p454 = scmp.eq.s32.totalorder %s46, 0
      %p455 = por %p453, %p454
      %p456 = scmp.ne.s32.totalorder %s444, %s445
      %p457 = scmp.eq.s32.totalorder %s47, 1
      %p458 = por %p456, %p457
      %p460 = scmp.ne.s32.totalorder %s445, %s459
      %p461 = scmp.eq.s32.totalorder %s47, 0
      %p462 = por %p460, %p461
      %s464 = sadd.s32 %s463, 1
      %p467 = scmp.eq.s32.totalorder %s41, 1
      %p468 = scmp.ne.s32.totalorder %s463, %s465
      %p469 = scmp.eq.s32.totalorder %s41, 0
      %p470 = por %p468, %p469
      %p471 = scmp.ne.s32.totalorder %s463, %s465
      %p472 = scmp.eq.s32.totalorder %s46, 1
      %p473 = por %p471, %p472
      %p474 = scmp.ne.s32.totalorder %s465, %s466
      %p475 = scmp.eq.s32.totalorder %s46, 0
      %p476 = por %p474, %p475
      %p477 = scmp.ne.s32.totalorder %s465, %s466
      %p478 = scmp.eq.s32.totalorder %s47, 1
      %p479 = por %p477, %p478
      %p481 = scmp.ne.s32.totalorder %s466, %s480
      %p482 = scmp.eq.s32.totalorder %s47, 0
      %p483 = por %p481, %p482
      %s485 = sadd.s32 %s484, 1
      %p488 = scmp.eq.s32.totalorder %s41, 1
      %p489 = scmp.ne.s32.totalorder %s484, %s486
      %p490 = scmp.eq.s32.totalorder %s41, 0
      %p491 = por %p489, %p490
      %p492 = scmp.ne.s32.totalorder %s484, %s486
      %p493 = scmp.eq.s32.totalorder %s46, 1
      %p494 = por %p492, %p493
      %p495 = scmp.ne.s32.totalorder %s486, %s487
      %p496 = scmp.eq.s32.totalorder %s46, 0
      %p497 = por %p495, %p496
      %p498 = scmp.ne.s32.totalorder %s486, %s487
      %p499 = scmp.eq.s32.totalorder %s47, 1
      %p500 = por %p498, %p499
      %p502 = scmp.ne.s32.totalorder %s487, %s501
      %p503 = scmp.eq.s32.totalorder %s47, 0
      %p504 = por %p502, %p503
      %s506 = sadd.s32 %s505, 1
      %p509 = scmp.eq.s32.totalorder %s41, 1
      %p510 = scmp.ne.s32.totalorder %s505, %s507
      %p511 = scmp.eq.s32.totalorder %s41, 0
      %p512 = por %p510, %p511
      %p513 = scmp.ne.s32.totalorder %s505, %s507
      %p514 = scmp.eq.s32.totalorder %s46, 1
      %p515 = por %p513, %p514
      %p516 = scmp.ne.s32.totalorder %s507, %s508
      %p517 = scmp.eq.s32.totalorder %s46, 0
      %p518 = por %p516, %p517
      %p519 = scmp.ne.s32.totalorder %s507, %s508
      %p520 = scmp.eq.s32.totalorder %s47, 1
      %p521 = por %p519, %p520
      %p523 = scmp.ne.s32.totalorder %s508, %s522
      %p524 = scmp.eq.s32.totalorder %s47, 0
      %p525 = por %p523, %p524
      %s527 = sadd.s32 %s526, 1
      %p530 = scmp.eq.s32.totalorder %s41, 1
      %p531 = scmp.ne.s32.totalorder %s526, %s528
      %p532 = scmp.eq.s32.totalorder %s41, 0
      %p533 = por %p531, %p532
      %p534 = scmp.ne.s32.totalorder %s526, %s528
      %p535 = scmp.eq.s32.totalorder %s46, 1
      %p536 = por %p534, %p535
      %p537 = scmp.ne.s32.totalorder %s528, %s529
      %p538 = scmp.eq.s32.totalorder %s46, 0
      %p539 = por %p537, %p538
      %p540 = scmp.ne.s32.totalorder %s528, %s529
      %p541 = scmp.eq.s32.totalorder %s47, 1
      %p542 = por %p540, %p541
      %p544 = scmp.ne.s32.totalorder %s529, %s543
      %p545 = scmp.eq.s32.totalorder %s47, 0
      %p546 = por %p544, %p545
      %s548 = sadd.s32 %s547, 1
      %p551 = scmp.eq.s32.totalorder %s41, 1
      %p552 = scmp.ne.s32.totalorder %s547, %s549
      %p553 = scmp.eq.s32.totalorder %s41, 0
      %p554 = por %p552, %p553
      %p555 = scmp.ne.s32.totalorder %s547, %s549
      %p556 = scmp.eq.s32.totalorder %s46, 1
      %p557 = por %p555, %p556
      %p558 = scmp.ne.s32.totalorder %s549, %s550
      %p559 = scmp.eq.s32.totalorder %s46, 0
      %p560 = por %p558, %p559
      %p561 = scmp.ne.s32.totalorder %s549, %s550
      %p562 = scmp.eq.s32.totalorder %s47, 1
      %p563 = por %p561, %p562
      %p565 = scmp.ne.s32.totalorder %s550, %s564
      %p566 = scmp.eq.s32.totalorder %s47, 0
      %p567 = por %p565, %p566
      %s568 = ssub.s32 %s41, %s48
      %p569 = scmp.eq.s32.totalorder %s568, 0
      %s571 = sadd.s32 %s570, 1
      %s572 = scalar_select %p569, %s570, %s571
      %p575 = pneg %p569
      %p576 = scmp.eq.s32.totalorder %s41, 1
      %p577 = por %p575, %p576
      %p578 = scmp.ne.s32.totalorder %s570, %s573
      %p579 = scmp.eq.s32.totalorder %s41, 0
      %p580 = por %p578, %p579
      %p581 = scmp.ne.s32.totalorder %s570, %s573
      %p582 = scmp.eq.s32.totalorder %s46, 1
      %p583 = por %p581, %p582
      %p584 = scmp.ne.s32.totalorder %s573, %s574
      %p585 = scmp.eq.s32.totalorder %s46, 0
      %p586 = por %p584, %p585
      %p587 = scmp.ne.s32.totalorder %s573, %s574
      %p588 = scmp.eq.s32.totalorder %s47, 1
      %p589 = por %p587, %p588
      %p591 = scmp.ne.s32.totalorder %s574, %s590
      %p592 = scmp.eq.s32.totalorder %s47, 0
      %p593 = por %p591, %p592
      %p594 = scmp.le.s32.totalorder 1, %s41
      %p595 = scmp.lt.s32.totalorder %s41, 3
      %p596 = pnand %p594, %p595
      %p597 = pneg %p596
      // Predicated region
      $region9: #{expression_attention_transformer_block.1} parent=5 // pred_check
        _
      $region10: #{expression_attention_transformer_block.1} parent=5 // pred_check_branch
        %599 = sbr.rel (%p596) target = $region12
      $region11: #{expression_attention_transformer_block.1} parent=5 // pred_region
        %s600 = ssub.s32 %s41, 1
        // Predicated region
        $region13: #{expression_attention_transformer_block.1} parent=11 // pred_check
          %p601 = pneg %p140
        $region14: #{expression_attention_transformer_block.1} parent=11 // pred_check_branch
          %603 = sbr.rel (%p601) target = $region16
        $region15: #{expression_attention_transformer_block.1} parent=11 // pred_region
          _
        $region16: #{expression_attention_transformer_block.1} parent=11 // pred_fallthru
          _
        // Predicated region
        $region17: #{expression_attention_transformer_block.1} parent=11 // pred_check
          %p604 = pneg %p161
        $region18: #{expression_attention_transformer_block.1} parent=11 // pred_check_branch
          %606 = sbr.rel (%p604) target = $region20
        $region19: #{expression_attention_transformer_block.1} parent=11 // pred_region
          _
        $region20: #{expression_attention_transformer_block.1} parent=11 // pred_fallthru
          _
        // Predicated region
        $region21: #{expression_attention_transformer_block.1} parent=11 // pred_check
          %p607 = pneg %p182
        $region22: #{expression_attention_transformer_block.1} parent=11 // pred_check_branch
          %609 = sbr.rel (%p607) target = $region24
        $region23: #{expression_attention_transformer_block.1} parent=11 // pred_region
          %611 = vsyncadd [#allocation6], 0
          %s612 = sshll.u32 %s5, 4
          %s613 = int_to_ptr.hbm [resolvable:$true] %s612
          %s614 = sshll.u32 [#allocation5], 4
          %s615 = int_to_ptr.vmem [resolvable:$true] %s614
          %620 = dma.hbm_to_vmem [thread:$0]  %s613, 3072, %s615, [#allocation6], 192, 192, 12
        $region24: #{expression_attention_transformer_block.1} parent=11 // pred_fallthru
          _
        // Predicated region
        $region25: #{expression_attention_transformer_block.1} parent=11 // pred_check
          %p621 = pneg %p203
        $region26: #{expression_attention_transformer_block.1} parent=11 // pred_check_branch
          %623 = sbr.rel (%p621) target = $region28
        $region27: #{expression_attention_transformer_block.1} parent=11 // pred_region
          %625 = vsyncadd [#allocation6], 0
          %s626 = sshll.u32 %s6, 4
          %s627 = int_to_ptr.hbm [resolvable:$true] %s626
          %s628 = sshll.u32 [#allocation7], 4
          %s629 = int_to_ptr.vmem [resolvable:$true] %s628
          %634 = dma.hbm_to_vmem [thread:$0]  %s627, 1024, %s629, [#allocation6], 64, 64, 4
        $region28: #{expression_attention_transformer_block.1} parent=11 // pred_fallthru
          _
        // Predicated region
        $region29: #{expression_attention_transformer_block.1} parent=11 // pred_check
          %p635 = pneg %p224
        $region30: #{expression_attention_transformer_block.1} parent=11 // pred_check_branch
          %637 = sbr.rel (%p635) target = $region32
        $region31: #{expression_attention_transformer_block.1} parent=11 // pred_region
          _
        $region32: #{expression_attention_transformer_block.1} parent=11 // pred_fallthru
          _
        // Predicated region
        $region33: #{expression_attention_transformer_block.1} parent=11 // pred_check
          %p638 = pneg %p245
        $region34: #{expression_attention_transformer_block.1} parent=11 // pred_check_branch
          %640 = sbr.rel (%p638) target = $region36
        $region35: #{expression_attention_transformer_block.1} parent=11 // pred_region
          _
        $region36: #{expression_attention_transformer_block.1} parent=11 // pred_fallthru
          _
        // Predicated region
        $region37: #{expression_attention_transformer_block.1} parent=11 // pred_check
          %p641 = pneg %p266
        $region38: #{expression_attention_transformer_block.1} parent=11 // pred_check_branch
          %643 = sbr.rel (%p641) target = $region40
        $region39: #{expression_attention_transformer_block.1} parent=11 // pred_region
          _
        $region40: #{expression_attention_transformer_block.1} parent=11 // pred_fallthru
          _
        // Predicated region
        $region41: #{expression_attention_transformer_block.1} parent=11 // pred_check
          %p644 = pneg %p287
        $region42: #{expression_attention_transformer_block.1} parent=11 // pred_check_branch
          %646 = sbr.rel (%p644) target = $region44
        $region43: #{expression_attention_transformer_block.1} parent=11 // pred_region
          %648 = vsyncadd [#allocation9], 0
          %s649 = sshll.u32 %s10, 4
          %s650 = int_to_ptr.hbm [resolvable:$true] %s649
          %s651 = sshll.u32 [#allocation8], 4
          %s652 = int_to_ptr.vmem [resolvable:$true] %s651
          %657 = dma.hbm_to_vmem [thread:$0]  %s650, 1024, %s652, [#allocation9], 64, 64, 4
        $region44: #{expression_attention_transformer_block.1} parent=11 // pred_fallthru
          _
        // Predicated region
        $region45: #{expression_attention_transformer_block.1} parent=11 // pred_check
          %p658 = pneg %p308
        $region46: #{expression_attention_transformer_block.1} parent=11 // pred_check_branch
          %660 = sbr.rel (%p658) target = $region48
        $region47: #{expression_attention_transformer_block.1} parent=11 // pred_region
          %662 = vsyncadd [#allocation9], 0
          %s663 = sshll.u32 %s11, 4
          %s664 = int_to_ptr.hbm [resolvable:$true] %s663
          %s665 = sshll.u32 [#allocation10], 4
          %s666 = int_to_ptr.vmem [resolvable:$true] %s665
          %671 = dma.hbm_to_vmem [thread:$0]  %s664, 1024, %s666, [#allocation9], 128, 128, 8
        $region48: #{expression_attention_transformer_block.1} parent=11 // pred_fallthru
          _
        // Predicated region
        $region49: #{expression_attention_transformer_block.1} parent=11 // pred_check
          %p672 = pneg %p329
        $region50: #{expression_attention_transformer_block.1} parent=11 // pred_check_branch
          %674 = sbr.rel (%p672) target = $region52
        $region51: #{expression_attention_transformer_block.1} parent=11 // pred_region
          %676 = vsyncadd [#allocation12], 0
          %s677 = sshll.u32 %s12, 4
          %s678 = int_to_ptr.hbm [resolvable:$true] %s677
          %s679 = sshll.u32 [#allocation11], 4
          %s680 = int_to_ptr.vmem [resolvable:$true] %s679
          %685 = dma.hbm_to_vmem [thread:$0]  %s678, 1024, %s680, [#allocation12], 64, 64, 4
        $region52: #{expression_attention_transformer_block.1} parent=11 // pred_fallthru
          _
        // Predicated region
        $region53: #{expression_attention_transformer_block.1} parent=11 // pred_check
          %p686 = pneg %p350
        $region54: #{expression_attention_transformer_block.1} parent=11 // pred_check_branch
          %688 = sbr.rel (%p686) target = $region56
        $region55: #{expression_attention_transformer_block.1} parent=11 // pred_region
          _
        $region56: #{expression_attention_transformer_block.1} parent=11 // pred_fallthru
          _
        // Predicated region
        $region57: #{expression_attention_transformer_block.1} parent=11 // pred_check
          %p689 = pneg %p371
        $region58: #{expression_attention_transformer_block.1} parent=11 // pred_check_branch
          %691 = sbr.rel (%p689) target = $region60
        $region59: #{expression_attention_transformer_block.1} parent=11 // pred_region
          %693 = vsyncadd [#allocation12], 0
          %s694 = sshll.u32 %s14, 4
          %s695 = int_to_ptr.hbm [resolvable:$true] %s694
          %s696 = sshll.u32 [#allocation13], 4
          %s697 = int_to_ptr.vmem [resolvable:$true] %s696
          %702 = dma.hbm_to_vmem [thread:$0]  %s695, 1024, %s697, [#allocation12], 64, 64, 4
        $region60: #{expression_attention_transformer_block.1} parent=11 // pred_fallthru
          _
        // Predicated region
        $region61: #{expression_attention_transformer_block.1} parent=11 // pred_check
          %p703 = pneg %p392
        $region62: #{expression_attention_transformer_block.1} parent=11 // pred_check_branch
          %705 = sbr.rel (%p703) target = $region64
        $region63: #{expression_attention_transformer_block.1} parent=11 // pred_region
          %707 = vsyncadd [#allocation15], 0
          %s708 = sshll.u32 %s15, 4
          %s709 = int_to_ptr.hbm [resolvable:$true] %s708
          %s710 = sshll.u32 [#allocation14], 4
          %s711 = int_to_ptr.vmem [resolvable:$true] %s710
          %716 = dma.hbm_to_vmem [thread:$0]  %s709, 1024, %s711, [#allocation15], 128, 128, 8
        $region64: #{expression_attention_transformer_block.1} parent=11 // pred_fallthru
          _
        // Predicated region
        $region65: #{expression_attention_transformer_block.1} parent=11 // pred_check
          %p717 = pneg %p413
        $region66: #{expression_attention_transformer_block.1} parent=11 // pred_check_branch
          %719 = sbr.rel (%p717) target = $region68
        $region67: #{expression_attention_transformer_block.1} parent=11 // pred_region
          %721 = vsyncadd [#allocation15], 0
          %s722 = sshll.u32 %s16, 4
          %s723 = int_to_ptr.hbm [resolvable:$true] %s722
          %s724 = sshll.u32 [#allocation16], 4
          %s725 = int_to_ptr.vmem [resolvable:$true] %s724
          %730 = dma.hbm_to_vmem [thread:$0]  %s723, 1024, %s725, [#allocation15], 64, 64, 4
        $region68: #{expression_attention_transformer_block.1} parent=11 // pred_fallthru
          _
        // Predicated region
        $region69: #{expression_attention_transformer_block.1} parent=11 // pred_check
          %p731 = pneg %p434
        $region70: #{expression_attention_transformer_block.1} parent=11 // pred_check_branch
          %733 = sbr.rel (%p731) target = $region72
        $region71: #{expression_attention_transformer_block.1} parent=11 // pred_region
          _
        $region72: #{expression_attention_transformer_block.1} parent=11 // pred_fallthru
          _
        // Predicated region
        $region73: #{expression_attention_transformer_block.1} parent=11 // pred_check
          %p734 = pneg %p455
        $region74: #{expression_attention_transformer_block.1} parent=11 // pred_check_branch
          %736 = sbr.rel (%p734) target = $region76
        $region75: #{expression_attention_transformer_block.1} parent=11 // pred_region
          _
        $region76: #{expression_attention_transformer_block.1} parent=11 // pred_fallthru
          _
        // Predicated region
        $region77: #{expression_attention_transformer_block.1} parent=11 // pred_check
          %p737 = pneg %p476
        $region78: #{expression_attention_transformer_block.1} parent=11 // pred_check_branch
          %739 = sbr.rel (%p737) target = $region80
        $region79: #{expression_attention_transformer_block.1} parent=11 // pred_region
          _
        $region80: #{expression_attention_transformer_block.1} parent=11 // pred_fallthru
          _
        // Predicated region
        $region81: #{expression_attention_transformer_block.1} parent=11 // pred_check
          %p740 = pneg %p497
        $region82: #{expression_attention_transformer_block.1} parent=11 // pred_check_branch
          %742 = sbr.rel (%p740) target = $region84
        $region83: #{expression_attention_transformer_block.1} parent=11 // pred_region
          _
        $region84: #{expression_attention_transformer_block.1} parent=11 // pred_fallthru
          _
        // Predicated region
        $region85: #{expression_attention_transformer_block.1} parent=11 // pred_check
          %p743 = pneg %p518
        $region86: #{expression_attention_transformer_block.1} parent=11 // pred_check_branch
          %745 = sbr.rel (%p743) target = $region88
        $region87: #{expression_attention_transformer_block.1} parent=11 // pred_region
          _
        $region88: #{expression_attention_transformer_block.1} parent=11 // pred_fallthru
          _
        // Predicated region
        $region89: #{expression_attention_transformer_block.1} parent=11 // pred_check
          %p746 = pneg %p539
        $region90: #{expression_attention_transformer_block.1} parent=11 // pred_check_branch
          %748 = sbr.rel (%p746) target = $region92
        $region91: #{expression_attention_transformer_block.1} parent=11 // pred_region
          %750 = vsyncadd [#allocation18], 0
          %s751 = sshll.u32 %s22, 4
          %s752 = int_to_ptr.hbm [resolvable:$true] %s751
          %s753 = sshll.u32 [#allocation17], 4
          %s754 = int_to_ptr.vmem [resolvable:$true] %s753
          %759 = dma.hbm_to_vmem [thread:$0]  %s752, 4096, %s754, [#allocation18], 64, 64, 4
        $region92: #{expression_attention_transformer_block.1} parent=11 // pred_fallthru
          _
        // Predicated region
        $region93: #{expression_attention_transformer_block.1} parent=11 // pred_check
          %p760 = pneg %p560
        $region94: #{expression_attention_transformer_block.1} parent=11 // pred_check_branch
          %762 = sbr.rel (%p760) target = $region96
        $region95: #{expression_attention_transformer_block.1} parent=11 // pred_region
          _
        $region96: #{expression_attention_transformer_block.1} parent=11 // pred_fallthru
          _
      $region12: #{expression_attention_transformer_block.1} parent=5 // pred_fallthru
        _
      %p763 = scmp.lt.s32.totalorder %s41, 2
      // Predicated region
      $region97: #{expression_attention_transformer_block.1} parent=5 // pred_check
        %p764 = pneg %p763
      $region98: #{expression_attention_transformer_block.1} parent=5 // pred_check_branch
        %766 = sbr.rel (%p764) target = $region100
      $region99: #{expression_attention_transformer_block.1} parent=5 // pred_region
        // Predicated region
        $region101: #{expression_attention_transformer_block.1} parent=99 // pred_check
          %p767 = pneg %p61
        $region102: #{expression_attention_transformer_block.1} parent=99 // pred_check_branch
          %769 = sbr.rel (%p767) target = $region104
        $region103: #{expression_attention_transformer_block.1} parent=99 // pred_region
          %s770 = sand.u32 %s51, 1
          %s771 = scalar_lea.sflag [#allocation3], %s770
          %s772 = sand.u32 %s51, 1
          %s773 = smul.addr %s772, 128
          %s774 = scalar_lea.vmem [#allocation2], %s773
          %776 = vsyncadd %s771, 0
          %s777 = smul.addr %s41, 16
          %s778 = smul.addr %s777, 8
          %s779 = scalar_lea.hbm %s0, %s778
          %s780 = sshll.u32 %s779, 4
          %s781 = int_to_ptr.hbm [resolvable:$true] %s780
          %s782 = sshll.u32 %s774, 4
          %s783 = int_to_ptr.vmem [resolvable:$true] %s782
          %788 = dma.hbm_to_vmem [thread:$0]  %s781, 2048, %s783, %s771, 128, 128, 8
        $region104: #{expression_attention_transformer_block.1} parent=99 // pred_fallthru
          _
        // Predicated region
        $region105: #{expression_attention_transformer_block.1} parent=99 // pred_check
          %p789 = pneg %p87
        $region106: #{expression_attention_transformer_block.1} parent=99 // pred_check_branch
          %791 = sbr.rel (%p789) target = $region108
        $region107: #{expression_attention_transformer_block.1} parent=99 // pred_region
          %p792 = scmp.lt.s32.totalorder %s41, 1
          %s793 = scalar_select %p792, %s41, 1
          %s794 = smul.addr %s793, 16
          %s795 = smul.addr %s794, 8
          %s796 = scalar_lea.vmem %s1, %s795
        $region108: #{expression_attention_transformer_block.1} parent=99 // pred_fallthru
          _
        // Predicated region
        $region109: #{expression_attention_transformer_block.1} parent=99 // pred_check
          %p797 = pneg %p113
        $region110: #{expression_attention_transformer_block.1} parent=99 // pred_check_branch
          %799 = sbr.rel (%p797) target = $region112
        $region111: #{expression_attention_transformer_block.1} parent=99 // pred_region
          %p800 = scmp.lt.s32.totalorder %s41, 1
          %s801 = scalar_select %p800, %s41, 1
          %s802 = smul.addr %s801, 16
          %s803 = smul.addr %s802, 8
          %s804 = scalar_lea.vmem %s2, %s803
        $region112: #{expression_attention_transformer_block.1} parent=99 // pred_fallthru
          _
      $region100: #{expression_attention_transformer_block.1} parent=5 // pred_fallthru
        _
      %p805 = scmp.le.s32.totalorder 1, %s41
      %p806 = scmp.lt.s32.totalorder %s41, 3
      %p807 = pnand %p805, %p806
      %p808 = pneg %p807
      // Predicated region
      $region113: #{expression_attention_transformer_block.1} parent=5 // pred_check
        _
      $region114: #{expression_attention_transformer_block.1} parent=5 // pred_check_branch
        %810 = sbr.rel (%p807) target = $region116
      $region115: #{expression_attention_transformer_block.1} parent=5 // pred_region
        %s811 = ssub.s32 %s41, 1
        %s812 = sand.u32 %s54, 1
        %s813 = scalar_lea.sflag [#allocation3], %s812
        %s814 = sand.u32 %s54, 1
        %s815 = smul.addr %s814, 128
        %s816 = scalar_lea.vmem [#allocation2], %s815
        // Predicated region
        $region117: #{expression_attention_transformer_block.1} parent=115 // pred_check
          %p817 = pneg %p67
        $region118: #{expression_attention_transformer_block.1} parent=115 // pred_check_branch
          %819 = sbr.rel (%p817) target = $region120
        $region119: #{expression_attention_transformer_block.1} parent=115 // pred_region
          %821 = dma.done %s813, 2048
        $region120: #{expression_attention_transformer_block.1} parent=115 // pred_fallthru
          _
        // Predicated region
        $region121: #{expression_attention_transformer_block.1} parent=115 // pred_check
          %p822 = pneg %p182
        $region122: #{expression_attention_transformer_block.1} parent=115 // pred_check_branch
          %824 = sbr.rel (%p822) target = $region124
        $region123: #{expression_attention_transformer_block.1} parent=115 // pred_region
          %826 = dma.done [#allocation6], 3072
        $region124: #{expression_attention_transformer_block.1} parent=115 // pred_fallthru
          _
        // Predicated region
        $region125: #{expression_attention_transformer_block.1} parent=115 // pred_check
          %p827 = pneg %p203
        $region126: #{expression_attention_transformer_block.1} parent=115 // pred_check_branch
          %829 = sbr.rel (%p827) target = $region128
        $region127: #{expression_attention_transformer_block.1} parent=115 // pred_region
          %831 = dma.done [#allocation6], 1024
        $region128: #{expression_attention_transformer_block.1} parent=115 // pred_fallthru
          _
        // Predicated region
        $region129: #{expression_attention_transformer_block.1} parent=115 // pred_check
          %p832 = pneg %p287
        $region130: #{expression_attention_transformer_block.1} parent=115 // pred_check_branch
          %834 = sbr.rel (%p832) target = $region132
        $region131: #{expression_attention_transformer_block.1} parent=115 // pred_region
          %836 = dma.done [#allocation9], 1024
        $region132: #{expression_attention_transformer_block.1} parent=115 // pred_fallthru
          _
        // Predicated region
        $region133: #{expression_attention_transformer_block.1} parent=115 // pred_check
          %p837 = pneg %p308
        $region134: #{expression_attention_transformer_block.1} parent=115 // pred_check_branch
          %839 = sbr.rel (%p837) target = $region136
        $region135: #{expression_attention_transformer_block.1} parent=115 // pred_region
          %841 = dma.done [#allocation9], 1024
        $region136: #{expression_attention_transformer_block.1} parent=115 // pred_fallthru
          _
        // Predicated region
        $region137: #{expression_attention_transformer_block.1} parent=115 // pred_check
          %p842 = pneg %p329
        $region138: #{expression_attention_transformer_block.1} parent=115 // pred_check_branch
          %844 = sbr.rel (%p842) target = $region140
        $region139: #{expression_attention_transformer_block.1} parent=115 // pred_region
          %846 = dma.done [#allocation12], 1024
        $region140: #{expression_attention_transformer_block.1} parent=115 // pred_fallthru
          _
        // Predicated region
        $region141: #{expression_attention_transformer_block.1} parent=115 // pred_check
          %p847 = pneg %p371
        $region142: #{expression_attention_transformer_block.1} parent=115 // pred_check_branch
          %849 = sbr.rel (%p847) target = $region144
        $region143: #{expression_attention_transformer_block.1} parent=115 // pred_region
          %851 = dma.done [#allocation12], 1024
        $region144: #{expression_attention_transformer_block.1} parent=115 // pred_fallthru
          _
        // Predicated region
        $region145: #{expression_attention_transformer_block.1} parent=115 // pred_check
          %p852 = pneg %p392
        $region146: #{expression_attention_transformer_block.1} parent=115 // pred_check_branch
          %854 = sbr.rel (%p852) target = $region148
        $region147: #{expression_attention_transformer_block.1} parent=115 // pred_region
          %856 = dma.done [#allocation15], 1024
        $region148: #{expression_attention_transformer_block.1} parent=115 // pred_fallthru
          _
        // Predicated region
        $region149: #{expression_attention_transformer_block.1} parent=115 // pred_check
          %p857 = pneg %p413
        $region150: #{expression_attention_transformer_block.1} parent=115 // pred_check_branch
          %859 = sbr.rel (%p857) target = $region152
        $region151: #{expression_attention_transformer_block.1} parent=115 // pred_region
          %861 = dma.done [#allocation15], 1024
        $region152: #{expression_attention_transformer_block.1} parent=115 // pred_fallthru
          _
        // Predicated region
        $region153: #{expression_attention_transformer_block.1} parent=115 // pred_check
          %p862 = pneg %p539
        $region154: #{expression_attention_transformer_block.1} parent=115 // pred_check_branch
          %864 = sbr.rel (%p862) target = $region156
        $region155: #{expression_attention_transformer_block.1} parent=115 // pred_region
          %866 = dma.done [#allocation18], 4096
        $region156: #{expression_attention_transformer_block.1} parent=115 // pred_fallthru
          _
        %s867 = sand.u32 %s54, 1
        %s868 = scalar_lea.sflag [#allocation3], %s867
        %s869 = sand.u32 %s54, 1
        %s870 = smul.addr %s869, 128
        %s871 = scalar_lea.vmem [#allocation2], %s870
        %p872 = pneg %p67
        %p873 = pneg %p64
        %p874 = scmp.lt.s32.totalorder %s46, 1
        %s875 = scalar_select %p874, %s46, 1
        %s876 = smul.addr %s875, 16
        %s877 = smul.addr %s876, 8
        %s878 = scalar_lea.vmem %s1, %s877
        %p879 = pneg %p93
        %p880 = pneg %p90
        %p881 = scmp.lt.s32.totalorder %s46, 1
        %s882 = scalar_select %p881, %s46, 1
        %s883 = smul.addr %s882, 16
        %s884 = smul.addr %s883, 8
        %s885 = scalar_lea.vmem %s2, %s884
        %p886 = pneg %p119
        %p887 = pneg %p116
        %p888 = pneg %p140
        %p889 = pneg %p137
        %p890 = pneg %p161
        %p891 = pneg %p158
        %p892 = pneg %p182
        %p893 = pneg %p179
        %p894 = pneg %p203
        %p895 = pneg %p200
        %p896 = pneg %p224
        %p897 = pneg %p221
        %p898 = pneg %p245
        %p899 = pneg %p242
        %p900 = pneg %p266
        %p901 = pneg %p263
        %p902 = pneg %p287
        %p903 = pneg %p284
        %p904 = pneg %p308
        %p905 = pneg %p305
        %p906 = pneg %p329
        %p907 = pneg %p326
        %p908 = pneg %p350
        %p909 = pneg %p347
        %p910 = pneg %p371
        %p911 = pneg %p368
        %p912 = pneg %p392
        %p913 = pneg %p389
        %p914 = pneg %p413
        %p915 = pneg %p410
        %p916 = pneg %p434
        %p917 = pneg %p431
        %p918 = pneg %p455
        %p919 = pneg %p452
        %p920 = pneg %p476
        %p921 = pneg %p473
        %p922 = pneg %p497
        %p923 = pneg %p494
        %p924 = pneg %p518
        %p925 = pneg %p515
        %p926 = pneg %p539
        %p927 = pneg %p536
        %p928 = pneg %p560
        %p929 = pneg %p557
        %p930 = pneg %p586
        %p931 = pneg %p583
        %s932 = sand.u32 %s573, 1
        %s933 = scalar_lea.sflag [#allocation4], %s932
        %s934 = sand.u32 %s573, 1
        %s935 = smul.addr %s934, 128
        %s936 = scalar_lea.vmem [#allocation19], %s935
        %p937 = scmp.lt.s32.totalorder %s46, 1
        %s938 = scalar_select %p937, %s46, 1
        %s939 = smul.addr %s938, 16
        %s940 = smul.addr %s939, 8
        %s941 = scalar_lea.vmem %s1, %s940
        %p942 = scmp.lt.s32.totalorder %s46, 1
        %s943 = scalar_select %p942, %s46, 1
        %s944 = smul.addr %s943, 16
        %s945 = smul.addr %s944, 8
        %s946 = scalar_lea.vmem %s2, %s945
        %v948 = vld [vmem:[%s816] sm:$0xff]
        %v949 = vld [vmem:[%s816 + $0x8] sm:$0xff]
        %v950 = vld [vmem:[%s816 + $0x10] sm:$0xff]
        %v951 = vld [vmem:[%s816 + $0x18] sm:$0xff]
        %v952 = vld [vmem:[%s816 + $0x20] sm:$0xff]
        %v953 = vld [vmem:[%s816 + $0x28] sm:$0xff]
        %v954 = vld [vmem:[%s816 + $0x30] sm:$0xff]
        %v955 = vld [vmem:[%s816 + $0x38] sm:$0xff]
        %v956 = vld [vmem:[%s816 + $0x40] sm:$0xff]
        %v957 = vld [vmem:[%s816 + $0x48] sm:$0xff]
        %v958 = vld [vmem:[%s816 + $0x50] sm:$0xff]
        %v959 = vld [vmem:[%s816 + $0x58] sm:$0xff]
        %v960 = vld [vmem:[%s816 + $0x60] sm:$0xff]
        %v961 = vld [vmem:[%s816 + $0x68] sm:$0xff]
        %v962 = vld [vmem:[%s816 + $0x70] sm:$0xff]
        %v963 = vld [vmem:[%s816 + $0x78] sm:$0xff]
        %v964 = vld [vmem:[%s941] sm:$0xff]
        %v965 = vld [vmem:[%s941 + $0x8] sm:$0xff]
        %v966 = vld [vmem:[%s941 + $0x10] sm:$0xff]
        %v967 = vld [vmem:[%s941 + $0x18] sm:$0xff]
        %v968 = vld [vmem:[%s941 + $0x20] sm:$0xff]
        %v969 = vld [vmem:[%s941 + $0x28] sm:$0xff]
        %v970 = vld [vmem:[%s941 + $0x30] sm:$0xff]
        %v971 = vld [vmem:[%s941 + $0x38] sm:$0xff]
        %v972 = vld [vmem:[%s941 + $0x40] sm:$0xff]
        %v973 = vld [vmem:[%s941 + $0x48] sm:$0xff]
        %v974 = vld [vmem:[%s941 + $0x50] sm:$0xff]
        %v975 = vld [vmem:[%s941 + $0x58] sm:$0xff]
        %v976 = vld [vmem:[%s941 + $0x60] sm:$0xff]
        %v977 = vld [vmem:[%s941 + $0x68] sm:$0xff]
        %v978 = vld [vmem:[%s941 + $0x70] sm:$0xff]
        %v979 = vld [vmem:[%s941 + $0x78] sm:$0xff]
        %v980 = vld [vmem:[%s946] sm:$0xff]
        %v981 = vld [vmem:[%s946 + $0x8] sm:$0xff]
        %v982 = vld [vmem:[%s946 + $0x10] sm:$0xff]
        %v983 = vld [vmem:[%s946 + $0x18] sm:$0xff]
        %v984 = vld [vmem:[%s946 + $0x20] sm:$0xff]
        %v985 = vld [vmem:[%s946 + $0x28] sm:$0xff]
        %v986 = vld [vmem:[%s946 + $0x30] sm:$0xff]
        %v987 = vld [vmem:[%s946 + $0x38] sm:$0xff]
        %v988 = vld [vmem:[%s946 + $0x40] sm:$0xff]
        %v989 = vld [vmem:[%s946 + $0x48] sm:$0xff]
        %v990 = vld [vmem:[%s946 + $0x50] sm:$0xff]
        %v991 = vld [vmem:[%s946 + $0x58] sm:$0xff]
        %v992 = vld [vmem:[%s946 + $0x60] sm:$0xff]
        %v993 = vld [vmem:[%s946 + $0x68] sm:$0xff]
        %v994 = vld [vmem:[%s946 + $0x70] sm:$0xff]
        %v995 = vld [vmem:[%s946 + $0x78] sm:$0xff]
        %996 = vadd.xlane.f32.xlu0 %v948
        %v997 = vpop.xlane.xlu0 %996
        %998 = vadd.xlane.f32.xlu0 %v949
        %v999 = vpop.xlane.xlu0 %998
        %1000 = vadd.xlane.f32.xlu0 %v950
        %v1001 = vpop.xlane.xlu0 %1000
        %1002 = vadd.xlane.f32.xlu0 %v951
        %v1003 = vpop.xlane.xlu0 %1002
        %1004 = vadd.xlane.f32.xlu0 %v952
        %v1005 = vpop.xlane.xlu0 %1004
        %1006 = vadd.xlane.f32.xlu0 %v953
        %v1007 = vpop.xlane.xlu0 %1006
        %1008 = vadd.xlane.f32.xlu0 %v954
        %v1009 = vpop.xlane.xlu0 %1008
        %1010 = vadd.xlane.f32.xlu0 %v955
        %v1011 = vpop.xlane.xlu0 %1010
        %1012 = vadd.xlane.f32.xlu0 %v956
        %v1013 = vpop.xlane.xlu0 %1012
        %1014 = vadd.xlane.f32.xlu0 %v957
        %v1015 = vpop.xlane.xlu0 %1014
        %1016 = vadd.xlane.f32.xlu0 %v958
        %v1017 = vpop.xlane.xlu0 %1016
        %1018 = vadd.xlane.f32.xlu0 %v959
        %v1019 = vpop.xlane.xlu0 %1018
        %1020 = vadd.xlane.f32.xlu0 %v960
        %v1021 = vpop.xlane.xlu0 %1020
        %1022 = vadd.xlane.f32.xlu0 %v961
        %v1023 = vpop.xlane.xlu0 %1022
        %1024 = vadd.xlane.f32.xlu0 %v962
        %v1025 = vpop.xlane.xlu0 %1024
        %1026 = vadd.xlane.f32.xlu0 %v963
        %v1027 = vpop.xlane.xlu0 %1026
        %v1028 = vrcp.pop 128.0
        %v1029 = vmul.f32 128.0, %v1028
        %v1030 = vsub.f32 1.0, %v1029
        %v1031 = vmul.f32 %v1028, %v1030
        %v1032 = vadd.f32 %v1028, %v1031
        %vm1033 = vweird.f32 %v1028
        %v1034 = vsel %vm1033, %v1028, %v1032
        %v1035 = vmul.f32 %v997, %v1034
        %v1036 = vmul.f32 %v999, %v1034
        %v1037 = vmul.f32 %v1001, %v1034
        %v1038 = vmul.f32 %v1003, %v1034
        %v1039 = vmul.f32 %v1005, %v1034
        %v1040 = vmul.f32 %v1007, %v1034
        %v1041 = vmul.f32 %v1009, %v1034
        %v1042 = vmul.f32 %v1011, %v1034
        %v1043 = vmul.f32 %v1013, %v1034
        %v1044 = vmul.f32 %v1015, %v1034
        %v1045 = vmul.f32 %v1017, %v1034
        %v1046 = vmul.f32 %v1019, %v1034
        %v1047 = vmul.f32 %v1021, %v1034
        %v1048 = vmul.f32 %v1023, %v1034
        %v1049 = vmul.f32 %v1025, %v1034
        %v1050 = vmul.f32 %v1027, %v1034
        %v1051 = vsub.f32 %v948, %v1035
        %v1052 = vsub.f32 %v949, %v1036
        %v1053 = vsub.f32 %v950, %v1037
        %v1054 = vsub.f32 %v951, %v1038
        %v1055 = vsub.f32 %v952, %v1039
        %v1056 = vsub.f32 %v953, %v1040
        %v1057 = vsub.f32 %v954, %v1041
        %v1058 = vsub.f32 %v955, %v1042
        %v1059 = vsub.f32 %v956, %v1043
        %v1060 = vsub.f32 %v957, %v1044
        %v1061 = vsub.f32 %v958, %v1045
        %v1062 = vsub.f32 %v959, %v1046
        %v1063 = vsub.f32 %v960, %v1047
        %v1064 = vsub.f32 %v961, %v1048
        %v1065 = vsub.f32 %v962, %v1049
        %v1066 = vsub.f32 %v963, %v1050
        %v1067 = vmul.f32 %v1051, %v1051
        %v1068 = vmul.f32 %v1052, %v1052
        %v1069 = vmul.f32 %v1053, %v1053
        %v1070 = vmul.f32 %v1054, %v1054
        %v1071 = vmul.f32 %v1055, %v1055
        %v1072 = vmul.f32 %v1056, %v1056
        %v1073 = vmul.f32 %v1057, %v1057
        %v1074 = vmul.f32 %v1058, %v1058
        %v1075 = vmul.f32 %v1059, %v1059
        %v1076 = vmul.f32 %v1060, %v1060
        %v1077 = vmul.f32 %v1061, %v1061
        %v1078 = vmul.f32 %v1062, %v1062
        %v1079 = vmul.f32 %v1063, %v1063
        %v1080 = vmul.f32 %v1064, %v1064
        %v1081 = vmul.f32 %v1065, %v1065
        %v1082 = vmul.f32 %v1066, %v1066
        %1083 = vadd.xlane.f32.xlu0 %v1067
        %v1084 = vpop.xlane.xlu0 %1083
        %1085 = vadd.xlane.f32.xlu0 %v1068
        %v1086 = vpop.xlane.xlu0 %1085
        %1087 = vadd.xlane.f32.xlu0 %v1069
        %v1088 = vpop.xlane.xlu0 %1087
        %1089 = vadd.xlane.f32.xlu0 %v1070
        %v1090 = vpop.xlane.xlu0 %1089
        %1091 = vadd.xlane.f32.xlu0 %v1071
        %v1092 = vpop.xlane.xlu0 %1091
        %1093 = vadd.xlane.f32.xlu0 %v1072
        %v1094 = vpop.xlane.xlu0 %1093
        %1095 = vadd.xlane.f32.xlu0 %v1073
        %v1096 = vpop.xlane.xlu0 %1095
        %1097 = vadd.xlane.f32.xlu0 %v1074
        %v1098 = vpop.xlane.xlu0 %1097
        %1099 = vadd.xlane.f32.xlu0 %v1075
        %v1100 = vpop.xlane.xlu0 %1099
        %1101 = vadd.xlane.f32.xlu0 %v1076
        %v1102 = vpop.xlane.xlu0 %1101
        %1103 = vadd.xlane.f32.xlu0 %v1077
        %v1104 = vpop.xlane.xlu0 %1103
        %1105 = vadd.xlane.f32.xlu0 %v1078
        %v1106 = vpop.xlane.xlu0 %1105
        %1107 = vadd.xlane.f32.xlu0 %v1079
        %v1108 = vpop.xlane.xlu0 %1107
        %1109 = vadd.xlane.f32.xlu0 %v1080
        %v1110 = vpop.xlane.xlu0 %1109
        %1111 = vadd.xlane.f32.xlu0 %v1081
        %v1112 = vpop.xlane.xlu0 %1111
        %1113 = vadd.xlane.f32.xlu0 %v1082
        %v1114 = vpop.xlane.xlu0 %1113
        %v1115 = vmul.f32 %v1084, %v1034
        %v1116 = vmul.f32 %v1086, %v1034
        %v1117 = vmul.f32 %v1088, %v1034
        %v1118 = vmul.f32 %v1090, %v1034
        %v1119 = vmul.f32 %v1092, %v1034
        %v1120 = vmul.f32 %v1094, %v1034
        %v1121 = vmul.f32 %v1096, %v1034
        %v1122 = vmul.f32 %v1098, %v1034
        %v1123 = vmul.f32 %v1100, %v1034
        %v1124 = vmul.f32 %v1102, %v1034
        %v1125 = vmul.f32 %v1104, %v1034
        %v1126 = vmul.f32 %v1106, %v1034
        %v1127 = vmul.f32 %v1108, %v1034
        %v1128 = vmul.f32 %v1110, %v1034
        %v1129 = vmul.f32 %v1112, %v1034
        %v1130 = vmul.f32 %v1114, %v1034
        %v1131 = vadd.f32 %v1115, 1e-05
        %v1132 = vadd.f32 %v1116, 1e-05
        %v1133 = vadd.f32 %v1117, 1e-05
        %v1134 = vadd.f32 %v1118, 1e-05
        %v1135 = vadd.f32 %v1119, 1e-05
        %v1136 = vadd.f32 %v1120, 1e-05
        %v1137 = vadd.f32 %v1121, 1e-05
        %v1138 = vadd.f32 %v1122, 1e-05
        %v1139 = vadd.f32 %v1123, 1e-05
        %v1140 = vadd.f32 %v1124, 1e-05
        %v1141 = vadd.f32 %v1125, 1e-05
        %v1142 = vadd.f32 %v1126, 1e-05
        %v1143 = vadd.f32 %v1127, 1e-05
        %v1144 = vadd.f32 %v1128, 1e-05
        %v1145 = vadd.f32 %v1129, 1e-05
        %v1146 = vadd.f32 %v1130, 1e-05
        %v1147 = vrsqrt.pop %v1131
        %v1148 = vmul.f32 %v1147, %v1131
        %v1149 = vmul.f32 %v1148, %v1147
        %v1150 = vmul.f32 0.5, %v1149
        %v1151 = vsub.f32 1.5, %v1150
        %v1152 = vmul.f32 %v1147, %v1151
        %vm1153 = vweird.f32 %v1131
        %vm1154 = vweird.f32 %v1147
        %vm1155 = vmor %vm1153, %vm1154
        %v1156 = vsel %vm1155, %v1147, %v1152
        %v1157 = vrsqrt.pop %v1132
        %v1158 = vmul.f32 %v1157, %v1132
        %v1159 = vmul.f32 %v1158, %v1157
        %v1160 = vmul.f32 0.5, %v1159
        %v1161 = vsub.f32 1.5, %v1160
        %v1162 = vmul.f32 %v1157, %v1161
        %vm1163 = vweird.f32 %v1132
        %vm1164 = vweird.f32 %v1157
        %vm1165 = vmor %vm1163, %vm1164
        %v1166 = vsel %vm1165, %v1157, %v1162
        %v1167 = vrsqrt.pop %v1133
        %v1168 = vmul.f32 %v1167, %v1133
        %v1169 = vmul.f32 %v1168, %v1167
        %v1170 = vmul.f32 0.5, %v1169
        %v1171 = vsub.f32 1.5, %v1170
        %v1172 = vmul.f32 %v1167, %v1171
        %vm1173 = vweird.f32 %v1133
        %vm1174 = vweird.f32 %v1167
        %vm1175 = vmor %vm1173, %vm1174
        %v1176 = vsel %vm1175, %v1167, %v1172
        %v1177 = vrsqrt.pop %v1134
        %v1178 = vmul.f32 %v1177, %v1134
        %v1179 = vmul.f32 %v1178, %v1177
        %v1180 = vmul.f32 0.5, %v1179
        %v1181 = vsub.f32 1.5, %v1180
        %v1182 = vmul.f32 %v1177, %v1181
        %vm1183 = vweird.f32 %v1134
        %vm1184 = vweird.f32 %v1177
        %vm1185 = vmor %vm1183, %vm1184
        %v1186 = vsel %vm1185, %v1177, %v1182
        %v1187 = vrsqrt.pop %v1135
        %v1188 = vmul.f32 %v1187, %v1135
        %v1189 = vmul.f32 %v1188, %v1187
        %v1190 = vmul.f32 0.5, %v1189
        %v1191 = vsub.f32 1.5, %v1190
        %v1192 = vmul.f32 %v1187, %v1191
        %vm1193 = vweird.f32 %v1135
        %vm1194 = vweird.f32 %v1187
        %vm1195 = vmor %vm1193, %vm1194
        %v1196 = vsel %vm1195, %v1187, %v1192
        %v1197 = vrsqrt.pop %v1136
        %v1198 = vmul.f32 %v1197, %v1136
        %v1199 = vmul.f32 %v1198, %v1197
        %v1200 = vmul.f32 0.5, %v1199
        %v1201 = vsub.f32 1.5, %v1200
        %v1202 = vmul.f32 %v1197, %v1201
        %vm1203 = vweird.f32 %v1136
        %vm1204 = vweird.f32 %v1197
        %vm1205 = vmor %vm1203, %vm1204
        %v1206 = vsel %vm1205, %v1197, %v1202
        %v1207 = vrsqrt.pop %v1137
        %v1208 = vmul.f32 %v1207, %v1137
        %v1209 = vmul.f32 %v1208, %v1207
        %v1210 = vmul.f32 0.5, %v1209
        %v1211 = vsub.f32 1.5, %v1210
        %v1212 = vmul.f32 %v1207, %v1211
        %vm1213 = vweird.f32 %v1137
        %vm1214 = vweird.f32 %v1207
        %vm1215 = vmor %vm1213, %vm1214
        %v1216 = vsel %vm1215, %v1207, %v1212
        %v1217 = vrsqrt.pop %v1138
        %v1218 = vmul.f32 %v1217, %v1138
        %v1219 = vmul.f32 %v1218, %v1217
        %v1220 = vmul.f32 0.5, %v1219
        %v1221 = vsub.f32 1.5, %v1220
        %v1222 = vmul.f32 %v1217, %v1221
        %vm1223 = vweird.f32 %v1138
        %vm1224 = vweird.f32 %v1217
        %vm1225 = vmor %vm1223, %vm1224
        %v1226 = vsel %vm1225, %v1217, %v1222
        %v1227 = vrsqrt.pop %v1139
        %v1228 = vmul.f32 %v1227, %v1139
        %v1229 = vmul.f32 %v1228, %v1227
        %v1230 = vmul.f32 0.5, %v1229
        %v1231 = vsub.f32 1.5, %v1230
        %v1232 = vmul.f32 %v1227, %v1231
        %vm1233 = vweird.f32 %v1139
        %vm1234 = vweird.f32 %v1227
        %vm1235 = vmor %vm1233, %vm1234
        %v1236 = vsel %vm1235, %v1227, %v1232
        %v1237 = vrsqrt.pop %v1140
        %v1238 = vmul.f32 %v1237, %v1140
        %v1239 = vmul.f32 %v1238, %v1237
        %v1240 = vmul.f32 0.5, %v1239
        %v1241 = vsub.f32 1.5, %v1240
        %v1242 = vmul.f32 %v1237, %v1241
        %vm1243 = vweird.f32 %v1140
        %vm1244 = vweird.f32 %v1237
        %vm1245 = vmor %vm1243, %vm1244
        %v1246 = vsel %vm1245, %v1237, %v1242
        %v1247 = vrsqrt.pop %v1141
        %v1248 = vmul.f32 %v1247, %v1141
        %v1249 = vmul.f32 %v1248, %v1247
        %v1250 = vmul.f32 0.5, %v1249
        %v1251 = vsub.f32 1.5, %v1250
        %v1252 = vmul.f32 %v1247, %v1251
        %vm1253 = vweird.f32 %v1141
        %vm1254 = vweird.f32 %v1247
        %vm1255 = vmor %vm1253, %vm1254
        %v1256 = vsel %vm1255, %v1247, %v1252
        %v1257 = vrsqrt.pop %v1142
        %v1258 = vmul.f32 %v1257, %v1142
        %v1259 = vmul.f32 %v1258, %v1257
        %v1260 = vmul.f32 0.5, %v1259
        %v1261 = vsub.f32 1.5, %v1260
        %v1262 = vmul.f32 %v1257, %v1261
        %vm1263 = vweird.f32 %v1142
        %vm1264 = vweird.f32 %v1257
        %vm1265 = vmor %vm1263, %vm1264
        %v1266 = vsel %vm1265, %v1257, %v1262
        %v1267 = vrsqrt.pop %v1143
        %v1268 = vmul.f32 %v1267, %v1143
        %v1269 = vmul.f32 %v1268, %v1267
        %v1270 = vmul.f32 0.5, %v1269
        %v1271 = vsub.f32 1.5, %v1270
        %v1272 = vmul.f32 %v1267, %v1271
        %vm1273 = vweird.f32 %v1143
        %vm1274 = vweird.f32 %v1267
        %vm1275 = vmor %vm1273, %vm1274
        %v1276 = vsel %vm1275, %v1267, %v1272
        %v1277 = vrsqrt.pop %v1144
        %v1278 = vmul.f32 %v1277, %v1144
        %v1279 = vmul.f32 %v1278, %v1277
        %v1280 = vmul.f32 0.5, %v1279
        %v1281 = vsub.f32 1.5, %v1280
        %v1282 = vmul.f32 %v1277, %v1281
        %vm1283 = vweird.f32 %v1144
        %vm1284 = vweird.f32 %v1277
        %vm1285 = vmor %vm1283, %vm1284
        %v1286 = vsel %vm1285, %v1277, %v1282
        %v1287 = vrsqrt.pop %v1145
        %v1288 = vmul.f32 %v1287, %v1145
        %v1289 = vmul.f32 %v1288, %v1287
        %v1290 = vmul.f32 0.5, %v1289
        %v1291 = vsub.f32 1.5, %v1290
        %v1292 = vmul.f32 %v1287, %v1291
        %vm1293 = vweird.f32 %v1145
        %vm1294 = vweird.f32 %v1287
        %vm1295 = vmor %vm1293, %vm1294
        %v1296 = vsel %vm1295, %v1287, %v1292
        %v1297 = vrsqrt.pop %v1146
        %v1298 = vmul.f32 %v1297, %v1146
        %v1299 = vmul.f32 %v1298, %v1297
        %v1300 = vmul.f32 0.5, %v1299
        %v1301 = vsub.f32 1.5, %v1300
        %v1302 = vmul.f32 %v1297, %v1301
        %vm1303 = vweird.f32 %v1146
        %vm1304 = vweird.f32 %v1297
        %vm1305 = vmor %vm1303, %vm1304
        %v1306 = vsel %vm1305, %v1297, %v1302
        %v1307 = vmul.f32 %v1051, %v1156
        %v1308 = vmul.f32 %v1052, %v1166
        %v1309 = vmul.f32 %v1053, %v1176
        %v1310 = vmul.f32 %v1054, %v1186
        %v1311 = vmul.f32 %v1055, %v1196
        %v1312 = vmul.f32 %v1056, %v1206
        %v1313 = vmul.f32 %v1057, %v1216
        %v1314 = vmul.f32 %v1058, %v1226
        %v1315 = vmul.f32 %v1059, %v1236
        %v1316 = vmul.f32 %v1060, %v1246
        %v1317 = vmul.f32 %v1061, %v1256
        %v1318 = vmul.f32 %v1062, %v1266
        %v1319 = vmul.f32 %v1063, %v1276
        %v1320 = vmul.f32 %v1064, %v1286
        %v1321 = vmul.f32 %v1065, %v1296
        %v1322 = vmul.f32 %v1066, %v1306
        %v1323 = vld [vmem:[%s3] sm:$0x1]
        %v1325 = vperm.slane %v1323, 0
        %v1327 = vmul.f32 %v1307, %v1325
        %v1328 = vmul.f32 %v1308, %v1325
        %v1329 = vmul.f32 %v1309, %v1325
        %v1330 = vmul.f32 %v1310, %v1325
        %v1331 = vmul.f32 %v1311, %v1325
        %v1332 = vmul.f32 %v1312, %v1325
        %v1333 = vmul.f32 %v1313, %v1325
        %v1334 = vmul.f32 %v1314, %v1325
        %v1335 = vmul.f32 %v1315, %v1325
        %v1336 = vmul.f32 %v1316, %v1325
        %v1337 = vmul.f32 %v1317, %v1325
        %v1338 = vmul.f32 %v1318, %v1325
        %v1339 = vmul.f32 %v1319, %v1325
        %v1340 = vmul.f32 %v1320, %v1325
        %v1341 = vmul.f32 %v1321, %v1325
        %v1342 = vmul.f32 %v1322, %v1325
        %v1343 = vld [vmem:[%s4] sm:$0x1]
        %v1345 = vperm.slane %v1343, 0
        %v1347 = vadd.f32 %v1327, %v1345
        %v1348 = vadd.f32 %v1328, %v1345
        %v1349 = vadd.f32 %v1329, %v1345
        %v1350 = vadd.f32 %v1330, %v1345
        %v1351 = vadd.f32 %v1331, %v1345
        %v1352 = vadd.f32 %v1332, %v1345
        %v1353 = vadd.f32 %v1333, %v1345
        %v1354 = vadd.f32 %v1334, %v1345
        %v1355 = vadd.f32 %v1335, %v1345
        %v1356 = vadd.f32 %v1336, %v1345
        %v1357 = vadd.f32 %v1337, %v1345
        %v1358 = vadd.f32 %v1338, %v1345
        %v1359 = vadd.f32 %v1339, %v1345
        %v1360 = vadd.f32 %v1340, %v1345
        %v1361 = vadd.f32 %v1341, %v1345
        %v1362 = vadd.f32 %v1342, %v1345
        %v1363 = vpack.c.bf16 %v1348, %v1347
        %v1364 = vpack.c.bf16 %v1350, %v1349
        %v1365 = vpack.c.bf16 %v1352, %v1351
        %v1366 = vpack.c.bf16 %v1354, %v1353
        %v1367 = vpack.c.bf16 %v1356, %v1355
        %v1368 = vpack.c.bf16 %v1358, %v1357
        %v1369 = vpack.c.bf16 %v1360, %v1359
        %v1370 = vpack.c.bf16 %v1362, %v1361
        %v1371 = vld [vmem:[#allocation5] sm:$0xff]
        %v1372 = vld [vmem:[#allocation5 + $0x8] sm:$0xf]
        %v1373 = vld [vmem:[#allocation5 + $0xc] sm:$0xff]
        %v1374 = vld [vmem:[#allocation5 + $0x14] sm:$0xf]
        %v1375 = vld [vmem:[#allocation5 + $0x18] sm:$0xff]
        %v1376 = vld [vmem:[#allocation5 + $0x20] sm:$0xf]
        %v1377 = vld [vmem:[#allocation5 + $0x24] sm:$0xff]
        %v1378 = vld [vmem:[#allocation5 + $0x2c] sm:$0xf]
        %v1379 = vld [vmem:[#allocation5 + $0x30] sm:$0xff]
        %v1380 = vld [vmem:[#allocation5 + $0x38] sm:$0xf]
        %v1381 = vld [vmem:[#allocation5 + $0x3c] sm:$0xff]
        %v1382 = vld [vmem:[#allocation5 + $0x44] sm:$0xf]
        %v1383 = vld [vmem:[#allocation5 + $0x48] sm:$0xff]
        %v1384 = vld [vmem:[#allocation5 + $0x50] sm:$0xf]
        %v1385 = vld [vmem:[#allocation5 + $0x54] sm:$0xff]
        %v1386 = vld [vmem:[#allocation5 + $0x5c] sm:$0xf]
        %v1387 = vld [vmem:[#allocation5 + $0x60] sm:$0xff]
        %v1388 = vld [vmem:[#allocation5 + $0x68] sm:$0xf]
        %v1389 = vld [vmem:[#allocation5 + $0x6c] sm:$0xff]
        %v1390 = vld [vmem:[#allocation5 + $0x74] sm:$0xf]
        %v1391 = vld [vmem:[#allocation5 + $0x78] sm:$0xff]
        %v1392 = vld [vmem:[#allocation5 + $0x80] sm:$0xf]
        %v1393 = vld [vmem:[#allocation5 + $0x84] sm:$0xff]
        %v1394 = vld [vmem:[#allocation5 + $0x8c] sm:$0xf]
        %v1395 = vld [vmem:[#allocation5 + $0x90] sm:$0xff]
        %v1396 = vld [vmem:[#allocation5 + $0x98] sm:$0xf]
        %v1397 = vld [vmem:[#allocation5 + $0x9c] sm:$0xff]
        %v1398 = vld [vmem:[#allocation5 + $0xa4] sm:$0xf]
        %v1399 = vld [vmem:[#allocation5 + $0xa8] sm:$0xff]
        %v1400 = vld [vmem:[#allocation5 + $0xb0] sm:$0xf]
        %v1401 = vld [vmem:[#allocation5 + $0xb4] sm:$0xff]
        %v1402 = vld [vmem:[#allocation5 + $0xbc] sm:$0xf]
        %v1435 = vunpack.c.l.b16 %v1371
        %v1436 = vunpack.c.h.b16 %v1371
        %v1437 = vunpack.c.l.b16 %v1372
        %v1438 = vunpack.c.l.b16 %v1373
        %v1439 = vunpack.c.h.b16 %v1373
        %v1440 = vunpack.c.l.b16 %v1374
        %v1441 = vunpack.c.l.b16 %v1375
        %v1442 = vunpack.c.h.b16 %v1375
        %v1443 = vunpack.c.l.b16 %v1376
        %v1444 = vunpack.c.l.b16 %v1377
        %v1445 = vunpack.c.h.b16 %v1377
        %v1446 = vunpack.c.l.b16 %v1378
        %v1447 = vunpack.c.l.b16 %v1379
        %v1448 = vunpack.c.h.b16 %v1379
        %v1449 = vunpack.c.l.b16 %v1380
        %v1450 = vunpack.c.l.b16 %v1381
        %v1451 = vunpack.c.h.b16 %v1381
        %v1452 = vunpack.c.l.b16 %v1382
        %v1453 = vunpack.c.l.b16 %v1383
        %v1454 = vunpack.c.h.b16 %v1383
        %v1455 = vunpack.c.l.b16 %v1384
        %v1456 = vunpack.c.l.b16 %v1385
        %v1457 = vunpack.c.h.b16 %v1385
        %v1458 = vunpack.c.l.b16 %v1386
        %v1459 = vunpack.c.l.b16 %v1387
        %v1460 = vunpack.c.h.b16 %v1387
        %v1461 = vunpack.c.l.b16 %v1388
        %v1462 = vunpack.c.l.b16 %v1389
        %v1463 = vunpack.c.h.b16 %v1389
        %v1464 = vunpack.c.l.b16 %v1390
        %v1465 = vunpack.c.l.b16 %v1391
        %v1466 = vunpack.c.h.b16 %v1391
        %v1467 = vunpack.c.l.b16 %v1392
        %v1468 = vunpack.c.l.b16 %v1393
        %v1469 = vunpack.c.h.b16 %v1393
        %v1470 = vunpack.c.l.b16 %v1394
        %v1471 = vunpack.c.l.b16 %v1395
        %v1472 = vunpack.c.h.b16 %v1395
        %v1473 = vunpack.c.l.b16 %v1396
        %v1474 = vunpack.c.l.b16 %v1397
        %v1475 = vunpack.c.h.b16 %v1397
        %v1476 = vunpack.c.l.b16 %v1398
        %v1477 = vunpack.c.l.b16 %v1399
        %v1478 = vunpack.c.h.b16 %v1399
        %v1479 = vunpack.c.l.b16 %v1400
        %v1480 = vunpack.c.l.b16 %v1401
        %v1481 = vunpack.c.h.b16 %v1401
        %v1482 = vunpack.c.l.b16 %v1402
        %v1483 = vpack.c.b16 %v1438, %v1435
        %v1484 = vpack.c.b16 %v1439, %v1436
        %v1485 = vpack.c.b16 %v1440, %v1437
        %v1486 = vpack.c.b16 %v1444, %v1441
        %v1487 = vpack.c.b16 %v1445, %v1442
        %v1488 = vpack.c.b16 %v1446, %v1443
        %v1489 = vpack.c.b16 %v1450, %v1447
        %v1490 = vpack.c.b16 %v1451, %v1448
        %v1491 = vpack.c.b16 %v1452, %v1449
        %v1492 = vpack.c.b16 %v1456, %v1453
        %v1493 = vpack.c.b16 %v1457, %v1454
        %v1494 = vpack.c.b16 %v1458, %v1455
        %v1495 = vpack.c.b16 %v1462, %v1459
        %v1496 = vpack.c.b16 %v1463, %v1460
        %v1497 = vpack.c.b16 %v1464, %v1461
        %v1498 = vpack.c.b16 %v1468, %v1465
        %v1499 = vpack.c.b16 %v1469, %v1466
        %v1500 = vpack.c.b16 %v1470, %v1467
        %v1501 = vpack.c.b16 %v1474, %v1471
        %v1502 = vpack.c.b16 %v1475, %v1472
        %v1503 = vpack.c.b16 %v1476, %v1473
        %v1504 = vpack.c.b16 %v1480, %v1477
        %v1505 = vpack.c.b16 %v1481, %v1478
        %v1506 = vpack.c.b16 %v1482, %v1479
        %1531 = vmatpush.bf16.msra.mxu0 %v1504
        %1532 = vmatpush.bf16.msra.mxu0 %v1501
        %1533 = vmatpush.bf16.msra.mxu0 %v1498
        %1534 = vmatpush.bf16.msra.mxu0 %v1495
        %1535 = vmatpush.bf16.msra.mxu0 %v1492
        %1536 = vmatpush.bf16.msra.mxu0 %v1489
        %1537 = vmatpush.bf16.msra.mxu0 %v1486
        %1538 = vmatpush.bf16.msra.mxu0 %v1483
        %1539 = vmatmul.bf16.gmra.mxu0 %v1363
        %v1540 = vpop.f32.mrf.mxu0
        %v1541 = vadd.f32 0.0, %v1540
        %v1542 = vpop.f32.mrf.mxu0
        %v1543 = vadd.f32 0.0, %v1542
        %1544 = vmatmul.bf16.gmra.mxu0 %v1364
        %v1545 = vpop.f32.mrf.mxu0
        %v1546 = vadd.f32 0.0, %v1545
        %v1547 = vpop.f32.mrf.mxu0
        %v1548 = vadd.f32 0.0, %v1547
        %1549 = vmatmul.bf16.gmra.mxu0 %v1365
        %v1550 = vpop.f32.mrf.mxu0
        %v1551 = vadd.f32 0.0, %v1550
        %v1552 = vpop.f32.mrf.mxu0
        %v1553 = vadd.f32 0.0, %v1552
        %1554 = vmatmul.bf16.gmra.mxu0 %v1366
        %v1555 = vpop.f32.mrf.mxu0
        %v1556 = vadd.f32 0.0, %v1555
        %v1557 = vpop.f32.mrf.mxu0
        %v1558 = vadd.f32 0.0, %v1557
        %1559 = vmatmul.bf16.gmra.mxu0 %v1367
        %v1560 = vpop.f32.mrf.mxu0
        %v1561 = vadd.f32 0.0, %v1560
        %v1562 = vpop.f32.mrf.mxu0
        %v1563 = vadd.f32 0.0, %v1562
        %1564 = vmatmul.bf16.gmra.mxu0 %v1368
        %v1565 = vpop.f32.mrf.mxu0
        %v1566 = vadd.f32 0.0, %v1565
        %v1567 = vpop.f32.mrf.mxu0
        %v1568 = vadd.f32 0.0, %v1567
        %1569 = vmatmul.bf16.gmra.mxu0 %v1369
        %v1570 = vpop.f32.mrf.mxu0
        %v1571 = vadd.f32 0.0, %v1570
        %v1572 = vpop.f32.mrf.mxu0
        %v1573 = vadd.f32 0.0, %v1572
        %1574 = vmatmul.bf16.gmra.mxu0 %v1370
        %v1575 = vpop.f32.mrf.mxu0
        %v1576 = vadd.f32 0.0, %v1575
        %v1577 = vpop.f32.mrf.mxu0
        %v1578 = vadd.f32 0.0, %v1577
        %1579 = vdwg.mxu0
        %1580 = vmatpush.bf16.msra.mxu0 %v1505
        %1581 = vmatpush.bf16.msra.mxu0 %v1502
        %1582 = vmatpush.bf16.msra.mxu0 %v1499
        %1583 = vmatpush.bf16.msra.mxu0 %v1496
        %1584 = vmatpush.bf16.msra.mxu0 %v1493
        %1585 = vmatpush.bf16.msra.mxu0 %v1490
        %1586 = vmatpush.bf16.msra.mxu0 %v1487
        %1587 = vmatpush.bf16.msra.mxu0 %v1484
        %1588 = vmatmul.bf16.gmra.mxu0 %v1363
        %v1589 = vpop.f32.mrf.mxu0
        %v1590 = vadd.f32 0.0, %v1589
        %v1591 = vpop.f32.mrf.mxu0
        %v1592 = vadd.f32 0.0, %v1591
        %1593 = vmatmul.bf16.gmra.mxu0 %v1364
        %v1594 = vpop.f32.mrf.mxu0
        %v1595 = vadd.f32 0.0, %v1594
        %v1596 = vpop.f32.mrf.mxu0
        %v1597 = vadd.f32 0.0, %v1596
        %1598 = vmatmul.bf16.gmra.mxu0 %v1365
        %v1599 = vpop.f32.mrf.mxu0
        %v1600 = vadd.f32 0.0, %v1599
        %v1601 = vpop.f32.mrf.mxu0
        %v1602 = vadd.f32 0.0, %v1601
        %1603 = vmatmul.bf16.gmra.mxu0 %v1366
        %v1604 = vpop.f32.mrf.mxu0
        %v1605 = vadd.f32 0.0, %v1604
        %v1606 = vpop.f32.mrf.mxu0
        %v1607 = vadd.f32 0.0, %v1606
        %1608 = vmatmul.bf16.gmra.mxu0 %v1367
        %v1609 = vpop.f32.mrf.mxu0
        %v1610 = vadd.f32 0.0, %v1609
        %v1611 = vpop.f32.mrf.mxu0
        %v1612 = vadd.f32 0.0, %v1611
        %1613 = vmatmul.bf16.gmra.mxu0 %v1368
        %v1614 = vpop.f32.mrf.mxu0
        %v1615 = vadd.f32 0.0, %v1614
        %v1616 = vpop.f32.mrf.mxu0
        %v1617 = vadd.f32 0.0, %v1616
        %1618 = vmatmul.bf16.gmra.mxu0 %v1369
        %v1619 = vpop.f32.mrf.mxu0
        %v1620 = vadd.f32 0.0, %v1619
        %v1621 = vpop.f32.mrf.mxu0
        %v1622 = vadd.f32 0.0, %v1621
        %1623 = vmatmul.bf16.gmra.mxu0 %v1370
        %v1624 = vpop.f32.mrf.mxu0
        %v1625 = vadd.f32 0.0, %v1624
        %v1626 = vpop.f32.mrf.mxu0
        %v1627 = vadd.f32 0.0, %v1626
        %1628 = vdwg.mxu0
        %1629 = vmatpush.bf16.msra.mxu0 %v1506
        %1630 = vmatpush.bf16.msra.mxu0 %v1503
        %1631 = vmatpush.bf16.msra.mxu0 %v1500
        %1632 = vmatpush.bf16.msra.mxu0 %v1497
        %1633 = vmatpush.bf16.msra.mxu0 %v1494
        %1634 = vmatpush.bf16.msra.mxu0 %v1491
        %1635 = vmatpush.bf16.msra.mxu0 %v1488
        %1636 = vmatpush.bf16.msra.mxu0 %v1485
        %1637 = vmatmul.bf16.gmra.mxu0 %v1363
        %v1638 = vpop.f32.mrf.mxu0
        %v1639 = vadd.f32 0.0, %v1638
        %v1640 = vpop.f32.mrf.mxu0
        %v1641 = vadd.f32 0.0, %v1640
        %1642 = vmatmul.bf16.gmra.mxu0 %v1364
        %v1643 = vpop.f32.mrf.mxu0
        %v1644 = vadd.f32 0.0, %v1643
        %v1645 = vpop.f32.mrf.mxu0
        %v1646 = vadd.f32 0.0, %v1645
        %1647 = vmatmul.bf16.gmra.mxu0 %v1365
        %v1648 = vpop.f32.mrf.mxu0
        %v1649 = vadd.f32 0.0, %v1648
        %v1650 = vpop.f32.mrf.mxu0
        %v1651 = vadd.f32 0.0, %v1650
        %1652 = vmatmul.bf16.gmra.mxu0 %v1366
        %v1653 = vpop.f32.mrf.mxu0
        %v1654 = vadd.f32 0.0, %v1653
        %v1655 = vpop.f32.mrf.mxu0
        %v1656 = vadd.f32 0.0, %v1655
        %1657 = vmatmul.bf16.gmra.mxu0 %v1367
        %v1658 = vpop.f32.mrf.mxu0
        %v1659 = vadd.f32 0.0, %v1658
        %v1660 = vpop.f32.mrf.mxu0
        %v1661 = vadd.f32 0.0, %v1660
        %1662 = vmatmul.bf16.gmra.mxu0 %v1368
        %v1663 = vpop.f32.mrf.mxu0
        %v1664 = vadd.f32 0.0, %v1663
        %v1665 = vpop.f32.mrf.mxu0
        %v1666 = vadd.f32 0.0, %v1665
        %1667 = vmatmul.bf16.gmra.mxu0 %v1369
        %v1668 = vpop.f32.mrf.mxu0
        %v1669 = vadd.f32 0.0, %v1668
        %v1670 = vpop.f32.mrf.mxu0
        %v1671 = vadd.f32 0.0, %v1670
        %1672 = vmatmul.bf16.gmra.mxu0 %v1370
        %v1673 = vpop.f32.mrf.mxu0
        %v1674 = vadd.f32 0.0, %v1673
        %v1675 = vpop.f32.mrf.mxu0
        %v1676 = vadd.f32 0.0, %v1675
        %1677 = vdwg.mxu0
        %v1678 = vpack.c.bf16 %v1541, %v1541
        %v1679 = vpack.c.bf16 %v1543, %v1543
        %v1680 = vpack.c.bf16 %v1546, %v1546
        %v1681 = vpack.c.bf16 %v1548, %v1548
        %v1682 = vpack.c.bf16 %v1551, %v1551
        %v1683 = vpack.c.bf16 %v1553, %v1553
        %v1684 = vpack.c.bf16 %v1556, %v1556
        %v1685 = vpack.c.bf16 %v1558, %v1558
        %v1686 = vpack.c.bf16 %v1561, %v1561
        %v1687 = vpack.c.bf16 %v1563, %v1563
        %v1688 = vpack.c.bf16 %v1566, %v1566
        %v1689 = vpack.c.bf16 %v1568, %v1568
        %v1690 = vpack.c.bf16 %v1571, %v1571
        %v1691 = vpack.c.bf16 %v1573, %v1573
        %v1692 = vpack.c.bf16 %v1576, %v1576
        %v1693 = vpack.c.bf16 %v1578, %v1578
        %v1694 = vpack.c.bf16 %v1590, %v1590
        %v1695 = vpack.c.bf16 %v1592, %v1592
        %v1696 = vpack.c.bf16 %v1595, %v1595
        %v1697 = vpack.c.bf16 %v1597, %v1597
        %v1698 = vpack.c.bf16 %v1600, %v1600
        %v1699 = vpack.c.bf16 %v1602, %v1602
        %v1700 = vpack.c.bf16 %v1605, %v1605
        %v1701 = vpack.c.bf16 %v1607, %v1607
        %v1702 = vpack.c.bf16 %v1610, %v1610
        %v1703 = vpack.c.bf16 %v1612, %v1612
        %v1704 = vpack.c.bf16 %v1615, %v1615
        %v1705 = vpack.c.bf16 %v1617, %v1617
        %v1706 = vpack.c.bf16 %v1620, %v1620
        %v1707 = vpack.c.bf16 %v1622, %v1622
        %v1708 = vpack.c.bf16 %v1625, %v1625
        %v1709 = vpack.c.bf16 %v1627, %v1627
        %v1710 = vpack.c.bf16 %v1639, %v1639
        %v1711 = vpack.c.bf16 %v1641, %v1641
        %v1712 = vpack.c.bf16 %v1644, %v1644
        %v1713 = vpack.c.bf16 %v1646, %v1646
        %v1714 = vpack.c.bf16 %v1649, %v1649
        %v1715 = vpack.c.bf16 %v1651, %v1651
        %v1716 = vpack.c.bf16 %v1654, %v1654
        %v1717 = vpack.c.bf16 %v1656, %v1656
        %v1718 = vpack.c.bf16 %v1659, %v1659
        %v1719 = vpack.c.bf16 %v1661, %v1661
        %v1720 = vpack.c.bf16 %v1664, %v1664
        %v1721 = vpack.c.bf16 %v1666, %v1666
        %v1722 = vpack.c.bf16 %v1669, %v1669
        %v1723 = vpack.c.bf16 %v1671, %v1671
        %v1724 = vpack.c.bf16 %v1674, %v1674
        %v1725 = vpack.c.bf16 %v1676, %v1676
        %v1742 = vunpack.c.l.b16 %v1678
        %v1743 = vunpack.c.l.b16 %v1679
        %v1744 = vunpack.c.l.b16 %v1680
        %v1745 = vunpack.c.l.b16 %v1681
        %v1746 = vunpack.c.l.b16 %v1682
        %v1747 = vunpack.c.l.b16 %v1683
        %v1748 = vunpack.c.l.b16 %v1684
        %v1749 = vunpack.c.l.b16 %v1685
        %v1750 = vunpack.c.l.b16 %v1686
        %v1751 = vunpack.c.l.b16 %v1687
        %v1752 = vunpack.c.l.b16 %v1688
        %v1753 = vunpack.c.l.b16 %v1689
        %v1754 = vunpack.c.l.b16 %v1690
        %v1755 = vunpack.c.l.b16 %v1691
        %v1756 = vunpack.c.l.b16 %v1692
        %v1757 = vunpack.c.l.b16 %v1693
        %v1758 = vpack.c.b16 %v1743, %v1742
        %v1759 = vpack.c.b16 %v1745, %v1744
        %v1760 = vpack.c.b16 %v1747, %v1746
        %v1761 = vpack.c.b16 %v1749, %v1748
        %v1762 = vpack.c.b16 %v1751, %v1750
        %v1763 = vpack.c.b16 %v1753, %v1752
        %v1764 = vpack.c.b16 %v1755, %v1754
        %v1765 = vpack.c.b16 %v1757, %v1756
        %v1782 = vunpack.c.l.b16 %v1694
        %v1783 = vunpack.c.l.b16 %v1695
        %v1784 = vunpack.c.l.b16 %v1696
        %v1785 = vunpack.c.l.b16 %v1697
        %v1786 = vunpack.c.l.b16 %v1698
        %v1787 = vunpack.c.l.b16 %v1699
        %v1788 = vunpack.c.l.b16 %v1700
        %v1789 = vunpack.c.l.b16 %v1701
        %v1790 = vunpack.c.l.b16 %v1702
        %v1791 = vunpack.c.l.b16 %v1703
        %v1792 = vunpack.c.l.b16 %v1704
        %v1793 = vunpack.c.l.b16 %v1705
        %v1794 = vunpack.c.l.b16 %v1706
        %v1795 = vunpack.c.l.b16 %v1707
        %v1796 = vunpack.c.l.b16 %v1708
        %v1797 = vunpack.c.l.b16 %v1709
        %v1798 = vpack.c.b16 %v1783, %v1782
        %v1799 = vpack.c.b16 %v1785, %v1784
        %v1800 = vpack.c.b16 %v1787, %v1786
        %v1801 = vpack.c.b16 %v1789, %v1788
        %v1802 = vpack.c.b16 %v1791, %v1790
        %v1803 = vpack.c.b16 %v1793, %v1792
        %v1804 = vpack.c.b16 %v1795, %v1794
        %v1805 = vpack.c.b16 %v1797, %v1796
        %vm1806 = vcmask 261120
        %v1808 = vsel %vm1806, %v1758, 0
        %v1811 = vsel %vm1806, %v1759, 0
        %v1814 = vsel %vm1806, %v1760, 0
        %v1817 = vsel %vm1806, %v1761, 0
        %v1820 = vsel %vm1806, %v1762, 0
        %v1823 = vsel %vm1806, %v1763, 0
        %v1826 = vsel %vm1806, %v1764, 0
        %v1829 = vsel %vm1806, %v1765, 0
        %v1832 = vsel %vm1806, %v1798, 0
        %v1835 = vsel %vm1806, %v1799, 0
        %v1838 = vsel %vm1806, %v1800, 0
        %v1841 = vsel %vm1806, %v1801, 0
        %v1844 = vsel %vm1806, %v1802, 0
        %v1847 = vsel %vm1806, %v1803, 0
        %v1850 = vsel %vm1806, %v1804, 0
        %v1853 = vsel %vm1806, %v1805, 0
        %1855 = vmatpush.bf16.xpose.msra.mxu0 %v1853
        %1856 = vmatpush.bf16.xpose.msra.mxu0 %v1850
        %1857 = vmatpush.bf16.xpose.msra.mxu0 %v1847
        %1858 = vmatpush.bf16.xpose.msra.mxu0 %v1844
        %1859 = vmatpush.bf16.xpose.msra.mxu0 %v1841
        %1860 = vmatpush.bf16.xpose.msra.mxu0 %v1838
        %1861 = vmatpush.bf16.xpose.msra.mxu0 %v1835
        %1862 = vmatpush.bf16.xpose.msra.mxu0 %v1832
        %1863 = vmatmul.bf16.gmra.mxu0 %v1808
        %v1864 = vpop.f32.mrf.mxu0
        %v1865 = vadd.f32 0.0, %v1864
        %v1866 = vpop.f32.mrf.mxu0
        %v1867 = vadd.f32 0.0, %v1866
        %1868 = vmatmul.bf16.gmra.mxu0 %v1811
        %v1869 = vpop.f32.mrf.mxu0
        %v1870 = vadd.f32 0.0, %v1869
        %v1871 = vpop.f32.mrf.mxu0
        %v1872 = vadd.f32 0.0, %v1871
        %1873 = vmatmul.bf16.gmra.mxu0 %v1814
        %v1874 = vpop.f32.mrf.mxu0
        %v1875 = vadd.f32 0.0, %v1874
        %v1876 = vpop.f32.mrf.mxu0
        %v1877 = vadd.f32 0.0, %v1876
        %1878 = vmatmul.bf16.gmra.mxu0 %v1817
        %v1879 = vpop.f32.mrf.mxu0
        %v1880 = vadd.f32 0.0, %v1879
        %v1881 = vpop.f32.mrf.mxu0
        %v1882 = vadd.f32 0.0, %v1881
        %1883 = vmatmul.bf16.gmra.mxu0 %v1820
        %v1884 = vpop.f32.mrf.mxu0
        %v1885 = vadd.f32 0.0, %v1884
        %v1886 = vpop.f32.mrf.mxu0
        %v1887 = vadd.f32 0.0, %v1886
        %1888 = vmatmul.bf16.gmra.mxu0 %v1823
        %v1889 = vpop.f32.mrf.mxu0
        %v1890 = vadd.f32 0.0, %v1889
        %v1891 = vpop.f32.mrf.mxu0
        %v1892 = vadd.f32 0.0, %v1891
        %1893 = vmatmul.bf16.gmra.mxu0 %v1826
        %v1894 = vpop.f32.mrf.mxu0
        %v1895 = vadd.f32 0.0, %v1894
        %v1896 = vpop.f32.mrf.mxu0
        %v1897 = vadd.f32 0.0, %v1896
        %1898 = vmatmul.bf16.gmra.mxu0 %v1829
        %v1899 = vpop.f32.mrf.mxu0
        %v1900 = vadd.f32 0.0, %v1899
        %v1901 = vpop.f32.mrf.mxu0
        %v1902 = vadd.f32 0.0, %v1901
        %1903 = vdwg.mxu0
        %1904 = vmax.xlane.f32.xlu0 %v1865
        %v1905 = vpop.xlane.xlu0 %1904
        %1906 = vmax.xlane.f32.xlu0 %v1867
        %v1907 = vpop.xlane.xlu0 %1906
        %1908 = vmax.xlane.f32.xlu0 %v1870
        %v1909 = vpop.xlane.xlu0 %1908
        %1910 = vmax.xlane.f32.xlu0 %v1872
        %v1911 = vpop.xlane.xlu0 %1910
        %1912 = vmax.xlane.f32.xlu0 %v1875
        %v1913 = vpop.xlane.xlu0 %1912
        %1914 = vmax.xlane.f32.xlu0 %v1877
        %v1915 = vpop.xlane.xlu0 %1914
        %1916 = vmax.xlane.f32.xlu0 %v1880
        %v1917 = vpop.xlane.xlu0 %1916
        %1918 = vmax.xlane.f32.xlu0 %v1882
        %v1919 = vpop.xlane.xlu0 %1918
        %1920 = vmax.xlane.f32.xlu0 %v1885
        %v1921 = vpop.xlane.xlu0 %1920
        %1922 = vmax.xlane.f32.xlu0 %v1887
        %v1923 = vpop.xlane.xlu0 %1922
        %1924 = vmax.xlane.f32.xlu0 %v1890
        %v1925 = vpop.xlane.xlu0 %1924
        %1926 = vmax.xlane.f32.xlu0 %v1892
        %v1927 = vpop.xlane.xlu0 %1926
        %1928 = vmax.xlane.f32.xlu0 %v1895
        %v1929 = vpop.xlane.xlu0 %1928
        %1930 = vmax.xlane.f32.xlu0 %v1897
        %v1931 = vpop.xlane.xlu0 %1930
        %1932 = vmax.xlane.f32.xlu0 %v1900
        %v1933 = vpop.xlane.xlu0 %1932
        %1934 = vmax.xlane.f32.xlu0 %v1902
        %v1935 = vpop.xlane.xlu0 %1934
        %v1936 = vsub.f32 %v1865, %v1905
        %v1937 = vsub.f32 %v1867, %v1907
        %v1938 = vsub.f32 %v1870, %v1909
        %v1939 = vsub.f32 %v1872, %v1911
        %v1940 = vsub.f32 %v1875, %v1913
        %v1941 = vsub.f32 %v1877, %v1915
        %v1942 = vsub.f32 %v1880, %v1917
        %v1943 = vsub.f32 %v1882, %v1919
        %v1944 = vsub.f32 %v1885, %v1921
        %v1945 = vsub.f32 %v1887, %v1923
        %v1946 = vsub.f32 %v1890, %v1925
        %v1947 = vsub.f32 %v1892, %v1927
        %v1948 = vsub.f32 %v1895, %v1929
        %v1949 = vsub.f32 %v1897, %v1931
        %v1950 = vsub.f32 %v1900, %v1933
        %v1951 = vsub.f32 %v1902, %v1935
        %v1952 = vmul.f32 %v1936, 1.442695
        %v1953 = vpow.pop %v1952
        %v1954 = vmul.f32 %v1937, 1.442695
        %v1955 = vpow.pop %v1954
        %v1956 = vmul.f32 %v1938, 1.442695
        %v1957 = vpow.pop %v1956
        %v1958 = vmul.f32 %v1939, 1.442695
        %v1959 = vpow.pop %v1958
        %v1960 = vmul.f32 %v1940, 1.442695
        %v1961 = vpow.pop %v1960
        %v1962 = vmul.f32 %v1941, 1.442695
        %v1963 = vpow.pop %v1962
        %v1964 = vmul.f32 %v1942, 1.442695
        %v1965 = vpow.pop %v1964
        %v1966 = vmul.f32 %v1943, 1.442695
        %v1967 = vpow.pop %v1966
        %v1968 = vmul.f32 %v1944, 1.442695
        %v1969 = vpow.pop %v1968
        %v1970 = vmul.f32 %v1945, 1.442695
        %v1971 = vpow.pop %v1970
        %v1972 = vmul.f32 %v1946, 1.442695
        %v1973 = vpow.pop %v1972
        %v1974 = vmul.f32 %v1947, 1.442695
        %v1975 = vpow.pop %v1974
        %v1976 = vmul.f32 %v1948, 1.442695
        %v1977 = vpow.pop %v1976
        %v1978 = vmul.f32 %v1949, 1.442695
        %v1979 = vpow.pop %v1978
        %v1980 = vmul.f32 %v1950, 1.442695
        %v1981 = vpow.pop %v1980
        %v1982 = vmul.f32 %v1951, 1.442695
        %v1983 = vpow.pop %v1982
        %1984 = vadd.xlane.f32.xlu0 %v1953
        %v1985 = vpop.xlane.xlu0 %1984
        %1986 = vadd.xlane.f32.xlu0 %v1955
        %v1987 = vpop.xlane.xlu0 %1986
        %1988 = vadd.xlane.f32.xlu0 %v1957
        %v1989 = vpop.xlane.xlu0 %1988
        %1990 = vadd.xlane.f32.xlu0 %v1959
        %v1991 = vpop.xlane.xlu0 %1990
        %1992 = vadd.xlane.f32.xlu0 %v1961
        %v1993 = vpop.xlane.xlu0 %1992
        %1994 = vadd.xlane.f32.xlu0 %v1963
        %v1995 = vpop.xlane.xlu0 %1994
        %1996 = vadd.xlane.f32.xlu0 %v1965
        %v1997 = vpop.xlane.xlu0 %1996
        %1998 = vadd.xlane.f32.xlu0 %v1967
        %v1999 = vpop.xlane.xlu0 %1998
        %2000 = vadd.xlane.f32.xlu0 %v1969
        %v2001 = vpop.xlane.xlu0 %2000
        %2002 = vadd.xlane.f32.xlu0 %v1971
        %v2003 = vpop.xlane.xlu0 %2002
        %2004 = vadd.xlane.f32.xlu0 %v1973
        %v2005 = vpop.xlane.xlu0 %2004
        %2006 = vadd.xlane.f32.xlu0 %v1975
        %v2007 = vpop.xlane.xlu0 %2006
        %2008 = vadd.xlane.f32.xlu0 %v1977
        %v2009 = vpop.xlane.xlu0 %2008
        %2010 = vadd.xlane.f32.xlu0 %v1979
        %v2011 = vpop.xlane.xlu0 %2010
        %2012 = vadd.xlane.f32.xlu0 %v1981
        %v2013 = vpop.xlane.xlu0 %2012
        %2014 = vadd.xlane.f32.xlu0 %v1983
        %v2015 = vpop.xlane.xlu0 %2014
        %v2016 = vrcp.pop %v1985
        %v2017 = vrcp.pop %v1987
        %v2018 = vrcp.pop %v1989
        %v2019 = vrcp.pop %v1991
        %v2020 = vrcp.pop %v1993
        %v2021 = vrcp.pop %v1995
        %v2022 = vrcp.pop %v1997
        %v2023 = vrcp.pop %v1999
        %v2024 = vrcp.pop %v2001
        %v2025 = vrcp.pop %v2003
        %v2026 = vrcp.pop %v2005
        %v2027 = vrcp.pop %v2007
        %v2028 = vrcp.pop %v2009
        %v2029 = vrcp.pop %v2011
        %v2030 = vrcp.pop %v2013
        %v2031 = vrcp.pop %v2015
        %v2032 = vmul.f32 %v1953, %v2016
        %v2033 = vmul.f32 %v1955, %v2017
        %v2034 = vmul.f32 %v1957, %v2018
        %v2035 = vmul.f32 %v1959, %v2019
        %v2036 = vmul.f32 %v1961, %v2020
        %v2037 = vmul.f32 %v1963, %v2021
        %v2038 = vmul.f32 %v1965, %v2022
        %v2039 = vmul.f32 %v1967, %v2023
        %v2040 = vmul.f32 %v1969, %v2024
        %v2041 = vmul.f32 %v1971, %v2025
        %v2042 = vmul.f32 %v1973, %v2026
        %v2043 = vmul.f32 %v1975, %v2027
        %v2044 = vmul.f32 %v1977, %v2028
        %v2045 = vmul.f32 %v1979, %v2029
        %v2046 = vmul.f32 %v1981, %v2030
        %v2047 = vmul.f32 %v1983, %v2031
        %v2048 = vpack.c.bf16 %v2033, %v2032
        %v2049 = vpack.c.bf16 %v2035, %v2034
        %v2050 = vpack.c.bf16 %v2037, %v2036
        %v2051 = vpack.c.bf16 %v2039, %v2038
        %v2052 = vpack.c.bf16 %v2041, %v2040
        %v2053 = vpack.c.bf16 %v2043, %v2042
        %v2054 = vpack.c.bf16 %v2045, %v2044
        %v2055 = vpack.c.bf16 %v2047, %v2046
        %v2072 = vunpack.c.l.b16 %v1710
        %v2073 = vunpack.c.l.b16 %v1711
        %v2074 = vunpack.c.l.b16 %v1712
        %v2075 = vunpack.c.l.b16 %v1713
        %v2076 = vunpack.c.l.b16 %v1714
        %v2077 = vunpack.c.l.b16 %v1715
        %v2078 = vunpack.c.l.b16 %v1716
        %v2079 = vunpack.c.l.b16 %v1717
        %v2080 = vunpack.c.l.b16 %v1718
        %v2081 = vunpack.c.l.b16 %v1719
        %v2082 = vunpack.c.l.b16 %v1720
        %v2083 = vunpack.c.l.b16 %v1721
        %v2084 = vunpack.c.l.b16 %v1722
        %v2085 = vunpack.c.l.b16 %v1723
        %v2086 = vunpack.c.l.b16 %v1724
        %v2087 = vunpack.c.l.b16 %v1725
        %v2088 = vpack.c.b16 %v2073, %v2072
        %v2089 = vpack.c.b16 %v2075, %v2074
        %v2090 = vpack.c.b16 %v2077, %v2076
        %v2091 = vpack.c.b16 %v2079, %v2078
        %v2092 = vpack.c.b16 %v2081, %v2080
        %v2093 = vpack.c.b16 %v2083, %v2082
        %v2094 = vpack.c.b16 %v2085, %v2084
        %v2095 = vpack.c.b16 %v2087, %v2086
        %2104 = vmatpush.bf16.msra.mxu0 %v2095
        %2105 = vmatpush.bf16.msra.mxu0 %v2094
        %2106 = vmatpush.bf16.msra.mxu0 %v2093
        %2107 = vmatpush.bf16.msra.mxu0 %v2092
        %2108 = vmatpush.bf16.msra.mxu0 %v2091
        %2109 = vmatpush.bf16.msra.mxu0 %v2090
        %2110 = vmatpush.bf16.msra.mxu0 %v2089
        %2111 = vmatpush.bf16.msra.mxu0 %v2088
        %2112 = vmatmul.bf16.gmra.mxu0 %v2048
        %v2113 = vpop.f32.mrf.mxu0
        %v2114 = vadd.f32 0.0, %v2113
        %v2115 = vpop.f32.mrf.mxu0
        %v2116 = vadd.f32 0.0, %v2115
        %2117 = vmatmul.bf16.gmra.mxu0 %v2049
        %v2118 = vpop.f32.mrf.mxu0
        %v2119 = vadd.f32 0.0, %v2118
        %v2120 = vpop.f32.mrf.mxu0
        %v2121 = vadd.f32 0.0, %v2120
        %2122 = vmatmul.bf16.gmra.mxu0 %v2050
        %v2123 = vpop.f32.mrf.mxu0
        %v2124 = vadd.f32 0.0, %v2123
        %v2125 = vpop.f32.mrf.mxu0
        %v2126 = vadd.f32 0.0, %v2125
        %2127 = vmatmul.bf16.gmra.mxu0 %v2051
        %v2128 = vpop.f32.mrf.mxu0
        %v2129 = vadd.f32 0.0, %v2128
        %v2130 = vpop.f32.mrf.mxu0
        %v2131 = vadd.f32 0.0, %v2130
        %2132 = vmatmul.bf16.gmra.mxu0 %v2052
        %v2133 = vpop.f32.mrf.mxu0
        %v2134 = vadd.f32 0.0, %v2133
        %v2135 = vpop.f32.mrf.mxu0
        %v2136 = vadd.f32 0.0, %v2135
        %2137 = vmatmul.bf16.gmra.mxu0 %v2053
        %v2138 = vpop.f32.mrf.mxu0
        %v2139 = vadd.f32 0.0, %v2138
        %v2140 = vpop.f32.mrf.mxu0
        %v2141 = vadd.f32 0.0, %v2140
        %2142 = vmatmul.bf16.gmra.mxu0 %v2054
        %v2143 = vpop.f32.mrf.mxu0
        %v2144 = vadd.f32 0.0, %v2143
        %v2145 = vpop.f32.mrf.mxu0
        %v2146 = vadd.f32 0.0, %v2145
        %2147 = vmatmul.bf16.gmra.mxu0 %v2055
        %v2148 = vpop.f32.mrf.mxu0
        %v2149 = vadd.f32 0.0, %v2148
        %v2150 = vpop.f32.mrf.mxu0
        %v2151 = vadd.f32 0.0, %v2150
        %2152 = vdwg.mxu0
        %2153 = vrot.lane.b32.xlu0 %v1758, 96
        %v2154 = vpop.permute.xlu0 %2153
        %2155 = vrot.lane.b32.xlu0 %v1759, 96
        %v2156 = vpop.permute.xlu0 %2155
        %2157 = vrot.lane.b32.xlu0 %v1760, 96
        %v2158 = vpop.permute.xlu0 %2157
        %2159 = vrot.lane.b32.xlu0 %v1761, 96
        %v2160 = vpop.permute.xlu0 %2159
        %2161 = vrot.lane.b32.xlu0 %v1762, 96
        %v2162 = vpop.permute.xlu0 %2161
        %2163 = vrot.lane.b32.xlu0 %v1763, 96
        %v2164 = vpop.permute.xlu0 %2163
        %2165 = vrot.lane.b32.xlu0 %v1764, 96
        %v2166 = vpop.permute.xlu0 %2165
        %2167 = vrot.lane.b32.xlu0 %v1765, 96
        %v2168 = vpop.permute.xlu0 %2167
        %2169 = vrot.lane.b32.xlu0 %v1798, 96
        %v2170 = vpop.permute.xlu0 %2169
        %2171 = vrot.lane.b32.xlu0 %v1799, 96
        %v2172 = vpop.permute.xlu0 %2171
        %2173 = vrot.lane.b32.xlu0 %v1800, 96
        %v2174 = vpop.permute.xlu0 %2173
        %2175 = vrot.lane.b32.xlu0 %v1801, 96
        %v2176 = vpop.permute.xlu0 %2175
        %2177 = vrot.lane.b32.xlu0 %v1802, 96
        %v2178 = vpop.permute.xlu0 %2177
        %2179 = vrot.lane.b32.xlu0 %v1803, 96
        %v2180 = vpop.permute.xlu0 %2179
        %2181 = vrot.lane.b32.xlu0 %v1804, 96
        %v2182 = vpop.permute.xlu0 %2181
        %2183 = vrot.lane.b32.xlu0 %v1805, 96
        %v2184 = vpop.permute.xlu0 %2183
        %v2186 = vsel %vm1806, %v2154, 0
        %v2189 = vsel %vm1806, %v2156, 0
        %v2192 = vsel %vm1806, %v2158, 0
        %v2195 = vsel %vm1806, %v2160, 0
        %v2198 = vsel %vm1806, %v2162, 0
        %v2201 = vsel %vm1806, %v2164, 0
        %v2204 = vsel %vm1806, %v2166, 0
        %v2207 = vsel %vm1806, %v2168, 0
        %v2210 = vsel %vm1806, %v2170, 0
        %v2213 = vsel %vm1806, %v2172, 0
        %v2216 = vsel %vm1806, %v2174, 0
        %v2219 = vsel %vm1806, %v2176, 0
        %v2222 = vsel %vm1806, %v2178, 0
        %v2225 = vsel %vm1806, %v2180, 0
        %v2228 = vsel %vm1806, %v2182, 0
        %v2231 = vsel %vm1806, %v2184, 0
        %2233 = vmatpush.bf16.xpose.msra.mxu0 %v2231
        %2234 = vmatpush.bf16.xpose.msra.mxu0 %v2228
        %2235 = vmatpush.bf16.xpose.msra.mxu0 %v2225
        %2236 = vmatpush.bf16.xpose.msra.mxu0 %v2222
        %2237 = vmatpush.bf16.xpose.msra.mxu0 %v2219
        %2238 = vmatpush.bf16.xpose.msra.mxu0 %v2216
        %2239 = vmatpush.bf16.xpose.msra.mxu0 %v2213
        %2240 = vmatpush.bf16.xpose.msra.mxu0 %v2210
        %2241 = vmatmul.bf16.gmra.mxu0 %v2186
        %v2242 = vpop.f32.mrf.mxu0
        %v2243 = vadd.f32 0.0, %v2242
        %v2244 = vpop.f32.mrf.mxu0
        %v2245 = vadd.f32 0.0, %v2244
        %2246 = vmatmul.bf16.gmra.mxu0 %v2189
        %v2247 = vpop.f32.mrf.mxu0
        %v2248 = vadd.f32 0.0, %v2247
        %v2249 = vpop.f32.mrf.mxu0
        %v2250 = vadd.f32 0.0, %v2249
        %2251 = vmatmul.bf16.gmra.mxu0 %v2192
        %v2252 = vpop.f32.mrf.mxu0
        %v2253 = vadd.f32 0.0, %v2252
        %v2254 = vpop.f32.mrf.mxu0
        %v2255 = vadd.f32 0.0, %v2254
        %2256 = vmatmul.bf16.gmra.mxu0 %v2195
        %v2257 = vpop.f32.mrf.mxu0
        %v2258 = vadd.f32 0.0, %v2257
        %v2259 = vpop.f32.mrf.mxu0
        %v2260 = vadd.f32 0.0, %v2259
        %2261 = vmatmul.bf16.gmra.mxu0 %v2198
        %v2262 = vpop.f32.mrf.mxu0
        %v2263 = vadd.f32 0.0, %v2262
        %v2264 = vpop.f32.mrf.mxu0
        %v2265 = vadd.f32 0.0, %v2264
        %2266 = vmatmul.bf16.gmra.mxu0 %v2201
        %v2267 = vpop.f32.mrf.mxu0
        %v2268 = vadd.f32 0.0, %v2267
        %v2269 = vpop.f32.mrf.mxu0
        %v2270 = vadd.f32 0.0, %v2269
        %2271 = vmatmul.bf16.gmra.mxu0 %v2204
        %v2272 = vpop.f32.mrf.mxu0
        %v2273 = vadd.f32 0.0, %v2272
        %v2274 = vpop.f32.mrf.mxu0
        %v2275 = vadd.f32 0.0, %v2274
        %2276 = vmatmul.bf16.gmra.mxu0 %v2207
        %v2277 = vpop.f32.mrf.mxu0
        %v2278 = vadd.f32 0.0, %v2277
        %v2279 = vpop.f32.mrf.mxu0
        %v2280 = vadd.f32 0.0, %v2279
        %2281 = vdwg.mxu0
        %2282 = vmax.xlane.f32.xlu0 %v2243
        %v2283 = vpop.xlane.xlu0 %2282
        %2284 = vmax.xlane.f32.xlu0 %v2245
        %v2285 = vpop.xlane.xlu0 %2284
        %2286 = vmax.xlane.f32.xlu0 %v2248
        %v2287 = vpop.xlane.xlu0 %2286
        %2288 = vmax.xlane.f32.xlu0 %v2250
        %v2289 = vpop.xlane.xlu0 %2288
        %2290 = vmax.xlane.f32.xlu0 %v2253
        %v2291 = vpop.xlane.xlu0 %2290
        %2292 = vmax.xlane.f32.xlu0 %v2255
        %v2293 = vpop.xlane.xlu0 %2292
        %2294 = vmax.xlane.f32.xlu0 %v2258
        %v2295 = vpop.xlane.xlu0 %2294
        %2296 = vmax.xlane.f32.xlu0 %v2260
        %v2297 = vpop.xlane.xlu0 %2296
        %2298 = vmax.xlane.f32.xlu0 %v2263
        %v2299 = vpop.xlane.xlu0 %2298
        %2300 = vmax.xlane.f32.xlu0 %v2265
        %v2301 = vpop.xlane.xlu0 %2300
        %2302 = vmax.xlane.f32.xlu0 %v2268
        %v2303 = vpop.xlane.xlu0 %2302
        %2304 = vmax.xlane.f32.xlu0 %v2270
        %v2305 = vpop.xlane.xlu0 %2304
        %2306 = vmax.xlane.f32.xlu0 %v2273
        %v2307 = vpop.xlane.xlu0 %2306
        %2308 = vmax.xlane.f32.xlu0 %v2275
        %v2309 = vpop.xlane.xlu0 %2308
        %2310 = vmax.xlane.f32.xlu0 %v2278
        %v2311 = vpop.xlane.xlu0 %2310
        %2312 = vmax.xlane.f32.xlu0 %v2280
        %v2313 = vpop.xlane.xlu0 %2312
        %v2314 = vsub.f32 %v2243, %v2283
        %v2315 = vsub.f32 %v2245, %v2285
        %v2316 = vsub.f32 %v2248, %v2287
        %v2317 = vsub.f32 %v2250, %v2289
        %v2318 = vsub.f32 %v2253, %v2291
        %v2319 = vsub.f32 %v2255, %v2293
        %v2320 = vsub.f32 %v2258, %v2295
        %v2321 = vsub.f32 %v2260, %v2297
        %v2322 = vsub.f32 %v2263, %v2299
        %v2323 = vsub.f32 %v2265, %v2301
        %v2324 = vsub.f32 %v2268, %v2303
        %v2325 = vsub.f32 %v2270, %v2305
        %v2326 = vsub.f32 %v2273, %v2307
        %v2327 = vsub.f32 %v2275, %v2309
        %v2328 = vsub.f32 %v2278, %v2311
        %v2329 = vsub.f32 %v2280, %v2313
        %v2330 = vmul.f32 %v2314, 1.442695
        %v2331 = vpow.pop %v2330
        %v2332 = vmul.f32 %v2315, 1.442695
        %v2333 = vpow.pop %v2332
        %v2334 = vmul.f32 %v2316, 1.442695
        %v2335 = vpow.pop %v2334
        %v2336 = vmul.f32 %v2317, 1.442695
        %v2337 = vpow.pop %v2336
        %v2338 = vmul.f32 %v2318, 1.442695
        %v2339 = vpow.pop %v2338
        %v2340 = vmul.f32 %v2319, 1.442695
        %v2341 = vpow.pop %v2340
        %v2342 = vmul.f32 %v2320, 1.442695
        %v2343 = vpow.pop %v2342
        %v2344 = vmul.f32 %v2321, 1.442695
        %v2345 = vpow.pop %v2344
        %v2346 = vmul.f32 %v2322, 1.442695
        %v2347 = vpow.pop %v2346
        %v2348 = vmul.f32 %v2323, 1.442695
        %v2349 = vpow.pop %v2348
        %v2350 = vmul.f32 %v2324, 1.442695
        %v2351 = vpow.pop %v2350
        %v2352 = vmul.f32 %v2325, 1.442695
        %v2353 = vpow.pop %v2352
        %v2354 = vmul.f32 %v2326, 1.442695
        %v2355 = vpow.pop %v2354
        %v2356 = vmul.f32 %v2327, 1.442695
        %v2357 = vpow.pop %v2356
        %v2358 = vmul.f32 %v2328, 1.442695
        %v2359 = vpow.pop %v2358
        %v2360 = vmul.f32 %v2329, 1.442695
        %v2361 = vpow.pop %v2360
        %2362 = vadd.xlane.f32.xlu0 %v2331
        %v2363 = vpop.xlane.xlu0 %2362
        %2364 = vadd.xlane.f32.xlu0 %v2333
        %v2365 = vpop.xlane.xlu0 %2364
        %2366 = vadd.xlane.f32.xlu0 %v2335
        %v2367 = vpop.xlane.xlu0 %2366
        %2368 = vadd.xlane.f32.xlu0 %v2337
        %v2369 = vpop.xlane.xlu0 %2368
        %2370 = vadd.xlane.f32.xlu0 %v2339
        %v2371 = vpop.xlane.xlu0 %2370
        %2372 = vadd.xlane.f32.xlu0 %v2341
        %v2373 = vpop.xlane.xlu0 %2372
        %2374 = vadd.xlane.f32.xlu0 %v2343
        %v2375 = vpop.xlane.xlu0 %2374
        %2376 = vadd.xlane.f32.xlu0 %v2345
        %v2377 = vpop.xlane.xlu0 %2376
        %2378 = vadd.xlane.f32.xlu0 %v2347
        %v2379 = vpop.xlane.xlu0 %2378
        %2380 = vadd.xlane.f32.xlu0 %v2349
        %v2381 = vpop.xlane.xlu0 %2380
        %2382 = vadd.xlane.f32.xlu0 %v2351
        %v2383 = vpop.xlane.xlu0 %2382
        %2384 = vadd.xlane.f32.xlu0 %v2353
        %v2385 = vpop.xlane.xlu0 %2384
        %2386 = vadd.xlane.f32.xlu0 %v2355
        %v2387 = vpop.xlane.xlu0 %2386
        %2388 = vadd.xlane.f32.xlu0 %v2357
        %v2389 = vpop.xlane.xlu0 %2388
        %2390 = vadd.xlane.f32.xlu0 %v2359
        %v2391 = vpop.xlane.xlu0 %2390
        %2392 = vadd.xlane.f32.xlu0 %v2361
        %v2393 = vpop.xlane.xlu0 %2392
        %v2394 = vrcp.pop %v2363
        %v2395 = vrcp.pop %v2365
        %v2396 = vrcp.pop %v2367
        %v2397 = vrcp.pop %v2369
        %v2398 = vrcp.pop %v2371
        %v2399 = vrcp.pop %v2373
        %v2400 = vrcp.pop %v2375
        %v2401 = vrcp.pop %v2377
        %v2402 = vrcp.pop %v2379
        %v2403 = vrcp.pop %v2381
        %v2404 = vrcp.pop %v2383
        %v2405 = vrcp.pop %v2385
        %v2406 = vrcp.pop %v2387
        %v2407 = vrcp.pop %v2389
        %v2408 = vrcp.pop %v2391
        %v2409 = vrcp.pop %v2393
        %v2410 = vmul.f32 %v2331, %v2394
        %v2411 = vmul.f32 %v2333, %v2395
        %v2412 = vmul.f32 %v2335, %v2396
        %v2413 = vmul.f32 %v2337, %v2397
        %v2414 = vmul.f32 %v2339, %v2398
        %v2415 = vmul.f32 %v2341, %v2399
        %v2416 = vmul.f32 %v2343, %v2400
        %v2417 = vmul.f32 %v2345, %v2401
        %v2418 = vmul.f32 %v2347, %v2402
        %v2419 = vmul.f32 %v2349, %v2403
        %v2420 = vmul.f32 %v2351, %v2404
        %v2421 = vmul.f32 %v2353, %v2405
        %v2422 = vmul.f32 %v2355, %v2406
        %v2423 = vmul.f32 %v2357, %v2407
        %v2424 = vmul.f32 %v2359, %v2408
        %v2425 = vmul.f32 %v2361, %v2409
        %v2426 = vpack.c.bf16 %v2411, %v2410
        %v2427 = vpack.c.bf16 %v2413, %v2412
        %v2428 = vpack.c.bf16 %v2415, %v2414
        %v2429 = vpack.c.bf16 %v2417, %v2416
        %v2430 = vpack.c.bf16 %v2419, %v2418
        %v2431 = vpack.c.bf16 %v2421, %v2420
        %v2432 = vpack.c.bf16 %v2423, %v2422
        %v2433 = vpack.c.bf16 %v2425, %v2424
        %2434 = vrot.lane.b32.xlu0 %v2088, 96
        %v2435 = vpop.permute.xlu0 %2434
        %2436 = vrot.lane.b32.xlu0 %v2089, 96
        %v2437 = vpop.permute.xlu0 %2436
        %2438 = vrot.lane.b32.xlu0 %v2090, 96
        %v2439 = vpop.permute.xlu0 %2438
        %2440 = vrot.lane.b32.xlu0 %v2091, 96
        %v2441 = vpop.permute.xlu0 %2440
        %2442 = vrot.lane.b32.xlu0 %v2092, 96
        %v2443 = vpop.permute.xlu0 %2442
        %2444 = vrot.lane.b32.xlu0 %v2093, 96
        %v2445 = vpop.permute.xlu0 %2444
        %2446 = vrot.lane.b32.xlu0 %v2094, 96
        %v2447 = vpop.permute.xlu0 %2446
        %2448 = vrot.lane.b32.xlu0 %v2095, 96
        %v2449 = vpop.permute.xlu0 %2448
        %2458 = vmatpush.bf16.msra.mxu0 %v2449
        %2459 = vmatpush.bf16.msra.mxu0 %v2447
        %2460 = vmatpush.bf16.msra.mxu0 %v2445
        %2461 = vmatpush.bf16.msra.mxu0 %v2443
        %2462 = vmatpush.bf16.msra.mxu0 %v2441
        %2463 = vmatpush.bf16.msra.mxu0 %v2439
        %2464 = vmatpush.bf16.msra.mxu0 %v2437
        %2465 = vmatpush.bf16.msra.mxu0 %v2435
        %2466 = vmatmul.bf16.gmra.mxu0 %v2426
        %v2467 = vpop.f32.mrf.mxu0
        %v2468 = vadd.f32 0.0, %v2467
        %v2469 = vpop.f32.mrf.mxu0
        %v2470 = vadd.f32 0.0, %v2469
        %2471 = vmatmul.bf16.gmra.mxu0 %v2427
        %v2472 = vpop.f32.mrf.mxu0
        %v2473 = vadd.f32 0.0, %v2472
        %v2474 = vpop.f32.mrf.mxu0
        %v2475 = vadd.f32 0.0, %v2474
        %2476 = vmatmul.bf16.gmra.mxu0 %v2428
        %v2477 = vpop.f32.mrf.mxu0
        %v2478 = vadd.f32 0.0, %v2477
        %v2479 = vpop.f32.mrf.mxu0
        %v2480 = vadd.f32 0.0, %v2479
        %2481 = vmatmul.bf16.gmra.mxu0 %v2429
        %v2482 = vpop.f32.mrf.mxu0
        %v2483 = vadd.f32 0.0, %v2482
        %v2484 = vpop.f32.mrf.mxu0
        %v2485 = vadd.f32 0.0, %v2484
        %2486 = vmatmul.bf16.gmra.mxu0 %v2430
        %v2487 = vpop.f32.mrf.mxu0
        %v2488 = vadd.f32 0.0, %v2487
        %v2489 = vpop.f32.mrf.mxu0
        %v2490 = vadd.f32 0.0, %v2489
        %2491 = vmatmul.bf16.gmra.mxu0 %v2431
        %v2492 = vpop.f32.mrf.mxu0
        %v2493 = vadd.f32 0.0, %v2492
        %v2494 = vpop.f32.mrf.mxu0
        %v2495 = vadd.f32 0.0, %v2494
        %2496 = vmatmul.bf16.gmra.mxu0 %v2432
        %v2497 = vpop.f32.mrf.mxu0
        %v2498 = vadd.f32 0.0, %v2497
        %v2499 = vpop.f32.mrf.mxu0
        %v2500 = vadd.f32 0.0, %v2499
        %2501 = vmatmul.bf16.gmra.mxu0 %v2433
        %v2502 = vpop.f32.mrf.mxu0
        %v2503 = vadd.f32 0.0, %v2502
        %v2504 = vpop.f32.mrf.mxu0
        %v2505 = vadd.f32 0.0, %v2504
        %2506 = vdwg.mxu0
        %2507 = vrot.lane.b32.xlu0 %v1758, 64
        %v2508 = vpop.permute.xlu0 %2507
        %2509 = vrot.lane.b32.xlu0 %v1759, 64
        %v2510 = vpop.permute.xlu0 %2509
        %2511 = vrot.lane.b32.xlu0 %v1760, 64
        %v2512 = vpop.permute.xlu0 %2511
        %2513 = vrot.lane.b32.xlu0 %v1761, 64
        %v2514 = vpop.permute.xlu0 %2513
        %2515 = vrot.lane.b32.xlu0 %v1762, 64
        %v2516 = vpop.permute.xlu0 %2515
        %2517 = vrot.lane.b32.xlu0 %v1763, 64
        %v2518 = vpop.permute.xlu0 %2517
        %2519 = vrot.lane.b32.xlu0 %v1764, 64
        %v2520 = vpop.permute.xlu0 %2519
        %2521 = vrot.lane.b32.xlu0 %v1765, 64
        %v2522 = vpop.permute.xlu0 %2521
        %2523 = vrot.lane.b32.xlu0 %v1798, 64
        %v2524 = vpop.permute.xlu0 %2523
        %2525 = vrot.lane.b32.xlu0 %v1799, 64
        %v2526 = vpop.permute.xlu0 %2525
        %2527 = vrot.lane.b32.xlu0 %v1800, 64
        %v2528 = vpop.permute.xlu0 %2527
        %2529 = vrot.lane.b32.xlu0 %v1801, 64
        %v2530 = vpop.permute.xlu0 %2529
        %2531 = vrot.lane.b32.xlu0 %v1802, 64
        %v2532 = vpop.permute.xlu0 %2531
        %2533 = vrot.lane.b32.xlu0 %v1803, 64
        %v2534 = vpop.permute.xlu0 %2533
        %2535 = vrot.lane.b32.xlu0 %v1804, 64
        %v2536 = vpop.permute.xlu0 %2535
        %2537 = vrot.lane.b32.xlu0 %v1805, 64
        %v2538 = vpop.permute.xlu0 %2537
        %v2540 = vsel %vm1806, %v2508, 0
        %v2543 = vsel %vm1806, %v2510, 0
        %v2546 = vsel %vm1806, %v2512, 0
        %v2549 = vsel %vm1806, %v2514, 0
        %v2552 = vsel %vm1806, %v2516, 0
        %v2555 = vsel %vm1806, %v2518, 0
        %v2558 = vsel %vm1806, %v2520, 0
        %v2561 = vsel %vm1806, %v2522, 0
        %v2564 = vsel %vm1806, %v2524, 0
        %v2567 = vsel %vm1806, %v2526, 0
        %v2570 = vsel %vm1806, %v2528, 0
        %v2573 = vsel %vm1806, %v2530, 0
        %v2576 = vsel %vm1806, %v2532, 0
        %v2579 = vsel %vm1806, %v2534, 0
        %v2582 = vsel %vm1806, %v2536, 0
        %v2585 = vsel %vm1806, %v2538, 0
        %2587 = vmatpush.bf16.xpose.msra.mxu0 %v2585
        %2588 = vmatpush.bf16.xpose.msra.mxu0 %v2582
        %2589 = vmatpush.bf16.xpose.msra.mxu0 %v2579
        %2590 = vmatpush.bf16.xpose.msra.mxu0 %v2576
        %2591 = vmatpush.bf16.xpose.msra.mxu0 %v2573
        %2592 = vmatpush.bf16.xpose.msra.mxu0 %v2570
        %2593 = vmatpush.bf16.xpose.msra.mxu0 %v2567
        %2594 = vmatpush.bf16.xpose.msra.mxu0 %v2564
        %2595 = vmatmul.bf16.gmra.mxu0 %v2540
        %v2596 = vpop.f32.mrf.mxu0
        %v2597 = vadd.f32 0.0, %v2596
        %v2598 = vpop.f32.mrf.mxu0
        %v2599 = vadd.f32 0.0, %v2598
        %2600 = vmatmul.bf16.gmra.mxu0 %v2543
        %v2601 = vpop.f32.mrf.mxu0
        %v2602 = vadd.f32 0.0, %v2601
        %v2603 = vpop.f32.mrf.mxu0
        %v2604 = vadd.f32 0.0, %v2603
        %2605 = vmatmul.bf16.gmra.mxu0 %v2546
        %v2606 = vpop.f32.mrf.mxu0
        %v2607 = vadd.f32 0.0, %v2606
        %v2608 = vpop.f32.mrf.mxu0
        %v2609 = vadd.f32 0.0, %v2608
        %2610 = vmatmul.bf16.gmra.mxu0 %v2549
        %v2611 = vpop.f32.mrf.mxu0
        %v2612 = vadd.f32 0.0, %v2611
        %v2613 = vpop.f32.mrf.mxu0
        %v2614 = vadd.f32 0.0, %v2613
        %2615 = vmatmul.bf16.gmra.mxu0 %v2552
        %v2616 = vpop.f32.mrf.mxu0
        %v2617 = vadd.f32 0.0, %v2616
        %v2618 = vpop.f32.mrf.mxu0
        %v2619 = vadd.f32 0.0, %v2618
        %2620 = vmatmul.bf16.gmra.mxu0 %v2555
        %v2621 = vpop.f32.mrf.mxu0
        %v2622 = vadd.f32 0.0, %v2621
        %v2623 = vpop.f32.mrf.mxu0
        %v2624 = vadd.f32 0.0, %v2623
        %2625 = vmatmul.bf16.gmra.mxu0 %v2558
        %v2626 = vpop.f32.mrf.mxu0
        %v2627 = vadd.f32 0.0, %v2626
        %v2628 = vpop.f32.mrf.mxu0
        %v2629 = vadd.f32 0.0, %v2628
        %2630 = vmatmul.bf16.gmra.mxu0 %v2561
        %v2631 = vpop.f32.mrf.mxu0
        %v2632 = vadd.f32 0.0, %v2631
        %v2633 = vpop.f32.mrf.mxu0
        %v2634 = vadd.f32 0.0, %v2633
        %2635 = vdwg.mxu0
        %2636 = vmax.xlane.f32.xlu0 %v2597
        %v2637 = vpop.xlane.xlu0 %2636
        %2638 = vmax.xlane.f32.xlu0 %v2599
        %v2639 = vpop.xlane.xlu0 %2638
        %2640 = vmax.xlane.f32.xlu0 %v2602
        %v2641 = vpop.xlane.xlu0 %2640
        %2642 = vmax.xlane.f32.xlu0 %v2604
        %v2643 = vpop.xlane.xlu0 %2642
        %2644 = vmax.xlane.f32.xlu0 %v2607
        %v2645 = vpop.xlane.xlu0 %2644
        %2646 = vmax.xlane.f32.xlu0 %v2609
        %v2647 = vpop.xlane.xlu0 %2646
        %2648 = vmax.xlane.f32.xlu0 %v2612
        %v2649 = vpop.xlane.xlu0 %2648
        %2650 = vmax.xlane.f32.xlu0 %v2614
        %v2651 = vpop.xlane.xlu0 %2650
        %2652 = vmax.xlane.f32.xlu0 %v2617
        %v2653 = vpop.xlane.xlu0 %2652
        %2654 = vmax.xlane.f32.xlu0 %v2619
        %v2655 = vpop.xlane.xlu0 %2654
        %2656 = vmax.xlane.f32.xlu0 %v2622
        %v2657 = vpop.xlane.xlu0 %2656
        %2658 = vmax.xlane.f32.xlu0 %v2624
        %v2659 = vpop.xlane.xlu0 %2658
        %2660 = vmax.xlane.f32.xlu0 %v2627
        %v2661 = vpop.xlane.xlu0 %2660
        %2662 = vmax.xlane.f32.xlu0 %v2629
        %v2663 = vpop.xlane.xlu0 %2662
        %2664 = vmax.xlane.f32.xlu0 %v2632
        %v2665 = vpop.xlane.xlu0 %2664
        %2666 = vmax.xlane.f32.xlu0 %v2634
        %v2667 = vpop.xlane.xlu0 %2666
        %v2668 = vsub.f32 %v2597, %v2637
        %v2669 = vsub.f32 %v2599, %v2639
        %v2670 = vsub.f32 %v2602, %v2641
        %v2671 = vsub.f32 %v2604, %v2643
        %v2672 = vsub.f32 %v2607, %v2645
        %v2673 = vsub.f32 %v2609, %v2647
        %v2674 = vsub.f32 %v2612, %v2649
        %v2675 = vsub.f32 %v2614, %v2651
        %v2676 = vsub.f32 %v2617, %v2653
        %v2677 = vsub.f32 %v2619, %v2655
        %v2678 = vsub.f32 %v2622, %v2657
        %v2679 = vsub.f32 %v2624, %v2659
        %v2680 = vsub.f32 %v2627, %v2661
        %v2681 = vsub.f32 %v2629, %v2663
        %v2682 = vsub.f32 %v2632, %v2665
        %v2683 = vsub.f32 %v2634, %v2667
        %v2684 = vmul.f32 %v2668, 1.442695
        %v2685 = vpow.pop %v2684
        %v2686 = vmul.f32 %v2669, 1.442695
        %v2687 = vpow.pop %v2686
        %v2688 = vmul.f32 %v2670, 1.442695
        %v2689 = vpow.pop %v2688
        %v2690 = vmul.f32 %v2671, 1.442695
        %v2691 = vpow.pop %v2690
        %v2692 = vmul.f32 %v2672, 1.442695
        %v2693 = vpow.pop %v2692
        %v2694 = vmul.f32 %v2673, 1.442695
        %v2695 = vpow.pop %v2694
        %v2696 = vmul.f32 %v2674, 1.442695
        %v2697 = vpow.pop %v2696
        %v2698 = vmul.f32 %v2675, 1.442695
        %v2699 = vpow.pop %v2698
        %v2700 = vmul.f32 %v2676, 1.442695
        %v2701 = vpow.pop %v2700
        %v2702 = vmul.f32 %v2677, 1.442695
        %v2703 = vpow.pop %v2702
        %v2704 = vmul.f32 %v2678, 1.442695
        %v2705 = vpow.pop %v2704
        %v2706 = vmul.f32 %v2679, 1.442695
        %v2707 = vpow.pop %v2706
        %v2708 = vmul.f32 %v2680, 1.442695
        %v2709 = vpow.pop %v2708
        %v2710 = vmul.f32 %v2681, 1.442695
        %v2711 = vpow.pop %v2710
        %v2712 = vmul.f32 %v2682, 1.442695
        %v2713 = vpow.pop %v2712
        %v2714 = vmul.f32 %v2683, 1.442695
        %v2715 = vpow.pop %v2714
        %2716 = vadd.xlane.f32.xlu0 %v2685
        %v2717 = vpop.xlane.xlu0 %2716
        %2718 = vadd.xlane.f32.xlu0 %v2687
        %v2719 = vpop.xlane.xlu0 %2718
        %2720 = vadd.xlane.f32.xlu0 %v2689
        %v2721 = vpop.xlane.xlu0 %2720
        %2722 = vadd.xlane.f32.xlu0 %v2691
        %v2723 = vpop.xlane.xlu0 %2722
        %2724 = vadd.xlane.f32.xlu0 %v2693
        %v2725 = vpop.xlane.xlu0 %2724
        %2726 = vadd.xlane.f32.xlu0 %v2695
        %v2727 = vpop.xlane.xlu0 %2726
        %2728 = vadd.xlane.f32.xlu0 %v2697
        %v2729 = vpop.xlane.xlu0 %2728
        %2730 = vadd.xlane.f32.xlu0 %v2699
        %v2731 = vpop.xlane.xlu0 %2730
        %2732 = vadd.xlane.f32.xlu0 %v2701
        %v2733 = vpop.xlane.xlu0 %2732
        %2734 = vadd.xlane.f32.xlu0 %v2703
        %v2735 = vpop.xlane.xlu0 %2734
        %2736 = vadd.xlane.f32.xlu0 %v2705
        %v2737 = vpop.xlane.xlu0 %2736
        %2738 = vadd.xlane.f32.xlu0 %v2707
        %v2739 = vpop.xlane.xlu0 %2738
        %2740 = vadd.xlane.f32.xlu0 %v2709
        %v2741 = vpop.xlane.xlu0 %2740
        %2742 = vadd.xlane.f32.xlu0 %v2711
        %v2743 = vpop.xlane.xlu0 %2742
        %2744 = vadd.xlane.f32.xlu0 %v2713
        %v2745 = vpop.xlane.xlu0 %2744
        %2746 = vadd.xlane.f32.xlu0 %v2715
        %v2747 = vpop.xlane.xlu0 %2746
        %v2748 = vrcp.pop %v2717
        %v2749 = vrcp.pop %v2719
        %v2750 = vrcp.pop %v2721
        %v2751 = vrcp.pop %v2723
        %v2752 = vrcp.pop %v2725
        %v2753 = vrcp.pop %v2727
        %v2754 = vrcp.pop %v2729
        %v2755 = vrcp.pop %v2731
        %v2756 = vrcp.pop %v2733
        %v2757 = vrcp.pop %v2735
        %v2758 = vrcp.pop %v2737
        %v2759 = vrcp.pop %v2739
        %v2760 = vrcp.pop %v2741
        %v2761 = vrcp.pop %v2743
        %v2762 = vrcp.pop %v2745
        %v2763 = vrcp.pop %v2747
        %v2764 = vmul.f32 %v2685, %v2748
        %v2765 = vmul.f32 %v2687, %v2749
        %v2766 = vmul.f32 %v2689, %v2750
        %v2767 = vmul.f32 %v2691, %v2751
        %v2768 = vmul.f32 %v2693, %v2752
        %v2769 = vmul.f32 %v2695, %v2753
        %v2770 = vmul.f32 %v2697, %v2754
        %v2771 = vmul.f32 %v2699, %v2755
        %v2772 = vmul.f32 %v2701, %v2756
        %v2773 = vmul.f32 %v2703, %v2757
        %v2774 = vmul.f32 %v2705, %v2758
        %v2775 = vmul.f32 %v2707, %v2759
        %v2776 = vmul.f32 %v2709, %v2760
        %v2777 = vmul.f32 %v2711, %v2761
        %v2778 = vmul.f32 %v2713, %v2762
        %v2779 = vmul.f32 %v2715, %v2763
        %v2780 = vpack.c.bf16 %v2765, %v2764
        %v2781 = vpack.c.bf16 %v2767, %v2766
        %v2782 = vpack.c.bf16 %v2769, %v2768
        %v2783 = vpack.c.bf16 %v2771, %v2770
        %v2784 = vpack.c.bf16 %v2773, %v2772
        %v2785 = vpack.c.bf16 %v2775, %v2774
        %v2786 = vpack.c.bf16 %v2777, %v2776
        %v2787 = vpack.c.bf16 %v2779, %v2778
        %2788 = vrot.lane.b32.xlu0 %v2088, 64
        %v2789 = vpop.permute.xlu0 %2788
        %2790 = vrot.lane.b32.xlu0 %v2089, 64
        %v2791 = vpop.permute.xlu0 %2790
        %2792 = vrot.lane.b32.xlu0 %v2090, 64
        %v2793 = vpop.permute.xlu0 %2792
        %2794 = vrot.lane.b32.xlu0 %v2091, 64
        %v2795 = vpop.permute.xlu0 %2794
        %2796 = vrot.lane.b32.xlu0 %v2092, 64
        %v2797 = vpop.permute.xlu0 %2796
        %2798 = vrot.lane.b32.xlu0 %v2093, 64
        %v2799 = vpop.permute.xlu0 %2798
        %2800 = vrot.lane.b32.xlu0 %v2094, 64
        %v2801 = vpop.permute.xlu0 %2800
        %2802 = vrot.lane.b32.xlu0 %v2095, 64
        %v2803 = vpop.permute.xlu0 %2802
        %2812 = vmatpush.bf16.msra.mxu0 %v2803
        %2813 = vmatpush.bf16.msra.mxu0 %v2801
        %2814 = vmatpush.bf16.msra.mxu0 %v2799
        %2815 = vmatpush.bf16.msra.mxu0 %v2797
        %2816 = vmatpush.bf16.msra.mxu0 %v2795
        %2817 = vmatpush.bf16.msra.mxu0 %v2793
        %2818 = vmatpush.bf16.msra.mxu0 %v2791
        %2819 = vmatpush.bf16.msra.mxu0 %v2789
        %2820 = vmatmul.bf16.gmra.mxu0 %v2780
        %v2821 = vpop.f32.mrf.mxu0
        %v2822 = vadd.f32 0.0, %v2821
        %v2823 = vpop.f32.mrf.mxu0
        %v2824 = vadd.f32 0.0, %v2823
        %2825 = vmatmul.bf16.gmra.mxu0 %v2781
        %v2826 = vpop.f32.mrf.mxu0
        %v2827 = vadd.f32 0.0, %v2826
        %v2828 = vpop.f32.mrf.mxu0
        %v2829 = vadd.f32 0.0, %v2828
        %2830 = vmatmul.bf16.gmra.mxu0 %v2782
        %v2831 = vpop.f32.mrf.mxu0
        %v2832 = vadd.f32 0.0, %v2831
        %v2833 = vpop.f32.mrf.mxu0
        %v2834 = vadd.f32 0.0, %v2833
        %2835 = vmatmul.bf16.gmra.mxu0 %v2783
        %v2836 = vpop.f32.mrf.mxu0
        %v2837 = vadd.f32 0.0, %v2836
        %v2838 = vpop.f32.mrf.mxu0
        %v2839 = vadd.f32 0.0, %v2838
        %2840 = vmatmul.bf16.gmra.mxu0 %v2784
        %v2841 = vpop.f32.mrf.mxu0
        %v2842 = vadd.f32 0.0, %v2841
        %v2843 = vpop.f32.mrf.mxu0
        %v2844 = vadd.f32 0.0, %v2843
        %2845 = vmatmul.bf16.gmra.mxu0 %v2785
        %v2846 = vpop.f32.mrf.mxu0
        %v2847 = vadd.f32 0.0, %v2846
        %v2848 = vpop.f32.mrf.mxu0
        %v2849 = vadd.f32 0.0, %v2848
        %2850 = vmatmul.bf16.gmra.mxu0 %v2786
        %v2851 = vpop.f32.mrf.mxu0
        %v2852 = vadd.f32 0.0, %v2851
        %v2853 = vpop.f32.mrf.mxu0
        %v2854 = vadd.f32 0.0, %v2853
        %2855 = vmatmul.bf16.gmra.mxu0 %v2787
        %v2856 = vpop.f32.mrf.mxu0
        %v2857 = vadd.f32 0.0, %v2856
        %v2858 = vpop.f32.mrf.mxu0
        %v2859 = vadd.f32 0.0, %v2858
        %2860 = vdwg.mxu0
        %2861 = vrot.lane.b32.xlu0 %v1758, 32
        %v2862 = vpop.permute.xlu0 %2861
        %2863 = vrot.lane.b32.xlu0 %v1759, 32
        %v2864 = vpop.permute.xlu0 %2863
        %2865 = vrot.lane.b32.xlu0 %v1760, 32
        %v2866 = vpop.permute.xlu0 %2865
        %2867 = vrot.lane.b32.xlu0 %v1761, 32
        %v2868 = vpop.permute.xlu0 %2867
        %2869 = vrot.lane.b32.xlu0 %v1762, 32
        %v2870 = vpop.permute.xlu0 %2869
        %2871 = vrot.lane.b32.xlu0 %v1763, 32
        %v2872 = vpop.permute.xlu0 %2871
        %2873 = vrot.lane.b32.xlu0 %v1764, 32
        %v2874 = vpop.permute.xlu0 %2873
        %2875 = vrot.lane.b32.xlu0 %v1765, 32
        %v2876 = vpop.permute.xlu0 %2875
        %2877 = vrot.lane.b32.xlu0 %v1798, 32
        %v2878 = vpop.permute.xlu0 %2877
        %2879 = vrot.lane.b32.xlu0 %v1799, 32
        %v2880 = vpop.permute.xlu0 %2879
        %2881 = vrot.lane.b32.xlu0 %v1800, 32
        %v2882 = vpop.permute.xlu0 %2881
        %2883 = vrot.lane.b32.xlu0 %v1801, 32
        %v2884 = vpop.permute.xlu0 %2883
        %2885 = vrot.lane.b32.xlu0 %v1802, 32
        %v2886 = vpop.permute.xlu0 %2885
        %2887 = vrot.lane.b32.xlu0 %v1803, 32
        %v2888 = vpop.permute.xlu0 %2887
        %2889 = vrot.lane.b32.xlu0 %v1804, 32
        %v2890 = vpop.permute.xlu0 %2889
        %2891 = vrot.lane.b32.xlu0 %v1805, 32
        %v2892 = vpop.permute.xlu0 %2891
        %v2894 = vsel %vm1806, %v2862, 0
        %v2897 = vsel %vm1806, %v2864, 0
        %v2900 = vsel %vm1806, %v2866, 0
        %v2903 = vsel %vm1806, %v2868, 0
        %v2906 = vsel %vm1806, %v2870, 0
        %v2909 = vsel %vm1806, %v2872, 0
        %v2912 = vsel %vm1806, %v2874, 0
        %v2915 = vsel %vm1806, %v2876, 0
        %v2918 = vsel %vm1806, %v2878, 0
        %v2921 = vsel %vm1806, %v2880, 0
        %v2924 = vsel %vm1806, %v2882, 0
        %v2927 = vsel %vm1806, %v2884, 0
        %v2930 = vsel %vm1806, %v2886, 0
        %v2933 = vsel %vm1806, %v2888, 0
        %v2936 = vsel %vm1806, %v2890, 0
        %v2939 = vsel %vm1806, %v2892, 0
        %2941 = vmatpush.bf16.xpose.msra.mxu0 %v2939
        %2942 = vmatpush.bf16.xpose.msra.mxu0 %v2936
        %2943 = vmatpush.bf16.xpose.msra.mxu0 %v2933
        %2944 = vmatpush.bf16.xpose.msra.mxu0 %v2930
        %2945 = vmatpush.bf16.xpose.msra.mxu0 %v2927
        %2946 = vmatpush.bf16.xpose.msra.mxu0 %v2924
        %2947 = vmatpush.bf16.xpose.msra.mxu0 %v2921
        %2948 = vmatpush.bf16.xpose.msra.mxu0 %v2918
        %2949 = vmatmul.bf16.gmra.mxu0 %v2894
        %v2950 = vpop.f32.mrf.mxu0
        %v2951 = vadd.f32 0.0, %v2950
        %v2952 = vpop.f32.mrf.mxu0
        %v2953 = vadd.f32 0.0, %v2952
        %2954 = vmatmul.bf16.gmra.mxu0 %v2897
        %v2955 = vpop.f32.mrf.mxu0
        %v2956 = vadd.f32 0.0, %v2955
        %v2957 = vpop.f32.mrf.mxu0
        %v2958 = vadd.f32 0.0, %v2957
        %2959 = vmatmul.bf16.gmra.mxu0 %v2900
        %v2960 = vpop.f32.mrf.mxu0
        %v2961 = vadd.f32 0.0, %v2960
        %v2962 = vpop.f32.mrf.mxu0
        %v2963 = vadd.f32 0.0, %v2962
        %2964 = vmatmul.bf16.gmra.mxu0 %v2903
        %v2965 = vpop.f32.mrf.mxu0
        %v2966 = vadd.f32 0.0, %v2965
        %v2967 = vpop.f32.mrf.mxu0
        %v2968 = vadd.f32 0.0, %v2967
        %2969 = vmatmul.bf16.gmra.mxu0 %v2906
        %v2970 = vpop.f32.mrf.mxu0
        %v2971 = vadd.f32 0.0, %v2970
        %v2972 = vpop.f32.mrf.mxu0
        %v2973 = vadd.f32 0.0, %v2972
        %2974 = vmatmul.bf16.gmra.mxu0 %v2909
        %v2975 = vpop.f32.mrf.mxu0
        %v2976 = vadd.f32 0.0, %v2975
        %v2977 = vpop.f32.mrf.mxu0
        %v2978 = vadd.f32 0.0, %v2977
        %2979 = vmatmul.bf16.gmra.mxu0 %v2912
        %v2980 = vpop.f32.mrf.mxu0
        %v2981 = vadd.f32 0.0, %v2980
        %v2982 = vpop.f32.mrf.mxu0
        %v2983 = vadd.f32 0.0, %v2982
        %2984 = vmatmul.bf16.gmra.mxu0 %v2915
        %v2985 = vpop.f32.mrf.mxu0
        %v2986 = vadd.f32 0.0, %v2985
        %v2987 = vpop.f32.mrf.mxu0
        %v2988 = vadd.f32 0.0, %v2987
        %2989 = vdwg.mxu0
        %2990 = vmax.xlane.f32.xlu0 %v2951
        %v2991 = vpop.xlane.xlu0 %2990
        %2992 = vmax.xlane.f32.xlu0 %v2953
        %v2993 = vpop.xlane.xlu0 %2992
        %2994 = vmax.xlane.f32.xlu0 %v2956
        %v2995 = vpop.xlane.xlu0 %2994
        %2996 = vmax.xlane.f32.xlu0 %v2958
        %v2997 = vpop.xlane.xlu0 %2996
        %2998 = vmax.xlane.f32.xlu0 %v2961
        %v2999 = vpop.xlane.xlu0 %2998
        %3000 = vmax.xlane.f32.xlu0 %v2963
        %v3001 = vpop.xlane.xlu0 %3000
        %3002 = vmax.xlane.f32.xlu0 %v2966
        %v3003 = vpop.xlane.xlu0 %3002
        %3004 = vmax.xlane.f32.xlu0 %v2968
        %v3005 = vpop.xlane.xlu0 %3004
        %3006 = vmax.xlane.f32.xlu0 %v2971
        %v3007 = vpop.xlane.xlu0 %3006
        %3008 = vmax.xlane.f32.xlu0 %v2973
        %v3009 = vpop.xlane.xlu0 %3008
        %3010 = vmax.xlane.f32.xlu0 %v2976
        %v3011 = vpop.xlane.xlu0 %3010
        %3012 = vmax.xlane.f32.xlu0 %v2978
        %v3013 = vpop.xlane.xlu0 %3012
        %3014 = vmax.xlane.f32.xlu0 %v2981
        %v3015 = vpop.xlane.xlu0 %3014
        %3016 = vmax.xlane.f32.xlu0 %v2983
        %v3017 = vpop.xlane.xlu0 %3016
        %3018 = vmax.xlane.f32.xlu0 %v2986
        %v3019 = vpop.xlane.xlu0 %3018
        %3020 = vmax.xlane.f32.xlu0 %v2988
        %v3021 = vpop.xlane.xlu0 %3020
        %v3022 = vsub.f32 %v2951, %v2991
        %v3023 = vsub.f32 %v2953, %v2993
        %v3024 = vsub.f32 %v2956, %v2995
        %v3025 = vsub.f32 %v2958, %v2997
        %v3026 = vsub.f32 %v2961, %v2999
        %v3027 = vsub.f32 %v2963, %v3001
        %v3028 = vsub.f32 %v2966, %v3003
        %v3029 = vsub.f32 %v2968, %v3005
        %v3030 = vsub.f32 %v2971, %v3007
        %v3031 = vsub.f32 %v2973, %v3009
        %v3032 = vsub.f32 %v2976, %v3011
        %v3033 = vsub.f32 %v2978, %v3013
        %v3034 = vsub.f32 %v2981, %v3015
        %v3035 = vsub.f32 %v2983, %v3017
        %v3036 = vsub.f32 %v2986, %v3019
        %v3037 = vsub.f32 %v2988, %v3021
        %v3038 = vmul.f32 %v3022, 1.442695
        %v3039 = vpow.pop %v3038
        %v3040 = vmul.f32 %v3023, 1.442695
        %v3041 = vpow.pop %v3040
        %v3042 = vmul.f32 %v3024, 1.442695
        %v3043 = vpow.pop %v3042
        %v3044 = vmul.f32 %v3025, 1.442695
        %v3045 = vpow.pop %v3044
        %v3046 = vmul.f32 %v3026, 1.442695
        %v3047 = vpow.pop %v3046
        %v3048 = vmul.f32 %v3027, 1.442695
        %v3049 = vpow.pop %v3048
        %v3050 = vmul.f32 %v3028, 1.442695
        %v3051 = vpow.pop %v3050
        %v3052 = vmul.f32 %v3029, 1.442695
        %v3053 = vpow.pop %v3052
        %v3054 = vmul.f32 %v3030, 1.442695
        %v3055 = vpow.pop %v3054
        %v3056 = vmul.f32 %v3031, 1.442695
        %v3057 = vpow.pop %v3056
        %v3058 = vmul.f32 %v3032, 1.442695
        %v3059 = vpow.pop %v3058
        %v3060 = vmul.f32 %v3033, 1.442695
        %v3061 = vpow.pop %v3060
        %v3062 = vmul.f32 %v3034, 1.442695
        %v3063 = vpow.pop %v3062
        %v3064 = vmul.f32 %v3035, 1.442695
        %v3065 = vpow.pop %v3064
        %v3066 = vmul.f32 %v3036, 1.442695
        %v3067 = vpow.pop %v3066
        %v3068 = vmul.f32 %v3037, 1.442695
        %v3069 = vpow.pop %v3068
        %3070 = vadd.xlane.f32.xlu0 %v3039
        %v3071 = vpop.xlane.xlu0 %3070
        %3072 = vadd.xlane.f32.xlu0 %v3041
        %v3073 = vpop.xlane.xlu0 %3072
        %3074 = vadd.xlane.f32.xlu0 %v3043
        %v3075 = vpop.xlane.xlu0 %3074
        %3076 = vadd.xlane.f32.xlu0 %v3045
        %v3077 = vpop.xlane.xlu0 %3076
        %3078 = vadd.xlane.f32.xlu0 %v3047
        %v3079 = vpop.xlane.xlu0 %3078
        %3080 = vadd.xlane.f32.xlu0 %v3049
        %v3081 = vpop.xlane.xlu0 %3080
        %3082 = vadd.xlane.f32.xlu0 %v3051
        %v3083 = vpop.xlane.xlu0 %3082
        %3084 = vadd.xlane.f32.xlu0 %v3053
        %v3085 = vpop.xlane.xlu0 %3084
        %3086 = vadd.xlane.f32.xlu0 %v3055
        %v3087 = vpop.xlane.xlu0 %3086
        %3088 = vadd.xlane.f32.xlu0 %v3057
        %v3089 = vpop.xlane.xlu0 %3088
        %3090 = vadd.xlane.f32.xlu0 %v3059
        %v3091 = vpop.xlane.xlu0 %3090
        %3092 = vadd.xlane.f32.xlu0 %v3061
        %v3093 = vpop.xlane.xlu0 %3092
        %3094 = vadd.xlane.f32.xlu0 %v3063
        %v3095 = vpop.xlane.xlu0 %3094
        %3096 = vadd.xlane.f32.xlu0 %v3065
        %v3097 = vpop.xlane.xlu0 %3096
        %3098 = vadd.xlane.f32.xlu0 %v3067
        %v3099 = vpop.xlane.xlu0 %3098
        %3100 = vadd.xlane.f32.xlu0 %v3069
        %v3101 = vpop.xlane.xlu0 %3100
        %v3102 = vrcp.pop %v3071
        %v3103 = vrcp.pop %v3073
        %v3104 = vrcp.pop %v3075
        %v3105 = vrcp.pop %v3077
        %v3106 = vrcp.pop %v3079
        %v3107 = vrcp.pop %v3081
        %v3108 = vrcp.pop %v3083
        %v3109 = vrcp.pop %v3085
        %v3110 = vrcp.pop %v3087
        %v3111 = vrcp.pop %v3089
        %v3112 = vrcp.pop %v3091
        %v3113 = vrcp.pop %v3093
        %v3114 = vrcp.pop %v3095
        %v3115 = vrcp.pop %v3097
        %v3116 = vrcp.pop %v3099
        %v3117 = vrcp.pop %v3101
        %v3118 = vmul.f32 %v3039, %v3102
        %v3119 = vmul.f32 %v3041, %v3103
        %v3120 = vmul.f32 %v3043, %v3104
        %v3121 = vmul.f32 %v3045, %v3105
        %v3122 = vmul.f32 %v3047, %v3106
        %v3123 = vmul.f32 %v3049, %v3107
        %v3124 = vmul.f32 %v3051, %v3108
        %v3125 = vmul.f32 %v3053, %v3109
        %v3126 = vmul.f32 %v3055, %v3110
        %v3127 = vmul.f32 %v3057, %v3111
        %v3128 = vmul.f32 %v3059, %v3112
        %v3129 = vmul.f32 %v3061, %v3113
        %v3130 = vmul.f32 %v3063, %v3114
        %v3131 = vmul.f32 %v3065, %v3115
        %v3132 = vmul.f32 %v3067, %v3116
        %v3133 = vmul.f32 %v3069, %v3117
        %v3134 = vpack.c.bf16 %v3119, %v3118
        %v3135 = vpack.c.bf16 %v3121, %v3120
        %v3136 = vpack.c.bf16 %v3123, %v3122
        %v3137 = vpack.c.bf16 %v3125, %v3124
        %v3138 = vpack.c.bf16 %v3127, %v3126
        %v3139 = vpack.c.bf16 %v3129, %v3128
        %v3140 = vpack.c.bf16 %v3131, %v3130
        %v3141 = vpack.c.bf16 %v3133, %v3132
        %3142 = vrot.lane.b32.xlu0 %v2088, 32
        %v3143 = vpop.permute.xlu0 %3142
        %3144 = vrot.lane.b32.xlu0 %v2089, 32
        %v3145 = vpop.permute.xlu0 %3144
        %3146 = vrot.lane.b32.xlu0 %v2090, 32
        %v3147 = vpop.permute.xlu0 %3146
        %3148 = vrot.lane.b32.xlu0 %v2091, 32
        %v3149 = vpop.permute.xlu0 %3148
        %3150 = vrot.lane.b32.xlu0 %v2092, 32
        %v3151 = vpop.permute.xlu0 %3150
        %3152 = vrot.lane.b32.xlu0 %v2093, 32
        %v3153 = vpop.permute.xlu0 %3152
        %3154 = vrot.lane.b32.xlu0 %v2094, 32
        %v3155 = vpop.permute.xlu0 %3154
        %3156 = vrot.lane.b32.xlu0 %v2095, 32
        %v3157 = vpop.permute.xlu0 %3156
        %3166 = vmatpush.bf16.msra.mxu0 %v3157
        %3167 = vmatpush.bf16.msra.mxu0 %v3155
        %3168 = vmatpush.bf16.msra.mxu0 %v3153
        %3169 = vmatpush.bf16.msra.mxu0 %v3151
        %3170 = vmatpush.bf16.msra.mxu0 %v3149
        %3171 = vmatpush.bf16.msra.mxu0 %v3147
        %3172 = vmatpush.bf16.msra.mxu0 %v3145
        %3173 = vmatpush.bf16.msra.mxu0 %v3143
        %3174 = vmatmul.bf16.gmra.mxu0 %v3134
        %v3175 = vpop.f32.mrf.mxu0
        %v3176 = vadd.f32 0.0, %v3175
        %v3177 = vpop.f32.mrf.mxu0
        %v3178 = vadd.f32 0.0, %v3177
        %3179 = vmatmul.bf16.gmra.mxu0 %v3135
        %v3180 = vpop.f32.mrf.mxu0
        %v3181 = vadd.f32 0.0, %v3180
        %v3182 = vpop.f32.mrf.mxu0
        %v3183 = vadd.f32 0.0, %v3182
        %3184 = vmatmul.bf16.gmra.mxu0 %v3136
        %v3185 = vpop.f32.mrf.mxu0
        %v3186 = vadd.f32 0.0, %v3185
        %v3187 = vpop.f32.mrf.mxu0
        %v3188 = vadd.f32 0.0, %v3187
        %3189 = vmatmul.bf16.gmra.mxu0 %v3137
        %v3190 = vpop.f32.mrf.mxu0
        %v3191 = vadd.f32 0.0, %v3190
        %v3192 = vpop.f32.mrf.mxu0
        %v3193 = vadd.f32 0.0, %v3192
        %3194 = vmatmul.bf16.gmra.mxu0 %v3138
        %v3195 = vpop.f32.mrf.mxu0
        %v3196 = vadd.f32 0.0, %v3195
        %v3197 = vpop.f32.mrf.mxu0
        %v3198 = vadd.f32 0.0, %v3197
        %3199 = vmatmul.bf16.gmra.mxu0 %v3139
        %v3200 = vpop.f32.mrf.mxu0
        %v3201 = vadd.f32 0.0, %v3200
        %v3202 = vpop.f32.mrf.mxu0
        %v3203 = vadd.f32 0.0, %v3202
        %3204 = vmatmul.bf16.gmra.mxu0 %v3140
        %v3205 = vpop.f32.mrf.mxu0
        %v3206 = vadd.f32 0.0, %v3205
        %v3207 = vpop.f32.mrf.mxu0
        %v3208 = vadd.f32 0.0, %v3207
        %3209 = vmatmul.bf16.gmra.mxu0 %v3141
        %v3210 = vpop.f32.mrf.mxu0
        %v3211 = vadd.f32 0.0, %v3210
        %v3212 = vpop.f32.mrf.mxu0
        %v3213 = vadd.f32 0.0, %v3212
        %3214 = vdwg.mxu0
        %3231 = vrot.lane.b32.xlu0 %v2468, 32
        %v3232 = vpop.permute.xlu0 %3231
        %3233 = vrot.lane.b32.xlu0 %v2470, 32
        %v3234 = vpop.permute.xlu0 %3233
        %3235 = vrot.lane.b32.xlu0 %v2473, 32
        %v3236 = vpop.permute.xlu0 %3235
        %3237 = vrot.lane.b32.xlu0 %v2475, 32
        %v3238 = vpop.permute.xlu0 %3237
        %3239 = vrot.lane.b32.xlu0 %v2478, 32
        %v3240 = vpop.permute.xlu0 %3239
        %3241 = vrot.lane.b32.xlu0 %v2480, 32
        %v3242 = vpop.permute.xlu0 %3241
        %3243 = vrot.lane.b32.xlu0 %v2483, 32
        %v3244 = vpop.permute.xlu0 %3243
        %3245 = vrot.lane.b32.xlu0 %v2485, 32
        %v3246 = vpop.permute.xlu0 %3245
        %3247 = vrot.lane.b32.xlu0 %v2488, 32
        %v3248 = vpop.permute.xlu0 %3247
        %3249 = vrot.lane.b32.xlu0 %v2490, 32
        %v3250 = vpop.permute.xlu0 %3249
        %3251 = vrot.lane.b32.xlu0 %v2493, 32
        %v3252 = vpop.permute.xlu0 %3251
        %3253 = vrot.lane.b32.xlu0 %v2495, 32
        %v3254 = vpop.permute.xlu0 %3253
        %3255 = vrot.lane.b32.xlu0 %v2498, 32
        %v3256 = vpop.permute.xlu0 %3255
        %3257 = vrot.lane.b32.xlu0 %v2500, 32
        %v3258 = vpop.permute.xlu0 %3257
        %3259 = vrot.lane.b32.xlu0 %v2503, 32
        %v3260 = vpop.permute.xlu0 %3259
        %3261 = vrot.lane.b32.xlu0 %v2505, 32
        %v3262 = vpop.permute.xlu0 %3261
        %3295 = vrot.lane.b32.xlu0 %v2822, 64
        %v3296 = vpop.permute.xlu0 %3295
        %3297 = vrot.lane.b32.xlu0 %v2824, 64
        %v3298 = vpop.permute.xlu0 %3297
        %3299 = vrot.lane.b32.xlu0 %v2827, 64
        %v3300 = vpop.permute.xlu0 %3299
        %3301 = vrot.lane.b32.xlu0 %v2829, 64
        %v3302 = vpop.permute.xlu0 %3301
        %3303 = vrot.lane.b32.xlu0 %v2832, 64
        %v3304 = vpop.permute.xlu0 %3303
        %3305 = vrot.lane.b32.xlu0 %v2834, 64
        %v3306 = vpop.permute.xlu0 %3305
        %3307 = vrot.lane.b32.xlu0 %v2837, 64
        %v3308 = vpop.permute.xlu0 %3307
        %3309 = vrot.lane.b32.xlu0 %v2839, 64
        %v3310 = vpop.permute.xlu0 %3309
        %3311 = vrot.lane.b32.xlu0 %v2842, 64
        %v3312 = vpop.permute.xlu0 %3311
        %3313 = vrot.lane.b32.xlu0 %v2844, 64
        %v3314 = vpop.permute.xlu0 %3313
        %3315 = vrot.lane.b32.xlu0 %v2847, 64
        %v3316 = vpop.permute.xlu0 %3315
        %3317 = vrot.lane.b32.xlu0 %v2849, 64
        %v3318 = vpop.permute.xlu0 %3317
        %3319 = vrot.lane.b32.xlu0 %v2852, 64
        %v3320 = vpop.permute.xlu0 %3319
        %3321 = vrot.lane.b32.xlu0 %v2854, 64
        %v3322 = vpop.permute.xlu0 %3321
        %3323 = vrot.lane.b32.xlu0 %v2857, 64
        %v3324 = vpop.permute.xlu0 %3323
        %3325 = vrot.lane.b32.xlu0 %v2859, 64
        %v3326 = vpop.permute.xlu0 %3325
        %3359 = vrot.lane.b32.xlu0 %v3176, 96
        %v3360 = vpop.permute.xlu0 %3359
        %3361 = vrot.lane.b32.xlu0 %v3178, 96
        %v3362 = vpop.permute.xlu0 %3361
        %3363 = vrot.lane.b32.xlu0 %v3181, 96
        %v3364 = vpop.permute.xlu0 %3363
        %3365 = vrot.lane.b32.xlu0 %v3183, 96
        %v3366 = vpop.permute.xlu0 %3365
        %3367 = vrot.lane.b32.xlu0 %v3186, 96
        %v3368 = vpop.permute.xlu0 %3367
        %3369 = vrot.lane.b32.xlu0 %v3188, 96
        %v3370 = vpop.permute.xlu0 %3369
        %3371 = vrot.lane.b32.xlu0 %v3191, 96
        %v3372 = vpop.permute.xlu0 %3371
        %3373 = vrot.lane.b32.xlu0 %v3193, 96
        %v3374 = vpop.permute.xlu0 %3373
        %3375 = vrot.lane.b32.xlu0 %v3196, 96
        %v3376 = vpop.permute.xlu0 %3375
        %3377 = vrot.lane.b32.xlu0 %v3198, 96
        %v3378 = vpop.permute.xlu0 %3377
        %3379 = vrot.lane.b32.xlu0 %v3201, 96
        %v3380 = vpop.permute.xlu0 %3379
        %3381 = vrot.lane.b32.xlu0 %v3203, 96
        %v3382 = vpop.permute.xlu0 %3381
        %3383 = vrot.lane.b32.xlu0 %v3206, 96
        %v3384 = vpop.permute.xlu0 %3383
        %3385 = vrot.lane.b32.xlu0 %v3208, 96
        %v3386 = vpop.permute.xlu0 %3385
        %3387 = vrot.lane.b32.xlu0 %v3211, 96
        %v3388 = vpop.permute.xlu0 %3387
        %3389 = vrot.lane.b32.xlu0 %v3213, 96
        %v3390 = vpop.permute.xlu0 %3389
        %v3407 = vsel %vm1806, %v2114, %v3232
        %v3408 = vsel %vm1806, %v2116, %v3234
        %v3409 = vsel %vm1806, %v2119, %v3236
        %v3410 = vsel %vm1806, %v2121, %v3238
        %v3411 = vsel %vm1806, %v2124, %v3240
        %v3412 = vsel %vm1806, %v2126, %v3242
        %v3413 = vsel %vm1806, %v2129, %v3244
        %v3414 = vsel %vm1806, %v2131, %v3246
        %v3415 = vsel %vm1806, %v2134, %v3248
        %v3416 = vsel %vm1806, %v2136, %v3250
        %v3417 = vsel %vm1806, %v2139, %v3252
        %v3418 = vsel %vm1806, %v2141, %v3254
        %v3419 = vsel %vm1806, %v2144, %v3256
        %v3420 = vsel %vm1806, %v2146, %v3258
        %v3421 = vsel %vm1806, %v2149, %v3260
        %v3422 = vsel %vm1806, %v2151, %v3262
        %vm3423 = vcmask 523264
        %v3424 = vsel %vm3423, %v3407, %v3296
        %v3425 = vsel %vm3423, %v3408, %v3298
        %v3426 = vsel %vm3423, %v3409, %v3300
        %v3427 = vsel %vm3423, %v3410, %v3302
        %v3428 = vsel %vm3423, %v3411, %v3304
        %v3429 = vsel %vm3423, %v3412, %v3306
        %v3430 = vsel %vm3423, %v3413, %v3308
        %v3431 = vsel %vm3423, %v3414, %v3310
        %v3432 = vsel %vm3423, %v3415, %v3312
        %v3433 = vsel %vm3423, %v3416, %v3314
        %v3434 = vsel %vm3423, %v3417, %v3316
        %v3435 = vsel %vm3423, %v3418, %v3318
        %v3436 = vsel %vm3423, %v3419, %v3320
        %v3437 = vsel %vm3423, %v3420, %v3322
        %v3438 = vsel %vm3423, %v3421, %v3324
        %v3439 = vsel %vm3423, %v3422, %v3326
        %vm3440 = vcmask 785408
        %v3441 = vsel %vm3440, %v3424, %v3360
        %v3442 = vsel %vm3440, %v3425, %v3362
        %v3443 = vsel %vm3440, %v3426, %v3364
        %v3444 = vsel %vm3440, %v3427, %v3366
        %v3445 = vsel %vm3440, %v3428, %v3368
        %v3446 = vsel %vm3440, %v3429, %v3370
        %v3447 = vsel %vm3440, %v3430, %v3372
        %v3448 = vsel %vm3440, %v3431, %v3374
        %v3449 = vsel %vm3440, %v3432, %v3376
        %v3450 = vsel %vm3440, %v3433, %v3378
        %v3451 = vsel %vm3440, %v3434, %v3380
        %v3452 = vsel %vm3440, %v3435, %v3382
        %v3453 = vsel %vm3440, %v3436, %v3384
        %v3454 = vsel %vm3440, %v3437, %v3386
        %v3455 = vsel %vm3440, %v3438, %v3388
        %v3456 = vsel %vm3440, %v3439, %v3390
        %v3457 = vpack.c.bf16 %v3442, %v3441
        %v3458 = vpack.c.bf16 %v3444, %v3443
        %v3459 = vpack.c.bf16 %v3446, %v3445
        %v3460 = vpack.c.bf16 %v3448, %v3447
        %v3461 = vpack.c.bf16 %v3450, %v3449
        %v3462 = vpack.c.bf16 %v3452, %v3451
        %v3463 = vpack.c.bf16 %v3454, %v3453
        %v3464 = vpack.c.bf16 %v3456, %v3455
        %v3465 = vld [vmem:[#allocation7] sm:$0xf]
        %v3466 = vld [vmem:[#allocation7 + $0x4] sm:$0xf]
        %v3467 = vld [vmem:[#allocation7 + $0x8] sm:$0xf]
        %v3468 = vld [vmem:[#allocation7 + $0xc] sm:$0xf]
        %v3469 = vld [vmem:[#allocation7 + $0x10] sm:$0xf]
        %v3470 = vld [vmem:[#allocation7 + $0x14] sm:$0xf]
        %v3471 = vld [vmem:[#allocation7 + $0x18] sm:$0xf]
        %v3472 = vld [vmem:[#allocation7 + $0x1c] sm:$0xf]
        %v3473 = vld [vmem:[#allocation7 + $0x20] sm:$0xf]
        %v3474 = vld [vmem:[#allocation7 + $0x24] sm:$0xf]
        %v3475 = vld [vmem:[#allocation7 + $0x28] sm:$0xf]
        %v3476 = vld [vmem:[#allocation7 + $0x2c] sm:$0xf]
        %v3477 = vld [vmem:[#allocation7 + $0x30] sm:$0xf]
        %v3478 = vld [vmem:[#allocation7 + $0x34] sm:$0xf]
        %v3479 = vld [vmem:[#allocation7 + $0x38] sm:$0xf]
        %v3480 = vld [vmem:[#allocation7 + $0x3c] sm:$0xf]
        %v3481 = vld [vmem:[%s7] sm:$0x1]
        %v3483 = vperm.slane %v3481, 0
        %v3501 = vunpack.c.l.b16 %v3465
        %v3502 = vunpack.c.l.b16 %v3466
        %v3503 = vunpack.c.l.b16 %v3467
        %v3504 = vunpack.c.l.b16 %v3468
        %v3505 = vunpack.c.l.b16 %v3469
        %v3506 = vunpack.c.l.b16 %v3470
        %v3507 = vunpack.c.l.b16 %v3471
        %v3508 = vunpack.c.l.b16 %v3472
        %v3509 = vunpack.c.l.b16 %v3473
        %v3510 = vunpack.c.l.b16 %v3474
        %v3511 = vunpack.c.l.b16 %v3475
        %v3512 = vunpack.c.l.b16 %v3476
        %v3513 = vunpack.c.l.b16 %v3477
        %v3514 = vunpack.c.l.b16 %v3478
        %v3515 = vunpack.c.l.b16 %v3479
        %v3516 = vunpack.c.l.b16 %v3480
        %v3517 = vpack.c.b16 %v3502, %v3501
        %v3518 = vpack.c.b16 %v3504, %v3503
        %v3519 = vpack.c.b16 %v3506, %v3505
        %v3520 = vpack.c.b16 %v3508, %v3507
        %v3521 = vpack.c.b16 %v3510, %v3509
        %v3522 = vpack.c.b16 %v3512, %v3511
        %v3523 = vpack.c.b16 %v3514, %v3513
        %v3524 = vpack.c.b16 %v3516, %v3515
        %3533 = vmatpush.bf16.msra.mxu0 %v3524
        %3534 = vmatpush.bf16.msra.mxu0 %v3523
        %3535 = vmatpush.bf16.msra.mxu0 %v3522
        %3536 = vmatpush.bf16.msra.mxu0 %v3521
        %3537 = vmatpush.bf16.msra.mxu0 %v3520
        %3538 = vmatpush.bf16.msra.mxu0 %v3519
        %3539 = vmatpush.bf16.msra.mxu0 %v3518
        %3540 = vmatpush.bf16.msra.mxu0 %v3517
        %3541 = vmatmul.bf16.gmra.mxu0 %v3457
        %v3542 = vpop.f32.mrf.mxu0
        %v3543 = vadd.f32 %v3483, %v3542
        %v3544 = vpop.f32.mrf.mxu0
        %v3545 = vadd.f32 %v3483, %v3544
        %3546 = vmatmul.bf16.gmra.mxu0 %v3458
        %v3547 = vpop.f32.mrf.mxu0
        %v3548 = vadd.f32 %v3483, %v3547
        %v3549 = vpop.f32.mrf.mxu0
        %v3550 = vadd.f32 %v3483, %v3549
        %3551 = vmatmul.bf16.gmra.mxu0 %v3459
        %v3552 = vpop.f32.mrf.mxu0
        %v3553 = vadd.f32 %v3483, %v3552
        %v3554 = vpop.f32.mrf.mxu0
        %v3555 = vadd.f32 %v3483, %v3554
        %3556 = vmatmul.bf16.gmra.mxu0 %v3460
        %v3557 = vpop.f32.mrf.mxu0
        %v3558 = vadd.f32 %v3483, %v3557
        %v3559 = vpop.f32.mrf.mxu0
        %v3560 = vadd.f32 %v3483, %v3559
        %3561 = vmatmul.bf16.gmra.mxu0 %v3461
        %v3562 = vpop.f32.mrf.mxu0
        %v3563 = vadd.f32 %v3483, %v3562
        %v3564 = vpop.f32.mrf.mxu0
        %v3565 = vadd.f32 %v3483, %v3564
        %3566 = vmatmul.bf16.gmra.mxu0 %v3462
        %v3567 = vpop.f32.mrf.mxu0
        %v3568 = vadd.f32 %v3483, %v3567
        %v3569 = vpop.f32.mrf.mxu0
        %v3570 = vadd.f32 %v3483, %v3569
        %3571 = vmatmul.bf16.gmra.mxu0 %v3463
        %v3572 = vpop.f32.mrf.mxu0
        %v3573 = vadd.f32 %v3483, %v3572
        %v3574 = vpop.f32.mrf.mxu0
        %v3575 = vadd.f32 %v3483, %v3574
        %3576 = vmatmul.bf16.gmra.mxu0 %v3464
        %v3577 = vpop.f32.mrf.mxu0
        %v3578 = vadd.f32 %v3483, %v3577
        %v3579 = vpop.f32.mrf.mxu0
        %v3580 = vadd.f32 %v3483, %v3579
        %3581 = vdwg.mxu0
        %v3582 = vadd.f32 %v3543, %v948
        %v3583 = vadd.f32 %v3545, %v949
        %v3584 = vadd.f32 %v3548, %v950
        %v3585 = vadd.f32 %v3550, %v951
        %v3586 = vadd.f32 %v3553, %v952
        %v3587 = vadd.f32 %v3555, %v953
        %v3588 = vadd.f32 %v3558, %v954
        %v3589 = vadd.f32 %v3560, %v955
        %v3590 = vadd.f32 %v3563, %v956
        %v3591 = vadd.f32 %v3565, %v957
        %v3592 = vadd.f32 %v3568, %v958
        %v3593 = vadd.f32 %v3570, %v959
        %v3594 = vadd.f32 %v3573, %v960
        %v3595 = vadd.f32 %v3575, %v961
        %v3596 = vadd.f32 %v3578, %v962
        %v3597 = vadd.f32 %v3580, %v963
        %3598 = vadd.xlane.f32.xlu0 %v3582
        %v3599 = vpop.xlane.xlu0 %3598
        %3600 = vadd.xlane.f32.xlu0 %v3583
        %v3601 = vpop.xlane.xlu0 %3600
        %3602 = vadd.xlane.f32.xlu0 %v3584
        %v3603 = vpop.xlane.xlu0 %3602
        %3604 = vadd.xlane.f32.xlu0 %v3585
        %v3605 = vpop.xlane.xlu0 %3604
        %3606 = vadd.xlane.f32.xlu0 %v3586
        %v3607 = vpop.xlane.xlu0 %3606
        %3608 = vadd.xlane.f32.xlu0 %v3587
        %v3609 = vpop.xlane.xlu0 %3608
        %3610 = vadd.xlane.f32.xlu0 %v3588
        %v3611 = vpop.xlane.xlu0 %3610
        %3612 = vadd.xlane.f32.xlu0 %v3589
        %v3613 = vpop.xlane.xlu0 %3612
        %3614 = vadd.xlane.f32.xlu0 %v3590
        %v3615 = vpop.xlane.xlu0 %3614
        %3616 = vadd.xlane.f32.xlu0 %v3591
        %v3617 = vpop.xlane.xlu0 %3616
        %3618 = vadd.xlane.f32.xlu0 %v3592
        %v3619 = vpop.xlane.xlu0 %3618
        %3620 = vadd.xlane.f32.xlu0 %v3593
        %v3621 = vpop.xlane.xlu0 %3620
        %3622 = vadd.xlane.f32.xlu0 %v3594
        %v3623 = vpop.xlane.xlu0 %3622
        %3624 = vadd.xlane.f32.xlu0 %v3595
        %v3625 = vpop.xlane.xlu0 %3624
        %3626 = vadd.xlane.f32.xlu0 %v3596
        %v3627 = vpop.xlane.xlu0 %3626
        %3628 = vadd.xlane.f32.xlu0 %v3597
        %v3629 = vpop.xlane.xlu0 %3628
        %v3630 = vmul.f32 %v3599, %v1034
        %v3631 = vmul.f32 %v3601, %v1034
        %v3632 = vmul.f32 %v3603, %v1034
        %v3633 = vmul.f32 %v3605, %v1034
        %v3634 = vmul.f32 %v3607, %v1034
        %v3635 = vmul.f32 %v3609, %v1034
        %v3636 = vmul.f32 %v3611, %v1034
        %v3637 = vmul.f32 %v3613, %v1034
        %v3638 = vmul.f32 %v3615, %v1034
        %v3639 = vmul.f32 %v3617, %v1034
        %v3640 = vmul.f32 %v3619, %v1034
        %v3641 = vmul.f32 %v3621, %v1034
        %v3642 = vmul.f32 %v3623, %v1034
        %v3643 = vmul.f32 %v3625, %v1034
        %v3644 = vmul.f32 %v3627, %v1034
        %v3645 = vmul.f32 %v3629, %v1034
        %v3646 = vsub.f32 %v3582, %v3630
        %v3647 = vsub.f32 %v3583, %v3631
        %v3648 = vsub.f32 %v3584, %v3632
        %v3649 = vsub.f32 %v3585, %v3633
        %v3650 = vsub.f32 %v3586, %v3634
        %v3651 = vsub.f32 %v3587, %v3635
        %v3652 = vsub.f32 %v3588, %v3636
        %v3653 = vsub.f32 %v3589, %v3637
        %v3654 = vsub.f32 %v3590, %v3638
        %v3655 = vsub.f32 %v3591, %v3639
        %v3656 = vsub.f32 %v3592, %v3640
        %v3657 = vsub.f32 %v3593, %v3641
        %v3658 = vsub.f32 %v3594, %v3642
        %v3659 = vsub.f32 %v3595, %v3643
        %v3660 = vsub.f32 %v3596, %v3644
        %v3661 = vsub.f32 %v3597, %v3645
        %v3662 = vmul.f32 %v3646, %v3646
        %v3663 = vmul.f32 %v3647, %v3647
        %v3664 = vmul.f32 %v3648, %v3648
        %v3665 = vmul.f32 %v3649, %v3649
        %v3666 = vmul.f32 %v3650, %v3650
        %v3667 = vmul.f32 %v3651, %v3651
        %v3668 = vmul.f32 %v3652, %v3652
        %v3669 = vmul.f32 %v3653, %v3653
        %v3670 = vmul.f32 %v3654, %v3654
        %v3671 = vmul.f32 %v3655, %v3655
        %v3672 = vmul.f32 %v3656, %v3656
        %v3673 = vmul.f32 %v3657, %v3657
        %v3674 = vmul.f32 %v3658, %v3658
        %v3675 = vmul.f32 %v3659, %v3659
        %v3676 = vmul.f32 %v3660, %v3660
        %v3677 = vmul.f32 %v3661, %v3661
        %3678 = vadd.xlane.f32.xlu0 %v3662
        %v3679 = vpop.xlane.xlu0 %3678
        %3680 = vadd.xlane.f32.xlu0 %v3663
        %v3681 = vpop.xlane.xlu0 %3680
        %3682 = vadd.xlane.f32.xlu0 %v3664
        %v3683 = vpop.xlane.xlu0 %3682
        %3684 = vadd.xlane.f32.xlu0 %v3665
        %v3685 = vpop.xlane.xlu0 %3684
        %3686 = vadd.xlane.f32.xlu0 %v3666
        %v3687 = vpop.xlane.xlu0 %3686
        %3688 = vadd.xlane.f32.xlu0 %v3667
        %v3689 = vpop.xlane.xlu0 %3688
        %3690 = vadd.xlane.f32.xlu0 %v3668
        %v3691 = vpop.xlane.xlu0 %3690
        %3692 = vadd.xlane.f32.xlu0 %v3669
        %v3693 = vpop.xlane.xlu0 %3692
        %3694 = vadd.xlane.f32.xlu0 %v3670
        %v3695 = vpop.xlane.xlu0 %3694
        %3696 = vadd.xlane.f32.xlu0 %v3671
        %v3697 = vpop.xlane.xlu0 %3696
        %3698 = vadd.xlane.f32.xlu0 %v3672
        %v3699 = vpop.xlane.xlu0 %3698
        %3700 = vadd.xlane.f32.xlu0 %v3673
        %v3701 = vpop.xlane.xlu0 %3700
        %3702 = vadd.xlane.f32.xlu0 %v3674
        %v3703 = vpop.xlane.xlu0 %3702
        %3704 = vadd.xlane.f32.xlu0 %v3675
        %v3705 = vpop.xlane.xlu0 %3704
        %3706 = vadd.xlane.f32.xlu0 %v3676
        %v3707 = vpop.xlane.xlu0 %3706
        %3708 = vadd.xlane.f32.xlu0 %v3677
        %v3709 = vpop.xlane.xlu0 %3708
        %v3710 = vmul.f32 %v3679, %v1034
        %v3711 = vmul.f32 %v3681, %v1034
        %v3712 = vmul.f32 %v3683, %v1034
        %v3713 = vmul.f32 %v3685, %v1034
        %v3714 = vmul.f32 %v3687, %v1034
        %v3715 = vmul.f32 %v3689, %v1034
        %v3716 = vmul.f32 %v3691, %v1034
        %v3717 = vmul.f32 %v3693, %v1034
        %v3718 = vmul.f32 %v3695, %v1034
        %v3719 = vmul.f32 %v3697, %v1034
        %v3720 = vmul.f32 %v3699, %v1034
        %v3721 = vmul.f32 %v3701, %v1034
        %v3722 = vmul.f32 %v3703, %v1034
        %v3723 = vmul.f32 %v3705, %v1034
        %v3724 = vmul.f32 %v3707, %v1034
        %v3725 = vmul.f32 %v3709, %v1034
        %v3726 = vadd.f32 %v3710, 1e-05
        %v3727 = vadd.f32 %v3711, 1e-05
        %v3728 = vadd.f32 %v3712, 1e-05
        %v3729 = vadd.f32 %v3713, 1e-05
        %v3730 = vadd.f32 %v3714, 1e-05
        %v3731 = vadd.f32 %v3715, 1e-05
        %v3732 = vadd.f32 %v3716, 1e-05
        %v3733 = vadd.f32 %v3717, 1e-05
        %v3734 = vadd.f32 %v3718, 1e-05
        %v3735 = vadd.f32 %v3719, 1e-05
        %v3736 = vadd.f32 %v3720, 1e-05
        %v3737 = vadd.f32 %v3721, 1e-05
        %v3738 = vadd.f32 %v3722, 1e-05
        %v3739 = vadd.f32 %v3723, 1e-05
        %v3740 = vadd.f32 %v3724, 1e-05
        %v3741 = vadd.f32 %v3725, 1e-05
        %v3742 = vrsqrt.pop %v3726
        %v3743 = vmul.f32 %v3742, %v3726
        %v3744 = vmul.f32 %v3743, %v3742
        %v3745 = vmul.f32 0.5, %v3744
        %v3746 = vsub.f32 1.5, %v3745
        %v3747 = vmul.f32 %v3742, %v3746
        %vm3748 = vweird.f32 %v3726
        %vm3749 = vweird.f32 %v3742
        %vm3750 = vmor %vm3748, %vm3749
        %v3751 = vsel %vm3750, %v3742, %v3747
        %v3752 = vrsqrt.pop %v3727
        %v3753 = vmul.f32 %v3752, %v3727
        %v3754 = vmul.f32 %v3753, %v3752
        %v3755 = vmul.f32 0.5, %v3754
        %v3756 = vsub.f32 1.5, %v3755
        %v3757 = vmul.f32 %v3752, %v3756
        %vm3758 = vweird.f32 %v3727
        %vm3759 = vweird.f32 %v3752
        %vm3760 = vmor %vm3758, %vm3759
        %v3761 = vsel %vm3760, %v3752, %v3757
        %v3762 = vrsqrt.pop %v3728
        %v3763 = vmul.f32 %v3762, %v3728
        %v3764 = vmul.f32 %v3763, %v3762
        %v3765 = vmul.f32 0.5, %v3764
        %v3766 = vsub.f32 1.5, %v3765
        %v3767 = vmul.f32 %v3762, %v3766
        %vm3768 = vweird.f32 %v3728
        %vm3769 = vweird.f32 %v3762
        %vm3770 = vmor %vm3768, %vm3769
        %v3771 = vsel %vm3770, %v3762, %v3767
        %v3772 = vrsqrt.pop %v3729
        %v3773 = vmul.f32 %v3772, %v3729
        %v3774 = vmul.f32 %v3773, %v3772
        %v3775 = vmul.f32 0.5, %v3774
        %v3776 = vsub.f32 1.5, %v3775
        %v3777 = vmul.f32 %v3772, %v3776
        %vm3778 = vweird.f32 %v3729
        %vm3779 = vweird.f32 %v3772
        %vm3780 = vmor %vm3778, %vm3779
        %v3781 = vsel %vm3780, %v3772, %v3777
        %v3782 = vrsqrt.pop %v3730
        %v3783 = vmul.f32 %v3782, %v3730
        %v3784 = vmul.f32 %v3783, %v3782
        %v3785 = vmul.f32 0.5, %v3784
        %v3786 = vsub.f32 1.5, %v3785
        %v3787 = vmul.f32 %v3782, %v3786
        %vm3788 = vweird.f32 %v3730
        %vm3789 = vweird.f32 %v3782
        %vm3790 = vmor %vm3788, %vm3789
        %v3791 = vsel %vm3790, %v3782, %v3787
        %v3792 = vrsqrt.pop %v3731
        %v3793 = vmul.f32 %v3792, %v3731
        %v3794 = vmul.f32 %v3793, %v3792
        %v3795 = vmul.f32 0.5, %v3794
        %v3796 = vsub.f32 1.5, %v3795
        %v3797 = vmul.f32 %v3792, %v3796
        %vm3798 = vweird.f32 %v3731
        %vm3799 = vweird.f32 %v3792
        %vm3800 = vmor %vm3798, %vm3799
        %v3801 = vsel %vm3800, %v3792, %v3797
        %v3802 = vrsqrt.pop %v3732
        %v3803 = vmul.f32 %v3802, %v3732
        %v3804 = vmul.f32 %v3803, %v3802
        %v3805 = vmul.f32 0.5, %v3804
        %v3806 = vsub.f32 1.5, %v3805
        %v3807 = vmul.f32 %v3802, %v3806
        %vm3808 = vweird.f32 %v3732
        %vm3809 = vweird.f32 %v3802
        %vm3810 = vmor %vm3808, %vm3809
        %v3811 = vsel %vm3810, %v3802, %v3807
        %v3812 = vrsqrt.pop %v3733
        %v3813 = vmul.f32 %v3812, %v3733
        %v3814 = vmul.f32 %v3813, %v3812
        %v3815 = vmul.f32 0.5, %v3814
        %v3816 = vsub.f32 1.5, %v3815
        %v3817 = vmul.f32 %v3812, %v3816
        %vm3818 = vweird.f32 %v3733
        %vm3819 = vweird.f32 %v3812
        %vm3820 = vmor %vm3818, %vm3819
        %v3821 = vsel %vm3820, %v3812, %v3817
        %v3822 = vrsqrt.pop %v3734
        %v3823 = vmul.f32 %v3822, %v3734
        %v3824 = vmul.f32 %v3823, %v3822
        %v3825 = vmul.f32 0.5, %v3824
        %v3826 = vsub.f32 1.5, %v3825
        %v3827 = vmul.f32 %v3822, %v3826
        %vm3828 = vweird.f32 %v3734
        %vm3829 = vweird.f32 %v3822
        %vm3830 = vmor %vm3828, %vm3829
        %v3831 = vsel %vm3830, %v3822, %v3827
        %v3832 = vrsqrt.pop %v3735
        %v3833 = vmul.f32 %v3832, %v3735
        %v3834 = vmul.f32 %v3833, %v3832
        %v3835 = vmul.f32 0.5, %v3834
        %v3836 = vsub.f32 1.5, %v3835
        %v3837 = vmul.f32 %v3832, %v3836
        %vm3838 = vweird.f32 %v3735
        %vm3839 = vweird.f32 %v3832
        %vm3840 = vmor %vm3838, %vm3839
        %v3841 = vsel %vm3840, %v3832, %v3837
        %v3842 = vrsqrt.pop %v3736
        %v3843 = vmul.f32 %v3842, %v3736
        %v3844 = vmul.f32 %v3843, %v3842
        %v3845 = vmul.f32 0.5, %v3844
        %v3846 = vsub.f32 1.5, %v3845
        %v3847 = vmul.f32 %v3842, %v3846
        %vm3848 = vweird.f32 %v3736
        %vm3849 = vweird.f32 %v3842
        %vm3850 = vmor %vm3848, %vm3849
        %v3851 = vsel %vm3850, %v3842, %v3847
        %v3852 = vrsqrt.pop %v3737
        %v3853 = vmul.f32 %v3852, %v3737
        %v3854 = vmul.f32 %v3853, %v3852
        %v3855 = vmul.f32 0.5, %v3854
        %v3856 = vsub.f32 1.5, %v3855
        %v3857 = vmul.f32 %v3852, %v3856
        %vm3858 = vweird.f32 %v3737
        %vm3859 = vweird.f32 %v3852
        %vm3860 = vmor %vm3858, %vm3859
        %v3861 = vsel %vm3860, %v3852, %v3857
        %v3862 = vrsqrt.pop %v3738
        %v3863 = vmul.f32 %v3862, %v3738
        %v3864 = vmul.f32 %v3863, %v3862
        %v3865 = vmul.f32 0.5, %v3864
        %v3866 = vsub.f32 1.5, %v3865
        %v3867 = vmul.f32 %v3862, %v3866
        %vm3868 = vweird.f32 %v3738
        %vm3869 = vweird.f32 %v3862
        %vm3870 = vmor %vm3868, %vm3869
        %v3871 = vsel %vm3870, %v3862, %v3867
        %v3872 = vrsqrt.pop %v3739
        %v3873 = vmul.f32 %v3872, %v3739
        %v3874 = vmul.f32 %v3873, %v3872
        %v3875 = vmul.f32 0.5, %v3874
        %v3876 = vsub.f32 1.5, %v3875
        %v3877 = vmul.f32 %v3872, %v3876
        %vm3878 = vweird.f32 %v3739
        %vm3879 = vweird.f32 %v3872
        %vm3880 = vmor %vm3878, %vm3879
        %v3881 = vsel %vm3880, %v3872, %v3877
        %v3882 = vrsqrt.pop %v3740
        %v3883 = vmul.f32 %v3882, %v3740
        %v3884 = vmul.f32 %v3883, %v3882
        %v3885 = vmul.f32 0.5, %v3884
        %v3886 = vsub.f32 1.5, %v3885
        %v3887 = vmul.f32 %v3882, %v3886
        %vm3888 = vweird.f32 %v3740
        %vm3889 = vweird.f32 %v3882
        %vm3890 = vmor %vm3888, %vm3889
        %v3891 = vsel %vm3890, %v3882, %v3887
        %v3892 = vrsqrt.pop %v3741
        %v3893 = vmul.f32 %v3892, %v3741
        %v3894 = vmul.f32 %v3893, %v3892
        %v3895 = vmul.f32 0.5, %v3894
        %v3896 = vsub.f32 1.5, %v3895
        %v3897 = vmul.f32 %v3892, %v3896
        %vm3898 = vweird.f32 %v3741
        %vm3899 = vweird.f32 %v3892
        %vm3900 = vmor %vm3898, %vm3899
        %v3901 = vsel %vm3900, %v3892, %v3897
        %v3902 = vmul.f32 %v3646, %v3751
        %v3903 = vmul.f32 %v3647, %v3761
        %v3904 = vmul.f32 %v3648, %v3771
        %v3905 = vmul.f32 %v3649, %v3781
        %v3906 = vmul.f32 %v3650, %v3791
        %v3907 = vmul.f32 %v3651, %v3801
        %v3908 = vmul.f32 %v3652, %v3811
        %v3909 = vmul.f32 %v3653, %v3821
        %v3910 = vmul.f32 %v3654, %v3831
        %v3911 = vmul.f32 %v3655, %v3841
        %v3912 = vmul.f32 %v3656, %v3851
        %v3913 = vmul.f32 %v3657, %v3861
        %v3914 = vmul.f32 %v3658, %v3871
        %v3915 = vmul.f32 %v3659, %v3881
        %v3916 = vmul.f32 %v3660, %v3891
        %v3917 = vmul.f32 %v3661, %v3901
        %v3918 = vld [vmem:[%s8] sm:$0x1]
        %v3920 = vperm.slane %v3918, 0
        %v3922 = vmul.f32 %v3902, %v3920
        %v3923 = vmul.f32 %v3903, %v3920
        %v3924 = vmul.f32 %v3904, %v3920
        %v3925 = vmul.f32 %v3905, %v3920
        %v3926 = vmul.f32 %v3906, %v3920
        %v3927 = vmul.f32 %v3907, %v3920
        %v3928 = vmul.f32 %v3908, %v3920
        %v3929 = vmul.f32 %v3909, %v3920
        %v3930 = vmul.f32 %v3910, %v3920
        %v3931 = vmul.f32 %v3911, %v3920
        %v3932 = vmul.f32 %v3912, %v3920
        %v3933 = vmul.f32 %v3913, %v3920
        %v3934 = vmul.f32 %v3914, %v3920
        %v3935 = vmul.f32 %v3915, %v3920
        %v3936 = vmul.f32 %v3916, %v3920
        %v3937 = vmul.f32 %v3917, %v3920
        %v3938 = vld [vmem:[%s9] sm:$0x1]
        %v3940 = vperm.slane %v3938, 0
        %v3942 = vadd.f32 %v3922, %v3940
        %v3943 = vadd.f32 %v3923, %v3940
        %v3944 = vadd.f32 %v3924, %v3940
        %v3945 = vadd.f32 %v3925, %v3940
        %v3946 = vadd.f32 %v3926, %v3940
        %v3947 = vadd.f32 %v3927, %v3940
        %v3948 = vadd.f32 %v3928, %v3940
        %v3949 = vadd.f32 %v3929, %v3940
        %v3950 = vadd.f32 %v3930, %v3940
        %v3951 = vadd.f32 %v3931, %v3940
        %v3952 = vadd.f32 %v3932, %v3940
        %v3953 = vadd.f32 %v3933, %v3940
        %v3954 = vadd.f32 %v3934, %v3940
        %v3955 = vadd.f32 %v3935, %v3940
        %v3956 = vadd.f32 %v3936, %v3940
        %v3957 = vadd.f32 %v3937, %v3940
        %v3958 = vpack.c.bf16 %v3943, %v3942
        %v3959 = vpack.c.bf16 %v3945, %v3944
        %v3960 = vpack.c.bf16 %v3947, %v3946
        %v3961 = vpack.c.bf16 %v3949, %v3948
        %v3962 = vpack.c.bf16 %v3951, %v3950
        %v3963 = vpack.c.bf16 %v3953, %v3952
        %v3964 = vpack.c.bf16 %v3955, %v3954
        %v3965 = vpack.c.bf16 %v3957, %v3956
        %v3966 = vld [vmem:[#allocation8] sm:$0xf]
        %v3967 = vld [vmem:[#allocation8 + $0x4] sm:$0xf]
        %v3968 = vld [vmem:[#allocation8 + $0x8] sm:$0xf]
        %v3969 = vld [vmem:[#allocation8 + $0xc] sm:$0xf]
        %v3970 = vld [vmem:[#allocation8 + $0x10] sm:$0xf]
        %v3971 = vld [vmem:[#allocation8 + $0x14] sm:$0xf]
        %v3972 = vld [vmem:[#allocation8 + $0x18] sm:$0xf]
        %v3973 = vld [vmem:[#allocation8 + $0x1c] sm:$0xf]
        %v3974 = vld [vmem:[#allocation8 + $0x20] sm:$0xf]
        %v3975 = vld [vmem:[#allocation8 + $0x24] sm:$0xf]
        %v3976 = vld [vmem:[#allocation8 + $0x28] sm:$0xf]
        %v3977 = vld [vmem:[#allocation8 + $0x2c] sm:$0xf]
        %v3978 = vld [vmem:[#allocation8 + $0x30] sm:$0xf]
        %v3979 = vld [vmem:[#allocation8 + $0x34] sm:$0xf]
        %v3980 = vld [vmem:[#allocation8 + $0x38] sm:$0xf]
        %v3981 = vld [vmem:[#allocation8 + $0x3c] sm:$0xf]
        %v3998 = vunpack.c.l.b16 %v3966
        %v3999 = vunpack.c.l.b16 %v3967
        %v4000 = vunpack.c.l.b16 %v3968
        %v4001 = vunpack.c.l.b16 %v3969
        %v4002 = vunpack.c.l.b16 %v3970
        %v4003 = vunpack.c.l.b16 %v3971
        %v4004 = vunpack.c.l.b16 %v3972
        %v4005 = vunpack.c.l.b16 %v3973
        %v4006 = vunpack.c.l.b16 %v3974
        %v4007 = vunpack.c.l.b16 %v3975
        %v4008 = vunpack.c.l.b16 %v3976
        %v4009 = vunpack.c.l.b16 %v3977
        %v4010 = vunpack.c.l.b16 %v3978
        %v4011 = vunpack.c.l.b16 %v3979
        %v4012 = vunpack.c.l.b16 %v3980
        %v4013 = vunpack.c.l.b16 %v3981
        %v4014 = vpack.c.b16 %v3999, %v3998
        %v4015 = vpack.c.b16 %v4001, %v4000
        %v4016 = vpack.c.b16 %v4003, %v4002
        %v4017 = vpack.c.b16 %v4005, %v4004
        %v4018 = vpack.c.b16 %v4007, %v4006
        %v4019 = vpack.c.b16 %v4009, %v4008
        %v4020 = vpack.c.b16 %v4011, %v4010
        %v4021 = vpack.c.b16 %v4013, %v4012
        %4030 = vmatpush.bf16.msra.mxu0 %v4021
        %4031 = vmatpush.bf16.msra.mxu0 %v4020
        %4032 = vmatpush.bf16.msra.mxu0 %v4019
        %4033 = vmatpush.bf16.msra.mxu0 %v4018
        %4034 = vmatpush.bf16.msra.mxu0 %v4017
        %4035 = vmatpush.bf16.msra.mxu0 %v4016
        %4036 = vmatpush.bf16.msra.mxu0 %v4015
        %4037 = vmatpush.bf16.msra.mxu0 %v4014
        %4038 = vmatmul.bf16.gmra.mxu0 %v3958
        %v4039 = vpop.f32.mrf.mxu0
        %v4040 = vadd.f32 0.0, %v4039
        %v4041 = vpop.f32.mrf.mxu0
        %v4042 = vadd.f32 0.0, %v4041
        %4043 = vmatmul.bf16.gmra.mxu0 %v3959
        %v4044 = vpop.f32.mrf.mxu0
        %v4045 = vadd.f32 0.0, %v4044
        %v4046 = vpop.f32.mrf.mxu0
        %v4047 = vadd.f32 0.0, %v4046
        %4048 = vmatmul.bf16.gmra.mxu0 %v3960
        %v4049 = vpop.f32.mrf.mxu0
        %v4050 = vadd.f32 0.0, %v4049
        %v4051 = vpop.f32.mrf.mxu0
        %v4052 = vadd.f32 0.0, %v4051
        %4053 = vmatmul.bf16.gmra.mxu0 %v3961
        %v4054 = vpop.f32.mrf.mxu0
        %v4055 = vadd.f32 0.0, %v4054
        %v4056 = vpop.f32.mrf.mxu0
        %v4057 = vadd.f32 0.0, %v4056
        %4058 = vmatmul.bf16.gmra.mxu0 %v3962
        %v4059 = vpop.f32.mrf.mxu0
        %v4060 = vadd.f32 0.0, %v4059
        %v4061 = vpop.f32.mrf.mxu0
        %v4062 = vadd.f32 0.0, %v4061
        %4063 = vmatmul.bf16.gmra.mxu0 %v3963
        %v4064 = vpop.f32.mrf.mxu0
        %v4065 = vadd.f32 0.0, %v4064
        %v4066 = vpop.f32.mrf.mxu0
        %v4067 = vadd.f32 0.0, %v4066
        %4068 = vmatmul.bf16.gmra.mxu0 %v3964
        %v4069 = vpop.f32.mrf.mxu0
        %v4070 = vadd.f32 0.0, %v4069
        %v4071 = vpop.f32.mrf.mxu0
        %v4072 = vadd.f32 0.0, %v4071
        %4073 = vmatmul.bf16.gmra.mxu0 %v3965
        %v4074 = vpop.f32.mrf.mxu0
        %v4075 = vadd.f32 0.0, %v4074
        %v4076 = vpop.f32.mrf.mxu0
        %v4077 = vadd.f32 0.0, %v4076
        %4078 = vdwg.mxu0
        %v4079 = vpack.c.bf16 %v965, %v964
        %v4080 = vpack.c.bf16 %v967, %v966
        %v4081 = vpack.c.bf16 %v969, %v968
        %v4082 = vpack.c.bf16 %v971, %v970
        %v4083 = vpack.c.bf16 %v973, %v972
        %v4084 = vpack.c.bf16 %v975, %v974
        %v4085 = vpack.c.bf16 %v977, %v976
        %v4086 = vpack.c.bf16 %v979, %v978
        %v4087 = vld [vmem:[#allocation10] sm:$0xff]
        %v4088 = vld [vmem:[#allocation10 + $0x8] sm:$0xff]
        %v4089 = vld [vmem:[#allocation10 + $0x10] sm:$0xff]
        %v4090 = vld [vmem:[#allocation10 + $0x18] sm:$0xff]
        %v4091 = vld [vmem:[#allocation10 + $0x20] sm:$0xff]
        %v4092 = vld [vmem:[#allocation10 + $0x28] sm:$0xff]
        %v4093 = vld [vmem:[#allocation10 + $0x30] sm:$0xff]
        %v4094 = vld [vmem:[#allocation10 + $0x38] sm:$0xff]
        %v4103 = vunpack.c.l.b16 %v4087
        %v4104 = vunpack.c.h.b16 %v4087
        %v4105 = vunpack.c.l.b16 %v4088
        %v4106 = vunpack.c.h.b16 %v4088
        %v4107 = vunpack.c.l.b16 %v4089
        %v4108 = vunpack.c.h.b16 %v4089
        %v4109 = vunpack.c.l.b16 %v4090
        %v4110 = vunpack.c.h.b16 %v4090
        %v4111 = vunpack.c.l.b16 %v4091
        %v4112 = vunpack.c.h.b16 %v4091
        %v4113 = vunpack.c.l.b16 %v4092
        %v4114 = vunpack.c.h.b16 %v4092
        %v4115 = vunpack.c.l.b16 %v4093
        %v4116 = vunpack.c.h.b16 %v4093
        %v4117 = vunpack.c.l.b16 %v4094
        %v4118 = vunpack.c.h.b16 %v4094
        %v4119 = vpack.c.b16 %v4105, %v4103
        %v4120 = vpack.c.b16 %v4106, %v4104
        %v4121 = vpack.c.b16 %v4109, %v4107
        %v4122 = vpack.c.b16 %v4110, %v4108
        %v4123 = vpack.c.b16 %v4113, %v4111
        %v4124 = vpack.c.b16 %v4114, %v4112
        %v4125 = vpack.c.b16 %v4117, %v4115
        %v4126 = vpack.c.b16 %v4118, %v4116
        %v4136 = vsel %vm3423, %v4079, 0
        %v4139 = vsel %vm3423, %v4080, 0
        %v4142 = vsel %vm3423, %v4081, 0
        %v4145 = vsel %vm3423, %v4082, 0
        %v4148 = vsel %vm3423, %v4083, 0
        %v4151 = vsel %vm3423, %v4084, 0
        %v4154 = vsel %vm3423, %v4085, 0
        %v4157 = vsel %vm3423, %v4086, 0
        %4159 = vmatpush.bf16.msra.mxu0 0
        %4160 = vmatpush.bf16.msra.mxu0 0
        %4161 = vmatpush.bf16.msra.mxu0 0
        %4162 = vmatpush.bf16.msra.mxu0 0
        %4163 = vmatpush.bf16.msra.mxu0 %v4125
        %4164 = vmatpush.bf16.msra.mxu0 %v4123
        %4165 = vmatpush.bf16.msra.mxu0 %v4121
        %4166 = vmatpush.bf16.msra.mxu0 %v4119
        %4167 = vmatmul.bf16.gmra.mxu0 %v4136
        %v4168 = vpop.f32.mrf.mxu0
        %v4169 = vadd.f32 0.0, %v4168
        %v4170 = vpop.f32.mrf.mxu0
        %v4171 = vadd.f32 0.0, %v4170
        %4172 = vmatmul.bf16.gmra.mxu0 %v4139
        %v4173 = vpop.f32.mrf.mxu0
        %v4174 = vadd.f32 0.0, %v4173
        %v4175 = vpop.f32.mrf.mxu0
        %v4176 = vadd.f32 0.0, %v4175
        %4177 = vmatmul.bf16.gmra.mxu0 %v4142
        %v4178 = vpop.f32.mrf.mxu0
        %v4179 = vadd.f32 0.0, %v4178
        %v4180 = vpop.f32.mrf.mxu0
        %v4181 = vadd.f32 0.0, %v4180
        %4182 = vmatmul.bf16.gmra.mxu0 %v4145
        %v4183 = vpop.f32.mrf.mxu0
        %v4184 = vadd.f32 0.0, %v4183
        %v4185 = vpop.f32.mrf.mxu0
        %v4186 = vadd.f32 0.0, %v4185
        %4187 = vmatmul.bf16.gmra.mxu0 %v4148
        %v4188 = vpop.f32.mrf.mxu0
        %v4189 = vadd.f32 0.0, %v4188
        %v4190 = vpop.f32.mrf.mxu0
        %v4191 = vadd.f32 0.0, %v4190
        %4192 = vmatmul.bf16.gmra.mxu0 %v4151
        %v4193 = vpop.f32.mrf.mxu0
        %v4194 = vadd.f32 0.0, %v4193
        %v4195 = vpop.f32.mrf.mxu0
        %v4196 = vadd.f32 0.0, %v4195
        %4197 = vmatmul.bf16.gmra.mxu0 %v4154
        %v4198 = vpop.f32.mrf.mxu0
        %v4199 = vadd.f32 0.0, %v4198
        %v4200 = vpop.f32.mrf.mxu0
        %v4201 = vadd.f32 0.0, %v4200
        %4202 = vmatmul.bf16.gmra.mxu0 %v4157
        %v4203 = vpop.f32.mrf.mxu0
        %v4204 = vadd.f32 0.0, %v4203
        %v4205 = vpop.f32.mrf.mxu0
        %v4206 = vadd.f32 0.0, %v4205
        %4207 = vdwg.mxu0
        %4208 = vmatpush.bf16.msra.mxu0 0
        %4209 = vmatpush.bf16.msra.mxu0 0
        %4210 = vmatpush.bf16.msra.mxu0 0
        %4211 = vmatpush.bf16.msra.mxu0 0
        %4212 = vmatpush.bf16.msra.mxu0 %v4126
        %4213 = vmatpush.bf16.msra.mxu0 %v4124
        %4214 = vmatpush.bf16.msra.mxu0 %v4122
        %4215 = vmatpush.bf16.msra.mxu0 %v4120
        %4216 = vmatmul.bf16.gmra.mxu0 %v4136
        %v4217 = vpop.f32.mrf.mxu0
        %v4218 = vadd.f32 0.0, %v4217
        %v4219 = vpop.f32.mrf.mxu0
        %v4220 = vadd.f32 0.0, %v4219
        %4221 = vmatmul.bf16.gmra.mxu0 %v4139
        %v4222 = vpop.f32.mrf.mxu0
        %v4223 = vadd.f32 0.0, %v4222
        %v4224 = vpop.f32.mrf.mxu0
        %v4225 = vadd.f32 0.0, %v4224
        %4226 = vmatmul.bf16.gmra.mxu0 %v4142
        %v4227 = vpop.f32.mrf.mxu0
        %v4228 = vadd.f32 0.0, %v4227
        %v4229 = vpop.f32.mrf.mxu0
        %v4230 = vadd.f32 0.0, %v4229
        %4231 = vmatmul.bf16.gmra.mxu0 %v4145
        %v4232 = vpop.f32.mrf.mxu0
        %v4233 = vadd.f32 0.0, %v4232
        %v4234 = vpop.f32.mrf.mxu0
        %v4235 = vadd.f32 0.0, %v4234
        %4236 = vmatmul.bf16.gmra.mxu0 %v4148
        %v4237 = vpop.f32.mrf.mxu0
        %v4238 = vadd.f32 0.0, %v4237
        %v4239 = vpop.f32.mrf.mxu0
        %v4240 = vadd.f32 0.0, %v4239
        %4241 = vmatmul.bf16.gmra.mxu0 %v4151
        %v4242 = vpop.f32.mrf.mxu0
        %v4243 = vadd.f32 0.0, %v4242
        %v4244 = vpop.f32.mrf.mxu0
        %v4245 = vadd.f32 0.0, %v4244
        %4246 = vmatmul.bf16.gmra.mxu0 %v4154
        %v4247 = vpop.f32.mrf.mxu0
        %v4248 = vadd.f32 0.0, %v4247
        %v4249 = vpop.f32.mrf.mxu0
        %v4250 = vadd.f32 0.0, %v4249
        %4251 = vmatmul.bf16.gmra.mxu0 %v4157
        %v4252 = vpop.f32.mrf.mxu0
        %v4253 = vadd.f32 0.0, %v4252
        %v4254 = vpop.f32.mrf.mxu0
        %v4255 = vadd.f32 0.0, %v4254
        %4256 = vdwg.mxu0
        %v4257 = vlaneseq
        %v4258 = vand.u32 %v4257, 127
        %vm4259 = vcmp.lt.s32.totalorder %v4258, 8
        %v4260 = vsel %vm4259, 0.0, -1e+30
        %v4261 = vpack.c.bf16 %v4040, %v4040
        %v4262 = vpack.c.bf16 %v4042, %v4042
        %v4263 = vpack.c.bf16 %v4045, %v4045
        %v4264 = vpack.c.bf16 %v4047, %v4047
        %v4265 = vpack.c.bf16 %v4050, %v4050
        %v4266 = vpack.c.bf16 %v4052, %v4052
        %v4267 = vpack.c.bf16 %v4055, %v4055
        %v4268 = vpack.c.bf16 %v4057, %v4057
        %v4269 = vpack.c.bf16 %v4060, %v4060
        %v4270 = vpack.c.bf16 %v4062, %v4062
        %v4271 = vpack.c.bf16 %v4065, %v4065
        %v4272 = vpack.c.bf16 %v4067, %v4067
        %v4273 = vpack.c.bf16 %v4070, %v4070
        %v4274 = vpack.c.bf16 %v4072, %v4072
        %v4275 = vpack.c.bf16 %v4075, %v4075
        %v4276 = vpack.c.bf16 %v4077, %v4077
        %v4277 = vpack.c.bf16 %v4169, %v4169
        %v4278 = vpack.c.bf16 %v4171, %v4171
        %v4279 = vpack.c.bf16 %v4174, %v4174
        %v4280 = vpack.c.bf16 %v4176, %v4176
        %v4281 = vpack.c.bf16 %v4179, %v4179
        %v4282 = vpack.c.bf16 %v4181, %v4181
        %v4283 = vpack.c.bf16 %v4184, %v4184
        %v4284 = vpack.c.bf16 %v4186, %v4186
        %v4285 = vpack.c.bf16 %v4189, %v4189
        %v4286 = vpack.c.bf16 %v4191, %v4191
        %v4287 = vpack.c.bf16 %v4194, %v4194
        %v4288 = vpack.c.bf16 %v4196, %v4196
        %v4289 = vpack.c.bf16 %v4199, %v4199
        %v4290 = vpack.c.bf16 %v4201, %v4201
        %v4291 = vpack.c.bf16 %v4204, %v4204
        %v4292 = vpack.c.bf16 %v4206, %v4206
        %v4293 = vpack.c.bf16 %v4218, %v4218
        %v4294 = vpack.c.bf16 %v4220, %v4220
        %v4295 = vpack.c.bf16 %v4223, %v4223
        %v4296 = vpack.c.bf16 %v4225, %v4225
        %v4297 = vpack.c.bf16 %v4228, %v4228
        %v4298 = vpack.c.bf16 %v4230, %v4230
        %v4299 = vpack.c.bf16 %v4233, %v4233
        %v4300 = vpack.c.bf16 %v4235, %v4235
        %v4301 = vpack.c.bf16 %v4238, %v4238
        %v4302 = vpack.c.bf16 %v4240, %v4240
        %v4303 = vpack.c.bf16 %v4243, %v4243
        %v4304 = vpack.c.bf16 %v4245, %v4245
        %v4305 = vpack.c.bf16 %v4248, %v4248
        %v4306 = vpack.c.bf16 %v4250, %v4250
        %v4307 = vpack.c.bf16 %v4253, %v4253
        %v4308 = vpack.c.bf16 %v4255, %v4255
        %v4325 = vunpack.c.l.b16 %v4261
        %v4326 = vunpack.c.l.b16 %v4262
        %v4327 = vunpack.c.l.b16 %v4263
        %v4328 = vunpack.c.l.b16 %v4264
        %v4329 = vunpack.c.l.b16 %v4265
        %v4330 = vunpack.c.l.b16 %v4266
        %v4331 = vunpack.c.l.b16 %v4267
        %v4332 = vunpack.c.l.b16 %v4268
        %v4333 = vunpack.c.l.b16 %v4269
        %v4334 = vunpack.c.l.b16 %v4270
        %v4335 = vunpack.c.l.b16 %v4271
        %v4336 = vunpack.c.l.b16 %v4272
        %v4337 = vunpack.c.l.b16 %v4273
        %v4338 = vunpack.c.l.b16 %v4274
        %v4339 = vunpack.c.l.b16 %v4275
        %v4340 = vunpack.c.l.b16 %v4276
        %v4341 = vpack.c.b16 %v4326, %v4325
        %v4342 = vpack.c.b16 %v4328, %v4327
        %v4343 = vpack.c.b16 %v4330, %v4329
        %v4344 = vpack.c.b16 %v4332, %v4331
        %v4345 = vpack.c.b16 %v4334, %v4333
        %v4346 = vpack.c.b16 %v4336, %v4335
        %v4347 = vpack.c.b16 %v4338, %v4337
        %v4348 = vpack.c.b16 %v4340, %v4339
        %v4365 = vunpack.c.l.b16 %v4277
        %v4366 = vunpack.c.l.b16 %v4278
        %v4367 = vunpack.c.l.b16 %v4279
        %v4368 = vunpack.c.l.b16 %v4280
        %v4369 = vunpack.c.l.b16 %v4281
        %v4370 = vunpack.c.l.b16 %v4282
        %v4371 = vunpack.c.l.b16 %v4283
        %v4372 = vunpack.c.l.b16 %v4284
        %v4373 = vunpack.c.l.b16 %v4285
        %v4374 = vunpack.c.l.b16 %v4286
        %v4375 = vunpack.c.l.b16 %v4287
        %v4376 = vunpack.c.l.b16 %v4288
        %v4377 = vunpack.c.l.b16 %v4289
        %v4378 = vunpack.c.l.b16 %v4290
        %v4379 = vunpack.c.l.b16 %v4291
        %v4380 = vunpack.c.l.b16 %v4292
        %v4381 = vpack.c.b16 %v4366, %v4365
        %v4382 = vpack.c.b16 %v4368, %v4367
        %v4383 = vpack.c.b16 %v4370, %v4369
        %v4384 = vpack.c.b16 %v4372, %v4371
        %v4385 = vpack.c.b16 %v4374, %v4373
        %v4386 = vpack.c.b16 %v4376, %v4375
        %v4387 = vpack.c.b16 %v4378, %v4377
        %v4388 = vpack.c.b16 %v4380, %v4379
        %v4390 = vsel %vm1806, %v4341, 0
        %v4393 = vsel %vm1806, %v4342, 0
        %v4396 = vsel %vm1806, %v4343, 0
        %v4399 = vsel %vm1806, %v4344, 0
        %v4402 = vsel %vm1806, %v4345, 0
        %v4405 = vsel %vm1806, %v4346, 0
        %v4408 = vsel %vm1806, %v4347, 0
        %v4411 = vsel %vm1806, %v4348, 0
        %v4414 = vsel %vm1806, %v4381, 0
        %v4417 = vsel %vm1806, %v4382, 0
        %v4420 = vsel %vm1806, %v4383, 0
        %v4423 = vsel %vm1806, %v4384, 0
        %v4426 = vsel %vm1806, %v4385, 0
        %v4429 = vsel %vm1806, %v4386, 0
        %v4432 = vsel %vm1806, %v4387, 0
        %v4435 = vsel %vm1806, %v4388, 0
        %4437 = vmatpush.bf16.xpose.msra.mxu0 %v4435
        %4438 = vmatpush.bf16.xpose.msra.mxu0 %v4432
        %4439 = vmatpush.bf16.xpose.msra.mxu0 %v4429
        %4440 = vmatpush.bf16.xpose.msra.mxu0 %v4426
        %4441 = vmatpush.bf16.xpose.msra.mxu0 %v4423
        %4442 = vmatpush.bf16.xpose.msra.mxu0 %v4420
        %4443 = vmatpush.bf16.xpose.msra.mxu0 %v4417
        %4444 = vmatpush.bf16.xpose.msra.mxu0 %v4414
        %4445 = vmatmul.bf16.gmra.mxu0 %v4390
        %v4446 = vpop.f32.mrf.mxu0
        %v4447 = vadd.f32 %v4260, %v4446
        %v4448 = vpop.f32.mrf.mxu0
        %v4449 = vadd.f32 %v4260, %v4448
        %4450 = vmatmul.bf16.gmra.mxu0 %v4393
        %v4451 = vpop.f32.mrf.mxu0
        %v4452 = vadd.f32 %v4260, %v4451
        %v4453 = vpop.f32.mrf.mxu0
        %v4454 = vadd.f32 %v4260, %v4453
        %4455 = vmatmul.bf16.gmra.mxu0 %v4396
        %v4456 = vpop.f32.mrf.mxu0
        %v4457 = vadd.f32 %v4260, %v4456
        %v4458 = vpop.f32.mrf.mxu0
        %v4459 = vadd.f32 %v4260, %v4458
        %4460 = vmatmul.bf16.gmra.mxu0 %v4399
        %v4461 = vpop.f32.mrf.mxu0
        %v4462 = vadd.f32 %v4260, %v4461
        %v4463 = vpop.f32.mrf.mxu0
        %v4464 = vadd.f32 %v4260, %v4463
        %4465 = vmatmul.bf16.gmra.mxu0 %v4402
        %v4466 = vpop.f32.mrf.mxu0
        %v4467 = vadd.f32 %v4260, %v4466
        %v4468 = vpop.f32.mrf.mxu0
        %v4469 = vadd.f32 %v4260, %v4468
        %4470 = vmatmul.bf16.gmra.mxu0 %v4405
        %v4471 = vpop.f32.mrf.mxu0
        %v4472 = vadd.f32 %v4260, %v4471
        %v4473 = vpop.f32.mrf.mxu0
        %v4474 = vadd.f32 %v4260, %v4473
        %4475 = vmatmul.bf16.gmra.mxu0 %v4408
        %v4476 = vpop.f32.mrf.mxu0
        %v4477 = vadd.f32 %v4260, %v4476
        %v4478 = vpop.f32.mrf.mxu0
        %v4479 = vadd.f32 %v4260, %v4478
        %4480 = vmatmul.bf16.gmra.mxu0 %v4411
        %v4481 = vpop.f32.mrf.mxu0
        %v4482 = vadd.f32 %v4260, %v4481
        %v4483 = vpop.f32.mrf.mxu0
        %v4484 = vadd.f32 %v4260, %v4483
        %4485 = vdwg.mxu0
        %4486 = vmax.xlane.f32.xlu0 %v4447
        %v4487 = vpop.xlane.xlu0 %4486
        %4488 = vmax.xlane.f32.xlu0 %v4449
        %v4489 = vpop.xlane.xlu0 %4488
        %4490 = vmax.xlane.f32.xlu0 %v4452
        %v4491 = vpop.xlane.xlu0 %4490
        %4492 = vmax.xlane.f32.xlu0 %v4454
        %v4493 = vpop.xlane.xlu0 %4492
        %4494 = vmax.xlane.f32.xlu0 %v4457
        %v4495 = vpop.xlane.xlu0 %4494
        %4496 = vmax.xlane.f32.xlu0 %v4459
        %v4497 = vpop.xlane.xlu0 %4496
        %4498 = vmax.xlane.f32.xlu0 %v4462
        %v4499 = vpop.xlane.xlu0 %4498
        %4500 = vmax.xlane.f32.xlu0 %v4464
        %v4501 = vpop.xlane.xlu0 %4500
        %4502 = vmax.xlane.f32.xlu0 %v4467
        %v4503 = vpop.xlane.xlu0 %4502
        %4504 = vmax.xlane.f32.xlu0 %v4469
        %v4505 = vpop.xlane.xlu0 %4504
        %4506 = vmax.xlane.f32.xlu0 %v4472
        %v4507 = vpop.xlane.xlu0 %4506
        %4508 = vmax.xlane.f32.xlu0 %v4474
        %v4509 = vpop.xlane.xlu0 %4508
        %4510 = vmax.xlane.f32.xlu0 %v4477
        %v4511 = vpop.xlane.xlu0 %4510
        %4512 = vmax.xlane.f32.xlu0 %v4479
        %v4513 = vpop.xlane.xlu0 %4512
        %4514 = vmax.xlane.f32.xlu0 %v4482
        %v4515 = vpop.xlane.xlu0 %4514
        %4516 = vmax.xlane.f32.xlu0 %v4484
        %v4517 = vpop.xlane.xlu0 %4516
        %v4518 = vsub.f32 %v4447, %v4487
        %v4519 = vsub.f32 %v4449, %v4489
        %v4520 = vsub.f32 %v4452, %v4491
        %v4521 = vsub.f32 %v4454, %v4493
        %v4522 = vsub.f32 %v4457, %v4495
        %v4523 = vsub.f32 %v4459, %v4497
        %v4524 = vsub.f32 %v4462, %v4499
        %v4525 = vsub.f32 %v4464, %v4501
        %v4526 = vsub.f32 %v4467, %v4503
        %v4527 = vsub.f32 %v4469, %v4505
        %v4528 = vsub.f32 %v4472, %v4507
        %v4529 = vsub.f32 %v4474, %v4509
        %v4530 = vsub.f32 %v4477, %v4511
        %v4531 = vsub.f32 %v4479, %v4513
        %v4532 = vsub.f32 %v4482, %v4515
        %v4533 = vsub.f32 %v4484, %v4517
        %v4534 = vmul.f32 %v4518, 1.442695
        %v4535 = vpow.pop %v4534
        %v4536 = vmul.f32 %v4519, 1.442695
        %v4537 = vpow.pop %v4536
        %v4538 = vmul.f32 %v4520, 1.442695
        %v4539 = vpow.pop %v4538
        %v4540 = vmul.f32 %v4521, 1.442695
        %v4541 = vpow.pop %v4540
        %v4542 = vmul.f32 %v4522, 1.442695
        %v4543 = vpow.pop %v4542
        %v4544 = vmul.f32 %v4523, 1.442695
        %v4545 = vpow.pop %v4544
        %v4546 = vmul.f32 %v4524, 1.442695
        %v4547 = vpow.pop %v4546
        %v4548 = vmul.f32 %v4525, 1.442695
        %v4549 = vpow.pop %v4548
        %v4550 = vmul.f32 %v4526, 1.442695
        %v4551 = vpow.pop %v4550
        %v4552 = vmul.f32 %v4527, 1.442695
        %v4553 = vpow.pop %v4552
        %v4554 = vmul.f32 %v4528, 1.442695
        %v4555 = vpow.pop %v4554
        %v4556 = vmul.f32 %v4529, 1.442695
        %v4557 = vpow.pop %v4556
        %v4558 = vmul.f32 %v4530, 1.442695
        %v4559 = vpow.pop %v4558
        %v4560 = vmul.f32 %v4531, 1.442695
        %v4561 = vpow.pop %v4560
        %v4562 = vmul.f32 %v4532, 1.442695
        %v4563 = vpow.pop %v4562
        %v4564 = vmul.f32 %v4533, 1.442695
        %v4565 = vpow.pop %v4564
        %4566 = vadd.xlane.f32.xlu0 %v4535
        %v4567 = vpop.xlane.xlu0 %4566
        %4568 = vadd.xlane.f32.xlu0 %v4537
        %v4569 = vpop.xlane.xlu0 %4568
        %4570 = vadd.xlane.f32.xlu0 %v4539
        %v4571 = vpop.xlane.xlu0 %4570
        %4572 = vadd.xlane.f32.xlu0 %v4541
        %v4573 = vpop.xlane.xlu0 %4572
        %4574 = vadd.xlane.f32.xlu0 %v4543
        %v4575 = vpop.xlane.xlu0 %4574
        %4576 = vadd.xlane.f32.xlu0 %v4545
        %v4577 = vpop.xlane.xlu0 %4576
        %4578 = vadd.xlane.f32.xlu0 %v4547
        %v4579 = vpop.xlane.xlu0 %4578
        %4580 = vadd.xlane.f32.xlu0 %v4549
        %v4581 = vpop.xlane.xlu0 %4580
        %4582 = vadd.xlane.f32.xlu0 %v4551
        %v4583 = vpop.xlane.xlu0 %4582
        %4584 = vadd.xlane.f32.xlu0 %v4553
        %v4585 = vpop.xlane.xlu0 %4584
        %4586 = vadd.xlane.f32.xlu0 %v4555
        %v4587 = vpop.xlane.xlu0 %4586
        %4588 = vadd.xlane.f32.xlu0 %v4557
        %v4589 = vpop.xlane.xlu0 %4588
        %4590 = vadd.xlane.f32.xlu0 %v4559
        %v4591 = vpop.xlane.xlu0 %4590
        %4592 = vadd.xlane.f32.xlu0 %v4561
        %v4593 = vpop.xlane.xlu0 %4592
        %4594 = vadd.xlane.f32.xlu0 %v4563
        %v4595 = vpop.xlane.xlu0 %4594
        %4596 = vadd.xlane.f32.xlu0 %v4565
        %v4597 = vpop.xlane.xlu0 %4596
        %v4598 = vrcp.pop %v4567
        %v4599 = vrcp.pop %v4569
        %v4600 = vrcp.pop %v4571
        %v4601 = vrcp.pop %v4573
        %v4602 = vrcp.pop %v4575
        %v4603 = vrcp.pop %v4577
        %v4604 = vrcp.pop %v4579
        %v4605 = vrcp.pop %v4581
        %v4606 = vrcp.pop %v4583
        %v4607 = vrcp.pop %v4585
        %v4608 = vrcp.pop %v4587
        %v4609 = vrcp.pop %v4589
        %v4610 = vrcp.pop %v4591
        %v4611 = vrcp.pop %v4593
        %v4612 = vrcp.pop %v4595
        %v4613 = vrcp.pop %v4597
        %v4614 = vmul.f32 %v4535, %v4598
        %v4615 = vmul.f32 %v4537, %v4599
        %v4616 = vmul.f32 %v4539, %v4600
        %v4617 = vmul.f32 %v4541, %v4601
        %v4618 = vmul.f32 %v4543, %v4602
        %v4619 = vmul.f32 %v4545, %v4603
        %v4620 = vmul.f32 %v4547, %v4604
        %v4621 = vmul.f32 %v4549, %v4605
        %v4622 = vmul.f32 %v4551, %v4606
        %v4623 = vmul.f32 %v4553, %v4607
        %v4624 = vmul.f32 %v4555, %v4608
        %v4625 = vmul.f32 %v4557, %v4609
        %v4626 = vmul.f32 %v4559, %v4610
        %v4627 = vmul.f32 %v4561, %v4611
        %v4628 = vmul.f32 %v4563, %v4612
        %v4629 = vmul.f32 %v4565, %v4613
        %v4630 = vpack.c.bf16 %v4615, %v4614
        %v4631 = vpack.c.bf16 %v4617, %v4616
        %v4632 = vpack.c.bf16 %v4619, %v4618
        %v4633 = vpack.c.bf16 %v4621, %v4620
        %v4634 = vpack.c.bf16 %v4623, %v4622
        %v4635 = vpack.c.bf16 %v4625, %v4624
        %v4636 = vpack.c.bf16 %v4627, %v4626
        %v4637 = vpack.c.bf16 %v4629, %v4628
        %v4654 = vunpack.c.l.b16 %v4293
        %v4655 = vunpack.c.l.b16 %v4294
        %v4656 = vunpack.c.l.b16 %v4295
        %v4657 = vunpack.c.l.b16 %v4296
        %v4658 = vunpack.c.l.b16 %v4297
        %v4659 = vunpack.c.l.b16 %v4298
        %v4660 = vunpack.c.l.b16 %v4299
        %v4661 = vunpack.c.l.b16 %v4300
        %v4662 = vunpack.c.l.b16 %v4301
        %v4663 = vunpack.c.l.b16 %v4302
        %v4664 = vunpack.c.l.b16 %v4303
        %v4665 = vunpack.c.l.b16 %v4304
        %v4666 = vunpack.c.l.b16 %v4305
        %v4667 = vunpack.c.l.b16 %v4306
        %v4668 = vunpack.c.l.b16 %v4307
        %v4669 = vunpack.c.l.b16 %v4308
        %v4670 = vpack.c.b16 %v4655, %v4654
        %v4671 = vpack.c.b16 %v4657, %v4656
        %v4672 = vpack.c.b16 %v4659, %v4658
        %v4673 = vpack.c.b16 %v4661, %v4660
        %v4674 = vpack.c.b16 %v4663, %v4662
        %v4675 = vpack.c.b16 %v4665, %v4664
        %v4676 = vpack.c.b16 %v4667, %v4666
        %v4677 = vpack.c.b16 %v4669, %v4668
        %4686 = vmatpush.bf16.msra.mxu0 %v4677
        %4687 = vmatpush.bf16.msra.mxu0 %v4676
        %4688 = vmatpush.bf16.msra.mxu0 %v4675
        %4689 = vmatpush.bf16.msra.mxu0 %v4674
        %4690 = vmatpush.bf16.msra.mxu0 %v4673
        %4691 = vmatpush.bf16.msra.mxu0 %v4672
        %4692 = vmatpush.bf16.msra.mxu0 %v4671
        %4693 = vmatpush.bf16.msra.mxu0 %v4670
        %4694 = vmatmul.bf16.gmra.mxu0 %v4630
        %v4695 = vpop.f32.mrf.mxu0
        %v4696 = vadd.f32 0.0, %v4695
        %v4697 = vpop.f32.mrf.mxu0
        %v4698 = vadd.f32 0.0, %v4697
        %4699 = vmatmul.bf16.gmra.mxu0 %v4631
        %v4700 = vpop.f32.mrf.mxu0
        %v4701 = vadd.f32 0.0, %v4700
        %v4702 = vpop.f32.mrf.mxu0
        %v4703 = vadd.f32 0.0, %v4702
        %4704 = vmatmul.bf16.gmra.mxu0 %v4632
        %v4705 = vpop.f32.mrf.mxu0
        %v4706 = vadd.f32 0.0, %v4705
        %v4707 = vpop.f32.mrf.mxu0
        %v4708 = vadd.f32 0.0, %v4707
        %4709 = vmatmul.bf16.gmra.mxu0 %v4633
        %v4710 = vpop.f32.mrf.mxu0
        %v4711 = vadd.f32 0.0, %v4710
        %v4712 = vpop.f32.mrf.mxu0
        %v4713 = vadd.f32 0.0, %v4712
        %4714 = vmatmul.bf16.gmra.mxu0 %v4634
        %v4715 = vpop.f32.mrf.mxu0
        %v4716 = vadd.f32 0.0, %v4715
        %v4717 = vpop.f32.mrf.mxu0
        %v4718 = vadd.f32 0.0, %v4717
        %4719 = vmatmul.bf16.gmra.mxu0 %v4635
        %v4720 = vpop.f32.mrf.mxu0
        %v4721 = vadd.f32 0.0, %v4720
        %v4722 = vpop.f32.mrf.mxu0
        %v4723 = vadd.f32 0.0, %v4722
        %4724 = vmatmul.bf16.gmra.mxu0 %v4636
        %v4725 = vpop.f32.mrf.mxu0
        %v4726 = vadd.f32 0.0, %v4725
        %v4727 = vpop.f32.mrf.mxu0
        %v4728 = vadd.f32 0.0, %v4727
        %4729 = vmatmul.bf16.gmra.mxu0 %v4637
        %v4730 = vpop.f32.mrf.mxu0
        %v4731 = vadd.f32 0.0, %v4730
        %v4732 = vpop.f32.mrf.mxu0
        %v4733 = vadd.f32 0.0, %v4732
        %4734 = vdwg.mxu0
        %4735 = vrot.lane.b32.xlu0 %v4341, 96
        %v4736 = vpop.permute.xlu0 %4735
        %4737 = vrot.lane.b32.xlu0 %v4342, 96
        %v4738 = vpop.permute.xlu0 %4737
        %4739 = vrot.lane.b32.xlu0 %v4343, 96
        %v4740 = vpop.permute.xlu0 %4739
        %4741 = vrot.lane.b32.xlu0 %v4344, 96
        %v4742 = vpop.permute.xlu0 %4741
        %4743 = vrot.lane.b32.xlu0 %v4345, 96
        %v4744 = vpop.permute.xlu0 %4743
        %4745 = vrot.lane.b32.xlu0 %v4346, 96
        %v4746 = vpop.permute.xlu0 %4745
        %4747 = vrot.lane.b32.xlu0 %v4347, 96
        %v4748 = vpop.permute.xlu0 %4747
        %4749 = vrot.lane.b32.xlu0 %v4348, 96
        %v4750 = vpop.permute.xlu0 %4749
        %4751 = vrot.lane.b32.xlu0 %v4381, 96
        %v4752 = vpop.permute.xlu0 %4751
        %4753 = vrot.lane.b32.xlu0 %v4382, 96
        %v4754 = vpop.permute.xlu0 %4753
        %4755 = vrot.lane.b32.xlu0 %v4383, 96
        %v4756 = vpop.permute.xlu0 %4755
        %4757 = vrot.lane.b32.xlu0 %v4384, 96
        %v4758 = vpop.permute.xlu0 %4757
        %4759 = vrot.lane.b32.xlu0 %v4385, 96
        %v4760 = vpop.permute.xlu0 %4759
        %4761 = vrot.lane.b32.xlu0 %v4386, 96
        %v4762 = vpop.permute.xlu0 %4761
        %4763 = vrot.lane.b32.xlu0 %v4387, 96
        %v4764 = vpop.permute.xlu0 %4763
        %4765 = vrot.lane.b32.xlu0 %v4388, 96
        %v4766 = vpop.permute.xlu0 %4765
        %v4768 = vsel %vm1806, %v4736, 0
        %v4771 = vsel %vm1806, %v4738, 0
        %v4774 = vsel %vm1806, %v4740, 0
        %v4777 = vsel %vm1806, %v4742, 0
        %v4780 = vsel %vm1806, %v4744, 0
        %v4783 = vsel %vm1806, %v4746, 0
        %v4786 = vsel %vm1806, %v4748, 0
        %v4789 = vsel %vm1806, %v4750, 0
        %v4792 = vsel %vm1806, %v4752, 0
        %v4795 = vsel %vm1806, %v4754, 0
        %v4798 = vsel %vm1806, %v4756, 0
        %v4801 = vsel %vm1806, %v4758, 0
        %v4804 = vsel %vm1806, %v4760, 0
        %v4807 = vsel %vm1806, %v4762, 0
        %v4810 = vsel %vm1806, %v4764, 0
        %v4813 = vsel %vm1806, %v4766, 0
        %4815 = vmatpush.bf16.xpose.msra.mxu0 %v4813
        %4816 = vmatpush.bf16.xpose.msra.mxu0 %v4810
        %4817 = vmatpush.bf16.xpose.msra.mxu0 %v4807
        %4818 = vmatpush.bf16.xpose.msra.mxu0 %v4804
        %4819 = vmatpush.bf16.xpose.msra.mxu0 %v4801
        %4820 = vmatpush.bf16.xpose.msra.mxu0 %v4798
        %4821 = vmatpush.bf16.xpose.msra.mxu0 %v4795
        %4822 = vmatpush.bf16.xpose.msra.mxu0 %v4792
        %4823 = vmatmul.bf16.gmra.mxu0 %v4768
        %v4824 = vpop.f32.mrf.mxu0
        %v4825 = vadd.f32 %v4260, %v4824
        %v4826 = vpop.f32.mrf.mxu0
        %v4827 = vadd.f32 %v4260, %v4826
        %4828 = vmatmul.bf16.gmra.mxu0 %v4771
        %v4829 = vpop.f32.mrf.mxu0
        %v4830 = vadd.f32 %v4260, %v4829
        %v4831 = vpop.f32.mrf.mxu0
        %v4832 = vadd.f32 %v4260, %v4831
        %4833 = vmatmul.bf16.gmra.mxu0 %v4774
        %v4834 = vpop.f32.mrf.mxu0
        %v4835 = vadd.f32 %v4260, %v4834
        %v4836 = vpop.f32.mrf.mxu0
        %v4837 = vadd.f32 %v4260, %v4836
        %4838 = vmatmul.bf16.gmra.mxu0 %v4777
        %v4839 = vpop.f32.mrf.mxu0
        %v4840 = vadd.f32 %v4260, %v4839
        %v4841 = vpop.f32.mrf.mxu0
        %v4842 = vadd.f32 %v4260, %v4841
        %4843 = vmatmul.bf16.gmra.mxu0 %v4780
        %v4844 = vpop.f32.mrf.mxu0
        %v4845 = vadd.f32 %v4260, %v4844
        %v4846 = vpop.f32.mrf.mxu0
        %v4847 = vadd.f32 %v4260, %v4846
        %4848 = vmatmul.bf16.gmra.mxu0 %v4783
        %v4849 = vpop.f32.mrf.mxu0
        %v4850 = vadd.f32 %v4260, %v4849
        %v4851 = vpop.f32.mrf.mxu0
        %v4852 = vadd.f32 %v4260, %v4851
        %4853 = vmatmul.bf16.gmra.mxu0 %v4786
        %v4854 = vpop.f32.mrf.mxu0
        %v4855 = vadd.f32 %v4260, %v4854
        %v4856 = vpop.f32.mrf.mxu0
        %v4857 = vadd.f32 %v4260, %v4856
        %4858 = vmatmul.bf16.gmra.mxu0 %v4789
        %v4859 = vpop.f32.mrf.mxu0
        %v4860 = vadd.f32 %v4260, %v4859
        %v4861 = vpop.f32.mrf.mxu0
        %v4862 = vadd.f32 %v4260, %v4861
        %4863 = vdwg.mxu0
        %4864 = vmax.xlane.f32.xlu0 %v4825
        %v4865 = vpop.xlane.xlu0 %4864
        %4866 = vmax.xlane.f32.xlu0 %v4827
        %v4867 = vpop.xlane.xlu0 %4866
        %4868 = vmax.xlane.f32.xlu0 %v4830
        %v4869 = vpop.xlane.xlu0 %4868
        %4870 = vmax.xlane.f32.xlu0 %v4832
        %v4871 = vpop.xlane.xlu0 %4870
        %4872 = vmax.xlane.f32.xlu0 %v4835
        %v4873 = vpop.xlane.xlu0 %4872
        %4874 = vmax.xlane.f32.xlu0 %v4837
        %v4875 = vpop.xlane.xlu0 %4874
        %4876 = vmax.xlane.f32.xlu0 %v4840
        %v4877 = vpop.xlane.xlu0 %4876
        %4878 = vmax.xlane.f32.xlu0 %v4842
        %v4879 = vpop.xlane.xlu0 %4878
        %4880 = vmax.xlane.f32.xlu0 %v4845
        %v4881 = vpop.xlane.xlu0 %4880
        %4882 = vmax.xlane.f32.xlu0 %v4847
        %v4883 = vpop.xlane.xlu0 %4882
        %4884 = vmax.xlane.f32.xlu0 %v4850
        %v4885 = vpop.xlane.xlu0 %4884
        %4886 = vmax.xlane.f32.xlu0 %v4852
        %v4887 = vpop.xlane.xlu0 %4886
        %4888 = vmax.xlane.f32.xlu0 %v4855
        %v4889 = vpop.xlane.xlu0 %4888
        %4890 = vmax.xlane.f32.xlu0 %v4857
        %v4891 = vpop.xlane.xlu0 %4890
        %4892 = vmax.xlane.f32.xlu0 %v4860
        %v4893 = vpop.xlane.xlu0 %4892
        %4894 = vmax.xlane.f32.xlu0 %v4862
        %v4895 = vpop.xlane.xlu0 %4894
        %v4896 = vsub.f32 %v4825, %v4865
        %v4897 = vsub.f32 %v4827, %v4867
        %v4898 = vsub.f32 %v4830, %v4869
        %v4899 = vsub.f32 %v4832, %v4871
        %v4900 = vsub.f32 %v4835, %v4873
        %v4901 = vsub.f32 %v4837, %v4875
        %v4902 = vsub.f32 %v4840, %v4877
        %v4903 = vsub.f32 %v4842, %v4879
        %v4904 = vsub.f32 %v4845, %v4881
        %v4905 = vsub.f32 %v4847, %v4883
        %v4906 = vsub.f32 %v4850, %v4885
        %v4907 = vsub.f32 %v4852, %v4887
        %v4908 = vsub.f32 %v4855, %v4889
        %v4909 = vsub.f32 %v4857, %v4891
        %v4910 = vsub.f32 %v4860, %v4893
        %v4911 = vsub.f32 %v4862, %v4895
        %v4912 = vmul.f32 %v4896, 1.442695
        %v4913 = vpow.pop %v4912
        %v4914 = vmul.f32 %v4897, 1.442695
        %v4915 = vpow.pop %v4914
        %v4916 = vmul.f32 %v4898, 1.442695
        %v4917 = vpow.pop %v4916
        %v4918 = vmul.f32 %v4899, 1.442695
        %v4919 = vpow.pop %v4918
        %v4920 = vmul.f32 %v4900, 1.442695
        %v4921 = vpow.pop %v4920
        %v4922 = vmul.f32 %v4901, 1.442695
        %v4923 = vpow.pop %v4922
        %v4924 = vmul.f32 %v4902, 1.442695
        %v4925 = vpow.pop %v4924
        %v4926 = vmul.f32 %v4903, 1.442695
        %v4927 = vpow.pop %v4926
        %v4928 = vmul.f32 %v4904, 1.442695
        %v4929 = vpow.pop %v4928
        %v4930 = vmul.f32 %v4905, 1.442695
        %v4931 = vpow.pop %v4930
        %v4932 = vmul.f32 %v4906, 1.442695
        %v4933 = vpow.pop %v4932
        %v4934 = vmul.f32 %v4907, 1.442695
        %v4935 = vpow.pop %v4934
        %v4936 = vmul.f32 %v4908, 1.442695
        %v4937 = vpow.pop %v4936
        %v4938 = vmul.f32 %v4909, 1.442695
        %v4939 = vpow.pop %v4938
        %v4940 = vmul.f32 %v4910, 1.442695
        %v4941 = vpow.pop %v4940
        %v4942 = vmul.f32 %v4911, 1.442695
        %v4943 = vpow.pop %v4942
        %4944 = vadd.xlane.f32.xlu0 %v4913
        %v4945 = vpop.xlane.xlu0 %4944
        %4946 = vadd.xlane.f32.xlu0 %v4915
        %v4947 = vpop.xlane.xlu0 %4946
        %4948 = vadd.xlane.f32.xlu0 %v4917
        %v4949 = vpop.xlane.xlu0 %4948
        %4950 = vadd.xlane.f32.xlu0 %v4919
        %v4951 = vpop.xlane.xlu0 %4950
        %4952 = vadd.xlane.f32.xlu0 %v4921
        %v4953 = vpop.xlane.xlu0 %4952
        %4954 = vadd.xlane.f32.xlu0 %v4923
        %v4955 = vpop.xlane.xlu0 %4954
        %4956 = vadd.xlane.f32.xlu0 %v4925
        %v4957 = vpop.xlane.xlu0 %4956
        %4958 = vadd.xlane.f32.xlu0 %v4927
        %v4959 = vpop.xlane.xlu0 %4958
        %4960 = vadd.xlane.f32.xlu0 %v4929
        %v4961 = vpop.xlane.xlu0 %4960
        %4962 = vadd.xlane.f32.xlu0 %v4931
        %v4963 = vpop.xlane.xlu0 %4962
        %4964 = vadd.xlane.f32.xlu0 %v4933
        %v4965 = vpop.xlane.xlu0 %4964
        %4966 = vadd.xlane.f32.xlu0 %v4935
        %v4967 = vpop.xlane.xlu0 %4966
        %4968 = vadd.xlane.f32.xlu0 %v4937
        %v4969 = vpop.xlane.xlu0 %4968
        %4970 = vadd.xlane.f32.xlu0 %v4939
        %v4971 = vpop.xlane.xlu0 %4970
        %4972 = vadd.xlane.f32.xlu0 %v4941
        %v4973 = vpop.xlane.xlu0 %4972
        %4974 = vadd.xlane.f32.xlu0 %v4943
        %v4975 = vpop.xlane.xlu0 %4974
        %v4976 = vrcp.pop %v4945
        %v4977 = vrcp.pop %v4947
        %v4978 = vrcp.pop %v4949
        %v4979 = vrcp.pop %v4951
        %v4980 = vrcp.pop %v4953
        %v4981 = vrcp.pop %v4955
        %v4982 = vrcp.pop %v4957
        %v4983 = vrcp.pop %v4959
        %v4984 = vrcp.pop %v4961
        %v4985 = vrcp.pop %v4963
        %v4986 = vrcp.pop %v4965
        %v4987 = vrcp.pop %v4967
        %v4988 = vrcp.pop %v4969
        %v4989 = vrcp.pop %v4971
        %v4990 = vrcp.pop %v4973
        %v4991 = vrcp.pop %v4975
        %v4992 = vmul.f32 %v4913, %v4976
        %v4993 = vmul.f32 %v4915, %v4977
        %v4994 = vmul.f32 %v4917, %v4978
        %v4995 = vmul.f32 %v4919, %v4979
        %v4996 = vmul.f32 %v4921, %v4980
        %v4997 = vmul.f32 %v4923, %v4981
        %v4998 = vmul.f32 %v4925, %v4982
        %v4999 = vmul.f32 %v4927, %v4983
        %v5000 = vmul.f32 %v4929, %v4984
        %v5001 = vmul.f32 %v4931, %v4985
        %v5002 = vmul.f32 %v4933, %v4986
        %v5003 = vmul.f32 %v4935, %v4987
        %v5004 = vmul.f32 %v4937, %v4988
        %v5005 = vmul.f32 %v4939, %v4989
        %v5006 = vmul.f32 %v4941, %v4990
        %v5007 = vmul.f32 %v4943, %v4991
        %v5008 = vpack.c.bf16 %v4993, %v4992
        %v5009 = vpack.c.bf16 %v4995, %v4994
        %v5010 = vpack.c.bf16 %v4997, %v4996
        %v5011 = vpack.c.bf16 %v4999, %v4998
        %v5012 = vpack.c.bf16 %v5001, %v5000
        %v5013 = vpack.c.bf16 %v5003, %v5002
        %v5014 = vpack.c.bf16 %v5005, %v5004
        %v5015 = vpack.c.bf16 %v5007, %v5006
        %5016 = vrot.lane.b32.xlu0 %v4670, 96
        %v5017 = vpop.permute.xlu0 %5016
        %5018 = vrot.lane.b32.xlu0 %v4671, 96
        %v5019 = vpop.permute.xlu0 %5018
        %5020 = vrot.lane.b32.xlu0 %v4672, 96
        %v5021 = vpop.permute.xlu0 %5020
        %5022 = vrot.lane.b32.xlu0 %v4673, 96
        %v5023 = vpop.permute.xlu0 %5022
        %5024 = vrot.lane.b32.xlu0 %v4674, 96
        %v5025 = vpop.permute.xlu0 %5024
        %5026 = vrot.lane.b32.xlu0 %v4675, 96
        %v5027 = vpop.permute.xlu0 %5026
        %5028 = vrot.lane.b32.xlu0 %v4676, 96
        %v5029 = vpop.permute.xlu0 %5028
        %5030 = vrot.lane.b32.xlu0 %v4677, 96
        %v5031 = vpop.permute.xlu0 %5030
        %5040 = vmatpush.bf16.msra.mxu0 %v5031
        %5041 = vmatpush.bf16.msra.mxu0 %v5029
        %5042 = vmatpush.bf16.msra.mxu0 %v5027
        %5043 = vmatpush.bf16.msra.mxu0 %v5025
        %5044 = vmatpush.bf16.msra.mxu0 %v5023
        %5045 = vmatpush.bf16.msra.mxu0 %v5021
        %5046 = vmatpush.bf16.msra.mxu0 %v5019
        %5047 = vmatpush.bf16.msra.mxu0 %v5017
        %5048 = vmatmul.bf16.gmra.mxu0 %v5008
        %v5049 = vpop.f32.mrf.mxu0
        %v5050 = vadd.f32 0.0, %v5049
        %v5051 = vpop.f32.mrf.mxu0
        %v5052 = vadd.f32 0.0, %v5051
        %5053 = vmatmul.bf16.gmra.mxu0 %v5009
        %v5054 = vpop.f32.mrf.mxu0
        %v5055 = vadd.f32 0.0, %v5054
        %v5056 = vpop.f32.mrf.mxu0
        %v5057 = vadd.f32 0.0, %v5056
        %5058 = vmatmul.bf16.gmra.mxu0 %v5010
        %v5059 = vpop.f32.mrf.mxu0
        %v5060 = vadd.f32 0.0, %v5059
        %v5061 = vpop.f32.mrf.mxu0
        %v5062 = vadd.f32 0.0, %v5061
        %5063 = vmatmul.bf16.gmra.mxu0 %v5011
        %v5064 = vpop.f32.mrf.mxu0
        %v5065 = vadd.f32 0.0, %v5064
        %v5066 = vpop.f32.mrf.mxu0
        %v5067 = vadd.f32 0.0, %v5066
        %5068 = vmatmul.bf16.gmra.mxu0 %v5012
        %v5069 = vpop.f32.mrf.mxu0
        %v5070 = vadd.f32 0.0, %v5069
        %v5071 = vpop.f32.mrf.mxu0
        %v5072 = vadd.f32 0.0, %v5071
        %5073 = vmatmul.bf16.gmra.mxu0 %v5013
        %v5074 = vpop.f32.mrf.mxu0
        %v5075 = vadd.f32 0.0, %v5074
        %v5076 = vpop.f32.mrf.mxu0
        %v5077 = vadd.f32 0.0, %v5076
        %5078 = vmatmul.bf16.gmra.mxu0 %v5014
        %v5079 = vpop.f32.mrf.mxu0
        %v5080 = vadd.f32 0.0, %v5079
        %v5081 = vpop.f32.mrf.mxu0
        %v5082 = vadd.f32 0.0, %v5081
        %5083 = vmatmul.bf16.gmra.mxu0 %v5015
        %v5084 = vpop.f32.mrf.mxu0
        %v5085 = vadd.f32 0.0, %v5084
        %v5086 = vpop.f32.mrf.mxu0
        %v5087 = vadd.f32 0.0, %v5086
        %5088 = vdwg.mxu0
        %5089 = vrot.lane.b32.xlu0 %v4341, 64
        %v5090 = vpop.permute.xlu0 %5089
        %5091 = vrot.lane.b32.xlu0 %v4342, 64
        %v5092 = vpop.permute.xlu0 %5091
        %5093 = vrot.lane.b32.xlu0 %v4343, 64
        %v5094 = vpop.permute.xlu0 %5093
        %5095 = vrot.lane.b32.xlu0 %v4344, 64
        %v5096 = vpop.permute.xlu0 %5095
        %5097 = vrot.lane.b32.xlu0 %v4345, 64
        %v5098 = vpop.permute.xlu0 %5097
        %5099 = vrot.lane.b32.xlu0 %v4346, 64
        %v5100 = vpop.permute.xlu0 %5099
        %5101 = vrot.lane.b32.xlu0 %v4347, 64
        %v5102 = vpop.permute.xlu0 %5101
        %5103 = vrot.lane.b32.xlu0 %v4348, 64
        %v5104 = vpop.permute.xlu0 %5103
        %5105 = vrot.lane.b32.xlu0 %v4381, 64
        %v5106 = vpop.permute.xlu0 %5105
        %5107 = vrot.lane.b32.xlu0 %v4382, 64
        %v5108 = vpop.permute.xlu0 %5107
        %5109 = vrot.lane.b32.xlu0 %v4383, 64
        %v5110 = vpop.permute.xlu0 %5109
        %5111 = vrot.lane.b32.xlu0 %v4384, 64
        %v5112 = vpop.permute.xlu0 %5111
        %5113 = vrot.lane.b32.xlu0 %v4385, 64
        %v5114 = vpop.permute.xlu0 %5113
        %5115 = vrot.lane.b32.xlu0 %v4386, 64
        %v5116 = vpop.permute.xlu0 %5115
        %5117 = vrot.lane.b32.xlu0 %v4387, 64
        %v5118 = vpop.permute.xlu0 %5117
        %5119 = vrot.lane.b32.xlu0 %v4388, 64
        %v5120 = vpop.permute.xlu0 %5119
        %v5122 = vsel %vm1806, %v5090, 0
        %v5125 = vsel %vm1806, %v5092, 0
        %v5128 = vsel %vm1806, %v5094, 0
        %v5131 = vsel %vm1806, %v5096, 0
        %v5134 = vsel %vm1806, %v5098, 0
        %v5137 = vsel %vm1806, %v5100, 0
        %v5140 = vsel %vm1806, %v5102, 0
        %v5143 = vsel %vm1806, %v5104, 0
        %v5146 = vsel %vm1806, %v5106, 0
        %v5149 = vsel %vm1806, %v5108, 0
        %v5152 = vsel %vm1806, %v5110, 0
        %v5155 = vsel %vm1806, %v5112, 0
        %v5158 = vsel %vm1806, %v5114, 0
        %v5161 = vsel %vm1806, %v5116, 0
        %v5164 = vsel %vm1806, %v5118, 0
        %v5167 = vsel %vm1806, %v5120, 0
        %5169 = vmatpush.bf16.xpose.msra.mxu0 %v5167
        %5170 = vmatpush.bf16.xpose.msra.mxu0 %v5164
        %5171 = vmatpush.bf16.xpose.msra.mxu0 %v5161
        %5172 = vmatpush.bf16.xpose.msra.mxu0 %v5158
        %5173 = vmatpush.bf16.xpose.msra.mxu0 %v5155
        %5174 = vmatpush.bf16.xpose.msra.mxu0 %v5152
        %5175 = vmatpush.bf16.xpose.msra.mxu0 %v5149
        %5176 = vmatpush.bf16.xpose.msra.mxu0 %v5146
        %5177 = vmatmul.bf16.gmra.mxu0 %v5122
        %v5178 = vpop.f32.mrf.mxu0
        %v5179 = vadd.f32 %v4260, %v5178
        %v5180 = vpop.f32.mrf.mxu0
        %v5181 = vadd.f32 %v4260, %v5180
        %5182 = vmatmul.bf16.gmra.mxu0 %v5125
        %v5183 = vpop.f32.mrf.mxu0
        %v5184 = vadd.f32 %v4260, %v5183
        %v5185 = vpop.f32.mrf.mxu0
        %v5186 = vadd.f32 %v4260, %v5185
        %5187 = vmatmul.bf16.gmra.mxu0 %v5128
        %v5188 = vpop.f32.mrf.mxu0
        %v5189 = vadd.f32 %v4260, %v5188
        %v5190 = vpop.f32.mrf.mxu0
        %v5191 = vadd.f32 %v4260, %v5190
        %5192 = vmatmul.bf16.gmra.mxu0 %v5131
        %v5193 = vpop.f32.mrf.mxu0
        %v5194 = vadd.f32 %v4260, %v5193
        %v5195 = vpop.f32.mrf.mxu0
        %v5196 = vadd.f32 %v4260, %v5195
        %5197 = vmatmul.bf16.gmra.mxu0 %v5134
        %v5198 = vpop.f32.mrf.mxu0
        %v5199 = vadd.f32 %v4260, %v5198
        %v5200 = vpop.f32.mrf.mxu0
        %v5201 = vadd.f32 %v4260, %v5200
        %5202 = vmatmul.bf16.gmra.mxu0 %v5137
        %v5203 = vpop.f32.mrf.mxu0
        %v5204 = vadd.f32 %v4260, %v5203
        %v5205 = vpop.f32.mrf.mxu0
        %v5206 = vadd.f32 %v4260, %v5205
        %5207 = vmatmul.bf16.gmra.mxu0 %v5140
        %v5208 = vpop.f32.mrf.mxu0
        %v5209 = vadd.f32 %v4260, %v5208
        %v5210 = vpop.f32.mrf.mxu0
        %v5211 = vadd.f32 %v4260, %v5210
        %5212 = vmatmul.bf16.gmra.mxu0 %v5143
        %v5213 = vpop.f32.mrf.mxu0
        %v5214 = vadd.f32 %v4260, %v5213
        %v5215 = vpop.f32.mrf.mxu0
        %v5216 = vadd.f32 %v4260, %v5215
        %5217 = vdwg.mxu0
        %5218 = vmax.xlane.f32.xlu0 %v5179
        %v5219 = vpop.xlane.xlu0 %5218
        %5220 = vmax.xlane.f32.xlu0 %v5181
        %v5221 = vpop.xlane.xlu0 %5220
        %5222 = vmax.xlane.f32.xlu0 %v5184
        %v5223 = vpop.xlane.xlu0 %5222
        %5224 = vmax.xlane.f32.xlu0 %v5186
        %v5225 = vpop.xlane.xlu0 %5224
        %5226 = vmax.xlane.f32.xlu0 %v5189
        %v5227 = vpop.xlane.xlu0 %5226
        %5228 = vmax.xlane.f32.xlu0 %v5191
        %v5229 = vpop.xlane.xlu0 %5228
        %5230 = vmax.xlane.f32.xlu0 %v5194
        %v5231 = vpop.xlane.xlu0 %5230
        %5232 = vmax.xlane.f32.xlu0 %v5196
        %v5233 = vpop.xlane.xlu0 %5232
        %5234 = vmax.xlane.f32.xlu0 %v5199
        %v5235 = vpop.xlane.xlu0 %5234
        %5236 = vmax.xlane.f32.xlu0 %v5201
        %v5237 = vpop.xlane.xlu0 %5236
        %5238 = vmax.xlane.f32.xlu0 %v5204
        %v5239 = vpop.xlane.xlu0 %5238
        %5240 = vmax.xlane.f32.xlu0 %v5206
        %v5241 = vpop.xlane.xlu0 %5240
        %5242 = vmax.xlane.f32.xlu0 %v5209
        %v5243 = vpop.xlane.xlu0 %5242
        %5244 = vmax.xlane.f32.xlu0 %v5211
        %v5245 = vpop.xlane.xlu0 %5244
        %5246 = vmax.xlane.f32.xlu0 %v5214
        %v5247 = vpop.xlane.xlu0 %5246
        %5248 = vmax.xlane.f32.xlu0 %v5216
        %v5249 = vpop.xlane.xlu0 %5248
        %v5250 = vsub.f32 %v5179, %v5219
        %v5251 = vsub.f32 %v5181, %v5221
        %v5252 = vsub.f32 %v5184, %v5223
        %v5253 = vsub.f32 %v5186, %v5225
        %v5254 = vsub.f32 %v5189, %v5227
        %v5255 = vsub.f32 %v5191, %v5229
        %v5256 = vsub.f32 %v5194, %v5231
        %v5257 = vsub.f32 %v5196, %v5233
        %v5258 = vsub.f32 %v5199, %v5235
        %v5259 = vsub.f32 %v5201, %v5237
        %v5260 = vsub.f32 %v5204, %v5239
        %v5261 = vsub.f32 %v5206, %v5241
        %v5262 = vsub.f32 %v5209, %v5243
        %v5263 = vsub.f32 %v5211, %v5245
        %v5264 = vsub.f32 %v5214, %v5247
        %v5265 = vsub.f32 %v5216, %v5249
        %v5266 = vmul.f32 %v5250, 1.442695
        %v5267 = vpow.pop %v5266
        %v5268 = vmul.f32 %v5251, 1.442695
        %v5269 = vpow.pop %v5268
        %v5270 = vmul.f32 %v5252, 1.442695
        %v5271 = vpow.pop %v5270
        %v5272 = vmul.f32 %v5253, 1.442695
        %v5273 = vpow.pop %v5272
        %v5274 = vmul.f32 %v5254, 1.442695
        %v5275 = vpow.pop %v5274
        %v5276 = vmul.f32 %v5255, 1.442695
        %v5277 = vpow.pop %v5276
        %v5278 = vmul.f32 %v5256, 1.442695
        %v5279 = vpow.pop %v5278
        %v5280 = vmul.f32 %v5257, 1.442695
        %v5281 = vpow.pop %v5280
        %v5282 = vmul.f32 %v5258, 1.442695
        %v5283 = vpow.pop %v5282
        %v5284 = vmul.f32 %v5259, 1.442695
        %v5285 = vpow.pop %v5284
        %v5286 = vmul.f32 %v5260, 1.442695
        %v5287 = vpow.pop %v5286
        %v5288 = vmul.f32 %v5261, 1.442695
        %v5289 = vpow.pop %v5288
        %v5290 = vmul.f32 %v5262, 1.442695
        %v5291 = vpow.pop %v5290
        %v5292 = vmul.f32 %v5263, 1.442695
        %v5293 = vpow.pop %v5292
        %v5294 = vmul.f32 %v5264, 1.442695
        %v5295 = vpow.pop %v5294
        %v5296 = vmul.f32 %v5265, 1.442695
        %v5297 = vpow.pop %v5296
        %5298 = vadd.xlane.f32.xlu0 %v5267
        %v5299 = vpop.xlane.xlu0 %5298
        %5300 = vadd.xlane.f32.xlu0 %v5269
        %v5301 = vpop.xlane.xlu0 %5300
        %5302 = vadd.xlane.f32.xlu0 %v5271
        %v5303 = vpop.xlane.xlu0 %5302
        %5304 = vadd.xlane.f32.xlu0 %v5273
        %v5305 = vpop.xlane.xlu0 %5304
        %5306 = vadd.xlane.f32.xlu0 %v5275
        %v5307 = vpop.xlane.xlu0 %5306
        %5308 = vadd.xlane.f32.xlu0 %v5277
        %v5309 = vpop.xlane.xlu0 %5308
        %5310 = vadd.xlane.f32.xlu0 %v5279
        %v5311 = vpop.xlane.xlu0 %5310
        %5312 = vadd.xlane.f32.xlu0 %v5281
        %v5313 = vpop.xlane.xlu0 %5312
        %5314 = vadd.xlane.f32.xlu0 %v5283
        %v5315 = vpop.xlane.xlu0 %5314
        %5316 = vadd.xlane.f32.xlu0 %v5285
        %v5317 = vpop.xlane.xlu0 %5316
        %5318 = vadd.xlane.f32.xlu0 %v5287
        %v5319 = vpop.xlane.xlu0 %5318
        %5320 = vadd.xlane.f32.xlu0 %v5289
        %v5321 = vpop.xlane.xlu0 %5320
        %5322 = vadd.xlane.f32.xlu0 %v5291
        %v5323 = vpop.xlane.xlu0 %5322
        %5324 = vadd.xlane.f32.xlu0 %v5293
        %v5325 = vpop.xlane.xlu0 %5324
        %5326 = vadd.xlane.f32.xlu0 %v5295
        %v5327 = vpop.xlane.xlu0 %5326
        %5328 = vadd.xlane.f32.xlu0 %v5297
        %v5329 = vpop.xlane.xlu0 %5328
        %v5330 = vrcp.pop %v5299
        %v5331 = vrcp.pop %v5301
        %v5332 = vrcp.pop %v5303
        %v5333 = vrcp.pop %v5305
        %v5334 = vrcp.pop %v5307
        %v5335 = vrcp.pop %v5309
        %v5336 = vrcp.pop %v5311
        %v5337 = vrcp.pop %v5313
        %v5338 = vrcp.pop %v5315
        %v5339 = vrcp.pop %v5317
        %v5340 = vrcp.pop %v5319
        %v5341 = vrcp.pop %v5321
        %v5342 = vrcp.pop %v5323
        %v5343 = vrcp.pop %v5325
        %v5344 = vrcp.pop %v5327
        %v5345 = vrcp.pop %v5329
        %v5346 = vmul.f32 %v5267, %v5330
        %v5347 = vmul.f32 %v5269, %v5331
        %v5348 = vmul.f32 %v5271, %v5332
        %v5349 = vmul.f32 %v5273, %v5333
        %v5350 = vmul.f32 %v5275, %v5334
        %v5351 = vmul.f32 %v5277, %v5335
        %v5352 = vmul.f32 %v5279, %v5336
        %v5353 = vmul.f32 %v5281, %v5337
        %v5354 = vmul.f32 %v5283, %v5338
        %v5355 = vmul.f32 %v5285, %v5339
        %v5356 = vmul.f32 %v5287, %v5340
        %v5357 = vmul.f32 %v5289, %v5341
        %v5358 = vmul.f32 %v5291, %v5342
        %v5359 = vmul.f32 %v5293, %v5343
        %v5360 = vmul.f32 %v5295, %v5344
        %v5361 = vmul.f32 %v5297, %v5345
        %v5362 = vpack.c.bf16 %v5347, %v5346
        %v5363 = vpack.c.bf16 %v5349, %v5348
        %v5364 = vpack.c.bf16 %v5351, %v5350
        %v5365 = vpack.c.bf16 %v5353, %v5352
        %v5366 = vpack.c.bf16 %v5355, %v5354
        %v5367 = vpack.c.bf16 %v5357, %v5356
        %v5368 = vpack.c.bf16 %v5359, %v5358
        %v5369 = vpack.c.bf16 %v5361, %v5360
        %5370 = vrot.lane.b32.xlu0 %v4670, 64
        %v5371 = vpop.permute.xlu0 %5370
        %5372 = vrot.lane.b32.xlu0 %v4671, 64
        %v5373 = vpop.permute.xlu0 %5372
        %5374 = vrot.lane.b32.xlu0 %v4672, 64
        %v5375 = vpop.permute.xlu0 %5374
        %5376 = vrot.lane.b32.xlu0 %v4673, 64
        %v5377 = vpop.permute.xlu0 %5376
        %5378 = vrot.lane.b32.xlu0 %v4674, 64
        %v5379 = vpop.permute.xlu0 %5378
        %5380 = vrot.lane.b32.xlu0 %v4675, 64
        %v5381 = vpop.permute.xlu0 %5380
        %5382 = vrot.lane.b32.xlu0 %v4676, 64
        %v5383 = vpop.permute.xlu0 %5382
        %5384 = vrot.lane.b32.xlu0 %v4677, 64
        %v5385 = vpop.permute.xlu0 %5384
        %5394 = vmatpush.bf16.msra.mxu0 %v5385
        %5395 = vmatpush.bf16.msra.mxu0 %v5383
        %5396 = vmatpush.bf16.msra.mxu0 %v5381
        %5397 = vmatpush.bf16.msra.mxu0 %v5379
        %5398 = vmatpush.bf16.msra.mxu0 %v5377
        %5399 = vmatpush.bf16.msra.mxu0 %v5375
        %5400 = vmatpush.bf16.msra.mxu0 %v5373
        %5401 = vmatpush.bf16.msra.mxu0 %v5371
        %5402 = vmatmul.bf16.gmra.mxu0 %v5362
        %v5403 = vpop.f32.mrf.mxu0
        %v5404 = vadd.f32 0.0, %v5403
        %v5405 = vpop.f32.mrf.mxu0
        %v5406 = vadd.f32 0.0, %v5405
        %5407 = vmatmul.bf16.gmra.mxu0 %v5363
        %v5408 = vpop.f32.mrf.mxu0
        %v5409 = vadd.f32 0.0, %v5408
        %v5410 = vpop.f32.mrf.mxu0
        %v5411 = vadd.f32 0.0, %v5410
        %5412 = vmatmul.bf16.gmra.mxu0 %v5364
        %v5413 = vpop.f32.mrf.mxu0
        %v5414 = vadd.f32 0.0, %v5413
        %v5415 = vpop.f32.mrf.mxu0
        %v5416 = vadd.f32 0.0, %v5415
        %5417 = vmatmul.bf16.gmra.mxu0 %v5365
        %v5418 = vpop.f32.mrf.mxu0
        %v5419 = vadd.f32 0.0, %v5418
        %v5420 = vpop.f32.mrf.mxu0
        %v5421 = vadd.f32 0.0, %v5420
        %5422 = vmatmul.bf16.gmra.mxu0 %v5366
        %v5423 = vpop.f32.mrf.mxu0
        %v5424 = vadd.f32 0.0, %v5423
        %v5425 = vpop.f32.mrf.mxu0
        %v5426 = vadd.f32 0.0, %v5425
        %5427 = vmatmul.bf16.gmra.mxu0 %v5367
        %v5428 = vpop.f32.mrf.mxu0
        %v5429 = vadd.f32 0.0, %v5428
        %v5430 = vpop.f32.mrf.mxu0
        %v5431 = vadd.f32 0.0, %v5430
        %5432 = vmatmul.bf16.gmra.mxu0 %v5368
        %v5433 = vpop.f32.mrf.mxu0
        %v5434 = vadd.f32 0.0, %v5433
        %v5435 = vpop.f32.mrf.mxu0
        %v5436 = vadd.f32 0.0, %v5435
        %5437 = vmatmul.bf16.gmra.mxu0 %v5369
        %v5438 = vpop.f32.mrf.mxu0
        %v5439 = vadd.f32 0.0, %v5438
        %v5440 = vpop.f32.mrf.mxu0
        %v5441 = vadd.f32 0.0, %v5440
        %5442 = vdwg.mxu0
        %5443 = vrot.lane.b32.xlu0 %v4341, 32
        %v5444 = vpop.permute.xlu0 %5443
        %5445 = vrot.lane.b32.xlu0 %v4342, 32
        %v5446 = vpop.permute.xlu0 %5445
        %5447 = vrot.lane.b32.xlu0 %v4343, 32
        %v5448 = vpop.permute.xlu0 %5447
        %5449 = vrot.lane.b32.xlu0 %v4344, 32
        %v5450 = vpop.permute.xlu0 %5449
        %5451 = vrot.lane.b32.xlu0 %v4345, 32
        %v5452 = vpop.permute.xlu0 %5451
        %5453 = vrot.lane.b32.xlu0 %v4346, 32
        %v5454 = vpop.permute.xlu0 %5453
        %5455 = vrot.lane.b32.xlu0 %v4347, 32
        %v5456 = vpop.permute.xlu0 %5455
        %5457 = vrot.lane.b32.xlu0 %v4348, 32
        %v5458 = vpop.permute.xlu0 %5457
        %5459 = vrot.lane.b32.xlu0 %v4381, 32
        %v5460 = vpop.permute.xlu0 %5459
        %5461 = vrot.lane.b32.xlu0 %v4382, 32
        %v5462 = vpop.permute.xlu0 %5461
        %5463 = vrot.lane.b32.xlu0 %v4383, 32
        %v5464 = vpop.permute.xlu0 %5463
        %5465 = vrot.lane.b32.xlu0 %v4384, 32
        %v5466 = vpop.permute.xlu0 %5465
        %5467 = vrot.lane.b32.xlu0 %v4385, 32
        %v5468 = vpop.permute.xlu0 %5467
        %5469 = vrot.lane.b32.xlu0 %v4386, 32
        %v5470 = vpop.permute.xlu0 %5469
        %5471 = vrot.lane.b32.xlu0 %v4387, 32
        %v5472 = vpop.permute.xlu0 %5471
        %5473 = vrot.lane.b32.xlu0 %v4388, 32
        %v5474 = vpop.permute.xlu0 %5473
        %v5476 = vsel %vm1806, %v5444, 0
        %v5479 = vsel %vm1806, %v5446, 0
        %v5482 = vsel %vm1806, %v5448, 0
        %v5485 = vsel %vm1806, %v5450, 0
        %v5488 = vsel %vm1806, %v5452, 0
        %v5491 = vsel %vm1806, %v5454, 0
        %v5494 = vsel %vm1806, %v5456, 0
        %v5497 = vsel %vm1806, %v5458, 0
        %v5500 = vsel %vm1806, %v5460, 0
        %v5503 = vsel %vm1806, %v5462, 0
        %v5506 = vsel %vm1806, %v5464, 0
        %v5509 = vsel %vm1806, %v5466, 0
        %v5512 = vsel %vm1806, %v5468, 0
        %v5515 = vsel %vm1806, %v5470, 0
        %v5518 = vsel %vm1806, %v5472, 0
        %v5521 = vsel %vm1806, %v5474, 0
        %5523 = vmatpush.bf16.xpose.msra.mxu0 %v5521
        %5524 = vmatpush.bf16.xpose.msra.mxu0 %v5518
        %5525 = vmatpush.bf16.xpose.msra.mxu0 %v5515
        %5526 = vmatpush.bf16.xpose.msra.mxu0 %v5512
        %5527 = vmatpush.bf16.xpose.msra.mxu0 %v5509
        %5528 = vmatpush.bf16.xpose.msra.mxu0 %v5506
        %5529 = vmatpush.bf16.xpose.msra.mxu0 %v5503
        %5530 = vmatpush.bf16.xpose.msra.mxu0 %v5500
        %5531 = vmatmul.bf16.gmra.mxu0 %v5476
        %v5532 = vpop.f32.mrf.mxu0
        %v5533 = vadd.f32 %v4260, %v5532
        %v5534 = vpop.f32.mrf.mxu0
        %v5535 = vadd.f32 %v4260, %v5534
        %5536 = vmatmul.bf16.gmra.mxu0 %v5479
        %v5537 = vpop.f32.mrf.mxu0
        %v5538 = vadd.f32 %v4260, %v5537
        %v5539 = vpop.f32.mrf.mxu0
        %v5540 = vadd.f32 %v4260, %v5539
        %5541 = vmatmul.bf16.gmra.mxu0 %v5482
        %v5542 = vpop.f32.mrf.mxu0
        %v5543 = vadd.f32 %v4260, %v5542
        %v5544 = vpop.f32.mrf.mxu0
        %v5545 = vadd.f32 %v4260, %v5544
        %5546 = vmatmul.bf16.gmra.mxu0 %v5485
        %v5547 = vpop.f32.mrf.mxu0
        %v5548 = vadd.f32 %v4260, %v5547
        %v5549 = vpop.f32.mrf.mxu0
        %v5550 = vadd.f32 %v4260, %v5549
        %5551 = vmatmul.bf16.gmra.mxu0 %v5488
        %v5552 = vpop.f32.mrf.mxu0
        %v5553 = vadd.f32 %v4260, %v5552
        %v5554 = vpop.f32.mrf.mxu0
        %v5555 = vadd.f32 %v4260, %v5554
        %5556 = vmatmul.bf16.gmra.mxu0 %v5491
        %v5557 = vpop.f32.mrf.mxu0
        %v5558 = vadd.f32 %v4260, %v5557
        %v5559 = vpop.f32.mrf.mxu0
        %v5560 = vadd.f32 %v4260, %v5559
        %5561 = vmatmul.bf16.gmra.mxu0 %v5494
        %v5562 = vpop.f32.mrf.mxu0
        %v5563 = vadd.f32 %v4260, %v5562
        %v5564 = vpop.f32.mrf.mxu0
        %v5565 = vadd.f32 %v4260, %v5564
        %5566 = vmatmul.bf16.gmra.mxu0 %v5497
        %v5567 = vpop.f32.mrf.mxu0
        %v5568 = vadd.f32 %v4260, %v5567
        %v5569 = vpop.f32.mrf.mxu0
        %v5570 = vadd.f32 %v4260, %v5569
        %5571 = vdwg.mxu0
        %5572 = vmax.xlane.f32.xlu0 %v5533
        %v5573 = vpop.xlane.xlu0 %5572
        %5574 = vmax.xlane.f32.xlu0 %v5535
        %v5575 = vpop.xlane.xlu0 %5574
        %5576 = vmax.xlane.f32.xlu0 %v5538
        %v5577 = vpop.xlane.xlu0 %5576
        %5578 = vmax.xlane.f32.xlu0 %v5540
        %v5579 = vpop.xlane.xlu0 %5578
        %5580 = vmax.xlane.f32.xlu0 %v5543
        %v5581 = vpop.xlane.xlu0 %5580
        %5582 = vmax.xlane.f32.xlu0 %v5545
        %v5583 = vpop.xlane.xlu0 %5582
        %5584 = vmax.xlane.f32.xlu0 %v5548
        %v5585 = vpop.xlane.xlu0 %5584
        %5586 = vmax.xlane.f32.xlu0 %v5550
        %v5587 = vpop.xlane.xlu0 %5586
        %5588 = vmax.xlane.f32.xlu0 %v5553
        %v5589 = vpop.xlane.xlu0 %5588
        %5590 = vmax.xlane.f32.xlu0 %v5555
        %v5591 = vpop.xlane.xlu0 %5590
        %5592 = vmax.xlane.f32.xlu0 %v5558
        %v5593 = vpop.xlane.xlu0 %5592
        %5594 = vmax.xlane.f32.xlu0 %v5560
        %v5595 = vpop.xlane.xlu0 %5594
        %5596 = vmax.xlane.f32.xlu0 %v5563
        %v5597 = vpop.xlane.xlu0 %5596
        %5598 = vmax.xlane.f32.xlu0 %v5565
        %v5599 = vpop.xlane.xlu0 %5598
        %5600 = vmax.xlane.f32.xlu0 %v5568
        %v5601 = vpop.xlane.xlu0 %5600
        %5602 = vmax.xlane.f32.xlu0 %v5570
        %v5603 = vpop.xlane.xlu0 %5602
        %v5604 = vsub.f32 %v5533, %v5573
        %v5605 = vsub.f32 %v5535, %v5575
        %v5606 = vsub.f32 %v5538, %v5577
        %v5607 = vsub.f32 %v5540, %v5579
        %v5608 = vsub.f32 %v5543, %v5581
        %v5609 = vsub.f32 %v5545, %v5583
        %v5610 = vsub.f32 %v5548, %v5585
        %v5611 = vsub.f32 %v5550, %v5587
        %v5612 = vsub.f32 %v5553, %v5589
        %v5613 = vsub.f32 %v5555, %v5591
        %v5614 = vsub.f32 %v5558, %v5593
        %v5615 = vsub.f32 %v5560, %v5595
        %v5616 = vsub.f32 %v5563, %v5597
        %v5617 = vsub.f32 %v5565, %v5599
        %v5618 = vsub.f32 %v5568, %v5601
        %v5619 = vsub.f32 %v5570, %v5603
        %v5620 = vmul.f32 %v5604, 1.442695
        %v5621 = vpow.pop %v5620
        %v5622 = vmul.f32 %v5605, 1.442695
        %v5623 = vpow.pop %v5622
        %v5624 = vmul.f32 %v5606, 1.442695
        %v5625 = vpow.pop %v5624
        %v5626 = vmul.f32 %v5607, 1.442695
        %v5627 = vpow.pop %v5626
        %v5628 = vmul.f32 %v5608, 1.442695
        %v5629 = vpow.pop %v5628
        %v5630 = vmul.f32 %v5609, 1.442695
        %v5631 = vpow.pop %v5630
        %v5632 = vmul.f32 %v5610, 1.442695
        %v5633 = vpow.pop %v5632
        %v5634 = vmul.f32 %v5611, 1.442695
        %v5635 = vpow.pop %v5634
        %v5636 = vmul.f32 %v5612, 1.442695
        %v5637 = vpow.pop %v5636
        %v5638 = vmul.f32 %v5613, 1.442695
        %v5639 = vpow.pop %v5638
        %v5640 = vmul.f32 %v5614, 1.442695
        %v5641 = vpow.pop %v5640
        %v5642 = vmul.f32 %v5615, 1.442695
        %v5643 = vpow.pop %v5642
        %v5644 = vmul.f32 %v5616, 1.442695
        %v5645 = vpow.pop %v5644
        %v5646 = vmul.f32 %v5617, 1.442695
        %v5647 = vpow.pop %v5646
        %v5648 = vmul.f32 %v5618, 1.442695
        %v5649 = vpow.pop %v5648
        %v5650 = vmul.f32 %v5619, 1.442695
        %v5651 = vpow.pop %v5650
        %5652 = vadd.xlane.f32.xlu0 %v5621
        %v5653 = vpop.xlane.xlu0 %5652
        %5654 = vadd.xlane.f32.xlu0 %v5623
        %v5655 = vpop.xlane.xlu0 %5654
        %5656 = vadd.xlane.f32.xlu0 %v5625
        %v5657 = vpop.xlane.xlu0 %5656
        %5658 = vadd.xlane.f32.xlu0 %v5627
        %v5659 = vpop.xlane.xlu0 %5658
        %5660 = vadd.xlane.f32.xlu0 %v5629
        %v5661 = vpop.xlane.xlu0 %5660
        %5662 = vadd.xlane.f32.xlu0 %v5631
        %v5663 = vpop.xlane.xlu0 %5662
        %5664 = vadd.xlane.f32.xlu0 %v5633
        %v5665 = vpop.xlane.xlu0 %5664
        %5666 = vadd.xlane.f32.xlu0 %v5635
        %v5667 = vpop.xlane.xlu0 %5666
        %5668 = vadd.xlane.f32.xlu0 %v5637
        %v5669 = vpop.xlane.xlu0 %5668
        %5670 = vadd.xlane.f32.xlu0 %v5639
        %v5671 = vpop.xlane.xlu0 %5670
        %5672 = vadd.xlane.f32.xlu0 %v5641
        %v5673 = vpop.xlane.xlu0 %5672
        %5674 = vadd.xlane.f32.xlu0 %v5643
        %v5675 = vpop.xlane.xlu0 %5674
        %5676 = vadd.xlane.f32.xlu0 %v5645
        %v5677 = vpop.xlane.xlu0 %5676
        %5678 = vadd.xlane.f32.xlu0 %v5647
        %v5679 = vpop.xlane.xlu0 %5678
        %5680 = vadd.xlane.f32.xlu0 %v5649
        %v5681 = vpop.xlane.xlu0 %5680
        %5682 = vadd.xlane.f32.xlu0 %v5651
        %v5683 = vpop.xlane.xlu0 %5682
        %v5684 = vrcp.pop %v5653
        %v5685 = vrcp.pop %v5655
        %v5686 = vrcp.pop %v5657
        %v5687 = vrcp.pop %v5659
        %v5688 = vrcp.pop %v5661
        %v5689 = vrcp.pop %v5663
        %v5690 = vrcp.pop %v5665
        %v5691 = vrcp.pop %v5667
        %v5692 = vrcp.pop %v5669
        %v5693 = vrcp.pop %v5671
        %v5694 = vrcp.pop %v5673
        %v5695 = vrcp.pop %v5675
        %v5696 = vrcp.pop %v5677
        %v5697 = vrcp.pop %v5679
        %v5698 = vrcp.pop %v5681
        %v5699 = vrcp.pop %v5683
        %v5700 = vmul.f32 %v5621, %v5684
        %v5701 = vmul.f32 %v5623, %v5685
        %v5702 = vmul.f32 %v5625, %v5686
        %v5703 = vmul.f32 %v5627, %v5687
        %v5704 = vmul.f32 %v5629, %v5688
        %v5705 = vmul.f32 %v5631, %v5689
        %v5706 = vmul.f32 %v5633, %v5690
        %v5707 = vmul.f32 %v5635, %v5691
        %v5708 = vmul.f32 %v5637, %v5692
        %v5709 = vmul.f32 %v5639, %v5693
        %v5710 = vmul.f32 %v5641, %v5694
        %v5711 = vmul.f32 %v5643, %v5695
        %v5712 = vmul.f32 %v5645, %v5696
        %v5713 = vmul.f32 %v5647, %v5697
        %v5714 = vmul.f32 %v5649, %v5698
        %v5715 = vmul.f32 %v5651, %v5699
        %v5716 = vpack.c.bf16 %v5701, %v5700
        %v5717 = vpack.c.bf16 %v5703, %v5702
        %v5718 = vpack.c.bf16 %v5705, %v5704
        %v5719 = vpack.c.bf16 %v5707, %v5706
        %v5720 = vpack.c.bf16 %v5709, %v5708
        %v5721 = vpack.c.bf16 %v5711, %v5710
        %v5722 = vpack.c.bf16 %v5713, %v5712
        %v5723 = vpack.c.bf16 %v5715, %v5714
        %5724 = vrot.lane.b32.xlu0 %v4670, 32
        %v5725 = vpop.permute.xlu0 %5724
        %5726 = vrot.lane.b32.xlu0 %v4671, 32
        %v5727 = vpop.permute.xlu0 %5726
        %5728 = vrot.lane.b32.xlu0 %v4672, 32
        %v5729 = vpop.permute.xlu0 %5728
        %5730 = vrot.lane.b32.xlu0 %v4673, 32
        %v5731 = vpop.permute.xlu0 %5730
        %5732 = vrot.lane.b32.xlu0 %v4674, 32
        %v5733 = vpop.permute.xlu0 %5732
        %5734 = vrot.lane.b32.xlu0 %v4675, 32
        %v5735 = vpop.permute.xlu0 %5734
        %5736 = vrot.lane.b32.xlu0 %v4676, 32
        %v5737 = vpop.permute.xlu0 %5736
        %5738 = vrot.lane.b32.xlu0 %v4677, 32
        %v5739 = vpop.permute.xlu0 %5738
        %5748 = vmatpush.bf16.msra.mxu0 %v5739
        %5749 = vmatpush.bf16.msra.mxu0 %v5737
        %5750 = vmatpush.bf16.msra.mxu0 %v5735
        %5751 = vmatpush.bf16.msra.mxu0 %v5733
        %5752 = vmatpush.bf16.msra.mxu0 %v5731
        %5753 = vmatpush.bf16.msra.mxu0 %v5729
        %5754 = vmatpush.bf16.msra.mxu0 %v5727
        %5755 = vmatpush.bf16.msra.mxu0 %v5725
        %5756 = vmatmul.bf16.gmra.mxu0 %v5716
        %v5757 = vpop.f32.mrf.mxu0
        %v5758 = vadd.f32 0.0, %v5757
        %v5759 = vpop.f32.mrf.mxu0
        %v5760 = vadd.f32 0.0, %v5759
        %5761 = vmatmul.bf16.gmra.mxu0 %v5717
        %v5762 = vpop.f32.mrf.mxu0
        %v5763 = vadd.f32 0.0, %v5762
        %v5764 = vpop.f32.mrf.mxu0
        %v5765 = vadd.f32 0.0, %v5764
        %5766 = vmatmul.bf16.gmra.mxu0 %v5718
        %v5767 = vpop.f32.mrf.mxu0
        %v5768 = vadd.f32 0.0, %v5767
        %v5769 = vpop.f32.mrf.mxu0
        %v5770 = vadd.f32 0.0, %v5769
        %5771 = vmatmul.bf16.gmra.mxu0 %v5719
        %v5772 = vpop.f32.mrf.mxu0
        %v5773 = vadd.f32 0.0, %v5772
        %v5774 = vpop.f32.mrf.mxu0
        %v5775 = vadd.f32 0.0, %v5774
        %5776 = vmatmul.bf16.gmra.mxu0 %v5720
        %v5777 = vpop.f32.mrf.mxu0
        %v5778 = vadd.f32 0.0, %v5777
        %v5779 = vpop.f32.mrf.mxu0
        %v5780 = vadd.f32 0.0, %v5779
        %5781 = vmatmul.bf16.gmra.mxu0 %v5721
        %v5782 = vpop.f32.mrf.mxu0
        %v5783 = vadd.f32 0.0, %v5782
        %v5784 = vpop.f32.mrf.mxu0
        %v5785 = vadd.f32 0.0, %v5784
        %5786 = vmatmul.bf16.gmra.mxu0 %v5722
        %v5787 = vpop.f32.mrf.mxu0
        %v5788 = vadd.f32 0.0, %v5787
        %v5789 = vpop.f32.mrf.mxu0
        %v5790 = vadd.f32 0.0, %v5789
        %5791 = vmatmul.bf16.gmra.mxu0 %v5723
        %v5792 = vpop.f32.mrf.mxu0
        %v5793 = vadd.f32 0.0, %v5792
        %v5794 = vpop.f32.mrf.mxu0
        %v5795 = vadd.f32 0.0, %v5794
        %5796 = vdwg.mxu0
        %5813 = vrot.lane.b32.xlu0 %v5050, 32
        %v5814 = vpop.permute.xlu0 %5813
        %5815 = vrot.lane.b32.xlu0 %v5052, 32
        %v5816 = vpop.permute.xlu0 %5815
        %5817 = vrot.lane.b32.xlu0 %v5055, 32
        %v5818 = vpop.permute.xlu0 %5817
        %5819 = vrot.lane.b32.xlu0 %v5057, 32
        %v5820 = vpop.permute.xlu0 %5819
        %5821 = vrot.lane.b32.xlu0 %v5060, 32
        %v5822 = vpop.permute.xlu0 %5821
        %5823 = vrot.lane.b32.xlu0 %v5062, 32
        %v5824 = vpop.permute.xlu0 %5823
        %5825 = vrot.lane.b32.xlu0 %v5065, 32
        %v5826 = vpop.permute.xlu0 %5825
        %5827 = vrot.lane.b32.xlu0 %v5067, 32
        %v5828 = vpop.permute.xlu0 %5827
        %5829 = vrot.lane.b32.xlu0 %v5070, 32
        %v5830 = vpop.permute.xlu0 %5829
        %5831 = vrot.lane.b32.xlu0 %v5072, 32
        %v5832 = vpop.permute.xlu0 %5831
        %5833 = vrot.lane.b32.xlu0 %v5075, 32
        %v5834 = vpop.permute.xlu0 %5833
        %5835 = vrot.lane.b32.xlu0 %v5077, 32
        %v5836 = vpop.permute.xlu0 %5835
        %5837 = vrot.lane.b32.xlu0 %v5080, 32
        %v5838 = vpop.permute.xlu0 %5837
        %5839 = vrot.lane.b32.xlu0 %v5082, 32
        %v5840 = vpop.permute.xlu0 %5839
        %5841 = vrot.lane.b32.xlu0 %v5085, 32
        %v5842 = vpop.permute.xlu0 %5841
        %5843 = vrot.lane.b32.xlu0 %v5087, 32
        %v5844 = vpop.permute.xlu0 %5843
        %5877 = vrot.lane.b32.xlu0 %v5404, 64
        %v5878 = vpop.permute.xlu0 %5877
        %5879 = vrot.lane.b32.xlu0 %v5406, 64
        %v5880 = vpop.permute.xlu0 %5879
        %5881 = vrot.lane.b32.xlu0 %v5409, 64
        %v5882 = vpop.permute.xlu0 %5881
        %5883 = vrot.lane.b32.xlu0 %v5411, 64
        %v5884 = vpop.permute.xlu0 %5883
        %5885 = vrot.lane.b32.xlu0 %v5414, 64
        %v5886 = vpop.permute.xlu0 %5885
        %5887 = vrot.lane.b32.xlu0 %v5416, 64
        %v5888 = vpop.permute.xlu0 %5887
        %5889 = vrot.lane.b32.xlu0 %v5419, 64
        %v5890 = vpop.permute.xlu0 %5889
        %5891 = vrot.lane.b32.xlu0 %v5421, 64
        %v5892 = vpop.permute.xlu0 %5891
        %5893 = vrot.lane.b32.xlu0 %v5424, 64
        %v5894 = vpop.permute.xlu0 %5893
        %5895 = vrot.lane.b32.xlu0 %v5426, 64
        %v5896 = vpop.permute.xlu0 %5895
        %5897 = vrot.lane.b32.xlu0 %v5429, 64
        %v5898 = vpop.permute.xlu0 %5897
        %5899 = vrot.lane.b32.xlu0 %v5431, 64
        %v5900 = vpop.permute.xlu0 %5899
        %5901 = vrot.lane.b32.xlu0 %v5434, 64
        %v5902 = vpop.permute.xlu0 %5901
        %5903 = vrot.lane.b32.xlu0 %v5436, 64
        %v5904 = vpop.permute.xlu0 %5903
        %5905 = vrot.lane.b32.xlu0 %v5439, 64
        %v5906 = vpop.permute.xlu0 %5905
        %5907 = vrot.lane.b32.xlu0 %v5441, 64
        %v5908 = vpop.permute.xlu0 %5907
        %5941 = vrot.lane.b32.xlu0 %v5758, 96
        %v5942 = vpop.permute.xlu0 %5941
        %5943 = vrot.lane.b32.xlu0 %v5760, 96
        %v5944 = vpop.permute.xlu0 %5943
        %5945 = vrot.lane.b32.xlu0 %v5763, 96
        %v5946 = vpop.permute.xlu0 %5945
        %5947 = vrot.lane.b32.xlu0 %v5765, 96
        %v5948 = vpop.permute.xlu0 %5947
        %5949 = vrot.lane.b32.xlu0 %v5768, 96
        %v5950 = vpop.permute.xlu0 %5949
        %5951 = vrot.lane.b32.xlu0 %v5770, 96
        %v5952 = vpop.permute.xlu0 %5951
        %5953 = vrot.lane.b32.xlu0 %v5773, 96
        %v5954 = vpop.permute.xlu0 %5953
        %5955 = vrot.lane.b32.xlu0 %v5775, 96
        %v5956 = vpop.permute.xlu0 %5955
        %5957 = vrot.lane.b32.xlu0 %v5778, 96
        %v5958 = vpop.permute.xlu0 %5957
        %5959 = vrot.lane.b32.xlu0 %v5780, 96
        %v5960 = vpop.permute.xlu0 %5959
        %5961 = vrot.lane.b32.xlu0 %v5783, 96
        %v5962 = vpop.permute.xlu0 %5961
        %5963 = vrot.lane.b32.xlu0 %v5785, 96
        %v5964 = vpop.permute.xlu0 %5963
        %5965 = vrot.lane.b32.xlu0 %v5788, 96
        %v5966 = vpop.permute.xlu0 %5965
        %5967 = vrot.lane.b32.xlu0 %v5790, 96
        %v5968 = vpop.permute.xlu0 %5967
        %5969 = vrot.lane.b32.xlu0 %v5793, 96
        %v5970 = vpop.permute.xlu0 %5969
        %5971 = vrot.lane.b32.xlu0 %v5795, 96
        %v5972 = vpop.permute.xlu0 %5971
        %v5989 = vsel %vm1806, %v4696, %v5814
        %v5990 = vsel %vm1806, %v4698, %v5816
        %v5991 = vsel %vm1806, %v4701, %v5818
        %v5992 = vsel %vm1806, %v4703, %v5820
        %v5993 = vsel %vm1806, %v4706, %v5822
        %v5994 = vsel %vm1806, %v4708, %v5824
        %v5995 = vsel %vm1806, %v4711, %v5826
        %v5996 = vsel %vm1806, %v4713, %v5828
        %v5997 = vsel %vm1806, %v4716, %v5830
        %v5998 = vsel %vm1806, %v4718, %v5832
        %v5999 = vsel %vm1806, %v4721, %v5834
        %v6000 = vsel %vm1806, %v4723, %v5836
        %v6001 = vsel %vm1806, %v4726, %v5838
        %v6002 = vsel %vm1806, %v4728, %v5840
        %v6003 = vsel %vm1806, %v4731, %v5842
        %v6004 = vsel %vm1806, %v4733, %v5844
        %v6005 = vsel %vm3423, %v5989, %v5878
        %v6006 = vsel %vm3423, %v5990, %v5880
        %v6007 = vsel %vm3423, %v5991, %v5882
        %v6008 = vsel %vm3423, %v5992, %v5884
        %v6009 = vsel %vm3423, %v5993, %v5886
        %v6010 = vsel %vm3423, %v5994, %v5888
        %v6011 = vsel %vm3423, %v5995, %v5890
        %v6012 = vsel %vm3423, %v5996, %v5892
        %v6013 = vsel %vm3423, %v5997, %v5894
        %v6014 = vsel %vm3423, %v5998, %v5896
        %v6015 = vsel %vm3423, %v5999, %v5898
        %v6016 = vsel %vm3423, %v6000, %v5900
        %v6017 = vsel %vm3423, %v6001, %v5902
        %v6018 = vsel %vm3423, %v6002, %v5904
        %v6019 = vsel %vm3423, %v6003, %v5906
        %v6020 = vsel %vm3423, %v6004, %v5908
        %v6021 = vsel %vm3440, %v6005, %v5942
        %v6022 = vsel %vm3440, %v6006, %v5944
        %v6023 = vsel %vm3440, %v6007, %v5946
        %v6024 = vsel %vm3440, %v6008, %v5948
        %v6025 = vsel %vm3440, %v6009, %v5950
        %v6026 = vsel %vm3440, %v6010, %v5952
        %v6027 = vsel %vm3440, %v6011, %v5954
        %v6028 = vsel %vm3440, %v6012, %v5956
        %v6029 = vsel %vm3440, %v6013, %v5958
        %v6030 = vsel %vm3440, %v6014, %v5960
        %v6031 = vsel %vm3440, %v6015, %v5962
        %v6032 = vsel %vm3440, %v6016, %v5964
        %v6033 = vsel %vm3440, %v6017, %v5966
        %v6034 = vsel %vm3440, %v6018, %v5968
        %v6035 = vsel %vm3440, %v6019, %v5970
        %v6036 = vsel %vm3440, %v6020, %v5972
        %v6037 = vpack.c.bf16 %v6022, %v6021
        %v6038 = vpack.c.bf16 %v6024, %v6023
        %v6039 = vpack.c.bf16 %v6026, %v6025
        %v6040 = vpack.c.bf16 %v6028, %v6027
        %v6041 = vpack.c.bf16 %v6030, %v6029
        %v6042 = vpack.c.bf16 %v6032, %v6031
        %v6043 = vpack.c.bf16 %v6034, %v6033
        %v6044 = vpack.c.bf16 %v6036, %v6035
        %v6045 = vld [vmem:[#allocation11] sm:$0xf]
        %v6046 = vld [vmem:[#allocation11 + $0x4] sm:$0xf]
        %v6047 = vld [vmem:[#allocation11 + $0x8] sm:$0xf]
        %v6048 = vld [vmem:[#allocation11 + $0xc] sm:$0xf]
        %v6049 = vld [vmem:[#allocation11 + $0x10] sm:$0xf]
        %v6050 = vld [vmem:[#allocation11 + $0x14] sm:$0xf]
        %v6051 = vld [vmem:[#allocation11 + $0x18] sm:$0xf]
        %v6052 = vld [vmem:[#allocation11 + $0x1c] sm:$0xf]
        %v6053 = vld [vmem:[#allocation11 + $0x20] sm:$0xf]
        %v6054 = vld [vmem:[#allocation11 + $0x24] sm:$0xf]
        %v6055 = vld [vmem:[#allocation11 + $0x28] sm:$0xf]
        %v6056 = vld [vmem:[#allocation11 + $0x2c] sm:$0xf]
        %v6057 = vld [vmem:[#allocation11 + $0x30] sm:$0xf]
        %v6058 = vld [vmem:[#allocation11 + $0x34] sm:$0xf]
        %v6059 = vld [vmem:[#allocation11 + $0x38] sm:$0xf]
        %v6060 = vld [vmem:[#allocation11 + $0x3c] sm:$0xf]
        %v6061 = vld [vmem:[%s13] sm:$0x1]
        %v6063 = vperm.slane %v6061, 0
        %v6081 = vunpack.c.l.b16 %v6045
        %v6082 = vunpack.c.l.b16 %v6046
        %v6083 = vunpack.c.l.b16 %v6047
        %v6084 = vunpack.c.l.b16 %v6048
        %v6085 = vunpack.c.l.b16 %v6049
        %v6086 = vunpack.c.l.b16 %v6050
        %v6087 = vunpack.c.l.b16 %v6051
        %v6088 = vunpack.c.l.b16 %v6052
        %v6089 = vunpack.c.l.b16 %v6053
        %v6090 = vunpack.c.l.b16 %v6054
        %v6091 = vunpack.c.l.b16 %v6055
        %v6092 = vunpack.c.l.b16 %v6056
        %v6093 = vunpack.c.l.b16 %v6057
        %v6094 = vunpack.c.l.b16 %v6058
        %v6095 = vunpack.c.l.b16 %v6059
        %v6096 = vunpack.c.l.b16 %v6060
        %v6097 = vpack.c.b16 %v6082, %v6081
        %v6098 = vpack.c.b16 %v6084, %v6083
        %v6099 = vpack.c.b16 %v6086, %v6085
        %v6100 = vpack.c.b16 %v6088, %v6087
        %v6101 = vpack.c.b16 %v6090, %v6089
        %v6102 = vpack.c.b16 %v6092, %v6091
        %v6103 = vpack.c.b16 %v6094, %v6093
        %v6104 = vpack.c.b16 %v6096, %v6095
        %6113 = vmatpush.bf16.msra.mxu0 %v6104
        %6114 = vmatpush.bf16.msra.mxu0 %v6103
        %6115 = vmatpush.bf16.msra.mxu0 %v6102
        %6116 = vmatpush.bf16.msra.mxu0 %v6101
        %6117 = vmatpush.bf16.msra.mxu0 %v6100
        %6118 = vmatpush.bf16.msra.mxu0 %v6099
        %6119 = vmatpush.bf16.msra.mxu0 %v6098
        %6120 = vmatpush.bf16.msra.mxu0 %v6097
        %6121 = vmatmul.bf16.gmra.mxu0 %v6037
        %v6122 = vpop.f32.mrf.mxu0
        %v6123 = vadd.f32 %v6063, %v6122
        %v6124 = vpop.f32.mrf.mxu0
        %v6125 = vadd.f32 %v6063, %v6124
        %6126 = vmatmul.bf16.gmra.mxu0 %v6038
        %v6127 = vpop.f32.mrf.mxu0
        %v6128 = vadd.f32 %v6063, %v6127
        %v6129 = vpop.f32.mrf.mxu0
        %v6130 = vadd.f32 %v6063, %v6129
        %6131 = vmatmul.bf16.gmra.mxu0 %v6039
        %v6132 = vpop.f32.mrf.mxu0
        %v6133 = vadd.f32 %v6063, %v6132
        %v6134 = vpop.f32.mrf.mxu0
        %v6135 = vadd.f32 %v6063, %v6134
        %6136 = vmatmul.bf16.gmra.mxu0 %v6040
        %v6137 = vpop.f32.mrf.mxu0
        %v6138 = vadd.f32 %v6063, %v6137
        %v6139 = vpop.f32.mrf.mxu0
        %v6140 = vadd.f32 %v6063, %v6139
        %6141 = vmatmul.bf16.gmra.mxu0 %v6041
        %v6142 = vpop.f32.mrf.mxu0
        %v6143 = vadd.f32 %v6063, %v6142
        %v6144 = vpop.f32.mrf.mxu0
        %v6145 = vadd.f32 %v6063, %v6144
        %6146 = vmatmul.bf16.gmra.mxu0 %v6042
        %v6147 = vpop.f32.mrf.mxu0
        %v6148 = vadd.f32 %v6063, %v6147
        %v6149 = vpop.f32.mrf.mxu0
        %v6150 = vadd.f32 %v6063, %v6149
        %6151 = vmatmul.bf16.gmra.mxu0 %v6043
        %v6152 = vpop.f32.mrf.mxu0
        %v6153 = vadd.f32 %v6063, %v6152
        %v6154 = vpop.f32.mrf.mxu0
        %v6155 = vadd.f32 %v6063, %v6154
        %6156 = vmatmul.bf16.gmra.mxu0 %v6044
        %v6157 = vpop.f32.mrf.mxu0
        %v6158 = vadd.f32 %v6063, %v6157
        %v6159 = vpop.f32.mrf.mxu0
        %v6160 = vadd.f32 %v6063, %v6159
        %6161 = vdwg.mxu0
        %v6162 = vadd.f32 %v6123, %v3582
        %v6163 = vadd.f32 %v6125, %v3583
        %v6164 = vadd.f32 %v6128, %v3584
        %v6165 = vadd.f32 %v6130, %v3585
        %v6166 = vadd.f32 %v6133, %v3586
        %v6167 = vadd.f32 %v6135, %v3587
        %v6168 = vadd.f32 %v6138, %v3588
        %v6169 = vadd.f32 %v6140, %v3589
        %v6170 = vadd.f32 %v6143, %v3590
        %v6171 = vadd.f32 %v6145, %v3591
        %v6172 = vadd.f32 %v6148, %v3592
        %v6173 = vadd.f32 %v6150, %v3593
        %v6174 = vadd.f32 %v6153, %v3594
        %v6175 = vadd.f32 %v6155, %v3595
        %v6176 = vadd.f32 %v6158, %v3596
        %v6177 = vadd.f32 %v6160, %v3597
        %v6178 = vpack.c.bf16 %v6163, %v6162
        %v6179 = vpack.c.bf16 %v6165, %v6164
        %v6180 = vpack.c.bf16 %v6167, %v6166
        %v6181 = vpack.c.bf16 %v6169, %v6168
        %v6182 = vpack.c.bf16 %v6171, %v6170
        %v6183 = vpack.c.bf16 %v6173, %v6172
        %v6184 = vpack.c.bf16 %v6175, %v6174
        %v6185 = vpack.c.bf16 %v6177, %v6176
        %v6186 = vld [vmem:[#allocation13] sm:$0xf]
        %v6187 = vld [vmem:[#allocation13 + $0x4] sm:$0xf]
        %v6188 = vld [vmem:[#allocation13 + $0x8] sm:$0xf]
        %v6189 = vld [vmem:[#allocation13 + $0xc] sm:$0xf]
        %v6190 = vld [vmem:[#allocation13 + $0x10] sm:$0xf]
        %v6191 = vld [vmem:[#allocation13 + $0x14] sm:$0xf]
        %v6192 = vld [vmem:[#allocation13 + $0x18] sm:$0xf]
        %v6193 = vld [vmem:[#allocation13 + $0x1c] sm:$0xf]
        %v6194 = vld [vmem:[#allocation13 + $0x20] sm:$0xf]
        %v6195 = vld [vmem:[#allocation13 + $0x24] sm:$0xf]
        %v6196 = vld [vmem:[#allocation13 + $0x28] sm:$0xf]
        %v6197 = vld [vmem:[#allocation13 + $0x2c] sm:$0xf]
        %v6198 = vld [vmem:[#allocation13 + $0x30] sm:$0xf]
        %v6199 = vld [vmem:[#allocation13 + $0x34] sm:$0xf]
        %v6200 = vld [vmem:[#allocation13 + $0x38] sm:$0xf]
        %v6201 = vld [vmem:[#allocation13 + $0x3c] sm:$0xf]
        %v6218 = vunpack.c.l.b16 %v6186
        %v6219 = vunpack.c.l.b16 %v6187
        %v6220 = vunpack.c.l.b16 %v6188
        %v6221 = vunpack.c.l.b16 %v6189
        %v6222 = vunpack.c.l.b16 %v6190
        %v6223 = vunpack.c.l.b16 %v6191
        %v6224 = vunpack.c.l.b16 %v6192
        %v6225 = vunpack.c.l.b16 %v6193
        %v6226 = vunpack.c.l.b16 %v6194
        %v6227 = vunpack.c.l.b16 %v6195
        %v6228 = vunpack.c.l.b16 %v6196
        %v6229 = vunpack.c.l.b16 %v6197
        %v6230 = vunpack.c.l.b16 %v6198
        %v6231 = vunpack.c.l.b16 %v6199
        %v6232 = vunpack.c.l.b16 %v6200
        %v6233 = vunpack.c.l.b16 %v6201
        %v6234 = vpack.c.b16 %v6219, %v6218
        %v6235 = vpack.c.b16 %v6221, %v6220
        %v6236 = vpack.c.b16 %v6223, %v6222
        %v6237 = vpack.c.b16 %v6225, %v6224
        %v6238 = vpack.c.b16 %v6227, %v6226
        %v6239 = vpack.c.b16 %v6229, %v6228
        %v6240 = vpack.c.b16 %v6231, %v6230
        %v6241 = vpack.c.b16 %v6233, %v6232
        %6250 = vmatpush.bf16.msra.mxu0 %v6241
        %6251 = vmatpush.bf16.msra.mxu0 %v6240
        %6252 = vmatpush.bf16.msra.mxu0 %v6239
        %6253 = vmatpush.bf16.msra.mxu0 %v6238
        %6254 = vmatpush.bf16.msra.mxu0 %v6237
        %6255 = vmatpush.bf16.msra.mxu0 %v6236
        %6256 = vmatpush.bf16.msra.mxu0 %v6235
        %6257 = vmatpush.bf16.msra.mxu0 %v6234
        %6258 = vmatmul.bf16.gmra.mxu0 %v6178
        %v6259 = vpop.f32.mrf.mxu0
        %v6260 = vadd.f32 0.0, %v6259
        %v6261 = vpop.f32.mrf.mxu0
        %v6262 = vadd.f32 0.0, %v6261
        %6263 = vmatmul.bf16.gmra.mxu0 %v6179
        %v6264 = vpop.f32.mrf.mxu0
        %v6265 = vadd.f32 0.0, %v6264
        %v6266 = vpop.f32.mrf.mxu0
        %v6267 = vadd.f32 0.0, %v6266
        %6268 = vmatmul.bf16.gmra.mxu0 %v6180
        %v6269 = vpop.f32.mrf.mxu0
        %v6270 = vadd.f32 0.0, %v6269
        %v6271 = vpop.f32.mrf.mxu0
        %v6272 = vadd.f32 0.0, %v6271
        %6273 = vmatmul.bf16.gmra.mxu0 %v6181
        %v6274 = vpop.f32.mrf.mxu0
        %v6275 = vadd.f32 0.0, %v6274
        %v6276 = vpop.f32.mrf.mxu0
        %v6277 = vadd.f32 0.0, %v6276
        %6278 = vmatmul.bf16.gmra.mxu0 %v6182
        %v6279 = vpop.f32.mrf.mxu0
        %v6280 = vadd.f32 0.0, %v6279
        %v6281 = vpop.f32.mrf.mxu0
        %v6282 = vadd.f32 0.0, %v6281
        %6283 = vmatmul.bf16.gmra.mxu0 %v6183
        %v6284 = vpop.f32.mrf.mxu0
        %v6285 = vadd.f32 0.0, %v6284
        %v6286 = vpop.f32.mrf.mxu0
        %v6287 = vadd.f32 0.0, %v6286
        %6288 = vmatmul.bf16.gmra.mxu0 %v6184
        %v6289 = vpop.f32.mrf.mxu0
        %v6290 = vadd.f32 0.0, %v6289
        %v6291 = vpop.f32.mrf.mxu0
        %v6292 = vadd.f32 0.0, %v6291
        %6293 = vmatmul.bf16.gmra.mxu0 %v6185
        %v6294 = vpop.f32.mrf.mxu0
        %v6295 = vadd.f32 0.0, %v6294
        %v6296 = vpop.f32.mrf.mxu0
        %v6297 = vadd.f32 0.0, %v6296
        %6298 = vdwg.mxu0
        %v6299 = vpack.c.bf16 %v981, %v980
        %v6300 = vpack.c.bf16 %v983, %v982
        %v6301 = vpack.c.bf16 %v985, %v984
        %v6302 = vpack.c.bf16 %v987, %v986
        %v6303 = vpack.c.bf16 %v989, %v988
        %v6304 = vpack.c.bf16 %v991, %v990
        %v6305 = vpack.c.bf16 %v993, %v992
        %v6306 = vpack.c.bf16 %v995, %v994
        %v6307 = vld [vmem:[#allocation14] sm:$0xff]
        %v6308 = vld [vmem:[#allocation14 + $0x8] sm:$0xff]
        %v6309 = vld [vmem:[#allocation14 + $0x10] sm:$0xff]
        %v6310 = vld [vmem:[#allocation14 + $0x18] sm:$0xff]
        %v6311 = vld [vmem:[#allocation14 + $0x20] sm:$0xff]
        %v6312 = vld [vmem:[#allocation14 + $0x28] sm:$0xff]
        %v6313 = vld [vmem:[#allocation14 + $0x30] sm:$0xff]
        %v6314 = vld [vmem:[#allocation14 + $0x38] sm:$0xff]
        %v6323 = vunpack.c.l.b16 %v6307
        %v6324 = vunpack.c.h.b16 %v6307
        %v6325 = vunpack.c.l.b16 %v6308
        %v6326 = vunpack.c.h.b16 %v6308
        %v6327 = vunpack.c.l.b16 %v6309
        %v6328 = vunpack.c.h.b16 %v6309
        %v6329 = vunpack.c.l.b16 %v6310
        %v6330 = vunpack.c.h.b16 %v6310
        %v6331 = vunpack.c.l.b16 %v6311
        %v6332 = vunpack.c.h.b16 %v6311
        %v6333 = vunpack.c.l.b16 %v6312
        %v6334 = vunpack.c.h.b16 %v6312
        %v6335 = vunpack.c.l.b16 %v6313
        %v6336 = vunpack.c.h.b16 %v6313
        %v6337 = vunpack.c.l.b16 %v6314
        %v6338 = vunpack.c.h.b16 %v6314
        %v6339 = vpack.c.b16 %v6325, %v6323
        %v6340 = vpack.c.b16 %v6326, %v6324
        %v6341 = vpack.c.b16 %v6329, %v6327
        %v6342 = vpack.c.b16 %v6330, %v6328
        %v6343 = vpack.c.b16 %v6333, %v6331
        %v6344 = vpack.c.b16 %v6334, %v6332
        %v6345 = vpack.c.b16 %v6337, %v6335
        %v6346 = vpack.c.b16 %v6338, %v6336
        %v6356 = vsel %vm3423, %v6299, 0
        %v6359 = vsel %vm3423, %v6300, 0
        %v6362 = vsel %vm3423, %v6301, 0
        %v6365 = vsel %vm3423, %v6302, 0
        %v6368 = vsel %vm3423, %v6303, 0
        %v6371 = vsel %vm3423, %v6304, 0
        %v6374 = vsel %vm3423, %v6305, 0
        %v6377 = vsel %vm3423, %v6306, 0
        %6379 = vmatpush.bf16.msra.mxu0 0
        %6380 = vmatpush.bf16.msra.mxu0 0
        %6381 = vmatpush.bf16.msra.mxu0 0
        %6382 = vmatpush.bf16.msra.mxu0 0
        %6383 = vmatpush.bf16.msra.mxu0 %v6345
        %6384 = vmatpush.bf16.msra.mxu0 %v6343
        %6385 = vmatpush.bf16.msra.mxu0 %v6341
        %6386 = vmatpush.bf16.msra.mxu0 %v6339
        %6387 = vmatmul.bf16.gmra.mxu0 %v6356
        %v6388 = vpop.f32.mrf.mxu0
        %v6389 = vadd.f32 0.0, %v6388
        %v6390 = vpop.f32.mrf.mxu0
        %v6391 = vadd.f32 0.0, %v6390
        %6392 = vmatmul.bf16.gmra.mxu0 %v6359
        %v6393 = vpop.f32.mrf.mxu0
        %v6394 = vadd.f32 0.0, %v6393
        %v6395 = vpop.f32.mrf.mxu0
        %v6396 = vadd.f32 0.0, %v6395
        %6397 = vmatmul.bf16.gmra.mxu0 %v6362
        %v6398 = vpop.f32.mrf.mxu0
        %v6399 = vadd.f32 0.0, %v6398
        %v6400 = vpop.f32.mrf.mxu0
        %v6401 = vadd.f32 0.0, %v6400
        %6402 = vmatmul.bf16.gmra.mxu0 %v6365
        %v6403 = vpop.f32.mrf.mxu0
        %v6404 = vadd.f32 0.0, %v6403
        %v6405 = vpop.f32.mrf.mxu0
        %v6406 = vadd.f32 0.0, %v6405
        %6407 = vmatmul.bf16.gmra.mxu0 %v6368
        %v6408 = vpop.f32.mrf.mxu0
        %v6409 = vadd.f32 0.0, %v6408
        %v6410 = vpop.f32.mrf.mxu0
        %v6411 = vadd.f32 0.0, %v6410
        %6412 = vmatmul.bf16.gmra.mxu0 %v6371
        %v6413 = vpop.f32.mrf.mxu0
        %v6414 = vadd.f32 0.0, %v6413
        %v6415 = vpop.f32.mrf.mxu0
        %v6416 = vadd.f32 0.0, %v6415
        %6417 = vmatmul.bf16.gmra.mxu0 %v6374
        %v6418 = vpop.f32.mrf.mxu0
        %v6419 = vadd.f32 0.0, %v6418
        %v6420 = vpop.f32.mrf.mxu0
        %v6421 = vadd.f32 0.0, %v6420
        %6422 = vmatmul.bf16.gmra.mxu0 %v6377
        %v6423 = vpop.f32.mrf.mxu0
        %v6424 = vadd.f32 0.0, %v6423
        %v6425 = vpop.f32.mrf.mxu0
        %v6426 = vadd.f32 0.0, %v6425
        %6427 = vdwg.mxu0
        %6428 = vmatpush.bf16.msra.mxu0 0
        %6429 = vmatpush.bf16.msra.mxu0 0
        %6430 = vmatpush.bf16.msra.mxu0 0
        %6431 = vmatpush.bf16.msra.mxu0 0
        %6432 = vmatpush.bf16.msra.mxu0 %v6346
        %6433 = vmatpush.bf16.msra.mxu0 %v6344
        %6434 = vmatpush.bf16.msra.mxu0 %v6342
        %6435 = vmatpush.bf16.msra.mxu0 %v6340
        %6436 = vmatmul.bf16.gmra.mxu0 %v6356
        %v6437 = vpop.f32.mrf.mxu0
        %v6438 = vadd.f32 0.0, %v6437
        %v6439 = vpop.f32.mrf.mxu0
        %v6440 = vadd.f32 0.0, %v6439
        %6441 = vmatmul.bf16.gmra.mxu0 %v6359
        %v6442 = vpop.f32.mrf.mxu0
        %v6443 = vadd.f32 0.0, %v6442
        %v6444 = vpop.f32.mrf.mxu0
        %v6445 = vadd.f32 0.0, %v6444
        %6446 = vmatmul.bf16.gmra.mxu0 %v6362
        %v6447 = vpop.f32.mrf.mxu0
        %v6448 = vadd.f32 0.0, %v6447
        %v6449 = vpop.f32.mrf.mxu0
        %v6450 = vadd.f32 0.0, %v6449
        %6451 = vmatmul.bf16.gmra.mxu0 %v6365
        %v6452 = vpop.f32.mrf.mxu0
        %v6453 = vadd.f32 0.0, %v6452
        %v6454 = vpop.f32.mrf.mxu0
        %v6455 = vadd.f32 0.0, %v6454
        %6456 = vmatmul.bf16.gmra.mxu0 %v6368
        %v6457 = vpop.f32.mrf.mxu0
        %v6458 = vadd.f32 0.0, %v6457
        %v6459 = vpop.f32.mrf.mxu0
        %v6460 = vadd.f32 0.0, %v6459
        %6461 = vmatmul.bf16.gmra.mxu0 %v6371
        %v6462 = vpop.f32.mrf.mxu0
        %v6463 = vadd.f32 0.0, %v6462
        %v6464 = vpop.f32.mrf.mxu0
        %v6465 = vadd.f32 0.0, %v6464
        %6466 = vmatmul.bf16.gmra.mxu0 %v6374
        %v6467 = vpop.f32.mrf.mxu0
        %v6468 = vadd.f32 0.0, %v6467
        %v6469 = vpop.f32.mrf.mxu0
        %v6470 = vadd.f32 0.0, %v6469
        %6471 = vmatmul.bf16.gmra.mxu0 %v6377
        %v6472 = vpop.f32.mrf.mxu0
        %v6473 = vadd.f32 0.0, %v6472
        %v6474 = vpop.f32.mrf.mxu0
        %v6475 = vadd.f32 0.0, %v6474
        %6476 = vdwg.mxu0
        %v6477 = vpack.c.bf16 %v6260, %v6260
        %v6478 = vpack.c.bf16 %v6262, %v6262
        %v6479 = vpack.c.bf16 %v6265, %v6265
        %v6480 = vpack.c.bf16 %v6267, %v6267
        %v6481 = vpack.c.bf16 %v6270, %v6270
        %v6482 = vpack.c.bf16 %v6272, %v6272
        %v6483 = vpack.c.bf16 %v6275, %v6275
        %v6484 = vpack.c.bf16 %v6277, %v6277
        %v6485 = vpack.c.bf16 %v6280, %v6280
        %v6486 = vpack.c.bf16 %v6282, %v6282
        %v6487 = vpack.c.bf16 %v6285, %v6285
        %v6488 = vpack.c.bf16 %v6287, %v6287
        %v6489 = vpack.c.bf16 %v6290, %v6290
        %v6490 = vpack.c.bf16 %v6292, %v6292
        %v6491 = vpack.c.bf16 %v6295, %v6295
        %v6492 = vpack.c.bf16 %v6297, %v6297
        %v6493 = vpack.c.bf16 %v6389, %v6389
        %v6494 = vpack.c.bf16 %v6391, %v6391
        %v6495 = vpack.c.bf16 %v6394, %v6394
        %v6496 = vpack.c.bf16 %v6396, %v6396
        %v6497 = vpack.c.bf16 %v6399, %v6399
        %v6498 = vpack.c.bf16 %v6401, %v6401
        %v6499 = vpack.c.bf16 %v6404, %v6404
        %v6500 = vpack.c.bf16 %v6406, %v6406
        %v6501 = vpack.c.bf16 %v6409, %v6409
        %v6502 = vpack.c.bf16 %v6411, %v6411
        %v6503 = vpack.c.bf16 %v6414, %v6414
        %v6504 = vpack.c.bf16 %v6416, %v6416
        %v6505 = vpack.c.bf16 %v6419, %v6419
        %v6506 = vpack.c.bf16 %v6421, %v6421
        %v6507 = vpack.c.bf16 %v6424, %v6424
        %v6508 = vpack.c.bf16 %v6426, %v6426
        %v6509 = vpack.c.bf16 %v6438, %v6438
        %v6510 = vpack.c.bf16 %v6440, %v6440
        %v6511 = vpack.c.bf16 %v6443, %v6443
        %v6512 = vpack.c.bf16 %v6445, %v6445
        %v6513 = vpack.c.bf16 %v6448, %v6448
        %v6514 = vpack.c.bf16 %v6450, %v6450
        %v6515 = vpack.c.bf16 %v6453, %v6453
        %v6516 = vpack.c.bf16 %v6455, %v6455
        %v6517 = vpack.c.bf16 %v6458, %v6458
        %v6518 = vpack.c.bf16 %v6460, %v6460
        %v6519 = vpack.c.bf16 %v6463, %v6463
        %v6520 = vpack.c.bf16 %v6465, %v6465
        %v6521 = vpack.c.bf16 %v6468, %v6468
        %v6522 = vpack.c.bf16 %v6470, %v6470
        %v6523 = vpack.c.bf16 %v6473, %v6473
        %v6524 = vpack.c.bf16 %v6475, %v6475
        %v6541 = vunpack.c.l.b16 %v6477
        %v6542 = vunpack.c.l.b16 %v6478
        %v6543 = vunpack.c.l.b16 %v6479
        %v6544 = vunpack.c.l.b16 %v6480
        %v6545 = vunpack.c.l.b16 %v6481
        %v6546 = vunpack.c.l.b16 %v6482
        %v6547 = vunpack.c.l.b16 %v6483
        %v6548 = vunpack.c.l.b16 %v6484
        %v6549 = vunpack.c.l.b16 %v6485
        %v6550 = vunpack.c.l.b16 %v6486
        %v6551 = vunpack.c.l.b16 %v6487
        %v6552 = vunpack.c.l.b16 %v6488
        %v6553 = vunpack.c.l.b16 %v6489
        %v6554 = vunpack.c.l.b16 %v6490
        %v6555 = vunpack.c.l.b16 %v6491
        %v6556 = vunpack.c.l.b16 %v6492
        %v6557 = vpack.c.b16 %v6542, %v6541
        %v6558 = vpack.c.b16 %v6544, %v6543
        %v6559 = vpack.c.b16 %v6546, %v6545
        %v6560 = vpack.c.b16 %v6548, %v6547
        %v6561 = vpack.c.b16 %v6550, %v6549
        %v6562 = vpack.c.b16 %v6552, %v6551
        %v6563 = vpack.c.b16 %v6554, %v6553
        %v6564 = vpack.c.b16 %v6556, %v6555
        %v6581 = vunpack.c.l.b16 %v6493
        %v6582 = vunpack.c.l.b16 %v6494
        %v6583 = vunpack.c.l.b16 %v6495
        %v6584 = vunpack.c.l.b16 %v6496
        %v6585 = vunpack.c.l.b16 %v6497
        %v6586 = vunpack.c.l.b16 %v6498
        %v6587 = vunpack.c.l.b16 %v6499
        %v6588 = vunpack.c.l.b16 %v6500
        %v6589 = vunpack.c.l.b16 %v6501
        %v6590 = vunpack.c.l.b16 %v6502
        %v6591 = vunpack.c.l.b16 %v6503
        %v6592 = vunpack.c.l.b16 %v6504
        %v6593 = vunpack.c.l.b16 %v6505
        %v6594 = vunpack.c.l.b16 %v6506
        %v6595 = vunpack.c.l.b16 %v6507
        %v6596 = vunpack.c.l.b16 %v6508
        %v6597 = vpack.c.b16 %v6582, %v6581
        %v6598 = vpack.c.b16 %v6584, %v6583
        %v6599 = vpack.c.b16 %v6586, %v6585
        %v6600 = vpack.c.b16 %v6588, %v6587
        %v6601 = vpack.c.b16 %v6590, %v6589
        %v6602 = vpack.c.b16 %v6592, %v6591
        %v6603 = vpack.c.b16 %v6594, %v6593
        %v6604 = vpack.c.b16 %v6596, %v6595
        %v6606 = vsel %vm1806, %v6557, 0
        %v6609 = vsel %vm1806, %v6558, 0
        %v6612 = vsel %vm1806, %v6559, 0
        %v6615 = vsel %vm1806, %v6560, 0
        %v6618 = vsel %vm1806, %v6561, 0
        %v6621 = vsel %vm1806, %v6562, 0
        %v6624 = vsel %vm1806, %v6563, 0
        %v6627 = vsel %vm1806, %v6564, 0
        %v6630 = vsel %vm1806, %v6597, 0
        %v6633 = vsel %vm1806, %v6598, 0
        %v6636 = vsel %vm1806, %v6599, 0
        %v6639 = vsel %vm1806, %v6600, 0
        %v6642 = vsel %vm1806, %v6601, 0
        %v6645 = vsel %vm1806, %v6602, 0
        %v6648 = vsel %vm1806, %v6603, 0
        %v6651 = vsel %vm1806, %v6604, 0
        %6653 = vmatpush.bf16.xpose.msra.mxu0 %v6651
        %6654 = vmatpush.bf16.xpose.msra.mxu0 %v6648
        %6655 = vmatpush.bf16.xpose.msra.mxu0 %v6645
        %6656 = vmatpush.bf16.xpose.msra.mxu0 %v6642
        %6657 = vmatpush.bf16.xpose.msra.mxu0 %v6639
        %6658 = vmatpush.bf16.xpose.msra.mxu0 %v6636
        %6659 = vmatpush.bf16.xpose.msra.mxu0 %v6633
        %6660 = vmatpush.bf16.xpose.msra.mxu0 %v6630
        %6661 = vmatmul.bf16.gmra.mxu0 %v6606
        %v6662 = vpop.f32.mrf.mxu0
        %v6663 = vadd.f32 %v4260, %v6662
        %v6664 = vpop.f32.mrf.mxu0
        %v6665 = vadd.f32 %v4260, %v6664
        %6666 = vmatmul.bf16.gmra.mxu0 %v6609
        %v6667 = vpop.f32.mrf.mxu0
        %v6668 = vadd.f32 %v4260, %v6667
        %v6669 = vpop.f32.mrf.mxu0
        %v6670 = vadd.f32 %v4260, %v6669
        %6671 = vmatmul.bf16.gmra.mxu0 %v6612
        %v6672 = vpop.f32.mrf.mxu0
        %v6673 = vadd.f32 %v4260, %v6672
        %v6674 = vpop.f32.mrf.mxu0
        %v6675 = vadd.f32 %v4260, %v6674
        %6676 = vmatmul.bf16.gmra.mxu0 %v6615
        %v6677 = vpop.f32.mrf.mxu0
        %v6678 = vadd.f32 %v4260, %v6677
        %v6679 = vpop.f32.mrf.mxu0
        %v6680 = vadd.f32 %v4260, %v6679
        %6681 = vmatmul.bf16.gmra.mxu0 %v6618
        %v6682 = vpop.f32.mrf.mxu0
        %v6683 = vadd.f32 %v4260, %v6682
        %v6684 = vpop.f32.mrf.mxu0
        %v6685 = vadd.f32 %v4260, %v6684
        %6686 = vmatmul.bf16.gmra.mxu0 %v6621
        %v6687 = vpop.f32.mrf.mxu0
        %v6688 = vadd.f32 %v4260, %v6687
        %v6689 = vpop.f32.mrf.mxu0
        %v6690 = vadd.f32 %v4260, %v6689
        %6691 = vmatmul.bf16.gmra.mxu0 %v6624
        %v6692 = vpop.f32.mrf.mxu0
        %v6693 = vadd.f32 %v4260, %v6692
        %v6694 = vpop.f32.mrf.mxu0
        %v6695 = vadd.f32 %v4260, %v6694
        %6696 = vmatmul.bf16.gmra.mxu0 %v6627
        %v6697 = vpop.f32.mrf.mxu0
        %v6698 = vadd.f32 %v4260, %v6697
        %v6699 = vpop.f32.mrf.mxu0
        %v6700 = vadd.f32 %v4260, %v6699
        %6701 = vdwg.mxu0
        %6702 = vmax.xlane.f32.xlu0 %v6663
        %v6703 = vpop.xlane.xlu0 %6702
        %6704 = vmax.xlane.f32.xlu0 %v6665
        %v6705 = vpop.xlane.xlu0 %6704
        %6706 = vmax.xlane.f32.xlu0 %v6668
        %v6707 = vpop.xlane.xlu0 %6706
        %6708 = vmax.xlane.f32.xlu0 %v6670
        %v6709 = vpop.xlane.xlu0 %6708
        %6710 = vmax.xlane.f32.xlu0 %v6673
        %v6711 = vpop.xlane.xlu0 %6710
        %6712 = vmax.xlane.f32.xlu0 %v6675
        %v6713 = vpop.xlane.xlu0 %6712
        %6714 = vmax.xlane.f32.xlu0 %v6678
        %v6715 = vpop.xlane.xlu0 %6714
        %6716 = vmax.xlane.f32.xlu0 %v6680
        %v6717 = vpop.xlane.xlu0 %6716
        %6718 = vmax.xlane.f32.xlu0 %v6683
        %v6719 = vpop.xlane.xlu0 %6718
        %6720 = vmax.xlane.f32.xlu0 %v6685
        %v6721 = vpop.xlane.xlu0 %6720
        %6722 = vmax.xlane.f32.xlu0 %v6688
        %v6723 = vpop.xlane.xlu0 %6722
        %6724 = vmax.xlane.f32.xlu0 %v6690
        %v6725 = vpop.xlane.xlu0 %6724
        %6726 = vmax.xlane.f32.xlu0 %v6693
        %v6727 = vpop.xlane.xlu0 %6726
        %6728 = vmax.xlane.f32.xlu0 %v6695
        %v6729 = vpop.xlane.xlu0 %6728
        %6730 = vmax.xlane.f32.xlu0 %v6698
        %v6731 = vpop.xlane.xlu0 %6730
        %6732 = vmax.xlane.f32.xlu0 %v6700
        %v6733 = vpop.xlane.xlu0 %6732
        %v6734 = vsub.f32 %v6663, %v6703
        %v6735 = vsub.f32 %v6665, %v6705
        %v6736 = vsub.f32 %v6668, %v6707
        %v6737 = vsub.f32 %v6670, %v6709
        %v6738 = vsub.f32 %v6673, %v6711
        %v6739 = vsub.f32 %v6675, %v6713
        %v6740 = vsub.f32 %v6678, %v6715
        %v6741 = vsub.f32 %v6680, %v6717
        %v6742 = vsub.f32 %v6683, %v6719
        %v6743 = vsub.f32 %v6685, %v6721
        %v6744 = vsub.f32 %v6688, %v6723
        %v6745 = vsub.f32 %v6690, %v6725
        %v6746 = vsub.f32 %v6693, %v6727
        %v6747 = vsub.f32 %v6695, %v6729
        %v6748 = vsub.f32 %v6698, %v6731
        %v6749 = vsub.f32 %v6700, %v6733
        %v6750 = vmul.f32 %v6734, 1.442695
        %v6751 = vpow.pop %v6750
        %v6752 = vmul.f32 %v6735, 1.442695
        %v6753 = vpow.pop %v6752
        %v6754 = vmul.f32 %v6736, 1.442695
        %v6755 = vpow.pop %v6754
        %v6756 = vmul.f32 %v6737, 1.442695
        %v6757 = vpow.pop %v6756
        %v6758 = vmul.f32 %v6738, 1.442695
        %v6759 = vpow.pop %v6758
        %v6760 = vmul.f32 %v6739, 1.442695
        %v6761 = vpow.pop %v6760
        %v6762 = vmul.f32 %v6740, 1.442695
        %v6763 = vpow.pop %v6762
        %v6764 = vmul.f32 %v6741, 1.442695
        %v6765 = vpow.pop %v6764
        %v6766 = vmul.f32 %v6742, 1.442695
        %v6767 = vpow.pop %v6766
        %v6768 = vmul.f32 %v6743, 1.442695
        %v6769 = vpow.pop %v6768
        %v6770 = vmul.f32 %v6744, 1.442695
        %v6771 = vpow.pop %v6770
        %v6772 = vmul.f32 %v6745, 1.442695
        %v6773 = vpow.pop %v6772
        %v6774 = vmul.f32 %v6746, 1.442695
        %v6775 = vpow.pop %v6774
        %v6776 = vmul.f32 %v6747, 1.442695
        %v6777 = vpow.pop %v6776
        %v6778 = vmul.f32 %v6748, 1.442695
        %v6779 = vpow.pop %v6778
        %v6780 = vmul.f32 %v6749, 1.442695
        %v6781 = vpow.pop %v6780
        %6782 = vadd.xlane.f32.xlu0 %v6751
        %v6783 = vpop.xlane.xlu0 %6782
        %6784 = vadd.xlane.f32.xlu0 %v6753
        %v6785 = vpop.xlane.xlu0 %6784
        %6786 = vadd.xlane.f32.xlu0 %v6755
        %v6787 = vpop.xlane.xlu0 %6786
        %6788 = vadd.xlane.f32.xlu0 %v6757
        %v6789 = vpop.xlane.xlu0 %6788
        %6790 = vadd.xlane.f32.xlu0 %v6759
        %v6791 = vpop.xlane.xlu0 %6790
        %6792 = vadd.xlane.f32.xlu0 %v6761
        %v6793 = vpop.xlane.xlu0 %6792
        %6794 = vadd.xlane.f32.xlu0 %v6763
        %v6795 = vpop.xlane.xlu0 %6794
        %6796 = vadd.xlane.f32.xlu0 %v6765
        %v6797 = vpop.xlane.xlu0 %6796
        %6798 = vadd.xlane.f32.xlu0 %v6767
        %v6799 = vpop.xlane.xlu0 %6798
        %6800 = vadd.xlane.f32.xlu0 %v6769
        %v6801 = vpop.xlane.xlu0 %6800
        %6802 = vadd.xlane.f32.xlu0 %v6771
        %v6803 = vpop.xlane.xlu0 %6802
        %6804 = vadd.xlane.f32.xlu0 %v6773
        %v6805 = vpop.xlane.xlu0 %6804
        %6806 = vadd.xlane.f32.xlu0 %v6775
        %v6807 = vpop.xlane.xlu0 %6806
        %6808 = vadd.xlane.f32.xlu0 %v6777
        %v6809 = vpop.xlane.xlu0 %6808
        %6810 = vadd.xlane.f32.xlu0 %v6779
        %v6811 = vpop.xlane.xlu0 %6810
        %6812 = vadd.xlane.f32.xlu0 %v6781
        %v6813 = vpop.xlane.xlu0 %6812
        %v6814 = vrcp.pop %v6783
        %v6815 = vrcp.pop %v6785
        %v6816 = vrcp.pop %v6787
        %v6817 = vrcp.pop %v6789
        %v6818 = vrcp.pop %v6791
        %v6819 = vrcp.pop %v6793
        %v6820 = vrcp.pop %v6795
        %v6821 = vrcp.pop %v6797
        %v6822 = vrcp.pop %v6799
        %v6823 = vrcp.pop %v6801
        %v6824 = vrcp.pop %v6803
        %v6825 = vrcp.pop %v6805
        %v6826 = vrcp.pop %v6807
        %v6827 = vrcp.pop %v6809
        %v6828 = vrcp.pop %v6811
        %v6829 = vrcp.pop %v6813
        %v6830 = vmul.f32 %v6751, %v6814
        %v6831 = vmul.f32 %v6753, %v6815
        %v6832 = vmul.f32 %v6755, %v6816
        %v6833 = vmul.f32 %v6757, %v6817
        %v6834 = vmul.f32 %v6759, %v6818
        %v6835 = vmul.f32 %v6761, %v6819
        %v6836 = vmul.f32 %v6763, %v6820
        %v6837 = vmul.f32 %v6765, %v6821
        %v6838 = vmul.f32 %v6767, %v6822
        %v6839 = vmul.f32 %v6769, %v6823
        %v6840 = vmul.f32 %v6771, %v6824
        %v6841 = vmul.f32 %v6773, %v6825
        %v6842 = vmul.f32 %v6775, %v6826
        %v6843 = vmul.f32 %v6777, %v6827
        %v6844 = vmul.f32 %v6779, %v6828
        %v6845 = vmul.f32 %v6781, %v6829
        %v6846 = vpack.c.bf16 %v6831, %v6830
        %v6847 = vpack.c.bf16 %v6833, %v6832
        %v6848 = vpack.c.bf16 %v6835, %v6834
        %v6849 = vpack.c.bf16 %v6837, %v6836
        %v6850 = vpack.c.bf16 %v6839, %v6838
        %v6851 = vpack.c.bf16 %v6841, %v6840
        %v6852 = vpack.c.bf16 %v6843, %v6842
        %v6853 = vpack.c.bf16 %v6845, %v6844
        %v6870 = vunpack.c.l.b16 %v6509
        %v6871 = vunpack.c.l.b16 %v6510
        %v6872 = vunpack.c.l.b16 %v6511
        %v6873 = vunpack.c.l.b16 %v6512
        %v6874 = vunpack.c.l.b16 %v6513
        %v6875 = vunpack.c.l.b16 %v6514
        %v6876 = vunpack.c.l.b16 %v6515
        %v6877 = vunpack.c.l.b16 %v6516
        %v6878 = vunpack.c.l.b16 %v6517
        %v6879 = vunpack.c.l.b16 %v6518
        %v6880 = vunpack.c.l.b16 %v6519
        %v6881 = vunpack.c.l.b16 %v6520
        %v6882 = vunpack.c.l.b16 %v6521
        %v6883 = vunpack.c.l.b16 %v6522
        %v6884 = vunpack.c.l.b16 %v6523
        %v6885 = vunpack.c.l.b16 %v6524
        %v6886 = vpack.c.b16 %v6871, %v6870
        %v6887 = vpack.c.b16 %v6873, %v6872
        %v6888 = vpack.c.b16 %v6875, %v6874
        %v6889 = vpack.c.b16 %v6877, %v6876
        %v6890 = vpack.c.b16 %v6879, %v6878
        %v6891 = vpack.c.b16 %v6881, %v6880
        %v6892 = vpack.c.b16 %v6883, %v6882
        %v6893 = vpack.c.b16 %v6885, %v6884
        %6902 = vmatpush.bf16.msra.mxu0 %v6893
        %6903 = vmatpush.bf16.msra.mxu0 %v6892
        %6904 = vmatpush.bf16.msra.mxu0 %v6891
        %6905 = vmatpush.bf16.msra.mxu0 %v6890
        %6906 = vmatpush.bf16.msra.mxu0 %v6889
        %6907 = vmatpush.bf16.msra.mxu0 %v6888
        %6908 = vmatpush.bf16.msra.mxu0 %v6887
        %6909 = vmatpush.bf16.msra.mxu0 %v6886
        %6910 = vmatmul.bf16.gmra.mxu0 %v6846
        %v6911 = vpop.f32.mrf.mxu0
        %v6912 = vadd.f32 0.0, %v6911
        %v6913 = vpop.f32.mrf.mxu0
        %v6914 = vadd.f32 0.0, %v6913
        %6915 = vmatmul.bf16.gmra.mxu0 %v6847
        %v6916 = vpop.f32.mrf.mxu0
        %v6917 = vadd.f32 0.0, %v6916
        %v6918 = vpop.f32.mrf.mxu0
        %v6919 = vadd.f32 0.0, %v6918
        %6920 = vmatmul.bf16.gmra.mxu0 %v6848
        %v6921 = vpop.f32.mrf.mxu0
        %v6922 = vadd.f32 0.0, %v6921
        %v6923 = vpop.f32.mrf.mxu0
        %v6924 = vadd.f32 0.0, %v6923
        %6925 = vmatmul.bf16.gmra.mxu0 %v6849
        %v6926 = vpop.f32.mrf.mxu0
        %v6927 = vadd.f32 0.0, %v6926
        %v6928 = vpop.f32.mrf.mxu0
        %v6929 = vadd.f32 0.0, %v6928
        %6930 = vmatmul.bf16.gmra.mxu0 %v6850
        %v6931 = vpop.f32.mrf.mxu0
        %v6932 = vadd.f32 0.0, %v6931
        %v6933 = vpop.f32.mrf.mxu0
        %v6934 = vadd.f32 0.0, %v6933
        %6935 = vmatmul.bf16.gmra.mxu0 %v6851
        %v6936 = vpop.f32.mrf.mxu0
        %v6937 = vadd.f32 0.0, %v6936
        %v6938 = vpop.f32.mrf.mxu0
        %v6939 = vadd.f32 0.0, %v6938
        %6940 = vmatmul.bf16.gmra.mxu0 %v6852
        %v6941 = vpop.f32.mrf.mxu0
        %v6942 = vadd.f32 0.0, %v6941
        %v6943 = vpop.f32.mrf.mxu0
        %v6944 = vadd.f32 0.0, %v6943
        %6945 = vmatmul.bf16.gmra.mxu0 %v6853
        %v6946 = vpop.f32.mrf.mxu0
        %v6947 = vadd.f32 0.0, %v6946
        %v6948 = vpop.f32.mrf.mxu0
        %v6949 = vadd.f32 0.0, %v6948
        %6950 = vdwg.mxu0
        %6951 = vrot.lane.b32.xlu0 %v6557, 96
        %v6952 = vpop.permute.xlu0 %6951
        %6953 = vrot.lane.b32.xlu0 %v6558, 96
        %v6954 = vpop.permute.xlu0 %6953
        %6955 = vrot.lane.b32.xlu0 %v6559, 96
        %v6956 = vpop.permute.xlu0 %6955
        %6957 = vrot.lane.b32.xlu0 %v6560, 96
        %v6958 = vpop.permute.xlu0 %6957
        %6959 = vrot.lane.b32.xlu0 %v6561, 96
        %v6960 = vpop.permute.xlu0 %6959
        %6961 = vrot.lane.b32.xlu0 %v6562, 96
        %v6962 = vpop.permute.xlu0 %6961
        %6963 = vrot.lane.b32.xlu0 %v6563, 96
        %v6964 = vpop.permute.xlu0 %6963
        %6965 = vrot.lane.b32.xlu0 %v6564, 96
        %v6966 = vpop.permute.xlu0 %6965
        %6967 = vrot.lane.b32.xlu0 %v6597, 96
        %v6968 = vpop.permute.xlu0 %6967
        %6969 = vrot.lane.b32.xlu0 %v6598, 96
        %v6970 = vpop.permute.xlu0 %6969
        %6971 = vrot.lane.b32.xlu0 %v6599, 96
        %v6972 = vpop.permute.xlu0 %6971
        %6973 = vrot.lane.b32.xlu0 %v6600, 96
        %v6974 = vpop.permute.xlu0 %6973
        %6975 = vrot.lane.b32.xlu0 %v6601, 96
        %v6976 = vpop.permute.xlu0 %6975
        %6977 = vrot.lane.b32.xlu0 %v6602, 96
        %v6978 = vpop.permute.xlu0 %6977
        %6979 = vrot.lane.b32.xlu0 %v6603, 96
        %v6980 = vpop.permute.xlu0 %6979
        %6981 = vrot.lane.b32.xlu0 %v6604, 96
        %v6982 = vpop.permute.xlu0 %6981
        %v6984 = vsel %vm1806, %v6952, 0
        %v6987 = vsel %vm1806, %v6954, 0
        %v6990 = vsel %vm1806, %v6956, 0
        %v6993 = vsel %vm1806, %v6958, 0
        %v6996 = vsel %vm1806, %v6960, 0
        %v6999 = vsel %vm1806, %v6962, 0
        %v7002 = vsel %vm1806, %v6964, 0
        %v7005 = vsel %vm1806, %v6966, 0
        %v7008 = vsel %vm1806, %v6968, 0
        %v7011 = vsel %vm1806, %v6970, 0
        %v7014 = vsel %vm1806, %v6972, 0
        %v7017 = vsel %vm1806, %v6974, 0
        %v7020 = vsel %vm1806, %v6976, 0
        %v7023 = vsel %vm1806, %v6978, 0
        %v7026 = vsel %vm1806, %v6980, 0
        %v7029 = vsel %vm1806, %v6982, 0
        %7031 = vmatpush.bf16.xpose.msra.mxu0 %v7029
        %7032 = vmatpush.bf16.xpose.msra.mxu0 %v7026
        %7033 = vmatpush.bf16.xpose.msra.mxu0 %v7023
        %7034 = vmatpush.bf16.xpose.msra.mxu0 %v7020
        %7035 = vmatpush.bf16.xpose.msra.mxu0 %v7017
        %7036 = vmatpush.bf16.xpose.msra.mxu0 %v7014
        %7037 = vmatpush.bf16.xpose.msra.mxu0 %v7011
        %7038 = vmatpush.bf16.xpose.msra.mxu0 %v7008
        %7039 = vmatmul.bf16.gmra.mxu0 %v6984
        %v7040 = vpop.f32.mrf.mxu0
        %v7041 = vadd.f32 %v4260, %v7040
        %v7042 = vpop.f32.mrf.mxu0
        %v7043 = vadd.f32 %v4260, %v7042
        %7044 = vmatmul.bf16.gmra.mxu0 %v6987
        %v7045 = vpop.f32.mrf.mxu0
        %v7046 = vadd.f32 %v4260, %v7045
        %v7047 = vpop.f32.mrf.mxu0
        %v7048 = vadd.f32 %v4260, %v7047
        %7049 = vmatmul.bf16.gmra.mxu0 %v6990
        %v7050 = vpop.f32.mrf.mxu0
        %v7051 = vadd.f32 %v4260, %v7050
        %v7052 = vpop.f32.mrf.mxu0
        %v7053 = vadd.f32 %v4260, %v7052
        %7054 = vmatmul.bf16.gmra.mxu0 %v6993
        %v7055 = vpop.f32.mrf.mxu0
        %v7056 = vadd.f32 %v4260, %v7055
        %v7057 = vpop.f32.mrf.mxu0
        %v7058 = vadd.f32 %v4260, %v7057
        %7059 = vmatmul.bf16.gmra.mxu0 %v6996
        %v7060 = vpop.f32.mrf.mxu0
        %v7061 = vadd.f32 %v4260, %v7060
        %v7062 = vpop.f32.mrf.mxu0
        %v7063 = vadd.f32 %v4260, %v7062
        %7064 = vmatmul.bf16.gmra.mxu0 %v6999
        %v7065 = vpop.f32.mrf.mxu0
        %v7066 = vadd.f32 %v4260, %v7065
        %v7067 = vpop.f32.mrf.mxu0
        %v7068 = vadd.f32 %v4260, %v7067
        %7069 = vmatmul.bf16.gmra.mxu0 %v7002
        %v7070 = vpop.f32.mrf.mxu0
        %v7071 = vadd.f32 %v4260, %v7070
        %v7072 = vpop.f32.mrf.mxu0
        %v7073 = vadd.f32 %v4260, %v7072
        %7074 = vmatmul.bf16.gmra.mxu0 %v7005
        %v7075 = vpop.f32.mrf.mxu0
        %v7076 = vadd.f32 %v4260, %v7075
        %v7077 = vpop.f32.mrf.mxu0
        %v7078 = vadd.f32 %v4260, %v7077
        %7079 = vdwg.mxu0
        %7080 = vmax.xlane.f32.xlu0 %v7041
        %v7081 = vpop.xlane.xlu0 %7080
        %7082 = vmax.xlane.f32.xlu0 %v7043
        %v7083 = vpop.xlane.xlu0 %7082
        %7084 = vmax.xlane.f32.xlu0 %v7046
        %v7085 = vpop.xlane.xlu0 %7084
        %7086 = vmax.xlane.f32.xlu0 %v7048
        %v7087 = vpop.xlane.xlu0 %7086
        %7088 = vmax.xlane.f32.xlu0 %v7051
        %v7089 = vpop.xlane.xlu0 %7088
        %7090 = vmax.xlane.f32.xlu0 %v7053
        %v7091 = vpop.xlane.xlu0 %7090
        %7092 = vmax.xlane.f32.xlu0 %v7056
        %v7093 = vpop.xlane.xlu0 %7092
        %7094 = vmax.xlane.f32.xlu0 %v7058
        %v7095 = vpop.xlane.xlu0 %7094
        %7096 = vmax.xlane.f32.xlu0 %v7061
        %v7097 = vpop.xlane.xlu0 %7096
        %7098 = vmax.xlane.f32.xlu0 %v7063
        %v7099 = vpop.xlane.xlu0 %7098
        %7100 = vmax.xlane.f32.xlu0 %v7066
        %v7101 = vpop.xlane.xlu0 %7100
        %7102 = vmax.xlane.f32.xlu0 %v7068
        %v7103 = vpop.xlane.xlu0 %7102
        %7104 = vmax.xlane.f32.xlu0 %v7071
        %v7105 = vpop.xlane.xlu0 %7104
        %7106 = vmax.xlane.f32.xlu0 %v7073
        %v7107 = vpop.xlane.xlu0 %7106
        %7108 = vmax.xlane.f32.xlu0 %v7076
        %v7109 = vpop.xlane.xlu0 %7108
        %7110 = vmax.xlane.f32.xlu0 %v7078
        %v7111 = vpop.xlane.xlu0 %7110
        %v7112 = vsub.f32 %v7041, %v7081
        %v7113 = vsub.f32 %v7043, %v7083
        %v7114 = vsub.f32 %v7046, %v7085
        %v7115 = vsub.f32 %v7048, %v7087
        %v7116 = vsub.f32 %v7051, %v7089
        %v7117 = vsub.f32 %v7053, %v7091
        %v7118 = vsub.f32 %v7056, %v7093
        %v7119 = vsub.f32 %v7058, %v7095
        %v7120 = vsub.f32 %v7061, %v7097
        %v7121 = vsub.f32 %v7063, %v7099
        %v7122 = vsub.f32 %v7066, %v7101
        %v7123 = vsub.f32 %v7068, %v7103
        %v7124 = vsub.f32 %v7071, %v7105
        %v7125 = vsub.f32 %v7073, %v7107
        %v7126 = vsub.f32 %v7076, %v7109
        %v7127 = vsub.f32 %v7078, %v7111
        %v7128 = vmul.f32 %v7112, 1.442695
        %v7129 = vpow.pop %v7128
        %v7130 = vmul.f32 %v7113, 1.442695
        %v7131 = vpow.pop %v7130
        %v7132 = vmul.f32 %v7114, 1.442695
        %v7133 = vpow.pop %v7132
        %v7134 = vmul.f32 %v7115, 1.442695
        %v7135 = vpow.pop %v7134
        %v7136 = vmul.f32 %v7116, 1.442695
        %v7137 = vpow.pop %v7136
        %v7138 = vmul.f32 %v7117, 1.442695
        %v7139 = vpow.pop %v7138
        %v7140 = vmul.f32 %v7118, 1.442695
        %v7141 = vpow.pop %v7140
        %v7142 = vmul.f32 %v7119, 1.442695
        %v7143 = vpow.pop %v7142
        %v7144 = vmul.f32 %v7120, 1.442695
        %v7145 = vpow.pop %v7144
        %v7146 = vmul.f32 %v7121, 1.442695
        %v7147 = vpow.pop %v7146
        %v7148 = vmul.f32 %v7122, 1.442695
        %v7149 = vpow.pop %v7148
        %v7150 = vmul.f32 %v7123, 1.442695
        %v7151 = vpow.pop %v7150
        %v7152 = vmul.f32 %v7124, 1.442695
        %v7153 = vpow.pop %v7152
        %v7154 = vmul.f32 %v7125, 1.442695
        %v7155 = vpow.pop %v7154
        %v7156 = vmul.f32 %v7126, 1.442695
        %v7157 = vpow.pop %v7156
        %v7158 = vmul.f32 %v7127, 1.442695
        %v7159 = vpow.pop %v7158
        %7160 = vadd.xlane.f32.xlu0 %v7129
        %v7161 = vpop.xlane.xlu0 %7160
        %7162 = vadd.xlane.f32.xlu0 %v7131
        %v7163 = vpop.xlane.xlu0 %7162
        %7164 = vadd.xlane.f32.xlu0 %v7133
        %v7165 = vpop.xlane.xlu0 %7164
        %7166 = vadd.xlane.f32.xlu0 %v7135
        %v7167 = vpop.xlane.xlu0 %7166
        %7168 = vadd.xlane.f32.xlu0 %v7137
        %v7169 = vpop.xlane.xlu0 %7168
        %7170 = vadd.xlane.f32.xlu0 %v7139
        %v7171 = vpop.xlane.xlu0 %7170
        %7172 = vadd.xlane.f32.xlu0 %v7141
        %v7173 = vpop.xlane.xlu0 %7172
        %7174 = vadd.xlane.f32.xlu0 %v7143
        %v7175 = vpop.xlane.xlu0 %7174
        %7176 = vadd.xlane.f32.xlu0 %v7145
        %v7177 = vpop.xlane.xlu0 %7176
        %7178 = vadd.xlane.f32.xlu0 %v7147
        %v7179 = vpop.xlane.xlu0 %7178
        %7180 = vadd.xlane.f32.xlu0 %v7149
        %v7181 = vpop.xlane.xlu0 %7180
        %7182 = vadd.xlane.f32.xlu0 %v7151
        %v7183 = vpop.xlane.xlu0 %7182
        %7184 = vadd.xlane.f32.xlu0 %v7153
        %v7185 = vpop.xlane.xlu0 %7184
        %7186 = vadd.xlane.f32.xlu0 %v7155
        %v7187 = vpop.xlane.xlu0 %7186
        %7188 = vadd.xlane.f32.xlu0 %v7157
        %v7189 = vpop.xlane.xlu0 %7188
        %7190 = vadd.xlane.f32.xlu0 %v7159
        %v7191 = vpop.xlane.xlu0 %7190
        %v7192 = vrcp.pop %v7161
        %v7193 = vrcp.pop %v7163
        %v7194 = vrcp.pop %v7165
        %v7195 = vrcp.pop %v7167
        %v7196 = vrcp.pop %v7169
        %v7197 = vrcp.pop %v7171
        %v7198 = vrcp.pop %v7173
        %v7199 = vrcp.pop %v7175
        %v7200 = vrcp.pop %v7177
        %v7201 = vrcp.pop %v7179
        %v7202 = vrcp.pop %v7181
        %v7203 = vrcp.pop %v7183
        %v7204 = vrcp.pop %v7185
        %v7205 = vrcp.pop %v7187
        %v7206 = vrcp.pop %v7189
        %v7207 = vrcp.pop %v7191
        %v7208 = vmul.f32 %v7129, %v7192
        %v7209 = vmul.f32 %v7131, %v7193
        %v7210 = vmul.f32 %v7133, %v7194
        %v7211 = vmul.f32 %v7135, %v7195
        %v7212 = vmul.f32 %v7137, %v7196
        %v7213 = vmul.f32 %v7139, %v7197
        %v7214 = vmul.f32 %v7141, %v7198
        %v7215 = vmul.f32 %v7143, %v7199
        %v7216 = vmul.f32 %v7145, %v7200
        %v7217 = vmul.f32 %v7147, %v7201
        %v7218 = vmul.f32 %v7149, %v7202
        %v7219 = vmul.f32 %v7151, %v7203
        %v7220 = vmul.f32 %v7153, %v7204
        %v7221 = vmul.f32 %v7155, %v7205
        %v7222 = vmul.f32 %v7157, %v7206
        %v7223 = vmul.f32 %v7159, %v7207
        %v7224 = vpack.c.bf16 %v7209, %v7208
        %v7225 = vpack.c.bf16 %v7211, %v7210
        %v7226 = vpack.c.bf16 %v7213, %v7212
        %v7227 = vpack.c.bf16 %v7215, %v7214
        %v7228 = vpack.c.bf16 %v7217, %v7216
        %v7229 = vpack.c.bf16 %v7219, %v7218
        %v7230 = vpack.c.bf16 %v7221, %v7220
        %v7231 = vpack.c.bf16 %v7223, %v7222
        %7232 = vrot.lane.b32.xlu0 %v6886, 96
        %v7233 = vpop.permute.xlu0 %7232
        %7234 = vrot.lane.b32.xlu0 %v6887, 96
        %v7235 = vpop.permute.xlu0 %7234
        %7236 = vrot.lane.b32.xlu0 %v6888, 96
        %v7237 = vpop.permute.xlu0 %7236
        %7238 = vrot.lane.b32.xlu0 %v6889, 96
        %v7239 = vpop.permute.xlu0 %7238
        %7240 = vrot.lane.b32.xlu0 %v6890, 96
        %v7241 = vpop.permute.xlu0 %7240
        %7242 = vrot.lane.b32.xlu0 %v6891, 96
        %v7243 = vpop.permute.xlu0 %7242
        %7244 = vrot.lane.b32.xlu0 %v6892, 96
        %v7245 = vpop.permute.xlu0 %7244
        %7246 = vrot.lane.b32.xlu0 %v6893, 96
        %v7247 = vpop.permute.xlu0 %7246
        %7256 = vmatpush.bf16.msra.mxu0 %v7247
        %7257 = vmatpush.bf16.msra.mxu0 %v7245
        %7258 = vmatpush.bf16.msra.mxu0 %v7243
        %7259 = vmatpush.bf16.msra.mxu0 %v7241
        %7260 = vmatpush.bf16.msra.mxu0 %v7239
        %7261 = vmatpush.bf16.msra.mxu0 %v7237
        %7262 = vmatpush.bf16.msra.mxu0 %v7235
        %7263 = vmatpush.bf16.msra.mxu0 %v7233
        %7264 = vmatmul.bf16.gmra.mxu0 %v7224
        %v7265 = vpop.f32.mrf.mxu0
        %v7266 = vadd.f32 0.0, %v7265
        %v7267 = vpop.f32.mrf.mxu0
        %v7268 = vadd.f32 0.0, %v7267
        %7269 = vmatmul.bf16.gmra.mxu0 %v7225
        %v7270 = vpop.f32.mrf.mxu0
        %v7271 = vadd.f32 0.0, %v7270
        %v7272 = vpop.f32.mrf.mxu0
        %v7273 = vadd.f32 0.0, %v7272
        %7274 = vmatmul.bf16.gmra.mxu0 %v7226
        %v7275 = vpop.f32.mrf.mxu0
        %v7276 = vadd.f32 0.0, %v7275
        %v7277 = vpop.f32.mrf.mxu0
        %v7278 = vadd.f32 0.0, %v7277
        %7279 = vmatmul.bf16.gmra.mxu0 %v7227
        %v7280 = vpop.f32.mrf.mxu0
        %v7281 = vadd.f32 0.0, %v7280
        %v7282 = vpop.f32.mrf.mxu0
        %v7283 = vadd.f32 0.0, %v7282
        %7284 = vmatmul.bf16.gmra.mxu0 %v7228
        %v7285 = vpop.f32.mrf.mxu0
        %v7286 = vadd.f32 0.0, %v7285
        %v7287 = vpop.f32.mrf.mxu0
        %v7288 = vadd.f32 0.0, %v7287
        %7289 = vmatmul.bf16.gmra.mxu0 %v7229
        %v7290 = vpop.f32.mrf.mxu0
        %v7291 = vadd.f32 0.0, %v7290
        %v7292 = vpop.f32.mrf.mxu0
        %v7293 = vadd.f32 0.0, %v7292
        %7294 = vmatmul.bf16.gmra.mxu0 %v7230
        %v7295 = vpop.f32.mrf.mxu0
        %v7296 = vadd.f32 0.0, %v7295
        %v7297 = vpop.f32.mrf.mxu0
        %v7298 = vadd.f32 0.0, %v7297
        %7299 = vmatmul.bf16.gmra.mxu0 %v7231
        %v7300 = vpop.f32.mrf.mxu0
        %v7301 = vadd.f32 0.0, %v7300
        %v7302 = vpop.f32.mrf.mxu0
        %v7303 = vadd.f32 0.0, %v7302
        %7304 = vdwg.mxu0
        %7305 = vrot.lane.b32.xlu0 %v6557, 64
        %v7306 = vpop.permute.xlu0 %7305
        %7307 = vrot.lane.b32.xlu0 %v6558, 64
        %v7308 = vpop.permute.xlu0 %7307
        %7309 = vrot.lane.b32.xlu0 %v6559, 64
        %v7310 = vpop.permute.xlu0 %7309
        %7311 = vrot.lane.b32.xlu0 %v6560, 64
        %v7312 = vpop.permute.xlu0 %7311
        %7313 = vrot.lane.b32.xlu0 %v6561, 64
        %v7314 = vpop.permute.xlu0 %7313
        %7315 = vrot.lane.b32.xlu0 %v6562, 64
        %v7316 = vpop.permute.xlu0 %7315
        %7317 = vrot.lane.b32.xlu0 %v6563, 64
        %v7318 = vpop.permute.xlu0 %7317
        %7319 = vrot.lane.b32.xlu0 %v6564, 64
        %v7320 = vpop.permute.xlu0 %7319
        %7321 = vrot.lane.b32.xlu0 %v6597, 64
        %v7322 = vpop.permute.xlu0 %7321
        %7323 = vrot.lane.b32.xlu0 %v6598, 64
        %v7324 = vpop.permute.xlu0 %7323
        %7325 = vrot.lane.b32.xlu0 %v6599, 64
        %v7326 = vpop.permute.xlu0 %7325
        %7327 = vrot.lane.b32.xlu0 %v6600, 64
        %v7328 = vpop.permute.xlu0 %7327
        %7329 = vrot.lane.b32.xlu0 %v6601, 64
        %v7330 = vpop.permute.xlu0 %7329
        %7331 = vrot.lane.b32.xlu0 %v6602, 64
        %v7332 = vpop.permute.xlu0 %7331
        %7333 = vrot.lane.b32.xlu0 %v6603, 64
        %v7334 = vpop.permute.xlu0 %7333
        %7335 = vrot.lane.b32.xlu0 %v6604, 64
        %v7336 = vpop.permute.xlu0 %7335
        %v7338 = vsel %vm1806, %v7306, 0
        %v7341 = vsel %vm1806, %v7308, 0
        %v7344 = vsel %vm1806, %v7310, 0
        %v7347 = vsel %vm1806, %v7312, 0
        %v7350 = vsel %vm1806, %v7314, 0
        %v7353 = vsel %vm1806, %v7316, 0
        %v7356 = vsel %vm1806, %v7318, 0
        %v7359 = vsel %vm1806, %v7320, 0
        %v7362 = vsel %vm1806, %v7322, 0
        %v7365 = vsel %vm1806, %v7324, 0
        %v7368 = vsel %vm1806, %v7326, 0
        %v7371 = vsel %vm1806, %v7328, 0
        %v7374 = vsel %vm1806, %v7330, 0
        %v7377 = vsel %vm1806, %v7332, 0
        %v7380 = vsel %vm1806, %v7334, 0
        %v7383 = vsel %vm1806, %v7336, 0
        %7385 = vmatpush.bf16.xpose.msra.mxu0 %v7383
        %7386 = vmatpush.bf16.xpose.msra.mxu0 %v7380
        %7387 = vmatpush.bf16.xpose.msra.mxu0 %v7377
        %7388 = vmatpush.bf16.xpose.msra.mxu0 %v7374
        %7389 = vmatpush.bf16.xpose.msra.mxu0 %v7371
        %7390 = vmatpush.bf16.xpose.msra.mxu0 %v7368
        %7391 = vmatpush.bf16.xpose.msra.mxu0 %v7365
        %7392 = vmatpush.bf16.xpose.msra.mxu0 %v7362
        %7393 = vmatmul.bf16.gmra.mxu0 %v7338
        %v7394 = vpop.f32.mrf.mxu0
        %v7395 = vadd.f32 %v4260, %v7394
        %v7396 = vpop.f32.mrf.mxu0
        %v7397 = vadd.f32 %v4260, %v7396
        %7398 = vmatmul.bf16.gmra.mxu0 %v7341
        %v7399 = vpop.f32.mrf.mxu0
        %v7400 = vadd.f32 %v4260, %v7399
        %v7401 = vpop.f32.mrf.mxu0
        %v7402 = vadd.f32 %v4260, %v7401
        %7403 = vmatmul.bf16.gmra.mxu0 %v7344
        %v7404 = vpop.f32.mrf.mxu0
        %v7405 = vadd.f32 %v4260, %v7404
        %v7406 = vpop.f32.mrf.mxu0
        %v7407 = vadd.f32 %v4260, %v7406
        %7408 = vmatmul.bf16.gmra.mxu0 %v7347
        %v7409 = vpop.f32.mrf.mxu0
        %v7410 = vadd.f32 %v4260, %v7409
        %v7411 = vpop.f32.mrf.mxu0
        %v7412 = vadd.f32 %v4260, %v7411
        %7413 = vmatmul.bf16.gmra.mxu0 %v7350
        %v7414 = vpop.f32.mrf.mxu0
        %v7415 = vadd.f32 %v4260, %v7414
        %v7416 = vpop.f32.mrf.mxu0
        %v7417 = vadd.f32 %v4260, %v7416
        %7418 = vmatmul.bf16.gmra.mxu0 %v7353
        %v7419 = vpop.f32.mrf.mxu0
        %v7420 = vadd.f32 %v4260, %v7419
        %v7421 = vpop.f32.mrf.mxu0
        %v7422 = vadd.f32 %v4260, %v7421
        %7423 = vmatmul.bf16.gmra.mxu0 %v7356
        %v7424 = vpop.f32.mrf.mxu0
        %v7425 = vadd.f32 %v4260, %v7424
        %v7426 = vpop.f32.mrf.mxu0
        %v7427 = vadd.f32 %v4260, %v7426
        %7428 = vmatmul.bf16.gmra.mxu0 %v7359
        %v7429 = vpop.f32.mrf.mxu0
        %v7430 = vadd.f32 %v4260, %v7429
        %v7431 = vpop.f32.mrf.mxu0
        %v7432 = vadd.f32 %v4260, %v7431
        %7433 = vdwg.mxu0
        %7434 = vmax.xlane.f32.xlu0 %v7395
        %v7435 = vpop.xlane.xlu0 %7434
        %7436 = vmax.xlane.f32.xlu0 %v7397
        %v7437 = vpop.xlane.xlu0 %7436
        %7438 = vmax.xlane.f32.xlu0 %v7400
        %v7439 = vpop.xlane.xlu0 %7438
        %7440 = vmax.xlane.f32.xlu0 %v7402
        %v7441 = vpop.xlane.xlu0 %7440
        %7442 = vmax.xlane.f32.xlu0 %v7405
        %v7443 = vpop.xlane.xlu0 %7442
        %7444 = vmax.xlane.f32.xlu0 %v7407
        %v7445 = vpop.xlane.xlu0 %7444
        %7446 = vmax.xlane.f32.xlu0 %v7410
        %v7447 = vpop.xlane.xlu0 %7446
        %7448 = vmax.xlane.f32.xlu0 %v7412
        %v7449 = vpop.xlane.xlu0 %7448
        %7450 = vmax.xlane.f32.xlu0 %v7415
        %v7451 = vpop.xlane.xlu0 %7450
        %7452 = vmax.xlane.f32.xlu0 %v7417
        %v7453 = vpop.xlane.xlu0 %7452
        %7454 = vmax.xlane.f32.xlu0 %v7420
        %v7455 = vpop.xlane.xlu0 %7454
        %7456 = vmax.xlane.f32.xlu0 %v7422
        %v7457 = vpop.xlane.xlu0 %7456
        %7458 = vmax.xlane.f32.xlu0 %v7425
        %v7459 = vpop.xlane.xlu0 %7458
        %7460 = vmax.xlane.f32.xlu0 %v7427
        %v7461 = vpop.xlane.xlu0 %7460
        %7462 = vmax.xlane.f32.xlu0 %v7430
        %v7463 = vpop.xlane.xlu0 %7462
        %7464 = vmax.xlane.f32.xlu0 %v7432
        %v7465 = vpop.xlane.xlu0 %7464
        %v7466 = vsub.f32 %v7395, %v7435
        %v7467 = vsub.f32 %v7397, %v7437
        %v7468 = vsub.f32 %v7400, %v7439
        %v7469 = vsub.f32 %v7402, %v7441
        %v7470 = vsub.f32 %v7405, %v7443
        %v7471 = vsub.f32 %v7407, %v7445
        %v7472 = vsub.f32 %v7410, %v7447
        %v7473 = vsub.f32 %v7412, %v7449
        %v7474 = vsub.f32 %v7415, %v7451
        %v7475 = vsub.f32 %v7417, %v7453
        %v7476 = vsub.f32 %v7420, %v7455
        %v7477 = vsub.f32 %v7422, %v7457
        %v7478 = vsub.f32 %v7425, %v7459
        %v7479 = vsub.f32 %v7427, %v7461
        %v7480 = vsub.f32 %v7430, %v7463
        %v7481 = vsub.f32 %v7432, %v7465
        %v7482 = vmul.f32 %v7466, 1.442695
        %v7483 = vpow.pop %v7482
        %v7484 = vmul.f32 %v7467, 1.442695
        %v7485 = vpow.pop %v7484
        %v7486 = vmul.f32 %v7468, 1.442695
        %v7487 = vpow.pop %v7486
        %v7488 = vmul.f32 %v7469, 1.442695
        %v7489 = vpow.pop %v7488
        %v7490 = vmul.f32 %v7470, 1.442695
        %v7491 = vpow.pop %v7490
        %v7492 = vmul.f32 %v7471, 1.442695
        %v7493 = vpow.pop %v7492
        %v7494 = vmul.f32 %v7472, 1.442695
        %v7495 = vpow.pop %v7494
        %v7496 = vmul.f32 %v7473, 1.442695
        %v7497 = vpow.pop %v7496
        %v7498 = vmul.f32 %v7474, 1.442695
        %v7499 = vpow.pop %v7498
        %v7500 = vmul.f32 %v7475, 1.442695
        %v7501 = vpow.pop %v7500
        %v7502 = vmul.f32 %v7476, 1.442695
        %v7503 = vpow.pop %v7502
        %v7504 = vmul.f32 %v7477, 1.442695
        %v7505 = vpow.pop %v7504
        %v7506 = vmul.f32 %v7478, 1.442695
        %v7507 = vpow.pop %v7506
        %v7508 = vmul.f32 %v7479, 1.442695
        %v7509 = vpow.pop %v7508
        %v7510 = vmul.f32 %v7480, 1.442695
        %v7511 = vpow.pop %v7510
        %v7512 = vmul.f32 %v7481, 1.442695
        %v7513 = vpow.pop %v7512
        %7514 = vadd.xlane.f32.xlu0 %v7483
        %v7515 = vpop.xlane.xlu0 %7514
        %7516 = vadd.xlane.f32.xlu0 %v7485
        %v7517 = vpop.xlane.xlu0 %7516
        %7518 = vadd.xlane.f32.xlu0 %v7487
        %v7519 = vpop.xlane.xlu0 %7518
        %7520 = vadd.xlane.f32.xlu0 %v7489
        %v7521 = vpop.xlane.xlu0 %7520
        %7522 = vadd.xlane.f32.xlu0 %v7491
        %v7523 = vpop.xlane.xlu0 %7522
        %7524 = vadd.xlane.f32.xlu0 %v7493
        %v7525 = vpop.xlane.xlu0 %7524
        %7526 = vadd.xlane.f32.xlu0 %v7495
        %v7527 = vpop.xlane.xlu0 %7526
        %7528 = vadd.xlane.f32.xlu0 %v7497
        %v7529 = vpop.xlane.xlu0 %7528
        %7530 = vadd.xlane.f32.xlu0 %v7499
        %v7531 = vpop.xlane.xlu0 %7530
        %7532 = vadd.xlane.f32.xlu0 %v7501
        %v7533 = vpop.xlane.xlu0 %7532
        %7534 = vadd.xlane.f32.xlu0 %v7503
        %v7535 = vpop.xlane.xlu0 %7534
        %7536 = vadd.xlane.f32.xlu0 %v7505
        %v7537 = vpop.xlane.xlu0 %7536
        %7538 = vadd.xlane.f32.xlu0 %v7507
        %v7539 = vpop.xlane.xlu0 %7538
        %7540 = vadd.xlane.f32.xlu0 %v7509
        %v7541 = vpop.xlane.xlu0 %7540
        %7542 = vadd.xlane.f32.xlu0 %v7511
        %v7543 = vpop.xlane.xlu0 %7542
        %7544 = vadd.xlane.f32.xlu0 %v7513
        %v7545 = vpop.xlane.xlu0 %7544
        %v7546 = vrcp.pop %v7515
        %v7547 = vrcp.pop %v7517
        %v7548 = vrcp.pop %v7519
        %v7549 = vrcp.pop %v7521
        %v7550 = vrcp.pop %v7523
        %v7551 = vrcp.pop %v7525
        %v7552 = vrcp.pop %v7527
        %v7553 = vrcp.pop %v7529
        %v7554 = vrcp.pop %v7531
        %v7555 = vrcp.pop %v7533
        %v7556 = vrcp.pop %v7535
        %v7557 = vrcp.pop %v7537
        %v7558 = vrcp.pop %v7539
        %v7559 = vrcp.pop %v7541
        %v7560 = vrcp.pop %v7543
        %v7561 = vrcp.pop %v7545
        %v7562 = vmul.f32 %v7483, %v7546
        %v7563 = vmul.f32 %v7485, %v7547
        %v7564 = vmul.f32 %v7487, %v7548
        %v7565 = vmul.f32 %v7489, %v7549
        %v7566 = vmul.f32 %v7491, %v7550
        %v7567 = vmul.f32 %v7493, %v7551
        %v7568 = vmul.f32 %v7495, %v7552
        %v7569 = vmul.f32 %v7497, %v7553
        %v7570 = vmul.f32 %v7499, %v7554
        %v7571 = vmul.f32 %v7501, %v7555
        %v7572 = vmul.f32 %v7503, %v7556
        %v7573 = vmul.f32 %v7505, %v7557
        %v7574 = vmul.f32 %v7507, %v7558
        %v7575 = vmul.f32 %v7509, %v7559
        %v7576 = vmul.f32 %v7511, %v7560
        %v7577 = vmul.f32 %v7513, %v7561
        %v7578 = vpack.c.bf16 %v7563, %v7562
        %v7579 = vpack.c.bf16 %v7565, %v7564
        %v7580 = vpack.c.bf16 %v7567, %v7566
        %v7581 = vpack.c.bf16 %v7569, %v7568
        %v7582 = vpack.c.bf16 %v7571, %v7570
        %v7583 = vpack.c.bf16 %v7573, %v7572
        %v7584 = vpack.c.bf16 %v7575, %v7574
        %v7585 = vpack.c.bf16 %v7577, %v7576
        %7586 = vrot.lane.b32.xlu0 %v6886, 64
        %v7587 = vpop.permute.xlu0 %7586
        %7588 = vrot.lane.b32.xlu0 %v6887, 64
        %v7589 = vpop.permute.xlu0 %7588
        %7590 = vrot.lane.b32.xlu0 %v6888, 64
        %v7591 = vpop.permute.xlu0 %7590
        %7592 = vrot.lane.b32.xlu0 %v6889, 64
        %v7593 = vpop.permute.xlu0 %7592
        %7594 = vrot.lane.b32.xlu0 %v6890, 64
        %v7595 = vpop.permute.xlu0 %7594
        %7596 = vrot.lane.b32.xlu0 %v6891, 64
        %v7597 = vpop.permute.xlu0 %7596
        %7598 = vrot.lane.b32.xlu0 %v6892, 64
        %v7599 = vpop.permute.xlu0 %7598
        %7600 = vrot.lane.b32.xlu0 %v6893, 64
        %v7601 = vpop.permute.xlu0 %7600
        %7610 = vmatpush.bf16.msra.mxu0 %v7601
        %7611 = vmatpush.bf16.msra.mxu0 %v7599
        %7612 = vmatpush.bf16.msra.mxu0 %v7597
        %7613 = vmatpush.bf16.msra.mxu0 %v7595
        %7614 = vmatpush.bf16.msra.mxu0 %v7593
        %7615 = vmatpush.bf16.msra.mxu0 %v7591
        %7616 = vmatpush.bf16.msra.mxu0 %v7589
        %7617 = vmatpush.bf16.msra.mxu0 %v7587
        %7618 = vmatmul.bf16.gmra.mxu0 %v7578
        %v7619 = vpop.f32.mrf.mxu0
        %v7620 = vadd.f32 0.0, %v7619
        %v7621 = vpop.f32.mrf.mxu0
        %v7622 = vadd.f32 0.0, %v7621
        %7623 = vmatmul.bf16.gmra.mxu0 %v7579
        %v7624 = vpop.f32.mrf.mxu0
        %v7625 = vadd.f32 0.0, %v7624
        %v7626 = vpop.f32.mrf.mxu0
        %v7627 = vadd.f32 0.0, %v7626
        %7628 = vmatmul.bf16.gmra.mxu0 %v7580
        %v7629 = vpop.f32.mrf.mxu0
        %v7630 = vadd.f32 0.0, %v7629
        %v7631 = vpop.f32.mrf.mxu0
        %v7632 = vadd.f32 0.0, %v7631
        %7633 = vmatmul.bf16.gmra.mxu0 %v7581
        %v7634 = vpop.f32.mrf.mxu0
        %v7635 = vadd.f32 0.0, %v7634
        %v7636 = vpop.f32.mrf.mxu0
        %v7637 = vadd.f32 0.0, %v7636
        %7638 = vmatmul.bf16.gmra.mxu0 %v7582
        %v7639 = vpop.f32.mrf.mxu0
        %v7640 = vadd.f32 0.0, %v7639
        %v7641 = vpop.f32.mrf.mxu0
        %v7642 = vadd.f32 0.0, %v7641
        %7643 = vmatmul.bf16.gmra.mxu0 %v7583
        %v7644 = vpop.f32.mrf.mxu0
        %v7645 = vadd.f32 0.0, %v7644
        %v7646 = vpop.f32.mrf.mxu0
        %v7647 = vadd.f32 0.0, %v7646
        %7648 = vmatmul.bf16.gmra.mxu0 %v7584
        %v7649 = vpop.f32.mrf.mxu0
        %v7650 = vadd.f32 0.0, %v7649
        %v7651 = vpop.f32.mrf.mxu0
        %v7652 = vadd.f32 0.0, %v7651
        %7653 = vmatmul.bf16.gmra.mxu0 %v7585
        %v7654 = vpop.f32.mrf.mxu0
        %v7655 = vadd.f32 0.0, %v7654
        %v7656 = vpop.f32.mrf.mxu0
        %v7657 = vadd.f32 0.0, %v7656
        %7658 = vdwg.mxu0
        %7659 = vrot.lane.b32.xlu0 %v6557, 32
        %v7660 = vpop.permute.xlu0 %7659
        %7661 = vrot.lane.b32.xlu0 %v6558, 32
        %v7662 = vpop.permute.xlu0 %7661
        %7663 = vrot.lane.b32.xlu0 %v6559, 32
        %v7664 = vpop.permute.xlu0 %7663
        %7665 = vrot.lane.b32.xlu0 %v6560, 32
        %v7666 = vpop.permute.xlu0 %7665
        %7667 = vrot.lane.b32.xlu0 %v6561, 32
        %v7668 = vpop.permute.xlu0 %7667
        %7669 = vrot.lane.b32.xlu0 %v6562, 32
        %v7670 = vpop.permute.xlu0 %7669
        %7671 = vrot.lane.b32.xlu0 %v6563, 32
        %v7672 = vpop.permute.xlu0 %7671
        %7673 = vrot.lane.b32.xlu0 %v6564, 32
        %v7674 = vpop.permute.xlu0 %7673
        %7675 = vrot.lane.b32.xlu0 %v6597, 32
        %v7676 = vpop.permute.xlu0 %7675
        %7677 = vrot.lane.b32.xlu0 %v6598, 32
        %v7678 = vpop.permute.xlu0 %7677
        %7679 = vrot.lane.b32.xlu0 %v6599, 32
        %v7680 = vpop.permute.xlu0 %7679
        %7681 = vrot.lane.b32.xlu0 %v6600, 32
        %v7682 = vpop.permute.xlu0 %7681
        %7683 = vrot.lane.b32.xlu0 %v6601, 32
        %v7684 = vpop.permute.xlu0 %7683
        %7685 = vrot.lane.b32.xlu0 %v6602, 32
        %v7686 = vpop.permute.xlu0 %7685
        %7687 = vrot.lane.b32.xlu0 %v6603, 32
        %v7688 = vpop.permute.xlu0 %7687
        %7689 = vrot.lane.b32.xlu0 %v6604, 32
        %v7690 = vpop.permute.xlu0 %7689
        %v7692 = vsel %vm1806, %v7660, 0
        %v7695 = vsel %vm1806, %v7662, 0
        %v7698 = vsel %vm1806, %v7664, 0
        %v7701 = vsel %vm1806, %v7666, 0
        %v7704 = vsel %vm1806, %v7668, 0
        %v7707 = vsel %vm1806, %v7670, 0
        %v7710 = vsel %vm1806, %v7672, 0
        %v7713 = vsel %vm1806, %v7674, 0
        %v7716 = vsel %vm1806, %v7676, 0
        %v7719 = vsel %vm1806, %v7678, 0
        %v7722 = vsel %vm1806, %v7680, 0
        %v7725 = vsel %vm1806, %v7682, 0
        %v7728 = vsel %vm1806, %v7684, 0
        %v7731 = vsel %vm1806, %v7686, 0
        %v7734 = vsel %vm1806, %v7688, 0
        %v7737 = vsel %vm1806, %v7690, 0
        %7739 = vmatpush.bf16.xpose.msra.mxu0 %v7737
        %7740 = vmatpush.bf16.xpose.msra.mxu0 %v7734
        %7741 = vmatpush.bf16.xpose.msra.mxu0 %v7731
        %7742 = vmatpush.bf16.xpose.msra.mxu0 %v7728
        %7743 = vmatpush.bf16.xpose.msra.mxu0 %v7725
        %7744 = vmatpush.bf16.xpose.msra.mxu0 %v7722
        %7745 = vmatpush.bf16.xpose.msra.mxu0 %v7719
        %7746 = vmatpush.bf16.xpose.msra.mxu0 %v7716
        %7747 = vmatmul.bf16.gmra.mxu0 %v7692
        %v7748 = vpop.f32.mrf.mxu0
        %v7749 = vadd.f32 %v4260, %v7748
        %v7750 = vpop.f32.mrf.mxu0
        %v7751 = vadd.f32 %v4260, %v7750
        %7752 = vmatmul.bf16.gmra.mxu0 %v7695
        %v7753 = vpop.f32.mrf.mxu0
        %v7754 = vadd.f32 %v4260, %v7753
        %v7755 = vpop.f32.mrf.mxu0
        %v7756 = vadd.f32 %v4260, %v7755
        %7757 = vmatmul.bf16.gmra.mxu0 %v7698
        %v7758 = vpop.f32.mrf.mxu0
        %v7759 = vadd.f32 %v4260, %v7758
        %v7760 = vpop.f32.mrf.mxu0
        %v7761 = vadd.f32 %v4260, %v7760
        %7762 = vmatmul.bf16.gmra.mxu0 %v7701
        %v7763 = vpop.f32.mrf.mxu0
        %v7764 = vadd.f32 %v4260, %v7763
        %v7765 = vpop.f32.mrf.mxu0
        %v7766 = vadd.f32 %v4260, %v7765
        %7767 = vmatmul.bf16.gmra.mxu0 %v7704
        %v7768 = vpop.f32.mrf.mxu0
        %v7769 = vadd.f32 %v4260, %v7768
        %v7770 = vpop.f32.mrf.mxu0
        %v7771 = vadd.f32 %v4260, %v7770
        %7772 = vmatmul.bf16.gmra.mxu0 %v7707
        %v7773 = vpop.f32.mrf.mxu0
        %v7774 = vadd.f32 %v4260, %v7773
        %v7775 = vpop.f32.mrf.mxu0
        %v7776 = vadd.f32 %v4260, %v7775
        %7777 = vmatmul.bf16.gmra.mxu0 %v7710
        %v7778 = vpop.f32.mrf.mxu0
        %v7779 = vadd.f32 %v4260, %v7778
        %v7780 = vpop.f32.mrf.mxu0
        %v7781 = vadd.f32 %v4260, %v7780
        %7782 = vmatmul.bf16.gmra.mxu0 %v7713
        %v7783 = vpop.f32.mrf.mxu0
        %v7784 = vadd.f32 %v4260, %v7783
        %v7785 = vpop.f32.mrf.mxu0
        %v7786 = vadd.f32 %v4260, %v7785
        %7787 = vdwg.mxu0
        %7788 = vmax.xlane.f32.xlu0 %v7749
        %v7789 = vpop.xlane.xlu0 %7788
        %7790 = vmax.xlane.f32.xlu0 %v7751
        %v7791 = vpop.xlane.xlu0 %7790
        %7792 = vmax.xlane.f32.xlu0 %v7754
        %v7793 = vpop.xlane.xlu0 %7792
        %7794 = vmax.xlane.f32.xlu0 %v7756
        %v7795 = vpop.xlane.xlu0 %7794
        %7796 = vmax.xlane.f32.xlu0 %v7759
        %v7797 = vpop.xlane.xlu0 %7796
        %7798 = vmax.xlane.f32.xlu0 %v7761
        %v7799 = vpop.xlane.xlu0 %7798
        %7800 = vmax.xlane.f32.xlu0 %v7764
        %v7801 = vpop.xlane.xlu0 %7800
        %7802 = vmax.xlane.f32.xlu0 %v7766
        %v7803 = vpop.xlane.xlu0 %7802
        %7804 = vmax.xlane.f32.xlu0 %v7769
        %v7805 = vpop.xlane.xlu0 %7804
        %7806 = vmax.xlane.f32.xlu0 %v7771
        %v7807 = vpop.xlane.xlu0 %7806
        %7808 = vmax.xlane.f32.xlu0 %v7774
        %v7809 = vpop.xlane.xlu0 %7808
        %7810 = vmax.xlane.f32.xlu0 %v7776
        %v7811 = vpop.xlane.xlu0 %7810
        %7812 = vmax.xlane.f32.xlu0 %v7779
        %v7813 = vpop.xlane.xlu0 %7812
        %7814 = vmax.xlane.f32.xlu0 %v7781
        %v7815 = vpop.xlane.xlu0 %7814
        %7816 = vmax.xlane.f32.xlu0 %v7784
        %v7817 = vpop.xlane.xlu0 %7816
        %7818 = vmax.xlane.f32.xlu0 %v7786
        %v7819 = vpop.xlane.xlu0 %7818
        %v7820 = vsub.f32 %v7749, %v7789
        %v7821 = vsub.f32 %v7751, %v7791
        %v7822 = vsub.f32 %v7754, %v7793
        %v7823 = vsub.f32 %v7756, %v7795
        %v7824 = vsub.f32 %v7759, %v7797
        %v7825 = vsub.f32 %v7761, %v7799
        %v7826 = vsub.f32 %v7764, %v7801
        %v7827 = vsub.f32 %v7766, %v7803
        %v7828 = vsub.f32 %v7769, %v7805
        %v7829 = vsub.f32 %v7771, %v7807
        %v7830 = vsub.f32 %v7774, %v7809
        %v7831 = vsub.f32 %v7776, %v7811
        %v7832 = vsub.f32 %v7779, %v7813
        %v7833 = vsub.f32 %v7781, %v7815
        %v7834 = vsub.f32 %v7784, %v7817
        %v7835 = vsub.f32 %v7786, %v7819
        %v7836 = vmul.f32 %v7820, 1.442695
        %v7837 = vpow.pop %v7836
        %v7838 = vmul.f32 %v7821, 1.442695
        %v7839 = vpow.pop %v7838
        %v7840 = vmul.f32 %v7822, 1.442695
        %v7841 = vpow.pop %v7840
        %v7842 = vmul.f32 %v7823, 1.442695
        %v7843 = vpow.pop %v7842
        %v7844 = vmul.f32 %v7824, 1.442695
        %v7845 = vpow.pop %v7844
        %v7846 = vmul.f32 %v7825, 1.442695
        %v7847 = vpow.pop %v7846
        %v7848 = vmul.f32 %v7826, 1.442695
        %v7849 = vpow.pop %v7848
        %v7850 = vmul.f32 %v7827, 1.442695
        %v7851 = vpow.pop %v7850
        %v7852 = vmul.f32 %v7828, 1.442695
        %v7853 = vpow.pop %v7852
        %v7854 = vmul.f32 %v7829, 1.442695
        %v7855 = vpow.pop %v7854
        %v7856 = vmul.f32 %v7830, 1.442695
        %v7857 = vpow.pop %v7856
        %v7858 = vmul.f32 %v7831, 1.442695
        %v7859 = vpow.pop %v7858
        %v7860 = vmul.f32 %v7832, 1.442695
        %v7861 = vpow.pop %v7860
        %v7862 = vmul.f32 %v7833, 1.442695
        %v7863 = vpow.pop %v7862
        %v7864 = vmul.f32 %v7834, 1.442695
        %v7865 = vpow.pop %v7864
        %v7866 = vmul.f32 %v7835, 1.442695
        %v7867 = vpow.pop %v7866
        %7868 = vadd.xlane.f32.xlu0 %v7837
        %v7869 = vpop.xlane.xlu0 %7868
        %7870 = vadd.xlane.f32.xlu0 %v7839
        %v7871 = vpop.xlane.xlu0 %7870
        %7872 = vadd.xlane.f32.xlu0 %v7841
        %v7873 = vpop.xlane.xlu0 %7872
        %7874 = vadd.xlane.f32.xlu0 %v7843
        %v7875 = vpop.xlane.xlu0 %7874
        %7876 = vadd.xlane.f32.xlu0 %v7845
        %v7877 = vpop.xlane.xlu0 %7876
        %7878 = vadd.xlane.f32.xlu0 %v7847
        %v7879 = vpop.xlane.xlu0 %7878
        %7880 = vadd.xlane.f32.xlu0 %v7849
        %v7881 = vpop.xlane.xlu0 %7880
        %7882 = vadd.xlane.f32.xlu0 %v7851
        %v7883 = vpop.xlane.xlu0 %7882
        %7884 = vadd.xlane.f32.xlu0 %v7853
        %v7885 = vpop.xlane.xlu0 %7884
        %7886 = vadd.xlane.f32.xlu0 %v7855
        %v7887 = vpop.xlane.xlu0 %7886
        %7888 = vadd.xlane.f32.xlu0 %v7857
        %v7889 = vpop.xlane.xlu0 %7888
        %7890 = vadd.xlane.f32.xlu0 %v7859
        %v7891 = vpop.xlane.xlu0 %7890
        %7892 = vadd.xlane.f32.xlu0 %v7861
        %v7893 = vpop.xlane.xlu0 %7892
        %7894 = vadd.xlane.f32.xlu0 %v7863
        %v7895 = vpop.xlane.xlu0 %7894
        %7896 = vadd.xlane.f32.xlu0 %v7865
        %v7897 = vpop.xlane.xlu0 %7896
        %7898 = vadd.xlane.f32.xlu0 %v7867
        %v7899 = vpop.xlane.xlu0 %7898
        %v7900 = vrcp.pop %v7869
        %v7901 = vrcp.pop %v7871
        %v7902 = vrcp.pop %v7873
        %v7903 = vrcp.pop %v7875
        %v7904 = vrcp.pop %v7877
        %v7905 = vrcp.pop %v7879
        %v7906 = vrcp.pop %v7881
        %v7907 = vrcp.pop %v7883
        %v7908 = vrcp.pop %v7885
        %v7909 = vrcp.pop %v7887
        %v7910 = vrcp.pop %v7889
        %v7911 = vrcp.pop %v7891
        %v7912 = vrcp.pop %v7893
        %v7913 = vrcp.pop %v7895
        %v7914 = vrcp.pop %v7897
        %v7915 = vrcp.pop %v7899
        %v7916 = vmul.f32 %v7837, %v7900
        %v7917 = vmul.f32 %v7839, %v7901
        %v7918 = vmul.f32 %v7841, %v7902
        %v7919 = vmul.f32 %v7843, %v7903
        %v7920 = vmul.f32 %v7845, %v7904
        %v7921 = vmul.f32 %v7847, %v7905
        %v7922 = vmul.f32 %v7849, %v7906
        %v7923 = vmul.f32 %v7851, %v7907
        %v7924 = vmul.f32 %v7853, %v7908
        %v7925 = vmul.f32 %v7855, %v7909
        %v7926 = vmul.f32 %v7857, %v7910
        %v7927 = vmul.f32 %v7859, %v7911
        %v7928 = vmul.f32 %v7861, %v7912
        %v7929 = vmul.f32 %v7863, %v7913
        %v7930 = vmul.f32 %v7865, %v7914
        %v7931 = vmul.f32 %v7867, %v7915
        %v7932 = vpack.c.bf16 %v7917, %v7916
        %v7933 = vpack.c.bf16 %v7919, %v7918
        %v7934 = vpack.c.bf16 %v7921, %v7920
        %v7935 = vpack.c.bf16 %v7923, %v7922
        %v7936 = vpack.c.bf16 %v7925, %v7924
        %v7937 = vpack.c.bf16 %v7927, %v7926
        %v7938 = vpack.c.bf16 %v7929, %v7928
        %v7939 = vpack.c.bf16 %v7931, %v7930
        %7940 = vrot.lane.b32.xlu0 %v6886, 32
        %v7941 = vpop.permute.xlu0 %7940
        %7942 = vrot.lane.b32.xlu0 %v6887, 32
        %v7943 = vpop.permute.xlu0 %7942
        %7944 = vrot.lane.b32.xlu0 %v6888, 32
        %v7945 = vpop.permute.xlu0 %7944
        %7946 = vrot.lane.b32.xlu0 %v6889, 32
        %v7947 = vpop.permute.xlu0 %7946
        %7948 = vrot.lane.b32.xlu0 %v6890, 32
        %v7949 = vpop.permute.xlu0 %7948
        %7950 = vrot.lane.b32.xlu0 %v6891, 32
        %v7951 = vpop.permute.xlu0 %7950
        %7952 = vrot.lane.b32.xlu0 %v6892, 32
        %v7953 = vpop.permute.xlu0 %7952
        %7954 = vrot.lane.b32.xlu0 %v6893, 32
        %v7955 = vpop.permute.xlu0 %7954
        %7964 = vmatpush.bf16.msra.mxu0 %v7955
        %7965 = vmatpush.bf16.msra.mxu0 %v7953
        %7966 = vmatpush.bf16.msra.mxu0 %v7951
        %7967 = vmatpush.bf16.msra.mxu0 %v7949
        %7968 = vmatpush.bf16.msra.mxu0 %v7947
        %7969 = vmatpush.bf16.msra.mxu0 %v7945
        %7970 = vmatpush.bf16.msra.mxu0 %v7943
        %7971 = vmatpush.bf16.msra.mxu0 %v7941
        %7972 = vmatmul.bf16.gmra.mxu0 %v7932
        %v7973 = vpop.f32.mrf.mxu0
        %v7974 = vadd.f32 0.0, %v7973
        %v7975 = vpop.f32.mrf.mxu0
        %v7976 = vadd.f32 0.0, %v7975
        %7977 = vmatmul.bf16.gmra.mxu0 %v7933
        %v7978 = vpop.f32.mrf.mxu0
        %v7979 = vadd.f32 0.0, %v7978
        %v7980 = vpop.f32.mrf.mxu0
        %v7981 = vadd.f32 0.0, %v7980
        %7982 = vmatmul.bf16.gmra.mxu0 %v7934
        %v7983 = vpop.f32.mrf.mxu0
        %v7984 = vadd.f32 0.0, %v7983
        %v7985 = vpop.f32.mrf.mxu0
        %v7986 = vadd.f32 0.0, %v7985
        %7987 = vmatmul.bf16.gmra.mxu0 %v7935
        %v7988 = vpop.f32.mrf.mxu0
        %v7989 = vadd.f32 0.0, %v7988
        %v7990 = vpop.f32.mrf.mxu0
        %v7991 = vadd.f32 0.0, %v7990
        %7992 = vmatmul.bf16.gmra.mxu0 %v7936
        %v7993 = vpop.f32.mrf.mxu0
        %v7994 = vadd.f32 0.0, %v7993
        %v7995 = vpop.f32.mrf.mxu0
        %v7996 = vadd.f32 0.0, %v7995
        %7997 = vmatmul.bf16.gmra.mxu0 %v7937
        %v7998 = vpop.f32.mrf.mxu0
        %v7999 = vadd.f32 0.0, %v7998
        %v8000 = vpop.f32.mrf.mxu0
        %v8001 = vadd.f32 0.0, %v8000
        %8002 = vmatmul.bf16.gmra.mxu0 %v7938
        %v8003 = vpop.f32.mrf.mxu0
        %v8004 = vadd.f32 0.0, %v8003
        %v8005 = vpop.f32.mrf.mxu0
        %v8006 = vadd.f32 0.0, %v8005
        %8007 = vmatmul.bf16.gmra.mxu0 %v7939
        %v8008 = vpop.f32.mrf.mxu0
        %v8009 = vadd.f32 0.0, %v8008
        %v8010 = vpop.f32.mrf.mxu0
        %v8011 = vadd.f32 0.0, %v8010
        %8012 = vdwg.mxu0
        %8029 = vrot.lane.b32.xlu0 %v7266, 32
        %v8030 = vpop.permute.xlu0 %8029
        %8031 = vrot.lane.b32.xlu0 %v7268, 32
        %v8032 = vpop.permute.xlu0 %8031
        %8033 = vrot.lane.b32.xlu0 %v7271, 32
        %v8034 = vpop.permute.xlu0 %8033
        %8035 = vrot.lane.b32.xlu0 %v7273, 32
        %v8036 = vpop.permute.xlu0 %8035
        %8037 = vrot.lane.b32.xlu0 %v7276, 32
        %v8038 = vpop.permute.xlu0 %8037
        %8039 = vrot.lane.b32.xlu0 %v7278, 32
        %v8040 = vpop.permute.xlu0 %8039
        %8041 = vrot.lane.b32.xlu0 %v7281, 32
        %v8042 = vpop.permute.xlu0 %8041
        %8043 = vrot.lane.b32.xlu0 %v7283, 32
        %v8044 = vpop.permute.xlu0 %8043
        %8045 = vrot.lane.b32.xlu0 %v7286, 32
        %v8046 = vpop.permute.xlu0 %8045
        %8047 = vrot.lane.b32.xlu0 %v7288, 32
        %v8048 = vpop.permute.xlu0 %8047
        %8049 = vrot.lane.b32.xlu0 %v7291, 32
        %v8050 = vpop.permute.xlu0 %8049
        %8051 = vrot.lane.b32.xlu0 %v7293, 32
        %v8052 = vpop.permute.xlu0 %8051
        %8053 = vrot.lane.b32.xlu0 %v7296, 32
        %v8054 = vpop.permute.xlu0 %8053
        %8055 = vrot.lane.b32.xlu0 %v7298, 32
        %v8056 = vpop.permute.xlu0 %8055
        %8057 = vrot.lane.b32.xlu0 %v7301, 32
        %v8058 = vpop.permute.xlu0 %8057
        %8059 = vrot.lane.b32.xlu0 %v7303, 32
        %v8060 = vpop.permute.xlu0 %8059
        %8093 = vrot.lane.b32.xlu0 %v7620, 64
        %v8094 = vpop.permute.xlu0 %8093
        %8095 = vrot.lane.b32.xlu0 %v7622, 64
        %v8096 = vpop.permute.xlu0 %8095
        %8097 = vrot.lane.b32.xlu0 %v7625, 64
        %v8098 = vpop.permute.xlu0 %8097
        %8099 = vrot.lane.b32.xlu0 %v7627, 64
        %v8100 = vpop.permute.xlu0 %8099
        %8101 = vrot.lane.b32.xlu0 %v7630, 64
        %v8102 = vpop.permute.xlu0 %8101
        %8103 = vrot.lane.b32.xlu0 %v7632, 64
        %v8104 = vpop.permute.xlu0 %8103
        %8105 = vrot.lane.b32.xlu0 %v7635, 64
        %v8106 = vpop.permute.xlu0 %8105
        %8107 = vrot.lane.b32.xlu0 %v7637, 64
        %v8108 = vpop.permute.xlu0 %8107
        %8109 = vrot.lane.b32.xlu0 %v7640, 64
        %v8110 = vpop.permute.xlu0 %8109
        %8111 = vrot.lane.b32.xlu0 %v7642, 64
        %v8112 = vpop.permute.xlu0 %8111
        %8113 = vrot.lane.b32.xlu0 %v7645, 64
        %v8114 = vpop.permute.xlu0 %8113
        %8115 = vrot.lane.b32.xlu0 %v7647, 64
        %v8116 = vpop.permute.xlu0 %8115
        %8117 = vrot.lane.b32.xlu0 %v7650, 64
        %v8118 = vpop.permute.xlu0 %8117
        %8119 = vrot.lane.b32.xlu0 %v7652, 64
        %v8120 = vpop.permute.xlu0 %8119
        %8121 = vrot.lane.b32.xlu0 %v7655, 64
        %v8122 = vpop.permute.xlu0 %8121
        %8123 = vrot.lane.b32.xlu0 %v7657, 64
        %v8124 = vpop.permute.xlu0 %8123
        %8157 = vrot.lane.b32.xlu0 %v7974, 96
        %v8158 = vpop.permute.xlu0 %8157
        %8159 = vrot.lane.b32.xlu0 %v7976, 96
        %v8160 = vpop.permute.xlu0 %8159
        %8161 = vrot.lane.b32.xlu0 %v7979, 96
        %v8162 = vpop.permute.xlu0 %8161
        %8163 = vrot.lane.b32.xlu0 %v7981, 96
        %v8164 = vpop.permute.xlu0 %8163
        %8165 = vrot.lane.b32.xlu0 %v7984, 96
        %v8166 = vpop.permute.xlu0 %8165
        %8167 = vrot.lane.b32.xlu0 %v7986, 96
        %v8168 = vpop.permute.xlu0 %8167
        %8169 = vrot.lane.b32.xlu0 %v7989, 96
        %v8170 = vpop.permute.xlu0 %8169
        %8171 = vrot.lane.b32.xlu0 %v7991, 96
        %v8172 = vpop.permute.xlu0 %8171
        %8173 = vrot.lane.b32.xlu0 %v7994, 96
        %v8174 = vpop.permute.xlu0 %8173
        %8175 = vrot.lane.b32.xlu0 %v7996, 96
        %v8176 = vpop.permute.xlu0 %8175
        %8177 = vrot.lane.b32.xlu0 %v7999, 96
        %v8178 = vpop.permute.xlu0 %8177
        %8179 = vrot.lane.b32.xlu0 %v8001, 96
        %v8180 = vpop.permute.xlu0 %8179
        %8181 = vrot.lane.b32.xlu0 %v8004, 96
        %v8182 = vpop.permute.xlu0 %8181
        %8183 = vrot.lane.b32.xlu0 %v8006, 96
        %v8184 = vpop.permute.xlu0 %8183
        %8185 = vrot.lane.b32.xlu0 %v8009, 96
        %v8186 = vpop.permute.xlu0 %8185
        %8187 = vrot.lane.b32.xlu0 %v8011, 96
        %v8188 = vpop.permute.xlu0 %8187
        %v8205 = vsel %vm1806, %v6912, %v8030
        %v8206 = vsel %vm1806, %v6914, %v8032
        %v8207 = vsel %vm1806, %v6917, %v8034
        %v8208 = vsel %vm1806, %v6919, %v8036
        %v8209 = vsel %vm1806, %v6922, %v8038
        %v8210 = vsel %vm1806, %v6924, %v8040
        %v8211 = vsel %vm1806, %v6927, %v8042
        %v8212 = vsel %vm1806, %v6929, %v8044
        %v8213 = vsel %vm1806, %v6932, %v8046
        %v8214 = vsel %vm1806, %v6934, %v8048
        %v8215 = vsel %vm1806, %v6937, %v8050
        %v8216 = vsel %vm1806, %v6939, %v8052
        %v8217 = vsel %vm1806, %v6942, %v8054
        %v8218 = vsel %vm1806, %v6944, %v8056
        %v8219 = vsel %vm1806, %v6947, %v8058
        %v8220 = vsel %vm1806, %v6949, %v8060
        %v8221 = vsel %vm3423, %v8205, %v8094
        %v8222 = vsel %vm3423, %v8206, %v8096
        %v8223 = vsel %vm3423, %v8207, %v8098
        %v8224 = vsel %vm3423, %v8208, %v8100
        %v8225 = vsel %vm3423, %v8209, %v8102
        %v8226 = vsel %vm3423, %v8210, %v8104
        %v8227 = vsel %vm3423, %v8211, %v8106
        %v8228 = vsel %vm3423, %v8212, %v8108
        %v8229 = vsel %vm3423, %v8213, %v8110
        %v8230 = vsel %vm3423, %v8214, %v8112
        %v8231 = vsel %vm3423, %v8215, %v8114
        %v8232 = vsel %vm3423, %v8216, %v8116
        %v8233 = vsel %vm3423, %v8217, %v8118
        %v8234 = vsel %vm3423, %v8218, %v8120
        %v8235 = vsel %vm3423, %v8219, %v8122
        %v8236 = vsel %vm3423, %v8220, %v8124
        %v8237 = vsel %vm3440, %v8221, %v8158
        %v8238 = vsel %vm3440, %v8222, %v8160
        %v8239 = vsel %vm3440, %v8223, %v8162
        %v8240 = vsel %vm3440, %v8224, %v8164
        %v8241 = vsel %vm3440, %v8225, %v8166
        %v8242 = vsel %vm3440, %v8226, %v8168
        %v8243 = vsel %vm3440, %v8227, %v8170
        %v8244 = vsel %vm3440, %v8228, %v8172
        %v8245 = vsel %vm3440, %v8229, %v8174
        %v8246 = vsel %vm3440, %v8230, %v8176
        %v8247 = vsel %vm3440, %v8231, %v8178
        %v8248 = vsel %vm3440, %v8232, %v8180
        %v8249 = vsel %vm3440, %v8233, %v8182
        %v8250 = vsel %vm3440, %v8234, %v8184
        %v8251 = vsel %vm3440, %v8235, %v8186
        %v8252 = vsel %vm3440, %v8236, %v8188
        %v8253 = vpack.c.bf16 %v8238, %v8237
        %v8254 = vpack.c.bf16 %v8240, %v8239
        %v8255 = vpack.c.bf16 %v8242, %v8241
        %v8256 = vpack.c.bf16 %v8244, %v8243
        %v8257 = vpack.c.bf16 %v8246, %v8245
        %v8258 = vpack.c.bf16 %v8248, %v8247
        %v8259 = vpack.c.bf16 %v8250, %v8249
        %v8260 = vpack.c.bf16 %v8252, %v8251
        %v8261 = vld [vmem:[#allocation16] sm:$0xf]
        %v8262 = vld [vmem:[#allocation16 + $0x4] sm:$0xf]
        %v8263 = vld [vmem:[#allocation16 + $0x8] sm:$0xf]
        %v8264 = vld [vmem:[#allocation16 + $0xc] sm:$0xf]
        %v8265 = vld [vmem:[#allocation16 + $0x10] sm:$0xf]
        %v8266 = vld [vmem:[#allocation16 + $0x14] sm:$0xf]
        %v8267 = vld [vmem:[#allocation16 + $0x18] sm:$0xf]
        %v8268 = vld [vmem:[#allocation16 + $0x1c] sm:$0xf]
        %v8269 = vld [vmem:[#allocation16 + $0x20] sm:$0xf]
        %v8270 = vld [vmem:[#allocation16 + $0x24] sm:$0xf]
        %v8271 = vld [vmem:[#allocation16 + $0x28] sm:$0xf]
        %v8272 = vld [vmem:[#allocation16 + $0x2c] sm:$0xf]
        %v8273 = vld [vmem:[#allocation16 + $0x30] sm:$0xf]
        %v8274 = vld [vmem:[#allocation16 + $0x34] sm:$0xf]
        %v8275 = vld [vmem:[#allocation16 + $0x38] sm:$0xf]
        %v8276 = vld [vmem:[#allocation16 + $0x3c] sm:$0xf]
        %v8277 = vld [vmem:[%s17] sm:$0x1]
        %v8279 = vperm.slane %v8277, 0
        %v8297 = vunpack.c.l.b16 %v8261
        %v8298 = vunpack.c.l.b16 %v8262
        %v8299 = vunpack.c.l.b16 %v8263
        %v8300 = vunpack.c.l.b16 %v8264
        %v8301 = vunpack.c.l.b16 %v8265
        %v8302 = vunpack.c.l.b16 %v8266
        %v8303 = vunpack.c.l.b16 %v8267
        %v8304 = vunpack.c.l.b16 %v8268
        %v8305 = vunpack.c.l.b16 %v8269
        %v8306 = vunpack.c.l.b16 %v8270
        %v8307 = vunpack.c.l.b16 %v8271
        %v8308 = vunpack.c.l.b16 %v8272
        %v8309 = vunpack.c.l.b16 %v8273
        %v8310 = vunpack.c.l.b16 %v8274
        %v8311 = vunpack.c.l.b16 %v8275
        %v8312 = vunpack.c.l.b16 %v8276
        %v8313 = vpack.c.b16 %v8298, %v8297
        %v8314 = vpack.c.b16 %v8300, %v8299
        %v8315 = vpack.c.b16 %v8302, %v8301
        %v8316 = vpack.c.b16 %v8304, %v8303
        %v8317 = vpack.c.b16 %v8306, %v8305
        %v8318 = vpack.c.b16 %v8308, %v8307
        %v8319 = vpack.c.b16 %v8310, %v8309
        %v8320 = vpack.c.b16 %v8312, %v8311
        %8329 = vmatpush.bf16.msra.mxu0 %v8320
        %8330 = vmatpush.bf16.msra.mxu0 %v8319
        %8331 = vmatpush.bf16.msra.mxu0 %v8318
        %8332 = vmatpush.bf16.msra.mxu0 %v8317
        %8333 = vmatpush.bf16.msra.mxu0 %v8316
        %8334 = vmatpush.bf16.msra.mxu0 %v8315
        %8335 = vmatpush.bf16.msra.mxu0 %v8314
        %8336 = vmatpush.bf16.msra.mxu0 %v8313
        %8337 = vmatmul.bf16.gmra.mxu0 %v8253
        %v8338 = vpop.f32.mrf.mxu0
        %v8339 = vadd.f32 %v8279, %v8338
        %v8340 = vpop.f32.mrf.mxu0
        %v8341 = vadd.f32 %v8279, %v8340
        %8342 = vmatmul.bf16.gmra.mxu0 %v8254
        %v8343 = vpop.f32.mrf.mxu0
        %v8344 = vadd.f32 %v8279, %v8343
        %v8345 = vpop.f32.mrf.mxu0
        %v8346 = vadd.f32 %v8279, %v8345
        %8347 = vmatmul.bf16.gmra.mxu0 %v8255
        %v8348 = vpop.f32.mrf.mxu0
        %v8349 = vadd.f32 %v8279, %v8348
        %v8350 = vpop.f32.mrf.mxu0
        %v8351 = vadd.f32 %v8279, %v8350
        %8352 = vmatmul.bf16.gmra.mxu0 %v8256
        %v8353 = vpop.f32.mrf.mxu0
        %v8354 = vadd.f32 %v8279, %v8353
        %v8355 = vpop.f32.mrf.mxu0
        %v8356 = vadd.f32 %v8279, %v8355
        %8357 = vmatmul.bf16.gmra.mxu0 %v8257
        %v8358 = vpop.f32.mrf.mxu0
        %v8359 = vadd.f32 %v8279, %v8358
        %v8360 = vpop.f32.mrf.mxu0
        %v8361 = vadd.f32 %v8279, %v8360
        %8362 = vmatmul.bf16.gmra.mxu0 %v8258
        %v8363 = vpop.f32.mrf.mxu0
        %v8364 = vadd.f32 %v8279, %v8363
        %v8365 = vpop.f32.mrf.mxu0
        %v8366 = vadd.f32 %v8279, %v8365
        %8367 = vmatmul.bf16.gmra.mxu0 %v8259
        %v8368 = vpop.f32.mrf.mxu0
        %v8369 = vadd.f32 %v8279, %v8368
        %v8370 = vpop.f32.mrf.mxu0
        %v8371 = vadd.f32 %v8279, %v8370
        %8372 = vmatmul.bf16.gmra.mxu0 %v8260
        %v8373 = vpop.f32.mrf.mxu0
        %v8374 = vadd.f32 %v8279, %v8373
        %v8375 = vpop.f32.mrf.mxu0
        %v8376 = vadd.f32 %v8279, %v8375
        %8377 = vdwg.mxu0
        %v8378 = vadd.f32 %v8339, %v6162
        %v8379 = vadd.f32 %v8341, %v6163
        %v8380 = vadd.f32 %v8344, %v6164
        %v8381 = vadd.f32 %v8346, %v6165
        %v8382 = vadd.f32 %v8349, %v6166
        %v8383 = vadd.f32 %v8351, %v6167
        %v8384 = vadd.f32 %v8354, %v6168
        %v8385 = vadd.f32 %v8356, %v6169
        %v8386 = vadd.f32 %v8359, %v6170
        %v8387 = vadd.f32 %v8361, %v6171
        %v8388 = vadd.f32 %v8364, %v6172
        %v8389 = vadd.f32 %v8366, %v6173
        %v8390 = vadd.f32 %v8369, %v6174
        %v8391 = vadd.f32 %v8371, %v6175
        %v8392 = vadd.f32 %v8374, %v6176
        %v8393 = vadd.f32 %v8376, %v6177
        %8394 = vadd.xlane.f32.xlu0 %v8378
        %v8395 = vpop.xlane.xlu0 %8394
        %8396 = vadd.xlane.f32.xlu0 %v8379
        %v8397 = vpop.xlane.xlu0 %8396
        %8398 = vadd.xlane.f32.xlu0 %v8380
        %v8399 = vpop.xlane.xlu0 %8398
        %8400 = vadd.xlane.f32.xlu0 %v8381
        %v8401 = vpop.xlane.xlu0 %8400
        %8402 = vadd.xlane.f32.xlu0 %v8382
        %v8403 = vpop.xlane.xlu0 %8402
        %8404 = vadd.xlane.f32.xlu0 %v8383
        %v8405 = vpop.xlane.xlu0 %8404
        %8406 = vadd.xlane.f32.xlu0 %v8384
        %v8407 = vpop.xlane.xlu0 %8406
        %8408 = vadd.xlane.f32.xlu0 %v8385
        %v8409 = vpop.xlane.xlu0 %8408
        %8410 = vadd.xlane.f32.xlu0 %v8386
        %v8411 = vpop.xlane.xlu0 %8410
        %8412 = vadd.xlane.f32.xlu0 %v8387
        %v8413 = vpop.xlane.xlu0 %8412
        %8414 = vadd.xlane.f32.xlu0 %v8388
        %v8415 = vpop.xlane.xlu0 %8414
        %8416 = vadd.xlane.f32.xlu0 %v8389
        %v8417 = vpop.xlane.xlu0 %8416
        %8418 = vadd.xlane.f32.xlu0 %v8390
        %v8419 = vpop.xlane.xlu0 %8418
        %8420 = vadd.xlane.f32.xlu0 %v8391
        %v8421 = vpop.xlane.xlu0 %8420
        %8422 = vadd.xlane.f32.xlu0 %v8392
        %v8423 = vpop.xlane.xlu0 %8422
        %8424 = vadd.xlane.f32.xlu0 %v8393
        %v8425 = vpop.xlane.xlu0 %8424
        %v8426 = vmul.f32 %v8395, %v1034
        %v8427 = vmul.f32 %v8397, %v1034
        %v8428 = vmul.f32 %v8399, %v1034
        %v8429 = vmul.f32 %v8401, %v1034
        %v8430 = vmul.f32 %v8403, %v1034
        %v8431 = vmul.f32 %v8405, %v1034
        %v8432 = vmul.f32 %v8407, %v1034
        %v8433 = vmul.f32 %v8409, %v1034
        %v8434 = vmul.f32 %v8411, %v1034
        %v8435 = vmul.f32 %v8413, %v1034
        %v8436 = vmul.f32 %v8415, %v1034
        %v8437 = vmul.f32 %v8417, %v1034
        %v8438 = vmul.f32 %v8419, %v1034
        %v8439 = vmul.f32 %v8421, %v1034
        %v8440 = vmul.f32 %v8423, %v1034
        %v8441 = vmul.f32 %v8425, %v1034
        %v8442 = vsub.f32 %v8378, %v8426
        %v8443 = vsub.f32 %v8379, %v8427
        %v8444 = vsub.f32 %v8380, %v8428
        %v8445 = vsub.f32 %v8381, %v8429
        %v8446 = vsub.f32 %v8382, %v8430
        %v8447 = vsub.f32 %v8383, %v8431
        %v8448 = vsub.f32 %v8384, %v8432
        %v8449 = vsub.f32 %v8385, %v8433
        %v8450 = vsub.f32 %v8386, %v8434
        %v8451 = vsub.f32 %v8387, %v8435
        %v8452 = vsub.f32 %v8388, %v8436
        %v8453 = vsub.f32 %v8389, %v8437
        %v8454 = vsub.f32 %v8390, %v8438
        %v8455 = vsub.f32 %v8391, %v8439
        %v8456 = vsub.f32 %v8392, %v8440
        %v8457 = vsub.f32 %v8393, %v8441
        %v8458 = vmul.f32 %v8442, %v8442
        %v8459 = vmul.f32 %v8443, %v8443
        %v8460 = vmul.f32 %v8444, %v8444
        %v8461 = vmul.f32 %v8445, %v8445
        %v8462 = vmul.f32 %v8446, %v8446
        %v8463 = vmul.f32 %v8447, %v8447
        %v8464 = vmul.f32 %v8448, %v8448
        %v8465 = vmul.f32 %v8449, %v8449
        %v8466 = vmul.f32 %v8450, %v8450
        %v8467 = vmul.f32 %v8451, %v8451
        %v8468 = vmul.f32 %v8452, %v8452
        %v8469 = vmul.f32 %v8453, %v8453
        %v8470 = vmul.f32 %v8454, %v8454
        %v8471 = vmul.f32 %v8455, %v8455
        %v8472 = vmul.f32 %v8456, %v8456
        %v8473 = vmul.f32 %v8457, %v8457
        %8474 = vadd.xlane.f32.xlu0 %v8458
        %v8475 = vpop.xlane.xlu0 %8474
        %8476 = vadd.xlane.f32.xlu0 %v8459
        %v8477 = vpop.xlane.xlu0 %8476
        %8478 = vadd.xlane.f32.xlu0 %v8460
        %v8479 = vpop.xlane.xlu0 %8478
        %8480 = vadd.xlane.f32.xlu0 %v8461
        %v8481 = vpop.xlane.xlu0 %8480
        %8482 = vadd.xlane.f32.xlu0 %v8462
        %v8483 = vpop.xlane.xlu0 %8482
        %8484 = vadd.xlane.f32.xlu0 %v8463
        %v8485 = vpop.xlane.xlu0 %8484
        %8486 = vadd.xlane.f32.xlu0 %v8464
        %v8487 = vpop.xlane.xlu0 %8486
        %8488 = vadd.xlane.f32.xlu0 %v8465
        %v8489 = vpop.xlane.xlu0 %8488
        %8490 = vadd.xlane.f32.xlu0 %v8466
        %v8491 = vpop.xlane.xlu0 %8490
        %8492 = vadd.xlane.f32.xlu0 %v8467
        %v8493 = vpop.xlane.xlu0 %8492
        %8494 = vadd.xlane.f32.xlu0 %v8468
        %v8495 = vpop.xlane.xlu0 %8494
        %8496 = vadd.xlane.f32.xlu0 %v8469
        %v8497 = vpop.xlane.xlu0 %8496
        %8498 = vadd.xlane.f32.xlu0 %v8470
        %v8499 = vpop.xlane.xlu0 %8498
        %8500 = vadd.xlane.f32.xlu0 %v8471
        %v8501 = vpop.xlane.xlu0 %8500
        %8502 = vadd.xlane.f32.xlu0 %v8472
        %v8503 = vpop.xlane.xlu0 %8502
        %8504 = vadd.xlane.f32.xlu0 %v8473
        %v8505 = vpop.xlane.xlu0 %8504
        %v8506 = vmul.f32 %v8475, %v1034
        %v8507 = vmul.f32 %v8477, %v1034
        %v8508 = vmul.f32 %v8479, %v1034
        %v8509 = vmul.f32 %v8481, %v1034
        %v8510 = vmul.f32 %v8483, %v1034
        %v8511 = vmul.f32 %v8485, %v1034
        %v8512 = vmul.f32 %v8487, %v1034
        %v8513 = vmul.f32 %v8489, %v1034
        %v8514 = vmul.f32 %v8491, %v1034
        %v8515 = vmul.f32 %v8493, %v1034
        %v8516 = vmul.f32 %v8495, %v1034
        %v8517 = vmul.f32 %v8497, %v1034
        %v8518 = vmul.f32 %v8499, %v1034
        %v8519 = vmul.f32 %v8501, %v1034
        %v8520 = vmul.f32 %v8503, %v1034
        %v8521 = vmul.f32 %v8505, %v1034
        %v8522 = vadd.f32 %v8506, 1e-05
        %v8523 = vadd.f32 %v8507, 1e-05
        %v8524 = vadd.f32 %v8508, 1e-05
        %v8525 = vadd.f32 %v8509, 1e-05
        %v8526 = vadd.f32 %v8510, 1e-05
        %v8527 = vadd.f32 %v8511, 1e-05
        %v8528 = vadd.f32 %v8512, 1e-05
        %v8529 = vadd.f32 %v8513, 1e-05
        %v8530 = vadd.f32 %v8514, 1e-05
        %v8531 = vadd.f32 %v8515, 1e-05
        %v8532 = vadd.f32 %v8516, 1e-05
        %v8533 = vadd.f32 %v8517, 1e-05
        %v8534 = vadd.f32 %v8518, 1e-05
        %v8535 = vadd.f32 %v8519, 1e-05
        %v8536 = vadd.f32 %v8520, 1e-05
        %v8537 = vadd.f32 %v8521, 1e-05
        %v8538 = vrsqrt.pop %v8522
        %v8539 = vmul.f32 %v8538, %v8522
        %v8540 = vmul.f32 %v8539, %v8538
        %v8541 = vmul.f32 0.5, %v8540
        %v8542 = vsub.f32 1.5, %v8541
        %v8543 = vmul.f32 %v8538, %v8542
        %vm8544 = vweird.f32 %v8522
        %vm8545 = vweird.f32 %v8538
        %vm8546 = vmor %vm8544, %vm8545
        %v8547 = vsel %vm8546, %v8538, %v8543
        %v8548 = vrsqrt.pop %v8523
        %v8549 = vmul.f32 %v8548, %v8523
        %v8550 = vmul.f32 %v8549, %v8548
        %v8551 = vmul.f32 0.5, %v8550
        %v8552 = vsub.f32 1.5, %v8551
        %v8553 = vmul.f32 %v8548, %v8552
        %vm8554 = vweird.f32 %v8523
        %vm8555 = vweird.f32 %v8548
        %vm8556 = vmor %vm8554, %vm8555
        %v8557 = vsel %vm8556, %v8548, %v8553
        %v8558 = vrsqrt.pop %v8524
        %v8559 = vmul.f32 %v8558, %v8524
        %v8560 = vmul.f32 %v8559, %v8558
        %v8561 = vmul.f32 0.5, %v8560
        %v8562 = vsub.f32 1.5, %v8561
        %v8563 = vmul.f32 %v8558, %v8562
        %vm8564 = vweird.f32 %v8524
        %vm8565 = vweird.f32 %v8558
        %vm8566 = vmor %vm8564, %vm8565
        %v8567 = vsel %vm8566, %v8558, %v8563
        %v8568 = vrsqrt.pop %v8525
        %v8569 = vmul.f32 %v8568, %v8525
        %v8570 = vmul.f32 %v8569, %v8568
        %v8571 = vmul.f32 0.5, %v8570
        %v8572 = vsub.f32 1.5, %v8571
        %v8573 = vmul.f32 %v8568, %v8572
        %vm8574 = vweird.f32 %v8525
        %vm8575 = vweird.f32 %v8568
        %vm8576 = vmor %vm8574, %vm8575
        %v8577 = vsel %vm8576, %v8568, %v8573
        %v8578 = vrsqrt.pop %v8526
        %v8579 = vmul.f32 %v8578, %v8526
        %v8580 = vmul.f32 %v8579, %v8578
        %v8581 = vmul.f32 0.5, %v8580
        %v8582 = vsub.f32 1.5, %v8581
        %v8583 = vmul.f32 %v8578, %v8582
        %vm8584 = vweird.f32 %v8526
        %vm8585 = vweird.f32 %v8578
        %vm8586 = vmor %vm8584, %vm8585
        %v8587 = vsel %vm8586, %v8578, %v8583
        %v8588 = vrsqrt.pop %v8527
        %v8589 = vmul.f32 %v8588, %v8527
        %v8590 = vmul.f32 %v8589, %v8588
        %v8591 = vmul.f32 0.5, %v8590
        %v8592 = vsub.f32 1.5, %v8591
        %v8593 = vmul.f32 %v8588, %v8592
        %vm8594 = vweird.f32 %v8527
        %vm8595 = vweird.f32 %v8588
        %vm8596 = vmor %vm8594, %vm8595
        %v8597 = vsel %vm8596, %v8588, %v8593
        %v8598 = vrsqrt.pop %v8528
        %v8599 = vmul.f32 %v8598, %v8528
        %v8600 = vmul.f32 %v8599, %v8598
        %v8601 = vmul.f32 0.5, %v8600
        %v8602 = vsub.f32 1.5, %v8601
        %v8603 = vmul.f32 %v8598, %v8602
        %vm8604 = vweird.f32 %v8528
        %vm8605 = vweird.f32 %v8598
        %vm8606 = vmor %vm8604, %vm8605
        %v8607 = vsel %vm8606, %v8598, %v8603
        %v8608 = vrsqrt.pop %v8529
        %v8609 = vmul.f32 %v8608, %v8529
        %v8610 = vmul.f32 %v8609, %v8608
        %v8611 = vmul.f32 0.5, %v8610
        %v8612 = vsub.f32 1.5, %v8611
        %v8613 = vmul.f32 %v8608, %v8612
        %vm8614 = vweird.f32 %v8529
        %vm8615 = vweird.f32 %v8608
        %vm8616 = vmor %vm8614, %vm8615
        %v8617 = vsel %vm8616, %v8608, %v8613
        %v8618 = vrsqrt.pop %v8530
        %v8619 = vmul.f32 %v8618, %v8530
        %v8620 = vmul.f32 %v8619, %v8618
        %v8621 = vmul.f32 0.5, %v8620
        %v8622 = vsub.f32 1.5, %v8621
        %v8623 = vmul.f32 %v8618, %v8622
        %vm8624 = vweird.f32 %v8530
        %vm8625 = vweird.f32 %v8618
        %vm8626 = vmor %vm8624, %vm8625
        %v8627 = vsel %vm8626, %v8618, %v8623
        %v8628 = vrsqrt.pop %v8531
        %v8629 = vmul.f32 %v8628, %v8531
        %v8630 = vmul.f32 %v8629, %v8628
        %v8631 = vmul.f32 0.5, %v8630
        %v8632 = vsub.f32 1.5, %v8631
        %v8633 = vmul.f32 %v8628, %v8632
        %vm8634 = vweird.f32 %v8531
        %vm8635 = vweird.f32 %v8628
        %vm8636 = vmor %vm8634, %vm8635
        %v8637 = vsel %vm8636, %v8628, %v8633
        %v8638 = vrsqrt.pop %v8532
        %v8639 = vmul.f32 %v8638, %v8532
        %v8640 = vmul.f32 %v8639, %v8638
        %v8641 = vmul.f32 0.5, %v8640
        %v8642 = vsub.f32 1.5, %v8641
        %v8643 = vmul.f32 %v8638, %v8642
        %vm8644 = vweird.f32 %v8532
        %vm8645 = vweird.f32 %v8638
        %vm8646 = vmor %vm8644, %vm8645
        %v8647 = vsel %vm8646, %v8638, %v8643
        %v8648 = vrsqrt.pop %v8533
        %v8649 = vmul.f32 %v8648, %v8533
        %v8650 = vmul.f32 %v8649, %v8648
        %v8651 = vmul.f32 0.5, %v8650
        %v8652 = vsub.f32 1.5, %v8651
        %v8653 = vmul.f32 %v8648, %v8652
        %vm8654 = vweird.f32 %v8533
        %vm8655 = vweird.f32 %v8648
        %vm8656 = vmor %vm8654, %vm8655
        %v8657 = vsel %vm8656, %v8648, %v8653
        %v8658 = vrsqrt.pop %v8534
        %v8659 = vmul.f32 %v8658, %v8534
        %v8660 = vmul.f32 %v8659, %v8658
        %v8661 = vmul.f32 0.5, %v8660
        %v8662 = vsub.f32 1.5, %v8661
        %v8663 = vmul.f32 %v8658, %v8662
        %vm8664 = vweird.f32 %v8534
        %vm8665 = vweird.f32 %v8658
        %vm8666 = vmor %vm8664, %vm8665
        %v8667 = vsel %vm8666, %v8658, %v8663
        %v8668 = vrsqrt.pop %v8535
        %v8669 = vmul.f32 %v8668, %v8535
        %v8670 = vmul.f32 %v8669, %v8668
        %v8671 = vmul.f32 0.5, %v8670
        %v8672 = vsub.f32 1.5, %v8671
        %v8673 = vmul.f32 %v8668, %v8672
        %vm8674 = vweird.f32 %v8535
        %vm8675 = vweird.f32 %v8668
        %vm8676 = vmor %vm8674, %vm8675
        %v8677 = vsel %vm8676, %v8668, %v8673
        %v8678 = vrsqrt.pop %v8536
        %v8679 = vmul.f32 %v8678, %v8536
        %v8680 = vmul.f32 %v8679, %v8678
        %v8681 = vmul.f32 0.5, %v8680
        %v8682 = vsub.f32 1.5, %v8681
        %v8683 = vmul.f32 %v8678, %v8682
        %vm8684 = vweird.f32 %v8536
        %vm8685 = vweird.f32 %v8678
        %vm8686 = vmor %vm8684, %vm8685
        %v8687 = vsel %vm8686, %v8678, %v8683
        %v8688 = vrsqrt.pop %v8537
        %v8689 = vmul.f32 %v8688, %v8537
        %v8690 = vmul.f32 %v8689, %v8688
        %v8691 = vmul.f32 0.5, %v8690
        %v8692 = vsub.f32 1.5, %v8691
        %v8693 = vmul.f32 %v8688, %v8692
        %vm8694 = vweird.f32 %v8537
        %vm8695 = vweird.f32 %v8688
        %vm8696 = vmor %vm8694, %vm8695
        %v8697 = vsel %vm8696, %v8688, %v8693
        %v8698 = vmul.f32 %v8442, %v8547
        %v8699 = vmul.f32 %v8443, %v8557
        %v8700 = vmul.f32 %v8444, %v8567
        %v8701 = vmul.f32 %v8445, %v8577
        %v8702 = vmul.f32 %v8446, %v8587
        %v8703 = vmul.f32 %v8447, %v8597
        %v8704 = vmul.f32 %v8448, %v8607
        %v8705 = vmul.f32 %v8449, %v8617
        %v8706 = vmul.f32 %v8450, %v8627
        %v8707 = vmul.f32 %v8451, %v8637
        %v8708 = vmul.f32 %v8452, %v8647
        %v8709 = vmul.f32 %v8453, %v8657
        %v8710 = vmul.f32 %v8454, %v8667
        %v8711 = vmul.f32 %v8455, %v8677
        %v8712 = vmul.f32 %v8456, %v8687
        %v8713 = vmul.f32 %v8457, %v8697
        %v8714 = vld [vmem:[%s18] sm:$0x1]
        %v8716 = vperm.slane %v8714, 0
        %v8718 = vmul.f32 %v8698, %v8716
        %v8719 = vmul.f32 %v8699, %v8716
        %v8720 = vmul.f32 %v8700, %v8716
        %v8721 = vmul.f32 %v8701, %v8716
        %v8722 = vmul.f32 %v8702, %v8716
        %v8723 = vmul.f32 %v8703, %v8716
        %v8724 = vmul.f32 %v8704, %v8716
        %v8725 = vmul.f32 %v8705, %v8716
        %v8726 = vmul.f32 %v8706, %v8716
        %v8727 = vmul.f32 %v8707, %v8716
        %v8728 = vmul.f32 %v8708, %v8716
        %v8729 = vmul.f32 %v8709, %v8716
        %v8730 = vmul.f32 %v8710, %v8716
        %v8731 = vmul.f32 %v8711, %v8716
        %v8732 = vmul.f32 %v8712, %v8716
        %v8733 = vmul.f32 %v8713, %v8716
        %v8734 = vld [vmem:[%s19] sm:$0x1]
        %v8736 = vperm.slane %v8734, 0
        %v8738 = vadd.f32 %v8718, %v8736
        %v8739 = vadd.f32 %v8719, %v8736
        %v8740 = vadd.f32 %v8720, %v8736
        %v8741 = vadd.f32 %v8721, %v8736
        %v8742 = vadd.f32 %v8722, %v8736
        %v8743 = vadd.f32 %v8723, %v8736
        %v8744 = vadd.f32 %v8724, %v8736
        %v8745 = vadd.f32 %v8725, %v8736
        %v8746 = vadd.f32 %v8726, %v8736
        %v8747 = vadd.f32 %v8727, %v8736
        %v8748 = vadd.f32 %v8728, %v8736
        %v8749 = vadd.f32 %v8729, %v8736
        %v8750 = vadd.f32 %v8730, %v8736
        %v8751 = vadd.f32 %v8731, %v8736
        %v8752 = vadd.f32 %v8732, %v8736
        %v8753 = vadd.f32 %v8733, %v8736
        %v8754 = vpack.c.bf16 %v8739, %v8738
        %v8755 = vpack.c.bf16 %v8741, %v8740
        %v8756 = vpack.c.bf16 %v8743, %v8742
        %v8757 = vpack.c.bf16 %v8745, %v8744
        %v8758 = vpack.c.bf16 %v8747, %v8746
        %v8759 = vpack.c.bf16 %v8749, %v8748
        %v8760 = vpack.c.bf16 %v8751, %v8750
        %v8761 = vpack.c.bf16 %v8753, %v8752
        %v8762 = vld [vmem:[%s20] sm:$0xff]
        %v8763 = vld [vmem:[%s20 + $0x8] sm:$0xff]
        %v8764 = vld [vmem:[%s20 + $0x10] sm:$0xff]
        %v8765 = vld [vmem:[%s20 + $0x18] sm:$0xff]
        %v8766 = vld [vmem:[%s20 + $0x20] sm:$0xff]
        %v8767 = vld [vmem:[%s20 + $0x28] sm:$0xff]
        %v8768 = vld [vmem:[%s20 + $0x30] sm:$0xff]
        %v8769 = vld [vmem:[%s20 + $0x38] sm:$0xff]
        %v8770 = vld [vmem:[%s20 + $0x40] sm:$0xff]
        %v8771 = vld [vmem:[%s20 + $0x48] sm:$0xff]
        %v8772 = vld [vmem:[%s20 + $0x50] sm:$0xff]
        %v8773 = vld [vmem:[%s20 + $0x58] sm:$0xff]
        %v8774 = vld [vmem:[%s20 + $0x60] sm:$0xff]
        %v8775 = vld [vmem:[%s20 + $0x68] sm:$0xff]
        %v8776 = vld [vmem:[%s20 + $0x70] sm:$0xff]
        %v8777 = vld [vmem:[%s20 + $0x78] sm:$0xff]
        %v8778 = vld [vmem:[%s20 + $0x80] sm:$0xff]
        %v8779 = vld [vmem:[%s20 + $0x88] sm:$0xff]
        %v8780 = vld [vmem:[%s20 + $0x90] sm:$0xff]
        %v8781 = vld [vmem:[%s20 + $0x98] sm:$0xff]
        %v8782 = vld [vmem:[%s20 + $0xa0] sm:$0xff]
        %v8783 = vld [vmem:[%s20 + $0xa8] sm:$0xff]
        %v8784 = vld [vmem:[%s20 + $0xb0] sm:$0xff]
        %v8785 = vld [vmem:[%s20 + $0xb8] sm:$0xff]
        %v8786 = vld [vmem:[%s20 + $0xc0] sm:$0xff]
        %v8787 = vld [vmem:[%s20 + $0xc8] sm:$0xff]
        %v8788 = vld [vmem:[%s20 + $0xd0] sm:$0xff]
        %v8789 = vld [vmem:[%s20 + $0xd8] sm:$0xff]
        %v8790 = vld [vmem:[%s20 + $0xe0] sm:$0xff]
        %v8791 = vld [vmem:[%s20 + $0xe8] sm:$0xff]
        %v8792 = vld [vmem:[%s20 + $0xf0] sm:$0xff]
        %v8793 = vld [vmem:[%s20 + $0xf8] sm:$0xff]
        %v8794 = vld [vmem:[%s20 + $0x100] sm:$0xff]
        %v8795 = vld [vmem:[%s20 + $0x108] sm:$0xff]
        %v8796 = vld [vmem:[%s20 + $0x110] sm:$0xff]
        %v8797 = vld [vmem:[%s20 + $0x118] sm:$0xff]
        %v8798 = vld [vmem:[%s20 + $0x120] sm:$0xff]
        %v8799 = vld [vmem:[%s20 + $0x128] sm:$0xff]
        %v8800 = vld [vmem:[%s20 + $0x130] sm:$0xff]
        %v8801 = vld [vmem:[%s20 + $0x138] sm:$0xff]
        %v8802 = vld [vmem:[%s20 + $0x140] sm:$0xff]
        %v8803 = vld [vmem:[%s20 + $0x148] sm:$0xff]
        %v8804 = vld [vmem:[%s20 + $0x150] sm:$0xff]
        %v8805 = vld [vmem:[%s20 + $0x158] sm:$0xff]
        %v8806 = vld [vmem:[%s20 + $0x160] sm:$0xff]
        %v8807 = vld [vmem:[%s20 + $0x168] sm:$0xff]
        %v8808 = vld [vmem:[%s20 + $0x170] sm:$0xff]
        %v8809 = vld [vmem:[%s20 + $0x178] sm:$0xff]
        %v8810 = vld [vmem:[%s20 + $0x180] sm:$0xff]
        %v8811 = vld [vmem:[%s20 + $0x188] sm:$0xff]
        %v8812 = vld [vmem:[%s20 + $0x190] sm:$0xff]
        %v8813 = vld [vmem:[%s20 + $0x198] sm:$0xff]
        %v8814 = vld [vmem:[%s20 + $0x1a0] sm:$0xff]
        %v8815 = vld [vmem:[%s20 + $0x1a8] sm:$0xff]
        %v8816 = vld [vmem:[%s20 + $0x1b0] sm:$0xff]
        %v8817 = vld [vmem:[%s20 + $0x1b8] sm:$0xff]
        %v8818 = vld [vmem:[%s20 + $0x1c0] sm:$0xff]
        %v8819 = vld [vmem:[%s20 + $0x1c8] sm:$0xff]
        %v8820 = vld [vmem:[%s20 + $0x1d0] sm:$0xff]
        %v8821 = vld [vmem:[%s20 + $0x1d8] sm:$0xff]
        %v8822 = vld [vmem:[%s20 + $0x1e0] sm:$0xff]
        %v8823 = vld [vmem:[%s20 + $0x1e8] sm:$0xff]
        %v8824 = vld [vmem:[%s20 + $0x1f0] sm:$0xff]
        %v8825 = vld [vmem:[%s20 + $0x1f8] sm:$0xff]
        %v8826 = vld [vmem:[%s21] sm:$0xff]
        %v8828 = vperm.slane %v8826, 0
        %v8829 = vperm.slane %v8826, 1
        %v8830 = vperm.slane %v8826, 2
        %v8831 = vperm.slane %v8826, 3
        %v8832 = vperm.slane %v8826, 4
        %v8833 = vperm.slane %v8826, 5
        %v8834 = vperm.slane %v8826, 6
        %v8835 = vperm.slane %v8826, 7
        %v8908 = vunpack.c.l.b16 %v8762
        %v8909 = vunpack.c.h.b16 %v8762
        %v8910 = vunpack.c.l.b16 %v8763
        %v8911 = vunpack.c.h.b16 %v8763
        %v8912 = vunpack.c.l.b16 %v8764
        %v8913 = vunpack.c.h.b16 %v8764
        %v8914 = vunpack.c.l.b16 %v8765
        %v8915 = vunpack.c.h.b16 %v8765
        %v8916 = vunpack.c.l.b16 %v8766
        %v8917 = vunpack.c.h.b16 %v8766
        %v8918 = vunpack.c.l.b16 %v8767
        %v8919 = vunpack.c.h.b16 %v8767
        %v8920 = vunpack.c.l.b16 %v8768
        %v8921 = vunpack.c.h.b16 %v8768
        %v8922 = vunpack.c.l.b16 %v8769
        %v8923 = vunpack.c.h.b16 %v8769
        %v8924 = vunpack.c.l.b16 %v8770
        %v8925 = vunpack.c.h.b16 %v8770
        %v8926 = vunpack.c.l.b16 %v8771
        %v8927 = vunpack.c.h.b16 %v8771
        %v8928 = vunpack.c.l.b16 %v8772
        %v8929 = vunpack.c.h.b16 %v8772
        %v8930 = vunpack.c.l.b16 %v8773
        %v8931 = vunpack.c.h.b16 %v8773
        %v8932 = vunpack.c.l.b16 %v8774
        %v8933 = vunpack.c.h.b16 %v8774
        %v8934 = vunpack.c.l.b16 %v8775
        %v8935 = vunpack.c.h.b16 %v8775
        %v8936 = vunpack.c.l.b16 %v8776
        %v8937 = vunpack.c.h.b16 %v8776
        %v8938 = vunpack.c.l.b16 %v8777
        %v8939 = vunpack.c.h.b16 %v8777
        %v8940 = vunpack.c.l.b16 %v8778
        %v8941 = vunpack.c.h.b16 %v8778
        %v8942 = vunpack.c.l.b16 %v8779
        %v8943 = vunpack.c.h.b16 %v8779
        %v8944 = vunpack.c.l.b16 %v8780
        %v8945 = vunpack.c.h.b16 %v8780
        %v8946 = vunpack.c.l.b16 %v8781
        %v8947 = vunpack.c.h.b16 %v8781
        %v8948 = vunpack.c.l.b16 %v8782
        %v8949 = vunpack.c.h.b16 %v8782
        %v8950 = vunpack.c.l.b16 %v8783
        %v8951 = vunpack.c.h.b16 %v8783
        %v8952 = vunpack.c.l.b16 %v8784
        %v8953 = vunpack.c.h.b16 %v8784
        %v8954 = vunpack.c.l.b16 %v8785
        %v8955 = vunpack.c.h.b16 %v8785
        %v8956 = vunpack.c.l.b16 %v8786
        %v8957 = vunpack.c.h.b16 %v8786
        %v8958 = vunpack.c.l.b16 %v8787
        %v8959 = vunpack.c.h.b16 %v8787
        %v8960 = vunpack.c.l.b16 %v8788
        %v8961 = vunpack.c.h.b16 %v8788
        %v8962 = vunpack.c.l.b16 %v8789
        %v8963 = vunpack.c.h.b16 %v8789
        %v8964 = vunpack.c.l.b16 %v8790
        %v8965 = vunpack.c.h.b16 %v8790
        %v8966 = vunpack.c.l.b16 %v8791
        %v8967 = vunpack.c.h.b16 %v8791
        %v8968 = vunpack.c.l.b16 %v8792
        %v8969 = vunpack.c.h.b16 %v8792
        %v8970 = vunpack.c.l.b16 %v8793
        %v8971 = vunpack.c.h.b16 %v8793
        %v8972 = vunpack.c.l.b16 %v8794
        %v8973 = vunpack.c.h.b16 %v8794
        %v8974 = vunpack.c.l.b16 %v8795
        %v8975 = vunpack.c.h.b16 %v8795
        %v8976 = vunpack.c.l.b16 %v8796
        %v8977 = vunpack.c.h.b16 %v8796
        %v8978 = vunpack.c.l.b16 %v8797
        %v8979 = vunpack.c.h.b16 %v8797
        %v8980 = vunpack.c.l.b16 %v8798
        %v8981 = vunpack.c.h.b16 %v8798
        %v8982 = vunpack.c.l.b16 %v8799
        %v8983 = vunpack.c.h.b16 %v8799
        %v8984 = vunpack.c.l.b16 %v8800
        %v8985 = vunpack.c.h.b16 %v8800
        %v8986 = vunpack.c.l.b16 %v8801
        %v8987 = vunpack.c.h.b16 %v8801
        %v8988 = vunpack.c.l.b16 %v8802
        %v8989 = vunpack.c.h.b16 %v8802
        %v8990 = vunpack.c.l.b16 %v8803
        %v8991 = vunpack.c.h.b16 %v8803
        %v8992 = vunpack.c.l.b16 %v8804
        %v8993 = vunpack.c.h.b16 %v8804
        %v8994 = vunpack.c.l.b16 %v8805
        %v8995 = vunpack.c.h.b16 %v8805
        %v8996 = vunpack.c.l.b16 %v8806
        %v8997 = vunpack.c.h.b16 %v8806
        %v8998 = vunpack.c.l.b16 %v8807
        %v8999 = vunpack.c.h.b16 %v8807
        %v9000 = vunpack.c.l.b16 %v8808
        %v9001 = vunpack.c.h.b16 %v8808
        %v9002 = vunpack.c.l.b16 %v8809
        %v9003 = vunpack.c.h.b16 %v8809
        %v9004 = vunpack.c.l.b16 %v8810
        %v9005 = vunpack.c.h.b16 %v8810
        %v9006 = vunpack.c.l.b16 %v8811
        %v9007 = vunpack.c.h.b16 %v8811
        %v9008 = vunpack.c.l.b16 %v8812
        %v9009 = vunpack.c.h.b16 %v8812
        %v9010 = vunpack.c.l.b16 %v8813
        %v9011 = vunpack.c.h.b16 %v8813
        %v9012 = vunpack.c.l.b16 %v8814
        %v9013 = vunpack.c.h.b16 %v8814
        %v9014 = vunpack.c.l.b16 %v8815
        %v9015 = vunpack.c.h.b16 %v8815
        %v9016 = vunpack.c.l.b16 %v8816
        %v9017 = vunpack.c.h.b16 %v8816
        %v9018 = vunpack.c.l.b16 %v8817
        %v9019 = vunpack.c.h.b16 %v8817
        %v9020 = vunpack.c.l.b16 %v8818
        %v9021 = vunpack.c.h.b16 %v8818
        %v9022 = vunpack.c.l.b16 %v8819
        %v9023 = vunpack.c.h.b16 %v8819
        %v9024 = vunpack.c.l.b16 %v8820
        %v9025 = vunpack.c.h.b16 %v8820
        %v9026 = vunpack.c.l.b16 %v8821
        %v9027 = vunpack.c.h.b16 %v8821
        %v9028 = vunpack.c.l.b16 %v8822
        %v9029 = vunpack.c.h.b16 %v8822
        %v9030 = vunpack.c.l.b16 %v8823
        %v9031 = vunpack.c.h.b16 %v8823
        %v9032 = vunpack.c.l.b16 %v8824
        %v9033 = vunpack.c.h.b16 %v8824
        %v9034 = vunpack.c.l.b16 %v8825
        %v9035 = vunpack.c.h.b16 %v8825
        %v9036 = vpack.c.b16 %v8916, %v8908
        %v9037 = vpack.c.b16 %v8917, %v8909
        %v9038 = vpack.c.b16 %v8918, %v8910
        %v9039 = vpack.c.b16 %v8919, %v8911
        %v9040 = vpack.c.b16 %v8920, %v8912
        %v9041 = vpack.c.b16 %v8921, %v8913
        %v9042 = vpack.c.b16 %v8922, %v8914
        %v9043 = vpack.c.b16 %v8923, %v8915
        %v9044 = vpack.c.b16 %v8932, %v8924
        %v9045 = vpack.c.b16 %v8933, %v8925
        %v9046 = vpack.c.b16 %v8934, %v8926
        %v9047 = vpack.c.b16 %v8935, %v8927
        %v9048 = vpack.c.b16 %v8936, %v8928
        %v9049 = vpack.c.b16 %v8937, %v8929
        %v9050 = vpack.c.b16 %v8938, %v8930
        %v9051 = vpack.c.b16 %v8939, %v8931
        %v9052 = vpack.c.b16 %v8948, %v8940
        %v9053 = vpack.c.b16 %v8949, %v8941
        %v9054 = vpack.c.b16 %v8950, %v8942
        %v9055 = vpack.c.b16 %v8951, %v8943
        %v9056 = vpack.c.b16 %v8952, %v8944
        %v9057 = vpack.c.b16 %v8953, %v8945
        %v9058 = vpack.c.b16 %v8954, %v8946
        %v9059 = vpack.c.b16 %v8955, %v8947
        %v9060 = vpack.c.b16 %v8964, %v8956
        %v9061 = vpack.c.b16 %v8965, %v8957
        %v9062 = vpack.c.b16 %v8966, %v8958
        %v9063 = vpack.c.b16 %v8967, %v8959
        %v9064 = vpack.c.b16 %v8968, %v8960
        %v9065 = vpack.c.b16 %v8969, %v8961
        %v9066 = vpack.c.b16 %v8970, %v8962
        %v9067 = vpack.c.b16 %v8971, %v8963
        %v9068 = vpack.c.b16 %v8980, %v8972
        %v9069 = vpack.c.b16 %v8981, %v8973
        %v9070 = vpack.c.b16 %v8982, %v8974
        %v9071 = vpack.c.b16 %v8983, %v8975
        %v9072 = vpack.c.b16 %v8984, %v8976
        %v9073 = vpack.c.b16 %v8985, %v8977
        %v9074 = vpack.c.b16 %v8986, %v8978
        %v9075 = vpack.c.b16 %v8987, %v8979
        %v9076 = vpack.c.b16 %v8996, %v8988
        %v9077 = vpack.c.b16 %v8997, %v8989
        %v9078 = vpack.c.b16 %v8998, %v8990
        %v9079 = vpack.c.b16 %v8999, %v8991
        %v9080 = vpack.c.b16 %v9000, %v8992
        %v9081 = vpack.c.b16 %v9001, %v8993
        %v9082 = vpack.c.b16 %v9002, %v8994
        %v9083 = vpack.c.b16 %v9003, %v8995
        %v9084 = vpack.c.b16 %v9012, %v9004
        %v9085 = vpack.c.b16 %v9013, %v9005
        %v9086 = vpack.c.b16 %v9014, %v9006
        %v9087 = vpack.c.b16 %v9015, %v9007
        %v9088 = vpack.c.b16 %v9016, %v9008
        %v9089 = vpack.c.b16 %v9017, %v9009
        %v9090 = vpack.c.b16 %v9018, %v9010
        %v9091 = vpack.c.b16 %v9019, %v9011
        %v9092 = vpack.c.b16 %v9028, %v9020
        %v9093 = vpack.c.b16 %v9029, %v9021
        %v9094 = vpack.c.b16 %v9030, %v9022
        %v9095 = vpack.c.b16 %v9031, %v9023
        %v9096 = vpack.c.b16 %v9032, %v9024
        %v9097 = vpack.c.b16 %v9033, %v9025
        %v9098 = vpack.c.b16 %v9034, %v9026
        %v9099 = vpack.c.b16 %v9035, %v9027
        %9164 = vmatpush.bf16.msra.mxu0 %v9092
        %9165 = vmatpush.bf16.msra.mxu0 %v9084
        %9166 = vmatpush.bf16.msra.mxu0 %v9076
        %9167 = vmatpush.bf16.msra.mxu0 %v9068
        %9168 = vmatpush.bf16.msra.mxu0 %v9060
        %9169 = vmatpush.bf16.msra.mxu0 %v9052
        %9170 = vmatpush.bf16.msra.mxu0 %v9044
        %9171 = vmatpush.bf16.msra.mxu0 %v9036
        %9172 = vmatmul.bf16.gmra.mxu0 %v8754
        %v9173 = vpop.f32.mrf.mxu0
        %v9174 = vadd.f32 %v8828, %v9173
        %v9175 = vpop.f32.mrf.mxu0
        %v9176 = vadd.f32 %v8828, %v9175
        %9177 = vmatmul.bf16.gmra.mxu0 %v8755
        %v9178 = vpop.f32.mrf.mxu0
        %v9179 = vadd.f32 %v8828, %v9178
        %v9180 = vpop.f32.mrf.mxu0
        %v9181 = vadd.f32 %v8828, %v9180
        %9182 = vmatmul.bf16.gmra.mxu0 %v8756
        %v9183 = vpop.f32.mrf.mxu0
        %v9184 = vadd.f32 %v8828, %v9183
        %v9185 = vpop.f32.mrf.mxu0
        %v9186 = vadd.f32 %v8828, %v9185
        %9187 = vmatmul.bf16.gmra.mxu0 %v8757
        %v9188 = vpop.f32.mrf.mxu0
        %v9189 = vadd.f32 %v8828, %v9188
        %v9190 = vpop.f32.mrf.mxu0
        %v9191 = vadd.f32 %v8828, %v9190
        %9192 = vmatmul.bf16.gmra.mxu0 %v8758
        %v9193 = vpop.f32.mrf.mxu0
        %v9194 = vadd.f32 %v8828, %v9193
        %v9195 = vpop.f32.mrf.mxu0
        %v9196 = vadd.f32 %v8828, %v9195
        %9197 = vmatmul.bf16.gmra.mxu0 %v8759
        %v9198 = vpop.f32.mrf.mxu0
        %v9199 = vadd.f32 %v8828, %v9198
        %v9200 = vpop.f32.mrf.mxu0
        %v9201 = vadd.f32 %v8828, %v9200
        %9202 = vmatmul.bf16.gmra.mxu0 %v8760
        %v9203 = vpop.f32.mrf.mxu0
        %v9204 = vadd.f32 %v8828, %v9203
        %v9205 = vpop.f32.mrf.mxu0
        %v9206 = vadd.f32 %v8828, %v9205
        %9207 = vmatmul.bf16.gmra.mxu0 %v8761
        %v9208 = vpop.f32.mrf.mxu0
        %v9209 = vadd.f32 %v8828, %v9208
        %v9210 = vpop.f32.mrf.mxu0
        %v9211 = vadd.f32 %v8828, %v9210
        %9212 = vdwg.mxu0
        %9213 = vmatpush.bf16.msra.mxu0 %v9093
        %9214 = vmatpush.bf16.msra.mxu0 %v9085
        %9215 = vmatpush.bf16.msra.mxu0 %v9077
        %9216 = vmatpush.bf16.msra.mxu0 %v9069
        %9217 = vmatpush.bf16.msra.mxu0 %v9061
        %9218 = vmatpush.bf16.msra.mxu0 %v9053
        %9219 = vmatpush.bf16.msra.mxu0 %v9045
        %9220 = vmatpush.bf16.msra.mxu0 %v9037
        %9221 = vmatmul.bf16.gmra.mxu0 %v8754
        %v9222 = vpop.f32.mrf.mxu0
        %v9223 = vadd.f32 %v8829, %v9222
        %v9224 = vpop.f32.mrf.mxu0
        %v9225 = vadd.f32 %v8829, %v9224
        %9226 = vmatmul.bf16.gmra.mxu0 %v8755
        %v9227 = vpop.f32.mrf.mxu0
        %v9228 = vadd.f32 %v8829, %v9227
        %v9229 = vpop.f32.mrf.mxu0
        %v9230 = vadd.f32 %v8829, %v9229
        %9231 = vmatmul.bf16.gmra.mxu0 %v8756
        %v9232 = vpop.f32.mrf.mxu0
        %v9233 = vadd.f32 %v8829, %v9232
        %v9234 = vpop.f32.mrf.mxu0
        %v9235 = vadd.f32 %v8829, %v9234
        %9236 = vmatmul.bf16.gmra.mxu0 %v8757
        %v9237 = vpop.f32.mrf.mxu0
        %v9238 = vadd.f32 %v8829, %v9237
        %v9239 = vpop.f32.mrf.mxu0
        %v9240 = vadd.f32 %v8829, %v9239
        %9241 = vmatmul.bf16.gmra.mxu0 %v8758
        %v9242 = vpop.f32.mrf.mxu0
        %v9243 = vadd.f32 %v8829, %v9242
        %v9244 = vpop.f32.mrf.mxu0
        %v9245 = vadd.f32 %v8829, %v9244
        %9246 = vmatmul.bf16.gmra.mxu0 %v8759
        %v9247 = vpop.f32.mrf.mxu0
        %v9248 = vadd.f32 %v8829, %v9247
        %v9249 = vpop.f32.mrf.mxu0
        %v9250 = vadd.f32 %v8829, %v9249
        %9251 = vmatmul.bf16.gmra.mxu0 %v8760
        %v9252 = vpop.f32.mrf.mxu0
        %v9253 = vadd.f32 %v8829, %v9252
        %v9254 = vpop.f32.mrf.mxu0
        %v9255 = vadd.f32 %v8829, %v9254
        %9256 = vmatmul.bf16.gmra.mxu0 %v8761
        %v9257 = vpop.f32.mrf.mxu0
        %v9258 = vadd.f32 %v8829, %v9257
        %v9259 = vpop.f32.mrf.mxu0
        %v9260 = vadd.f32 %v8829, %v9259
        %9261 = vdwg.mxu0
        %9262 = vmatpush.bf16.msra.mxu0 %v9094
        %9263 = vmatpush.bf16.msra.mxu0 %v9086
        %9264 = vmatpush.bf16.msra.mxu0 %v9078
        %9265 = vmatpush.bf16.msra.mxu0 %v9070
        %9266 = vmatpush.bf16.msra.mxu0 %v9062
        %9267 = vmatpush.bf16.msra.mxu0 %v9054
        %9268 = vmatpush.bf16.msra.mxu0 %v9046
        %9269 = vmatpush.bf16.msra.mxu0 %v9038
        %9270 = vmatmul.bf16.gmra.mxu0 %v8754
        %v9271 = vpop.f32.mrf.mxu0
        %v9272 = vadd.f32 %v8830, %v9271
        %v9273 = vpop.f32.mrf.mxu0
        %v9274 = vadd.f32 %v8830, %v9273
        %9275 = vmatmul.bf16.gmra.mxu0 %v8755
        %v9276 = vpop.f32.mrf.mxu0
        %v9277 = vadd.f32 %v8830, %v9276
        %v9278 = vpop.f32.mrf.mxu0
        %v9279 = vadd.f32 %v8830, %v9278
        %9280 = vmatmul.bf16.gmra.mxu0 %v8756
        %v9281 = vpop.f32.mrf.mxu0
        %v9282 = vadd.f32 %v8830, %v9281
        %v9283 = vpop.f32.mrf.mxu0
        %v9284 = vadd.f32 %v8830, %v9283
        %9285 = vmatmul.bf16.gmra.mxu0 %v8757
        %v9286 = vpop.f32.mrf.mxu0
        %v9287 = vadd.f32 %v8830, %v9286
        %v9288 = vpop.f32.mrf.mxu0
        %v9289 = vadd.f32 %v8830, %v9288
        %9290 = vmatmul.bf16.gmra.mxu0 %v8758
        %v9291 = vpop.f32.mrf.mxu0
        %v9292 = vadd.f32 %v8830, %v9291
        %v9293 = vpop.f32.mrf.mxu0
        %v9294 = vadd.f32 %v8830, %v9293
        %9295 = vmatmul.bf16.gmra.mxu0 %v8759
        %v9296 = vpop.f32.mrf.mxu0
        %v9297 = vadd.f32 %v8830, %v9296
        %v9298 = vpop.f32.mrf.mxu0
        %v9299 = vadd.f32 %v8830, %v9298
        %9300 = vmatmul.bf16.gmra.mxu0 %v8760
        %v9301 = vpop.f32.mrf.mxu0
        %v9302 = vadd.f32 %v8830, %v9301
        %v9303 = vpop.f32.mrf.mxu0
        %v9304 = vadd.f32 %v8830, %v9303
        %9305 = vmatmul.bf16.gmra.mxu0 %v8761
        %v9306 = vpop.f32.mrf.mxu0
        %v9307 = vadd.f32 %v8830, %v9306
        %v9308 = vpop.f32.mrf.mxu0
        %v9309 = vadd.f32 %v8830, %v9308
        %9310 = vdwg.mxu0
        %9311 = vmatpush.bf16.msra.mxu0 %v9095
        %9312 = vmatpush.bf16.msra.mxu0 %v9087
        %9313 = vmatpush.bf16.msra.mxu0 %v9079
        %9314 = vmatpush.bf16.msra.mxu0 %v9071
        %9315 = vmatpush.bf16.msra.mxu0 %v9063
        %9316 = vmatpush.bf16.msra.mxu0 %v9055
        %9317 = vmatpush.bf16.msra.mxu0 %v9047
        %9318 = vmatpush.bf16.msra.mxu0 %v9039
        %9319 = vmatmul.bf16.gmra.mxu0 %v8754
        %v9320 = vpop.f32.mrf.mxu0
        %v9321 = vadd.f32 %v8831, %v9320
        %v9322 = vpop.f32.mrf.mxu0
        %v9323 = vadd.f32 %v8831, %v9322
        %9324 = vmatmul.bf16.gmra.mxu0 %v8755
        %v9325 = vpop.f32.mrf.mxu0
        %v9326 = vadd.f32 %v8831, %v9325
        %v9327 = vpop.f32.mrf.mxu0
        %v9328 = vadd.f32 %v8831, %v9327
        %9329 = vmatmul.bf16.gmra.mxu0 %v8756
        %v9330 = vpop.f32.mrf.mxu0
        %v9331 = vadd.f32 %v8831, %v9330
        %v9332 = vpop.f32.mrf.mxu0
        %v9333 = vadd.f32 %v8831, %v9332
        %9334 = vmatmul.bf16.gmra.mxu0 %v8757
        %v9335 = vpop.f32.mrf.mxu0
        %v9336 = vadd.f32 %v8831, %v9335
        %v9337 = vpop.f32.mrf.mxu0
        %v9338 = vadd.f32 %v8831, %v9337
        %9339 = vmatmul.bf16.gmra.mxu0 %v8758
        %v9340 = vpop.f32.mrf.mxu0
        %v9341 = vadd.f32 %v8831, %v9340
        %v9342 = vpop.f32.mrf.mxu0
        %v9343 = vadd.f32 %v8831, %v9342
        %9344 = vmatmul.bf16.gmra.mxu0 %v8759
        %v9345 = vpop.f32.mrf.mxu0
        %v9346 = vadd.f32 %v8831, %v9345
        %v9347 = vpop.f32.mrf.mxu0
        %v9348 = vadd.f32 %v8831, %v9347
        %9349 = vmatmul.bf16.gmra.mxu0 %v8760
        %v9350 = vpop.f32.mrf.mxu0
        %v9351 = vadd.f32 %v8831, %v9350
        %v9352 = vpop.f32.mrf.mxu0
        %v9353 = vadd.f32 %v8831, %v9352
        %9354 = vmatmul.bf16.gmra.mxu0 %v8761
        %v9355 = vpop.f32.mrf.mxu0
        %v9356 = vadd.f32 %v8831, %v9355
        %v9357 = vpop.f32.mrf.mxu0
        %v9358 = vadd.f32 %v8831, %v9357
        %9359 = vdwg.mxu0
        %9360 = vmatpush.bf16.msra.mxu0 %v9096
        %9361 = vmatpush.bf16.msra.mxu0 %v9088
        %9362 = vmatpush.bf16.msra.mxu0 %v9080
        %9363 = vmatpush.bf16.msra.mxu0 %v9072
        %9364 = vmatpush.bf16.msra.mxu0 %v9064
        %9365 = vmatpush.bf16.msra.mxu0 %v9056
        %9366 = vmatpush.bf16.msra.mxu0 %v9048
        %9367 = vmatpush.bf16.msra.mxu0 %v9040
        %9368 = vmatmul.bf16.gmra.mxu0 %v8754
        %v9369 = vpop.f32.mrf.mxu0
        %v9370 = vadd.f32 %v8832, %v9369
        %v9371 = vpop.f32.mrf.mxu0
        %v9372 = vadd.f32 %v8832, %v9371
        %9373 = vmatmul.bf16.gmra.mxu0 %v8755
        %v9374 = vpop.f32.mrf.mxu0
        %v9375 = vadd.f32 %v8832, %v9374
        %v9376 = vpop.f32.mrf.mxu0
        %v9377 = vadd.f32 %v8832, %v9376
        %9378 = vmatmul.bf16.gmra.mxu0 %v8756
        %v9379 = vpop.f32.mrf.mxu0
        %v9380 = vadd.f32 %v8832, %v9379
        %v9381 = vpop.f32.mrf.mxu0
        %v9382 = vadd.f32 %v8832, %v9381
        %9383 = vmatmul.bf16.gmra.mxu0 %v8757
        %v9384 = vpop.f32.mrf.mxu0
        %v9385 = vadd.f32 %v8832, %v9384
        %v9386 = vpop.f32.mrf.mxu0
        %v9387 = vadd.f32 %v8832, %v9386
        %9388 = vmatmul.bf16.gmra.mxu0 %v8758
        %v9389 = vpop.f32.mrf.mxu0
        %v9390 = vadd.f32 %v8832, %v9389
        %v9391 = vpop.f32.mrf.mxu0
        %v9392 = vadd.f32 %v8832, %v9391
        %9393 = vmatmul.bf16.gmra.mxu0 %v8759
        %v9394 = vpop.f32.mrf.mxu0
        %v9395 = vadd.f32 %v8832, %v9394
        %v9396 = vpop.f32.mrf.mxu0
        %v9397 = vadd.f32 %v8832, %v9396
        %9398 = vmatmul.bf16.gmra.mxu0 %v8760
        %v9399 = vpop.f32.mrf.mxu0
        %v9400 = vadd.f32 %v8832, %v9399
        %v9401 = vpop.f32.mrf.mxu0
        %v9402 = vadd.f32 %v8832, %v9401
        %9403 = vmatmul.bf16.gmra.mxu0 %v8761
        %v9404 = vpop.f32.mrf.mxu0
        %v9405 = vadd.f32 %v8832, %v9404
        %v9406 = vpop.f32.mrf.mxu0
        %v9407 = vadd.f32 %v8832, %v9406
        %9408 = vdwg.mxu0
        %9409 = vmatpush.bf16.msra.mxu0 %v9097
        %9410 = vmatpush.bf16.msra.mxu0 %v9089
        %9411 = vmatpush.bf16.msra.mxu0 %v9081
        %9412 = vmatpush.bf16.msra.mxu0 %v9073
        %9413 = vmatpush.bf16.msra.mxu0 %v9065
        %9414 = vmatpush.bf16.msra.mxu0 %v9057
        %9415 = vmatpush.bf16.msra.mxu0 %v9049
        %9416 = vmatpush.bf16.msra.mxu0 %v9041
        %9417 = vmatmul.bf16.gmra.mxu0 %v8754
        %v9418 = vpop.f32.mrf.mxu0
        %v9419 = vadd.f32 %v8833, %v9418
        %v9420 = vpop.f32.mrf.mxu0
        %v9421 = vadd.f32 %v8833, %v9420
        %9422 = vmatmul.bf16.gmra.mxu0 %v8755
        %v9423 = vpop.f32.mrf.mxu0
        %v9424 = vadd.f32 %v8833, %v9423
        %v9425 = vpop.f32.mrf.mxu0
        %v9426 = vadd.f32 %v8833, %v9425
        %9427 = vmatmul.bf16.gmra.mxu0 %v8756
        %v9428 = vpop.f32.mrf.mxu0
        %v9429 = vadd.f32 %v8833, %v9428
        %v9430 = vpop.f32.mrf.mxu0
        %v9431 = vadd.f32 %v8833, %v9430
        %9432 = vmatmul.bf16.gmra.mxu0 %v8757
        %v9433 = vpop.f32.mrf.mxu0
        %v9434 = vadd.f32 %v8833, %v9433
        %v9435 = vpop.f32.mrf.mxu0
        %v9436 = vadd.f32 %v8833, %v9435
        %9437 = vmatmul.bf16.gmra.mxu0 %v8758
        %v9438 = vpop.f32.mrf.mxu0
        %v9439 = vadd.f32 %v8833, %v9438
        %v9440 = vpop.f32.mrf.mxu0
        %v9441 = vadd.f32 %v8833, %v9440
        %9442 = vmatmul.bf16.gmra.mxu0 %v8759
        %v9443 = vpop.f32.mrf.mxu0
        %v9444 = vadd.f32 %v8833, %v9443
        %v9445 = vpop.f32.mrf.mxu0
        %v9446 = vadd.f32 %v8833, %v9445
        %9447 = vmatmul.bf16.gmra.mxu0 %v8760
        %v9448 = vpop.f32.mrf.mxu0
        %v9449 = vadd.f32 %v8833, %v9448
        %v9450 = vpop.f32.mrf.mxu0
        %v9451 = vadd.f32 %v8833, %v9450
        %9452 = vmatmul.bf16.gmra.mxu0 %v8761
        %v9453 = vpop.f32.mrf.mxu0
        %v9454 = vadd.f32 %v8833, %v9453
        %v9455 = vpop.f32.mrf.mxu0
        %v9456 = vadd.f32 %v8833, %v9455
        %9457 = vdwg.mxu0
        %9458 = vmatpush.bf16.msra.mxu0 %v9098
        %9459 = vmatpush.bf16.msra.mxu0 %v9090
        %9460 = vmatpush.bf16.msra.mxu0 %v9082
        %9461 = vmatpush.bf16.msra.mxu0 %v9074
        %9462 = vmatpush.bf16.msra.mxu0 %v9066
        %9463 = vmatpush.bf16.msra.mxu0 %v9058
        %9464 = vmatpush.bf16.msra.mxu0 %v9050
        %9465 = vmatpush.bf16.msra.mxu0 %v9042
        %9466 = vmatmul.bf16.gmra.mxu0 %v8754
        %v9467 = vpop.f32.mrf.mxu0
        %v9468 = vadd.f32 %v8834, %v9467
        %v9469 = vpop.f32.mrf.mxu0
        %v9470 = vadd.f32 %v8834, %v9469
        %9471 = vmatmul.bf16.gmra.mxu0 %v8755
        %v9472 = vpop.f32.mrf.mxu0
        %v9473 = vadd.f32 %v8834, %v9472
        %v9474 = vpop.f32.mrf.mxu0
        %v9475 = vadd.f32 %v8834, %v9474
        %9476 = vmatmul.bf16.gmra.mxu0 %v8756
        %v9477 = vpop.f32.mrf.mxu0
        %v9478 = vadd.f32 %v8834, %v9477
        %v9479 = vpop.f32.mrf.mxu0
        %v9480 = vadd.f32 %v8834, %v9479
        %9481 = vmatmul.bf16.gmra.mxu0 %v8757
        %v9482 = vpop.f32.mrf.mxu0
        %v9483 = vadd.f32 %v8834, %v9482
        %v9484 = vpop.f32.mrf.mxu0
        %v9485 = vadd.f32 %v8834, %v9484
        %9486 = vmatmul.bf16.gmra.mxu0 %v8758
        %v9487 = vpop.f32.mrf.mxu0
        %v9488 = vadd.f32 %v8834, %v9487
        %v9489 = vpop.f32.mrf.mxu0
        %v9490 = vadd.f32 %v8834, %v9489
        %9491 = vmatmul.bf16.gmra.mxu0 %v8759
        %v9492 = vpop.f32.mrf.mxu0
        %v9493 = vadd.f32 %v8834, %v9492
        %v9494 = vpop.f32.mrf.mxu0
        %v9495 = vadd.f32 %v8834, %v9494
        %9496 = vmatmul.bf16.gmra.mxu0 %v8760
        %v9497 = vpop.f32.mrf.mxu0
        %v9498 = vadd.f32 %v8834, %v9497
        %v9499 = vpop.f32.mrf.mxu0
        %v9500 = vadd.f32 %v8834, %v9499
        %9501 = vmatmul.bf16.gmra.mxu0 %v8761
        %v9502 = vpop.f32.mrf.mxu0
        %v9503 = vadd.f32 %v8834, %v9502
        %v9504 = vpop.f32.mrf.mxu0
        %v9505 = vadd.f32 %v8834, %v9504
        %9506 = vdwg.mxu0
        %9507 = vmatpush.bf16.msra.mxu0 %v9099
        %9508 = vmatpush.bf16.msra.mxu0 %v9091
        %9509 = vmatpush.bf16.msra.mxu0 %v9083
        %9510 = vmatpush.bf16.msra.mxu0 %v9075
        %9511 = vmatpush.bf16.msra.mxu0 %v9067
        %9512 = vmatpush.bf16.msra.mxu0 %v9059
        %9513 = vmatpush.bf16.msra.mxu0 %v9051
        %9514 = vmatpush.bf16.msra.mxu0 %v9043
        %9515 = vmatmul.bf16.gmra.mxu0 %v8754
        %v9516 = vpop.f32.mrf.mxu0
        %v9517 = vadd.f32 %v8835, %v9516
        %v9518 = vpop.f32.mrf.mxu0
        %v9519 = vadd.f32 %v8835, %v9518
        %9520 = vmatmul.bf16.gmra.mxu0 %v8755
        %v9521 = vpop.f32.mrf.mxu0
        %v9522 = vadd.f32 %v8835, %v9521
        %v9523 = vpop.f32.mrf.mxu0
        %v9524 = vadd.f32 %v8835, %v9523
        %9525 = vmatmul.bf16.gmra.mxu0 %v8756
        %v9526 = vpop.f32.mrf.mxu0
        %v9527 = vadd.f32 %v8835, %v9526
        %v9528 = vpop.f32.mrf.mxu0
        %v9529 = vadd.f32 %v8835, %v9528
        %9530 = vmatmul.bf16.gmra.mxu0 %v8757
        %v9531 = vpop.f32.mrf.mxu0
        %v9532 = vadd.f32 %v8835, %v9531
        %v9533 = vpop.f32.mrf.mxu0
        %v9534 = vadd.f32 %v8835, %v9533
        %9535 = vmatmul.bf16.gmra.mxu0 %v8758
        %v9536 = vpop.f32.mrf.mxu0
        %v9537 = vadd.f32 %v8835, %v9536
        %v9538 = vpop.f32.mrf.mxu0
        %v9539 = vadd.f32 %v8835, %v9538
        %9540 = vmatmul.bf16.gmra.mxu0 %v8759
        %v9541 = vpop.f32.mrf.mxu0
        %v9542 = vadd.f32 %v8835, %v9541
        %v9543 = vpop.f32.mrf.mxu0
        %v9544 = vadd.f32 %v8835, %v9543
        %9545 = vmatmul.bf16.gmra.mxu0 %v8760
        %v9546 = vpop.f32.mrf.mxu0
        %v9547 = vadd.f32 %v8835, %v9546
        %v9548 = vpop.f32.mrf.mxu0
        %v9549 = vadd.f32 %v8835, %v9548
        %9550 = vmatmul.bf16.gmra.mxu0 %v8761
        %v9551 = vpop.f32.mrf.mxu0
        %v9552 = vadd.f32 %v8835, %v9551
        %v9553 = vpop.f32.mrf.mxu0
        %v9554 = vadd.f32 %v8835, %v9553
        %9555 = vdwg.mxu0
        %v9556 = vmul.f32 %v9370, 0.5
        %v9557 = vmul.f32 %v9419, 0.5
        %v9558 = vmul.f32 %v9468, 0.5
        %v9559 = vmul.f32 %v9517, 0.5
        %v9560 = vmul.f32 %v9372, 0.5
        %v9561 = vmul.f32 %v9421, 0.5
        %v9562 = vmul.f32 %v9470, 0.5
        %v9563 = vmul.f32 %v9519, 0.5
        %v9564 = vmul.f32 %v9375, 0.5
        %v9565 = vmul.f32 %v9424, 0.5
        %v9566 = vmul.f32 %v9473, 0.5
        %v9567 = vmul.f32 %v9522, 0.5
        %v9568 = vmul.f32 %v9377, 0.5
        %v9569 = vmul.f32 %v9426, 0.5
        %v9570 = vmul.f32 %v9475, 0.5
        %v9571 = vmul.f32 %v9524, 0.5
        %v9572 = vmul.f32 %v9380, 0.5
        %v9573 = vmul.f32 %v9429, 0.5
        %v9574 = vmul.f32 %v9478, 0.5
        %v9575 = vmul.f32 %v9527, 0.5
        %v9576 = vmul.f32 %v9382, 0.5
        %v9577 = vmul.f32 %v9431, 0.5
        %v9578 = vmul.f32 %v9480, 0.5
        %v9579 = vmul.f32 %v9529, 0.5
        %v9580 = vmul.f32 %v9385, 0.5
        %v9581 = vmul.f32 %v9434, 0.5
        %v9582 = vmul.f32 %v9483, 0.5
        %v9583 = vmul.f32 %v9532, 0.5
        %v9584 = vmul.f32 %v9387, 0.5
        %v9585 = vmul.f32 %v9436, 0.5
        %v9586 = vmul.f32 %v9485, 0.5
        %v9587 = vmul.f32 %v9534, 0.5
        %v9588 = vmul.f32 %v9390, 0.5
        %v9589 = vmul.f32 %v9439, 0.5
        %v9590 = vmul.f32 %v9488, 0.5
        %v9591 = vmul.f32 %v9537, 0.5
        %v9592 = vmul.f32 %v9392, 0.5
        %v9593 = vmul.f32 %v9441, 0.5
        %v9594 = vmul.f32 %v9490, 0.5
        %v9595 = vmul.f32 %v9539, 0.5
        %v9596 = vmul.f32 %v9395, 0.5
        %v9597 = vmul.f32 %v9444, 0.5
        %v9598 = vmul.f32 %v9493, 0.5
        %v9599 = vmul.f32 %v9542, 0.5
        %v9600 = vmul.f32 %v9397, 0.5
        %v9601 = vmul.f32 %v9446, 0.5
        %v9602 = vmul.f32 %v9495, 0.5
        %v9603 = vmul.f32 %v9544, 0.5
        %v9604 = vmul.f32 %v9400, 0.5
        %v9605 = vmul.f32 %v9449, 0.5
        %v9606 = vmul.f32 %v9498, 0.5
        %v9607 = vmul.f32 %v9547, 0.5
        %v9608 = vmul.f32 %v9402, 0.5
        %v9609 = vmul.f32 %v9451, 0.5
        %v9610 = vmul.f32 %v9500, 0.5
        %v9611 = vmul.f32 %v9549, 0.5
        %v9612 = vmul.f32 %v9405, 0.5
        %v9613 = vmul.f32 %v9454, 0.5
        %v9614 = vmul.f32 %v9503, 0.5
        %v9615 = vmul.f32 %v9552, 0.5
        %v9616 = vmul.f32 %v9407, 0.5
        %v9617 = vmul.f32 %v9456, 0.5
        %v9618 = vmul.f32 %v9505, 0.5
        %v9619 = vmul.f32 %v9554, 0.5
        %v9620 = vmul.f32 %v9370, 0.044715
        %v9621 = vmul.f32 %v9419, 0.044715
        %v9622 = vmul.f32 %v9468, 0.044715
        %v9623 = vmul.f32 %v9517, 0.044715
        %v9624 = vmul.f32 %v9372, 0.044715
        %v9625 = vmul.f32 %v9421, 0.044715
        %v9626 = vmul.f32 %v9470, 0.044715
        %v9627 = vmul.f32 %v9519, 0.044715
        %v9628 = vmul.f32 %v9375, 0.044715
        %v9629 = vmul.f32 %v9424, 0.044715
        %v9630 = vmul.f32 %v9473, 0.044715
        %v9631 = vmul.f32 %v9522, 0.044715
        %v9632 = vmul.f32 %v9377, 0.044715
        %v9633 = vmul.f32 %v9426, 0.044715
        %v9634 = vmul.f32 %v9475, 0.044715
        %v9635 = vmul.f32 %v9524, 0.044715
        %v9636 = vmul.f32 %v9380, 0.044715
        %v9637 = vmul.f32 %v9429, 0.044715
        %v9638 = vmul.f32 %v9478, 0.044715
        %v9639 = vmul.f32 %v9527, 0.044715
        %v9640 = vmul.f32 %v9382, 0.044715
        %v9641 = vmul.f32 %v9431, 0.044715
        %v9642 = vmul.f32 %v9480, 0.044715
        %v9643 = vmul.f32 %v9529, 0.044715
        %v9644 = vmul.f32 %v9385, 0.044715
        %v9645 = vmul.f32 %v9434, 0.044715
        %v9646 = vmul.f32 %v9483, 0.044715
        %v9647 = vmul.f32 %v9532, 0.044715
        %v9648 = vmul.f32 %v9387, 0.044715
        %v9649 = vmul.f32 %v9436, 0.044715
        %v9650 = vmul.f32 %v9485, 0.044715
        %v9651 = vmul.f32 %v9534, 0.044715
        %v9652 = vmul.f32 %v9390, 0.044715
        %v9653 = vmul.f32 %v9439, 0.044715
        %v9654 = vmul.f32 %v9488, 0.044715
        %v9655 = vmul.f32 %v9537, 0.044715
        %v9656 = vmul.f32 %v9392, 0.044715
        %v9657 = vmul.f32 %v9441, 0.044715
        %v9658 = vmul.f32 %v9490, 0.044715
        %v9659 = vmul.f32 %v9539, 0.044715
        %v9660 = vmul.f32 %v9395, 0.044715
        %v9661 = vmul.f32 %v9444, 0.044715
        %v9662 = vmul.f32 %v9493, 0.044715
        %v9663 = vmul.f32 %v9542, 0.044715
        %v9664 = vmul.f32 %v9397, 0.044715
        %v9665 = vmul.f32 %v9446, 0.044715
        %v9666 = vmul.f32 %v9495, 0.044715
        %v9667 = vmul.f32 %v9544, 0.044715
        %v9668 = vmul.f32 %v9400, 0.044715
        %v9669 = vmul.f32 %v9449, 0.044715
        %v9670 = vmul.f32 %v9498, 0.044715
        %v9671 = vmul.f32 %v9547, 0.044715
        %v9672 = vmul.f32 %v9402, 0.044715
        %v9673 = vmul.f32 %v9451, 0.044715
        %v9674 = vmul.f32 %v9500, 0.044715
        %v9675 = vmul.f32 %v9549, 0.044715
        %v9676 = vmul.f32 %v9405, 0.044715
        %v9677 = vmul.f32 %v9454, 0.044715
        %v9678 = vmul.f32 %v9503, 0.044715
        %v9679 = vmul.f32 %v9552, 0.044715
        %v9680 = vmul.f32 %v9407, 0.044715
        %v9681 = vmul.f32 %v9456, 0.044715
        %v9682 = vmul.f32 %v9505, 0.044715
        %v9683 = vmul.f32 %v9554, 0.044715
        %v9684 = vmul.f32 %v9620, %v9370
        %v9685 = vmul.f32 %v9621, %v9419
        %v9686 = vmul.f32 %v9622, %v9468
        %v9687 = vmul.f32 %v9623, %v9517
        %v9688 = vmul.f32 %v9624, %v9372
        %v9689 = vmul.f32 %v9625, %v9421
        %v9690 = vmul.f32 %v9626, %v9470
        %v9691 = vmul.f32 %v9627, %v9519
        %v9692 = vmul.f32 %v9628, %v9375
        %v9693 = vmul.f32 %v9629, %v9424
        %v9694 = vmul.f32 %v9630, %v9473
        %v9695 = vmul.f32 %v9631, %v9522
        %v9696 = vmul.f32 %v9632, %v9377
        %v9697 = vmul.f32 %v9633, %v9426
        %v9698 = vmul.f32 %v9634, %v9475
        %v9699 = vmul.f32 %v9635, %v9524
        %v9700 = vmul.f32 %v9636, %v9380
        %v9701 = vmul.f32 %v9637, %v9429
        %v9702 = vmul.f32 %v9638, %v9478
        %v9703 = vmul.f32 %v9639, %v9527
        %v9704 = vmul.f32 %v9640, %v9382
        %v9705 = vmul.f32 %v9641, %v9431
        %v9706 = vmul.f32 %v9642, %v9480
        %v9707 = vmul.f32 %v9643, %v9529
        %v9708 = vmul.f32 %v9644, %v9385
        %v9709 = vmul.f32 %v9645, %v9434
        %v9710 = vmul.f32 %v9646, %v9483
        %v9711 = vmul.f32 %v9647, %v9532
        %v9712 = vmul.f32 %v9648, %v9387
        %v9713 = vmul.f32 %v9649, %v9436
        %v9714 = vmul.f32 %v9650, %v9485
        %v9715 = vmul.f32 %v9651, %v9534
        %v9716 = vmul.f32 %v9652, %v9390
        %v9717 = vmul.f32 %v9653, %v9439
        %v9718 = vmul.f32 %v9654, %v9488
        %v9719 = vmul.f32 %v9655, %v9537
        %v9720 = vmul.f32 %v9656, %v9392
        %v9721 = vmul.f32 %v9657, %v9441
        %v9722 = vmul.f32 %v9658, %v9490
        %v9723 = vmul.f32 %v9659, %v9539
        %v9724 = vmul.f32 %v9660, %v9395
        %v9725 = vmul.f32 %v9661, %v9444
        %v9726 = vmul.f32 %v9662, %v9493
        %v9727 = vmul.f32 %v9663, %v9542
        %v9728 = vmul.f32 %v9664, %v9397
        %v9729 = vmul.f32 %v9665, %v9446
        %v9730 = vmul.f32 %v9666, %v9495
        %v9731 = vmul.f32 %v9667, %v9544
        %v9732 = vmul.f32 %v9668, %v9400
        %v9733 = vmul.f32 %v9669, %v9449
        %v9734 = vmul.f32 %v9670, %v9498
        %v9735 = vmul.f32 %v9671, %v9547
        %v9736 = vmul.f32 %v9672, %v9402
        %v9737 = vmul.f32 %v9673, %v9451
        %v9738 = vmul.f32 %v9674, %v9500
        %v9739 = vmul.f32 %v9675, %v9549
        %v9740 = vmul.f32 %v9676, %v9405
        %v9741 = vmul.f32 %v9677, %v9454
        %v9742 = vmul.f32 %v9678, %v9503
        %v9743 = vmul.f32 %v9679, %v9552
        %v9744 = vmul.f32 %v9680, %v9407
        %v9745 = vmul.f32 %v9681, %v9456
        %v9746 = vmul.f32 %v9682, %v9505
        %v9747 = vmul.f32 %v9683, %v9554
        %v9748 = vmul.f32 %v9684, %v9370
        %v9749 = vmul.f32 %v9685, %v9419
        %v9750 = vmul.f32 %v9686, %v9468
        %v9751 = vmul.f32 %v9687, %v9517
        %v9752 = vmul.f32 %v9688, %v9372
        %v9753 = vmul.f32 %v9689, %v9421
        %v9754 = vmul.f32 %v9690, %v9470
        %v9755 = vmul.f32 %v9691, %v9519
        %v9756 = vmul.f32 %v9692, %v9375
        %v9757 = vmul.f32 %v9693, %v9424
        %v9758 = vmul.f32 %v9694, %v9473
        %v9759 = vmul.f32 %v9695, %v9522
        %v9760 = vmul.f32 %v9696, %v9377
        %v9761 = vmul.f32 %v9697, %v9426
        %v9762 = vmul.f32 %v9698, %v9475
        %v9763 = vmul.f32 %v9699, %v9524
        %v9764 = vmul.f32 %v9700, %v9380
        %v9765 = vmul.f32 %v9701, %v9429
        %v9766 = vmul.f32 %v9702, %v9478
        %v9767 = vmul.f32 %v9703, %v9527
        %v9768 = vmul.f32 %v9704, %v9382
        %v9769 = vmul.f32 %v9705, %v9431
        %v9770 = vmul.f32 %v9706, %v9480
        %v9771 = vmul.f32 %v9707, %v9529
        %v9772 = vmul.f32 %v9708, %v9385
        %v9773 = vmul.f32 %v9709, %v9434
        %v9774 = vmul.f32 %v9710, %v9483
        %v9775 = vmul.f32 %v9711, %v9532
        %v9776 = vmul.f32 %v9712, %v9387
        %v9777 = vmul.f32 %v9713, %v9436
        %v9778 = vmul.f32 %v9714, %v9485
        %v9779 = vmul.f32 %v9715, %v9534
        %v9780 = vmul.f32 %v9716, %v9390
        %v9781 = vmul.f32 %v9717, %v9439
        %v9782 = vmul.f32 %v9718, %v9488
        %v9783 = vmul.f32 %v9719, %v9537
        %v9784 = vmul.f32 %v9720, %v9392
        %v9785 = vmul.f32 %v9721, %v9441
        %v9786 = vmul.f32 %v9722, %v9490
        %v9787 = vmul.f32 %v9723, %v9539
        %v9788 = vmul.f32 %v9724, %v9395
        %v9789 = vmul.f32 %v9725, %v9444
        %v9790 = vmul.f32 %v9726, %v9493
        %v9791 = vmul.f32 %v9727, %v9542
        %v9792 = vmul.f32 %v9728, %v9397
        %v9793 = vmul.f32 %v9729, %v9446
        %v9794 = vmul.f32 %v9730, %v9495
        %v9795 = vmul.f32 %v9731, %v9544
        %v9796 = vmul.f32 %v9732, %v9400
        %v9797 = vmul.f32 %v9733, %v9449
        %v9798 = vmul.f32 %v9734, %v9498
        %v9799 = vmul.f32 %v9735, %v9547
        %v9800 = vmul.f32 %v9736, %v9402
        %v9801 = vmul.f32 %v9737, %v9451
        %v9802 = vmul.f32 %v9738, %v9500
        %v9803 = vmul.f32 %v9739, %v9549
        %v9804 = vmul.f32 %v9740, %v9405
        %v9805 = vmul.f32 %v9741, %v9454
        %v9806 = vmul.f32 %v9742, %v9503
        %v9807 = vmul.f32 %v9743, %v9552
        %v9808 = vmul.f32 %v9744, %v9407
        %v9809 = vmul.f32 %v9745, %v9456
        %v9810 = vmul.f32 %v9746, %v9505
        %v9811 = vmul.f32 %v9747, %v9554
        %v9812 = vadd.f32 %v9370, %v9748
        %v9813 = vadd.f32 %v9419, %v9749
        %v9814 = vadd.f32 %v9468, %v9750
        %v9815 = vadd.f32 %v9517, %v9751
        %v9816 = vadd.f32 %v9372, %v9752
        %v9817 = vadd.f32 %v9421, %v9753
        %v9818 = vadd.f32 %v9470, %v9754
        %v9819 = vadd.f32 %v9519, %v9755
        %v9820 = vadd.f32 %v9375, %v9756
        %v9821 = vadd.f32 %v9424, %v9757
        %v9822 = vadd.f32 %v9473, %v9758
        %v9823 = vadd.f32 %v9522, %v9759
        %v9824 = vadd.f32 %v9377, %v9760
        %v9825 = vadd.f32 %v9426, %v9761
        %v9826 = vadd.f32 %v9475, %v9762
        %v9827 = vadd.f32 %v9524, %v9763
        %v9828 = vadd.f32 %v9380, %v9764
        %v9829 = vadd.f32 %v9429, %v9765
        %v9830 = vadd.f32 %v9478, %v9766
        %v9831 = vadd.f32 %v9527, %v9767
        %v9832 = vadd.f32 %v9382, %v9768
        %v9833 = vadd.f32 %v9431, %v9769
        %v9834 = vadd.f32 %v9480, %v9770
        %v9835 = vadd.f32 %v9529, %v9771
        %v9836 = vadd.f32 %v9385, %v9772
        %v9837 = vadd.f32 %v9434, %v9773
        %v9838 = vadd.f32 %v9483, %v9774
        %v9839 = vadd.f32 %v9532, %v9775
        %v9840 = vadd.f32 %v9387, %v9776
        %v9841 = vadd.f32 %v9436, %v9777
        %v9842 = vadd.f32 %v9485, %v9778
        %v9843 = vadd.f32 %v9534, %v9779
        %v9844 = vadd.f32 %v9390, %v9780
        %v9845 = vadd.f32 %v9439, %v9781
        %v9846 = vadd.f32 %v9488, %v9782
        %v9847 = vadd.f32 %v9537, %v9783
        %v9848 = vadd.f32 %v9392, %v9784
        %v9849 = vadd.f32 %v9441, %v9785
        %v9850 = vadd.f32 %v9490, %v9786
        %v9851 = vadd.f32 %v9539, %v9787
        %v9852 = vadd.f32 %v9395, %v9788
        %v9853 = vadd.f32 %v9444, %v9789
        %v9854 = vadd.f32 %v9493, %v9790
        %v9855 = vadd.f32 %v9542, %v9791
        %v9856 = vadd.f32 %v9397, %v9792
        %v9857 = vadd.f32 %v9446, %v9793
        %v9858 = vadd.f32 %v9495, %v9794
        %v9859 = vadd.f32 %v9544, %v9795
        %v9860 = vadd.f32 %v9400, %v9796
        %v9861 = vadd.f32 %v9449, %v9797
        %v9862 = vadd.f32 %v9498, %v9798
        %v9863 = vadd.f32 %v9547, %v9799
        %v9864 = vadd.f32 %v9402, %v9800
        %v9865 = vadd.f32 %v9451, %v9801
        %v9866 = vadd.f32 %v9500, %v9802
        %v9867 = vadd.f32 %v9549, %v9803
        %v9868 = vadd.f32 %v9405, %v9804
        %v9869 = vadd.f32 %v9454, %v9805
        %v9870 = vadd.f32 %v9503, %v9806
        %v9871 = vadd.f32 %v9552, %v9807
        %v9872 = vadd.f32 %v9407, %v9808
        %v9873 = vadd.f32 %v9456, %v9809
        %v9874 = vadd.f32 %v9505, %v9810
        %v9875 = vadd.f32 %v9554, %v9811
        %v9876 = vmul.f32 %v9812, 0.7978846
        %v9877 = vmul.f32 %v9813, 0.7978846
        %v9878 = vmul.f32 %v9814, 0.7978846
        %v9879 = vmul.f32 %v9815, 0.7978846
        %v9880 = vmul.f32 %v9816, 0.7978846
        %v9881 = vmul.f32 %v9817, 0.7978846
        %v9882 = vmul.f32 %v9818, 0.7978846
        %v9883 = vmul.f32 %v9819, 0.7978846
        %v9884 = vmul.f32 %v9820, 0.7978846
        %v9885 = vmul.f32 %v9821, 0.7978846
        %v9886 = vmul.f32 %v9822, 0.7978846
        %v9887 = vmul.f32 %v9823, 0.7978846
        %v9888 = vmul.f32 %v9824, 0.7978846
        %v9889 = vmul.f32 %v9825, 0.7978846
        %v9890 = vmul.f32 %v9826, 0.7978846
        %v9891 = vmul.f32 %v9827, 0.7978846
        %v9892 = vmul.f32 %v9828, 0.7978846
        %v9893 = vmul.f32 %v9829, 0.7978846
        %v9894 = vmul.f32 %v9830, 0.7978846
        %v9895 = vmul.f32 %v9831, 0.7978846
        %v9896 = vmul.f32 %v9832, 0.7978846
        %v9897 = vmul.f32 %v9833, 0.7978846
        %v9898 = vmul.f32 %v9834, 0.7978846
        %v9899 = vmul.f32 %v9835, 0.7978846
        %v9900 = vmul.f32 %v9836, 0.7978846
        %v9901 = vmul.f32 %v9837, 0.7978846
        %v9902 = vmul.f32 %v9838, 0.7978846
        %v9903 = vmul.f32 %v9839, 0.7978846
        %v9904 = vmul.f32 %v9840, 0.7978846
        %v9905 = vmul.f32 %v9841, 0.7978846
        %v9906 = vmul.f32 %v9842, 0.7978846
        %v9907 = vmul.f32 %v9843, 0.7978846
        %v9908 = vmul.f32 %v9844, 0.7978846
        %v9909 = vmul.f32 %v9845, 0.7978846
        %v9910 = vmul.f32 %v9846, 0.7978846
        %v9911 = vmul.f32 %v9847, 0.7978846
        %v9912 = vmul.f32 %v9848, 0.7978846
        %v9913 = vmul.f32 %v9849, 0.7978846
        %v9914 = vmul.f32 %v9850, 0.7978846
        %v9915 = vmul.f32 %v9851, 0.7978846
        %v9916 = vmul.f32 %v9852, 0.7978846
        %v9917 = vmul.f32 %v9853, 0.7978846
        %v9918 = vmul.f32 %v9854, 0.7978846
        %v9919 = vmul.f32 %v9855, 0.7978846
        %v9920 = vmul.f32 %v9856, 0.7978846
        %v9921 = vmul.f32 %v9857, 0.7978846
        %v9922 = vmul.f32 %v9858, 0.7978846
        %v9923 = vmul.f32 %v9859, 0.7978846
        %v9924 = vmul.f32 %v9860, 0.7978846
        %v9925 = vmul.f32 %v9861, 0.7978846
        %v9926 = vmul.f32 %v9862, 0.7978846
        %v9927 = vmul.f32 %v9863, 0.7978846
        %v9928 = vmul.f32 %v9864, 0.7978846
        %v9929 = vmul.f32 %v9865, 0.7978846
        %v9930 = vmul.f32 %v9866, 0.7978846
        %v9931 = vmul.f32 %v9867, 0.7978846
        %v9932 = vmul.f32 %v9868, 0.7978846
        %v9933 = vmul.f32 %v9869, 0.7978846
        %v9934 = vmul.f32 %v9870, 0.7978846
        %v9935 = vmul.f32 %v9871, 0.7978846
        %v9936 = vmul.f32 %v9872, 0.7978846
        %v9937 = vmul.f32 %v9873, 0.7978846
        %v9938 = vmul.f32 %v9874, 0.7978846
        %v9939 = vmul.f32 %v9875, 0.7978846
        %v9940 = vtanh.pop %v9876
        %v9941 = vtanh.pop %v9877
        %v9942 = vtanh.pop %v9878
        %v9943 = vtanh.pop %v9879
        %v9944 = vtanh.pop %v9880
        %v9945 = vtanh.pop %v9881
        %v9946 = vtanh.pop %v9882
        %v9947 = vtanh.pop %v9883
        %v9948 = vtanh.pop %v9884
        %v9949 = vtanh.pop %v9885
        %v9950 = vtanh.pop %v9886
        %v9951 = vtanh.pop %v9887
        %v9952 = vtanh.pop %v9888
        %v9953 = vtanh.pop %v9889
        %v9954 = vtanh.pop %v9890
        %v9955 = vtanh.pop %v9891
        %v9956 = vtanh.pop %v9892
        %v9957 = vtanh.pop %v9893
        %v9958 = vtanh.pop %v9894
        %v9959 = vtanh.pop %v9895
        %v9960 = vtanh.pop %v9896
        %v9961 = vtanh.pop %v9897
        %v9962 = vtanh.pop %v9898
        %v9963 = vtanh.pop %v9899
        %v9964 = vtanh.pop %v9900
        %v9965 = vtanh.pop %v9901
        %v9966 = vtanh.pop %v9902
        %v9967 = vtanh.pop %v9903
        %v9968 = vtanh.pop %v9904
        %v9969 = vtanh.pop %v9905
        %v9970 = vtanh.pop %v9906
        %v9971 = vtanh.pop %v9907
        %v9972 = vtanh.pop %v9908
        %v9973 = vtanh.pop %v9909
        %v9974 = vtanh.pop %v9910
        %v9975 = vtanh.pop %v9911
        %v9976 = vtanh.pop %v9912
        %v9977 = vtanh.pop %v9913
        %v9978 = vtanh.pop %v9914
        %v9979 = vtanh.pop %v9915
        %v9980 = vtanh.pop %v9916
        %v9981 = vtanh.pop %v9917
        %v9982 = vtanh.pop %v9918
        %v9983 = vtanh.pop %v9919
        %v9984 = vtanh.pop %v9920
        %v9985 = vtanh.pop %v9921
        %v9986 = vtanh.pop %v9922
        %v9987 = vtanh.pop %v9923
        %v9988 = vtanh.pop %v9924
        %v9989 = vtanh.pop %v9925
        %v9990 = vtanh.pop %v9926
        %v9991 = vtanh.pop %v9927
        %v9992 = vtanh.pop %v9928
        %v9993 = vtanh.pop %v9929
        %v9994 = vtanh.pop %v9930
        %v9995 = vtanh.pop %v9931
        %v9996 = vtanh.pop %v9932
        %v9997 = vtanh.pop %v9933
        %v9998 = vtanh.pop %v9934
        %v9999 = vtanh.pop %v9935
        %v10000 = vtanh.pop %v9936
        %v10001 = vtanh.pop %v9937
        %v10002 = vtanh.pop %v9938
        %v10003 = vtanh.pop %v9939
        %v10004 = vadd.f32 %v9940, 1.0
        %v10005 = vadd.f32 %v9941, 1.0
        %v10006 = vadd.f32 %v9942, 1.0
        %v10007 = vadd.f32 %v9943, 1.0
        %v10008 = vadd.f32 %v9944, 1.0
        %v10009 = vadd.f32 %v9945, 1.0
        %v10010 = vadd.f32 %v9946, 1.0
        %v10011 = vadd.f32 %v9947, 1.0
        %v10012 = vadd.f32 %v9948, 1.0
        %v10013 = vadd.f32 %v9949, 1.0
        %v10014 = vadd.f32 %v9950, 1.0
        %v10015 = vadd.f32 %v9951, 1.0
        %v10016 = vadd.f32 %v9952, 1.0
        %v10017 = vadd.f32 %v9953, 1.0
        %v10018 = vadd.f32 %v9954, 1.0
        %v10019 = vadd.f32 %v9955, 1.0
        %v10020 = vadd.f32 %v9956, 1.0
        %v10021 = vadd.f32 %v9957, 1.0
        %v10022 = vadd.f32 %v9958, 1.0
        %v10023 = vadd.f32 %v9959, 1.0
        %v10024 = vadd.f32 %v9960, 1.0
        %v10025 = vadd.f32 %v9961, 1.0
        %v10026 = vadd.f32 %v9962, 1.0
        %v10027 = vadd.f32 %v9963, 1.0
        %v10028 = vadd.f32 %v9964, 1.0
        %v10029 = vadd.f32 %v9965, 1.0
        %v10030 = vadd.f32 %v9966, 1.0
        %v10031 = vadd.f32 %v9967, 1.0
        %v10032 = vadd.f32 %v9968, 1.0
        %v10033 = vadd.f32 %v9969, 1.0
        %v10034 = vadd.f32 %v9970, 1.0
        %v10035 = vadd.f32 %v9971, 1.0
        %v10036 = vadd.f32 %v9972, 1.0
        %v10037 = vadd.f32 %v9973, 1.0
        %v10038 = vadd.f32 %v9974, 1.0
        %v10039 = vadd.f32 %v9975, 1.0
        %v10040 = vadd.f32 %v9976, 1.0
        %v10041 = vadd.f32 %v9977, 1.0
        %v10042 = vadd.f32 %v9978, 1.0
        %v10043 = vadd.f32 %v9979, 1.0
        %v10044 = vadd.f32 %v9980, 1.0
        %v10045 = vadd.f32 %v9981, 1.0
        %v10046 = vadd.f32 %v9982, 1.0
        %v10047 = vadd.f32 %v9983, 1.0
        %v10048 = vadd.f32 %v9984, 1.0
        %v10049 = vadd.f32 %v9985, 1.0
        %v10050 = vadd.f32 %v9986, 1.0
        %v10051 = vadd.f32 %v9987, 1.0
        %v10052 = vadd.f32 %v9988, 1.0
        %v10053 = vadd.f32 %v9989, 1.0
        %v10054 = vadd.f32 %v9990, 1.0
        %v10055 = vadd.f32 %v9991, 1.0
        %v10056 = vadd.f32 %v9992, 1.0
        %v10057 = vadd.f32 %v9993, 1.0
        %v10058 = vadd.f32 %v9994, 1.0
        %v10059 = vadd.f32 %v9995, 1.0
        %v10060 = vadd.f32 %v9996, 1.0
        %v10061 = vadd.f32 %v9997, 1.0
        %v10062 = vadd.f32 %v9998, 1.0
        %v10063 = vadd.f32 %v9999, 1.0
        %v10064 = vadd.f32 %v10000, 1.0
        %v10065 = vadd.f32 %v10001, 1.0
        %v10066 = vadd.f32 %v10002, 1.0
        %v10067 = vadd.f32 %v10003, 1.0
        %v10068 = vmul.f32 %v9556, %v10004
        %v10069 = vmul.f32 %v9557, %v10005
        %v10070 = vmul.f32 %v9558, %v10006
        %v10071 = vmul.f32 %v9559, %v10007
        %v10072 = vmul.f32 %v9560, %v10008
        %v10073 = vmul.f32 %v9561, %v10009
        %v10074 = vmul.f32 %v9562, %v10010
        %v10075 = vmul.f32 %v9563, %v10011
        %v10076 = vmul.f32 %v9564, %v10012
        %v10077 = vmul.f32 %v9565, %v10013
        %v10078 = vmul.f32 %v9566, %v10014
        %v10079 = vmul.f32 %v9567, %v10015
        %v10080 = vmul.f32 %v9568, %v10016
        %v10081 = vmul.f32 %v9569, %v10017
        %v10082 = vmul.f32 %v9570, %v10018
        %v10083 = vmul.f32 %v9571, %v10019
        %v10084 = vmul.f32 %v9572, %v10020
        %v10085 = vmul.f32 %v9573, %v10021
        %v10086 = vmul.f32 %v9574, %v10022
        %v10087 = vmul.f32 %v9575, %v10023
        %v10088 = vmul.f32 %v9576, %v10024
        %v10089 = vmul.f32 %v9577, %v10025
        %v10090 = vmul.f32 %v9578, %v10026
        %v10091 = vmul.f32 %v9579, %v10027
        %v10092 = vmul.f32 %v9580, %v10028
        %v10093 = vmul.f32 %v9581, %v10029
        %v10094 = vmul.f32 %v9582, %v10030
        %v10095 = vmul.f32 %v9583, %v10031
        %v10096 = vmul.f32 %v9584, %v10032
        %v10097 = vmul.f32 %v9585, %v10033
        %v10098 = vmul.f32 %v9586, %v10034
        %v10099 = vmul.f32 %v9587, %v10035
        %v10100 = vmul.f32 %v9588, %v10036
        %v10101 = vmul.f32 %v9589, %v10037
        %v10102 = vmul.f32 %v9590, %v10038
        %v10103 = vmul.f32 %v9591, %v10039
        %v10104 = vmul.f32 %v9592, %v10040
        %v10105 = vmul.f32 %v9593, %v10041
        %v10106 = vmul.f32 %v9594, %v10042
        %v10107 = vmul.f32 %v9595, %v10043
        %v10108 = vmul.f32 %v9596, %v10044
        %v10109 = vmul.f32 %v9597, %v10045
        %v10110 = vmul.f32 %v9598, %v10046
        %v10111 = vmul.f32 %v9599, %v10047
        %v10112 = vmul.f32 %v9600, %v10048
        %v10113 = vmul.f32 %v9601, %v10049
        %v10114 = vmul.f32 %v9602, %v10050
        %v10115 = vmul.f32 %v9603, %v10051
        %v10116 = vmul.f32 %v9604, %v10052
        %v10117 = vmul.f32 %v9605, %v10053
        %v10118 = vmul.f32 %v9606, %v10054
        %v10119 = vmul.f32 %v9607, %v10055
        %v10120 = vmul.f32 %v9608, %v10056
        %v10121 = vmul.f32 %v9609, %v10057
        %v10122 = vmul.f32 %v9610, %v10058
        %v10123 = vmul.f32 %v9611, %v10059
        %v10124 = vmul.f32 %v9612, %v10060
        %v10125 = vmul.f32 %v9613, %v10061
        %v10126 = vmul.f32 %v9614, %v10062
        %v10127 = vmul.f32 %v9615, %v10063
        %v10128 = vmul.f32 %v9616, %v10064
        %v10129 = vmul.f32 %v9617, %v10065
        %v10130 = vmul.f32 %v9618, %v10066
        %v10131 = vmul.f32 %v9619, %v10067
        %v10132 = vmul.f32 %v9174, %v10068
        %v10133 = vmul.f32 %v9223, %v10069
        %v10134 = vmul.f32 %v9272, %v10070
        %v10135 = vmul.f32 %v9321, %v10071
        %v10136 = vmul.f32 %v9176, %v10072
        %v10137 = vmul.f32 %v9225, %v10073
        %v10138 = vmul.f32 %v9274, %v10074
        %v10139 = vmul.f32 %v9323, %v10075
        %v10140 = vmul.f32 %v9179, %v10076
        %v10141 = vmul.f32 %v9228, %v10077
        %v10142 = vmul.f32 %v9277, %v10078
        %v10143 = vmul.f32 %v9326, %v10079
        %v10144 = vmul.f32 %v9181, %v10080
        %v10145 = vmul.f32 %v9230, %v10081
        %v10146 = vmul.f32 %v9279, %v10082
        %v10147 = vmul.f32 %v9328, %v10083
        %v10148 = vmul.f32 %v9184, %v10084
        %v10149 = vmul.f32 %v9233, %v10085
        %v10150 = vmul.f32 %v9282, %v10086
        %v10151 = vmul.f32 %v9331, %v10087
        %v10152 = vmul.f32 %v9186, %v10088
        %v10153 = vmul.f32 %v9235, %v10089
        %v10154 = vmul.f32 %v9284, %v10090
        %v10155 = vmul.f32 %v9333, %v10091
        %v10156 = vmul.f32 %v9189, %v10092
        %v10157 = vmul.f32 %v9238, %v10093
        %v10158 = vmul.f32 %v9287, %v10094
        %v10159 = vmul.f32 %v9336, %v10095
        %v10160 = vmul.f32 %v9191, %v10096
        %v10161 = vmul.f32 %v9240, %v10097
        %v10162 = vmul.f32 %v9289, %v10098
        %v10163 = vmul.f32 %v9338, %v10099
        %v10164 = vmul.f32 %v9194, %v10100
        %v10165 = vmul.f32 %v9243, %v10101
        %v10166 = vmul.f32 %v9292, %v10102
        %v10167 = vmul.f32 %v9341, %v10103
        %v10168 = vmul.f32 %v9196, %v10104
        %v10169 = vmul.f32 %v9245, %v10105
        %v10170 = vmul.f32 %v9294, %v10106
        %v10171 = vmul.f32 %v9343, %v10107
        %v10172 = vmul.f32 %v9199, %v10108
        %v10173 = vmul.f32 %v9248, %v10109
        %v10174 = vmul.f32 %v9297, %v10110
        %v10175 = vmul.f32 %v9346, %v10111
        %v10176 = vmul.f32 %v9201, %v10112
        %v10177 = vmul.f32 %v9250, %v10113
        %v10178 = vmul.f32 %v9299, %v10114
        %v10179 = vmul.f32 %v9348, %v10115
        %v10180 = vmul.f32 %v9204, %v10116
        %v10181 = vmul.f32 %v9253, %v10117
        %v10182 = vmul.f32 %v9302, %v10118
        %v10183 = vmul.f32 %v9351, %v10119
        %v10184 = vmul.f32 %v9206, %v10120
        %v10185 = vmul.f32 %v9255, %v10121
        %v10186 = vmul.f32 %v9304, %v10122
        %v10187 = vmul.f32 %v9353, %v10123
        %v10188 = vmul.f32 %v9209, %v10124
        %v10189 = vmul.f32 %v9258, %v10125
        %v10190 = vmul.f32 %v9307, %v10126
        %v10191 = vmul.f32 %v9356, %v10127
        %v10192 = vmul.f32 %v9211, %v10128
        %v10193 = vmul.f32 %v9260, %v10129
        %v10194 = vmul.f32 %v9309, %v10130
        %v10195 = vmul.f32 %v9358, %v10131
        %v10196 = vpack.c.bf16 %v10136, %v10132
        %v10197 = vpack.c.bf16 %v10137, %v10133
        %v10198 = vpack.c.bf16 %v10138, %v10134
        %v10199 = vpack.c.bf16 %v10139, %v10135
        %v10200 = vpack.c.bf16 %v10144, %v10140
        %v10201 = vpack.c.bf16 %v10145, %v10141
        %v10202 = vpack.c.bf16 %v10146, %v10142
        %v10203 = vpack.c.bf16 %v10147, %v10143
        %v10204 = vpack.c.bf16 %v10152, %v10148
        %v10205 = vpack.c.bf16 %v10153, %v10149
        %v10206 = vpack.c.bf16 %v10154, %v10150
        %v10207 = vpack.c.bf16 %v10155, %v10151
        %v10208 = vpack.c.bf16 %v10160, %v10156
        %v10209 = vpack.c.bf16 %v10161, %v10157
        %v10210 = vpack.c.bf16 %v10162, %v10158
        %v10211 = vpack.c.bf16 %v10163, %v10159
        %v10212 = vpack.c.bf16 %v10168, %v10164
        %v10213 = vpack.c.bf16 %v10169, %v10165
        %v10214 = vpack.c.bf16 %v10170, %v10166
        %v10215 = vpack.c.bf16 %v10171, %v10167
        %v10216 = vpack.c.bf16 %v10176, %v10172
        %v10217 = vpack.c.bf16 %v10177, %v10173
        %v10218 = vpack.c.bf16 %v10178, %v10174
        %v10219 = vpack.c.bf16 %v10179, %v10175
        %v10220 = vpack.c.bf16 %v10184, %v10180
        %v10221 = vpack.c.bf16 %v10185, %v10181
        %v10222 = vpack.c.bf16 %v10186, %v10182
        %v10223 = vpack.c.bf16 %v10187, %v10183
        %v10224 = vpack.c.bf16 %v10192, %v10188
        %v10225 = vpack.c.bf16 %v10193, %v10189
        %v10226 = vpack.c.bf16 %v10194, %v10190
        %v10227 = vpack.c.bf16 %v10195, %v10191
        %v10228 = vld [vmem:[#allocation17] sm:$0xf]
        %v10229 = vld [vmem:[#allocation17 + $0x4] sm:$0xf]
        %v10230 = vld [vmem:[#allocation17 + $0x8] sm:$0xf]
        %v10231 = vld [vmem:[#allocation17 + $0xc] sm:$0xf]
        %v10232 = vld [vmem:[#allocation17 + $0x10] sm:$0xf]
        %v10233 = vld [vmem:[#allocation17 + $0x14] sm:$0xf]
        %v10234 = vld [vmem:[#allocation17 + $0x18] sm:$0xf]
        %v10235 = vld [vmem:[#allocation17 + $0x1c] sm:$0xf]
        %v10236 = vld [vmem:[#allocation17 + $0x20] sm:$0xf]
        %v10237 = vld [vmem:[#allocation17 + $0x24] sm:$0xf]
        %v10238 = vld [vmem:[#allocation17 + $0x28] sm:$0xf]
        %v10239 = vld [vmem:[#allocation17 + $0x2c] sm:$0xf]
        %v10240 = vld [vmem:[#allocation17 + $0x30] sm:$0xf]
        %v10241 = vld [vmem:[#allocation17 + $0x34] sm:$0xf]
        %v10242 = vld [vmem:[#allocation17 + $0x38] sm:$0xf]
        %v10243 = vld [vmem:[#allocation17 + $0x3c] sm:$0xf]
        %v10244 = vld [vmem:[#allocation17 + $0x40] sm:$0xf]
        %v10245 = vld [vmem:[#allocation17 + $0x44] sm:$0xf]
        %v10246 = vld [vmem:[#allocation17 + $0x48] sm:$0xf]
        %v10247 = vld [vmem:[#allocation17 + $0x4c] sm:$0xf]
        %v10248 = vld [vmem:[#allocation17 + $0x50] sm:$0xf]
        %v10249 = vld [vmem:[#allocation17 + $0x54] sm:$0xf]
        %v10250 = vld [vmem:[#allocation17 + $0x58] sm:$0xf]
        %v10251 = vld [vmem:[#allocation17 + $0x5c] sm:$0xf]
        %v10252 = vld [vmem:[#allocation17 + $0x60] sm:$0xf]
        %v10253 = vld [vmem:[#allocation17 + $0x64] sm:$0xf]
        %v10254 = vld [vmem:[#allocation17 + $0x68] sm:$0xf]
        %v10255 = vld [vmem:[#allocation17 + $0x6c] sm:$0xf]
        %v10256 = vld [vmem:[#allocation17 + $0x70] sm:$0xf]
        %v10257 = vld [vmem:[#allocation17 + $0x74] sm:$0xf]
        %v10258 = vld [vmem:[#allocation17 + $0x78] sm:$0xf]
        %v10259 = vld [vmem:[#allocation17 + $0x7c] sm:$0xf]
        %v10260 = vld [vmem:[#allocation17 + $0x80] sm:$0xf]
        %v10261 = vld [vmem:[#allocation17 + $0x84] sm:$0xf]
        %v10262 = vld [vmem:[#allocation17 + $0x88] sm:$0xf]
        %v10263 = vld [vmem:[#allocation17 + $0x8c] sm:$0xf]
        %v10264 = vld [vmem:[#allocation17 + $0x90] sm:$0xf]
        %v10265 = vld [vmem:[#allocation17 + $0x94] sm:$0xf]
        %v10266 = vld [vmem:[#allocation17 + $0x98] sm:$0xf]
        %v10267 = vld [vmem:[#allocation17 + $0x9c] sm:$0xf]
        %v10268 = vld [vmem:[#allocation17 + $0xa0] sm:$0xf]
        %v10269 = vld [vmem:[#allocation17 + $0xa4] sm:$0xf]
        %v10270 = vld [vmem:[#allocation17 + $0xa8] sm:$0xf]
        %v10271 = vld [vmem:[#allocation17 + $0xac] sm:$0xf]
        %v10272 = vld [vmem:[#allocation17 + $0xb0] sm:$0xf]
        %v10273 = vld [vmem:[#allocation17 + $0xb4] sm:$0xf]
        %v10274 = vld [vmem:[#allocation17 + $0xb8] sm:$0xf]
        %v10275 = vld [vmem:[#allocation17 + $0xbc] sm:$0xf]
        %v10276 = vld [vmem:[#allocation17 + $0xc0] sm:$0xf]
        %v10277 = vld [vmem:[#allocation17 + $0xc4] sm:$0xf]
        %v10278 = vld [vmem:[#allocation17 + $0xc8] sm:$0xf]
        %v10279 = vld [vmem:[#allocation17 + $0xcc] sm:$0xf]
        %v10280 = vld [vmem:[#allocation17 + $0xd0] sm:$0xf]
        %v10281 = vld [vmem:[#allocation17 + $0xd4] sm:$0xf]
        %v10282 = vld [vmem:[#allocation17 + $0xd8] sm:$0xf]
        %v10283 = vld [vmem:[#allocation17 + $0xdc] sm:$0xf]
        %v10284 = vld [vmem:[#allocation17 + $0xe0] sm:$0xf]
        %v10285 = vld [vmem:[#allocation17 + $0xe4] sm:$0xf]
        %v10286 = vld [vmem:[#allocation17 + $0xe8] sm:$0xf]
        %v10287 = vld [vmem:[#allocation17 + $0xec] sm:$0xf]
        %v10288 = vld [vmem:[#allocation17 + $0xf0] sm:$0xf]
        %v10289 = vld [vmem:[#allocation17 + $0xf4] sm:$0xf]
        %v10290 = vld [vmem:[#allocation17 + $0xf8] sm:$0xf]
        %v10291 = vld [vmem:[#allocation17 + $0xfc] sm:$0xf]
        %v10292 = vld [vmem:[%s23] sm:$0x1]
        %v10294 = vperm.slane %v10292, 0
        %v10360 = vunpack.c.l.b16 %v10228
        %v10361 = vunpack.c.l.b16 %v10229
        %v10362 = vunpack.c.l.b16 %v10230
        %v10363 = vunpack.c.l.b16 %v10231
        %v10364 = vunpack.c.l.b16 %v10232
        %v10365 = vunpack.c.l.b16 %v10233
        %v10366 = vunpack.c.l.b16 %v10234
        %v10367 = vunpack.c.l.b16 %v10235
        %v10368 = vunpack.c.l.b16 %v10236
        %v10369 = vunpack.c.l.b16 %v10237
        %v10370 = vunpack.c.l.b16 %v10238
        %v10371 = vunpack.c.l.b16 %v10239
        %v10372 = vunpack.c.l.b16 %v10240
        %v10373 = vunpack.c.l.b16 %v10241
        %v10374 = vunpack.c.l.b16 %v10242
        %v10375 = vunpack.c.l.b16 %v10243
        %v10376 = vunpack.c.l.b16 %v10244
        %v10377 = vunpack.c.l.b16 %v10245
        %v10378 = vunpack.c.l.b16 %v10246
        %v10379 = vunpack.c.l.b16 %v10247
        %v10380 = vunpack.c.l.b16 %v10248
        %v10381 = vunpack.c.l.b16 %v10249
        %v10382 = vunpack.c.l.b16 %v10250
        %v10383 = vunpack.c.l.b16 %v10251
        %v10384 = vunpack.c.l.b16 %v10252
        %v10385 = vunpack.c.l.b16 %v10253
        %v10386 = vunpack.c.l.b16 %v10254
        %v10387 = vunpack.c.l.b16 %v10255
        %v10388 = vunpack.c.l.b16 %v10256
        %v10389 = vunpack.c.l.b16 %v10257
        %v10390 = vunpack.c.l.b16 %v10258
        %v10391 = vunpack.c.l.b16 %v10259
        %v10392 = vunpack.c.l.b16 %v10260
        %v10393 = vunpack.c.l.b16 %v10261
        %v10394 = vunpack.c.l.b16 %v10262
        %v10395 = vunpack.c.l.b16 %v10263
        %v10396 = vunpack.c.l.b16 %v10264
        %v10397 = vunpack.c.l.b16 %v10265
        %v10398 = vunpack.c.l.b16 %v10266
        %v10399 = vunpack.c.l.b16 %v10267
        %v10400 = vunpack.c.l.b16 %v10268
        %v10401 = vunpack.c.l.b16 %v10269
        %v10402 = vunpack.c.l.b16 %v10270
        %v10403 = vunpack.c.l.b16 %v10271
        %v10404 = vunpack.c.l.b16 %v10272
        %v10405 = vunpack.c.l.b16 %v10273
        %v10406 = vunpack.c.l.b16 %v10274
        %v10407 = vunpack.c.l.b16 %v10275
        %v10408 = vunpack.c.l.b16 %v10276
        %v10409 = vunpack.c.l.b16 %v10277
        %v10410 = vunpack.c.l.b16 %v10278
        %v10411 = vunpack.c.l.b16 %v10279
        %v10412 = vunpack.c.l.b16 %v10280
        %v10413 = vunpack.c.l.b16 %v10281
        %v10414 = vunpack.c.l.b16 %v10282
        %v10415 = vunpack.c.l.b16 %v10283
        %v10416 = vunpack.c.l.b16 %v10284
        %v10417 = vunpack.c.l.b16 %v10285
        %v10418 = vunpack.c.l.b16 %v10286
        %v10419 = vunpack.c.l.b16 %v10287
        %v10420 = vunpack.c.l.b16 %v10288
        %v10421 = vunpack.c.l.b16 %v10289
        %v10422 = vunpack.c.l.b16 %v10290
        %v10423 = vunpack.c.l.b16 %v10291
        %v10424 = vpack.c.b16 %v10361, %v10360
        %v10425 = vpack.c.b16 %v10363, %v10362
        %v10426 = vpack.c.b16 %v10365, %v10364
        %v10427 = vpack.c.b16 %v10367, %v10366
        %v10428 = vpack.c.b16 %v10369, %v10368
        %v10429 = vpack.c.b16 %v10371, %v10370
        %v10430 = vpack.c.b16 %v10373, %v10372
        %v10431 = vpack.c.b16 %v10375, %v10374
        %v10432 = vpack.c.b16 %v10377, %v10376
        %v10433 = vpack.c.b16 %v10379, %v10378
        %v10434 = vpack.c.b16 %v10381, %v10380
        %v10435 = vpack.c.b16 %v10383, %v10382
        %v10436 = vpack.c.b16 %v10385, %v10384
        %v10437 = vpack.c.b16 %v10387, %v10386
        %v10438 = vpack.c.b16 %v10389, %v10388
        %v10439 = vpack.c.b16 %v10391, %v10390
        %v10440 = vpack.c.b16 %v10393, %v10392
        %v10441 = vpack.c.b16 %v10395, %v10394
        %v10442 = vpack.c.b16 %v10397, %v10396
        %v10443 = vpack.c.b16 %v10399, %v10398
        %v10444 = vpack.c.b16 %v10401, %v10400
        %v10445 = vpack.c.b16 %v10403, %v10402
        %v10446 = vpack.c.b16 %v10405, %v10404
        %v10447 = vpack.c.b16 %v10407, %v10406
        %v10448 = vpack.c.b16 %v10409, %v10408
        %v10449 = vpack.c.b16 %v10411, %v10410
        %v10450 = vpack.c.b16 %v10413, %v10412
        %v10451 = vpack.c.b16 %v10415, %v10414
        %v10452 = vpack.c.b16 %v10417, %v10416
        %v10453 = vpack.c.b16 %v10419, %v10418
        %v10454 = vpack.c.b16 %v10421, %v10420
        %v10455 = vpack.c.b16 %v10423, %v10422
        %10488 = vmatpush.bf16.msra.mxu0 %v10431
        %10489 = vmatpush.bf16.msra.mxu0 %v10430
        %10490 = vmatpush.bf16.msra.mxu0 %v10429
        %10491 = vmatpush.bf16.msra.mxu0 %v10428
        %10492 = vmatpush.bf16.msra.mxu0 %v10427
        %10493 = vmatpush.bf16.msra.mxu0 %v10426
        %10494 = vmatpush.bf16.msra.mxu0 %v10425
        %10495 = vmatpush.bf16.msra.mxu0 %v10424
        %10496 = vmatmul.bf16.gmra.mxu0 %v10196
        %v10497 = vpop.f32.mrf.mxu0
        %v10498 = vadd.f32 %v10294, %v10497
        %v10499 = vpop.f32.mrf.mxu0
        %v10500 = vadd.f32 %v10294, %v10499
        %10501 = vmatmul.bf16.gmra.mxu0 %v10200
        %v10502 = vpop.f32.mrf.mxu0
        %v10503 = vadd.f32 %v10294, %v10502
        %v10504 = vpop.f32.mrf.mxu0
        %v10505 = vadd.f32 %v10294, %v10504
        %10506 = vmatmul.bf16.gmra.mxu0 %v10204
        %v10507 = vpop.f32.mrf.mxu0
        %v10508 = vadd.f32 %v10294, %v10507
        %v10509 = vpop.f32.mrf.mxu0
        %v10510 = vadd.f32 %v10294, %v10509
        %10511 = vmatmul.bf16.gmra.mxu0 %v10208
        %v10512 = vpop.f32.mrf.mxu0
        %v10513 = vadd.f32 %v10294, %v10512
        %v10514 = vpop.f32.mrf.mxu0
        %v10515 = vadd.f32 %v10294, %v10514
        %10516 = vmatmul.bf16.gmra.mxu0 %v10212
        %v10517 = vpop.f32.mrf.mxu0
        %v10518 = vadd.f32 %v10294, %v10517
        %v10519 = vpop.f32.mrf.mxu0
        %v10520 = vadd.f32 %v10294, %v10519
        %10521 = vmatmul.bf16.gmra.mxu0 %v10216
        %v10522 = vpop.f32.mrf.mxu0
        %v10523 = vadd.f32 %v10294, %v10522
        %v10524 = vpop.f32.mrf.mxu0
        %v10525 = vadd.f32 %v10294, %v10524
        %10526 = vmatmul.bf16.gmra.mxu0 %v10220
        %v10527 = vpop.f32.mrf.mxu0
        %v10528 = vadd.f32 %v10294, %v10527
        %v10529 = vpop.f32.mrf.mxu0
        %v10530 = vadd.f32 %v10294, %v10529
        %10531 = vmatmul.bf16.gmra.mxu0 %v10224
        %v10532 = vpop.f32.mrf.mxu0
        %v10533 = vadd.f32 %v10294, %v10532
        %v10534 = vpop.f32.mrf.mxu0
        %v10535 = vadd.f32 %v10294, %v10534
        %10536 = vdwg.mxu0
        %10537 = vmatpush.bf16.msra.mxu0 %v10439
        %10538 = vmatpush.bf16.msra.mxu0 %v10438
        %10539 = vmatpush.bf16.msra.mxu0 %v10437
        %10540 = vmatpush.bf16.msra.mxu0 %v10436
        %10541 = vmatpush.bf16.msra.mxu0 %v10435
        %10542 = vmatpush.bf16.msra.mxu0 %v10434
        %10543 = vmatpush.bf16.msra.mxu0 %v10433
        %10544 = vmatpush.bf16.msra.mxu0 %v10432
        %10545 = vmatmul.bf16.gmra.mxu0 %v10197
        %v10546 = vpop.f32.mrf.mxu0
        %v10547 = vadd.f32 %v10498, %v10546
        %v10548 = vpop.f32.mrf.mxu0
        %v10549 = vadd.f32 %v10500, %v10548
        %10550 = vmatmul.bf16.gmra.mxu0 %v10201
        %v10551 = vpop.f32.mrf.mxu0
        %v10552 = vadd.f32 %v10503, %v10551
        %v10553 = vpop.f32.mrf.mxu0
        %v10554 = vadd.f32 %v10505, %v10553
        %10555 = vmatmul.bf16.gmra.mxu0 %v10205
        %v10556 = vpop.f32.mrf.mxu0
        %v10557 = vadd.f32 %v10508, %v10556
        %v10558 = vpop.f32.mrf.mxu0
        %v10559 = vadd.f32 %v10510, %v10558
        %10560 = vmatmul.bf16.gmra.mxu0 %v10209
        %v10561 = vpop.f32.mrf.mxu0
        %v10562 = vadd.f32 %v10513, %v10561
        %v10563 = vpop.f32.mrf.mxu0
        %v10564 = vadd.f32 %v10515, %v10563
        %10565 = vmatmul.bf16.gmra.mxu0 %v10213
        %v10566 = vpop.f32.mrf.mxu0
        %v10567 = vadd.f32 %v10518, %v10566
        %v10568 = vpop.f32.mrf.mxu0
        %v10569 = vadd.f32 %v10520, %v10568
        %10570 = vmatmul.bf16.gmra.mxu0 %v10217
        %v10571 = vpop.f32.mrf.mxu0
        %v10572 = vadd.f32 %v10523, %v10571
        %v10573 = vpop.f32.mrf.mxu0
        %v10574 = vadd.f32 %v10525, %v10573
        %10575 = vmatmul.bf16.gmra.mxu0 %v10221
        %v10576 = vpop.f32.mrf.mxu0
        %v10577 = vadd.f32 %v10528, %v10576
        %v10578 = vpop.f32.mrf.mxu0
        %v10579 = vadd.f32 %v10530, %v10578
        %10580 = vmatmul.bf16.gmra.mxu0 %v10225
        %v10581 = vpop.f32.mrf.mxu0
        %v10582 = vadd.f32 %v10533, %v10581
        %v10583 = vpop.f32.mrf.mxu0
        %v10584 = vadd.f32 %v10535, %v10583
        %10585 = vdwg.mxu0
        %10586 = vmatpush.bf16.msra.mxu0 %v10447
        %10587 = vmatpush.bf16.msra.mxu0 %v10446
        %10588 = vmatpush.bf16.msra.mxu0 %v10445
        %10589 = vmatpush.bf16.msra.mxu0 %v10444
        %10590 = vmatpush.bf16.msra.mxu0 %v10443
        %10591 = vmatpush.bf16.msra.mxu0 %v10442
        %10592 = vmatpush.bf16.msra.mxu0 %v10441
        %10593 = vmatpush.bf16.msra.mxu0 %v10440
        %10594 = vmatmul.bf16.gmra.mxu0 %v10198
        %v10595 = vpop.f32.mrf.mxu0
        %v10596 = vadd.f32 %v10547, %v10595
        %v10597 = vpop.f32.mrf.mxu0
        %v10598 = vadd.f32 %v10549, %v10597
        %10599 = vmatmul.bf16.gmra.mxu0 %v10202
        %v10600 = vpop.f32.mrf.mxu0
        %v10601 = vadd.f32 %v10552, %v10600
        %v10602 = vpop.f32.mrf.mxu0
        %v10603 = vadd.f32 %v10554, %v10602
        %10604 = vmatmul.bf16.gmra.mxu0 %v10206
        %v10605 = vpop.f32.mrf.mxu0
        %v10606 = vadd.f32 %v10557, %v10605
        %v10607 = vpop.f32.mrf.mxu0
        %v10608 = vadd.f32 %v10559, %v10607
        %10609 = vmatmul.bf16.gmra.mxu0 %v10210
        %v10610 = vpop.f32.mrf.mxu0
        %v10611 = vadd.f32 %v10562, %v10610
        %v10612 = vpop.f32.mrf.mxu0
        %v10613 = vadd.f32 %v10564, %v10612
        %10614 = vmatmul.bf16.gmra.mxu0 %v10214
        %v10615 = vpop.f32.mrf.mxu0
        %v10616 = vadd.f32 %v10567, %v10615
        %v10617 = vpop.f32.mrf.mxu0
        %v10618 = vadd.f32 %v10569, %v10617
        %10619 = vmatmul.bf16.gmra.mxu0 %v10218
        %v10620 = vpop.f32.mrf.mxu0
        %v10621 = vadd.f32 %v10572, %v10620
        %v10622 = vpop.f32.mrf.mxu0
        %v10623 = vadd.f32 %v10574, %v10622
        %10624 = vmatmul.bf16.gmra.mxu0 %v10222
        %v10625 = vpop.f32.mrf.mxu0
        %v10626 = vadd.f32 %v10577, %v10625
        %v10627 = vpop.f32.mrf.mxu0
        %v10628 = vadd.f32 %v10579, %v10627
        %10629 = vmatmul.bf16.gmra.mxu0 %v10226
        %v10630 = vpop.f32.mrf.mxu0
        %v10631 = vadd.f32 %v10582, %v10630
        %v10632 = vpop.f32.mrf.mxu0
        %v10633 = vadd.f32 %v10584, %v10632
        %10634 = vdwg.mxu0
        %10635 = vmatpush.bf16.msra.mxu0 %v10455
        %10636 = vmatpush.bf16.msra.mxu0 %v10454
        %10637 = vmatpush.bf16.msra.mxu0 %v10453
        %10638 = vmatpush.bf16.msra.mxu0 %v10452
        %10639 = vmatpush.bf16.msra.mxu0 %v10451
        %10640 = vmatpush.bf16.msra.mxu0 %v10450
        %10641 = vmatpush.bf16.msra.mxu0 %v10449
        %10642 = vmatpush.bf16.msra.mxu0 %v10448
        %10643 = vmatmul.bf16.gmra.mxu0 %v10199
        %v10644 = vpop.f32.mrf.mxu0
        %v10645 = vadd.f32 %v10596, %v10644
        %v10646 = vpop.f32.mrf.mxu0
        %v10647 = vadd.f32 %v10598, %v10646
        %10648 = vmatmul.bf16.gmra.mxu0 %v10203
        %v10649 = vpop.f32.mrf.mxu0
        %v10650 = vadd.f32 %v10601, %v10649
        %v10651 = vpop.f32.mrf.mxu0
        %v10652 = vadd.f32 %v10603, %v10651
        %10653 = vmatmul.bf16.gmra.mxu0 %v10207
        %v10654 = vpop.f32.mrf.mxu0
        %v10655 = vadd.f32 %v10606, %v10654
        %v10656 = vpop.f32.mrf.mxu0
        %v10657 = vadd.f32 %v10608, %v10656
        %10658 = vmatmul.bf16.gmra.mxu0 %v10211
        %v10659 = vpop.f32.mrf.mxu0
        %v10660 = vadd.f32 %v10611, %v10659
        %v10661 = vpop.f32.mrf.mxu0
        %v10662 = vadd.f32 %v10613, %v10661
        %10663 = vmatmul.bf16.gmra.mxu0 %v10215
        %v10664 = vpop.f32.mrf.mxu0
        %v10665 = vadd.f32 %v10616, %v10664
        %v10666 = vpop.f32.mrf.mxu0
        %v10667 = vadd.f32 %v10618, %v10666
        %10668 = vmatmul.bf16.gmra.mxu0 %v10219
        %v10669 = vpop.f32.mrf.mxu0
        %v10670 = vadd.f32 %v10621, %v10669
        %v10671 = vpop.f32.mrf.mxu0
        %v10672 = vadd.f32 %v10623, %v10671
        %10673 = vmatmul.bf16.gmra.mxu0 %v10223
        %v10674 = vpop.f32.mrf.mxu0
        %v10675 = vadd.f32 %v10626, %v10674
        %v10676 = vpop.f32.mrf.mxu0
        %v10677 = vadd.f32 %v10628, %v10676
        %10678 = vmatmul.bf16.gmra.mxu0 %v10227
        %v10679 = vpop.f32.mrf.mxu0
        %v10680 = vadd.f32 %v10631, %v10679
        %v10681 = vpop.f32.mrf.mxu0
        %v10682 = vadd.f32 %v10633, %v10681
        %10683 = vdwg.mxu0
        %v10684 = vadd.f32 %v10645, %v8378
        %v10685 = vadd.f32 %v10647, %v8379
        %v10686 = vadd.f32 %v10650, %v8380
        %v10687 = vadd.f32 %v10652, %v8381
        %v10688 = vadd.f32 %v10655, %v8382
        %v10689 = vadd.f32 %v10657, %v8383
        %v10690 = vadd.f32 %v10660, %v8384
        %v10691 = vadd.f32 %v10662, %v8385
        %v10692 = vadd.f32 %v10665, %v8386
        %v10693 = vadd.f32 %v10667, %v8387
        %v10694 = vadd.f32 %v10670, %v8388
        %v10695 = vadd.f32 %v10672, %v8389
        %v10696 = vadd.f32 %v10675, %v8390
        %v10697 = vadd.f32 %v10677, %v8391
        %v10698 = vadd.f32 %v10680, %v8392
        %v10699 = vadd.f32 %v10682, %v8393
        %10700 = vst [vmem:[%s936] sm:$0xff] %v10684
        %10701 = vst [vmem:[%s936 + $0x8] sm:$0xff] %v10685
        %10702 = vst [vmem:[%s936 + $0x10] sm:$0xff] %v10686
        %10703 = vst [vmem:[%s936 + $0x18] sm:$0xff] %v10687
        %10704 = vst [vmem:[%s936 + $0x20] sm:$0xff] %v10688
        %10705 = vst [vmem:[%s936 + $0x28] sm:$0xff] %v10689
        %10706 = vst [vmem:[%s936 + $0x30] sm:$0xff] %v10690
        %10707 = vst [vmem:[%s936 + $0x38] sm:$0xff] %v10691
        %10708 = vst [vmem:[%s936 + $0x40] sm:$0xff] %v10692
        %10709 = vst [vmem:[%s936 + $0x48] sm:$0xff] %v10693
        %10710 = vst [vmem:[%s936 + $0x50] sm:$0xff] %v10694
        %10711 = vst [vmem:[%s936 + $0x58] sm:$0xff] %v10695
        %10712 = vst [vmem:[%s936 + $0x60] sm:$0xff] %v10696
        %10713 = vst [vmem:[%s936 + $0x68] sm:$0xff] %v10697
        %10714 = vst [vmem:[%s936 + $0x70] sm:$0xff] %v10698
        %10715 = vst [vmem:[%s936 + $0x78] sm:$0xff] %v10699
        %s10716 = sand.u32 %s573, 1
        %s10717 = scalar_lea.sflag [#allocation4], %s10716
        %s10718 = sand.u32 %s573, 1
        %s10719 = smul.addr %s10718, 128
        %s10720 = scalar_lea.vmem [#allocation19], %s10719
        // Predicated region
        $region157: #{expression_attention_transformer_block.1} parent=115 // pred_check
          %p10721 = pneg %p583
        $region158: #{expression_attention_transformer_block.1} parent=115 // pred_check_branch
          %10723 = sbr.rel (%p10721) target = $region160
        $region159: #{expression_attention_transformer_block.1} parent=115 // pred_region
          %10725 = vsyncadd %s10717, 0
          %s10726 = smul.addr %s46, 16
          %s10727 = smul.addr %s10726, 8
          %s10728 = scalar_lea.hbm %s24, %s10727
          %s10729 = sshll.u32 %s10720, 4
          %s10730 = int_to_ptr.vmem [resolvable:$true] %s10729
          %s10731 = sshll.u32 %s10728, 4
          %s10732 = int_to_ptr.hbm [resolvable:$true] %s10731
          %10737 = dma.vmem_to_hbm [thread:$0]  %s10730, 2048, %s10732, %s10717, 128, 128, 8
        $region160: #{expression_attention_transformer_block.1} parent=115 // pred_fallthru
          _
      $region116: #{expression_attention_transformer_block.1} parent=5 // pred_fallthru
        _
      %p10738 = scmp.le.s32.totalorder 2, %s41
      // Predicated region
      $region161: #{expression_attention_transformer_block.1} parent=5 // pred_check
        %p10739 = pneg %p10738
      $region162: #{expression_attention_transformer_block.1} parent=5 // pred_check_branch
        %10741 = sbr.rel (%p10739) target = $region164
      $region163: #{expression_attention_transformer_block.1} parent=5 // pred_region
        %s10742 = ssub.s32 %s41, 2
        // Predicated region
        $region165: #{expression_attention_transformer_block.1} parent=163 // pred_check
          %p10743 = pneg %p589
        $region166: #{expression_attention_transformer_block.1} parent=163 // pred_check_branch
          %10745 = sbr.rel (%p10743) target = $region168
        $region167: #{expression_attention_transformer_block.1} parent=163 // pred_region
          %s10746 = sand.u32 %s574, 1
          %s10747 = scalar_lea.sflag [#allocation4], %s10746
          %s10748 = sand.u32 %s574, 1
          %s10749 = smul.addr %s10748, 128
          %s10750 = scalar_lea.vmem [#allocation19], %s10749
          %10752 = dma.done %s10747, 2048
        $region168: #{expression_attention_transformer_block.1} parent=163 // pred_fallthru
          _
      $region164: #{expression_attention_transformer_block.1} parent=5 // pred_fallthru
        _
    $region6: #{expression_attention_transformer_block.1} parent=1 // loop_footer
      %s45 = sadd.s32 1, %s41
    $region7: #{expression_attention_transformer_block.1} parent=1 // loop_footer_branch
      %40 = sbr.rel target = $region3
    $region8: #{expression_attention_transformer_block.1} parent=1 // loop_exit
      _
    %10753 = vsyncpa [#allocation3], 1
    %s10754 = scalar_lea.sflag [#allocation3], 1
    %10755 = vsyncpa %s10754, 1
    %10756 = vsyncpa [#allocation6], 1
    %10757 = vsyncpa [#allocation9], 1
    %10758 = vsyncpa [#allocation12], 1
    %10759 = vsyncpa [#allocation15], 1
    %10760 = vsyncpa [#allocation18], 1
    %10761 = vsyncpa [#allocation4], 1
    %s10762 = scalar_lea.sflag [#allocation4], 1
    %10763 = vsyncpa %s10762, 1

</llo_original>
